<compile_context>
chip_gen: v7x
topology: tpu7x:2x2x1
jax: 0.10.0
libtpu: 0.0.40
codegen_flags: <defaults>
</compile_context>

<pallas_src>
import functools

import jax
import jax.numpy as jnp
from jax.experimental import pallas as pl
from jax.experimental.pallas import tpu as pltpu


def _round_up(x, m):
    return ((x + m - 1) // m) * m


# ------------------------------ fused kernel --------------------------------

def _block_kernel(x_ref, w1_ref, b1_ref, w2_ref, b2_ref, wres_ref, bres_ref,
                  o_ref, xp, y1p, y2s, res_s, *, H, W, rows, slope):
    """Whole DiscriminatorBlock for one image, entirely in VMEM.

    x_ref   : (1, H, W, Cin)      bf16 input image
    w1_ref  : (9, Cin, Cout)      bf16 conv1 data taps
    b1_ref  : (1, H, W, Cout)     f32  conv1 channel bias + coord term
    w2_ref  : (9, Cout, Cp)       bf16 conv2 data taps (x 0.25, pool folded)
    b2_ref  : (1, H, W, Cp)       f32  conv2 bias + coord term (x 0.25)
    wres_ref: (Cin, Cp)           bf16 residual 1x1 weights
    bres_ref: (1, oh, ow, Cp)     f32  residual bias + coord term
    o_ref   : (1, oh, ow, Cp)     f32  block output (zero-padded lanes)
    xp      : (H+2, W+2, Cin)     bf16 zero-padded input scratch
    y1p     : (H+2, W+2, Cout)    bf16 zero-padded y1 scratch (real channels)
    y2s     : (oh, 2*W, Cp)       f32  y2 rows, pooling source
    res_s   : (oh, 2*W, Cp)       f32  full-resolution residual map
    """
    cin = xp.shape[-1]
    cout = y1p.shape[-1]
    cp = o_ref.shape[-1]
    oh, ow = H // 2, W // 2
    hw = H * W
    mchunk = rows * W
    nchunk = H // rows

    def lrelu(v):
        return jnp.where(v > 0, v, slope * v)

    # Zero-padded tiles.  Re-zeroing is a few KiB per step (only the 1-pixel
    # borders actually need it) and keeps the kernel correct regardless of how
    # the "parallel" batch axis is split across TensorCores.
    xp[...] = jnp.zeros_like(xp)
    y1p[...] = jnp.zeros_like(y1p)
    xp[1:H + 1, 1:W + 1, :] = x_ref[0]

    # ---- residual branch: 1x1 CoordConv at full resolution (tiny K=cin
    # matmul); stride-2 sampled from VMEM at the end. ----
    resf = jnp.dot(x_ref[0].reshape(hw, cin), wres_ref[...],
                   preferred_element_type=jnp.float32)            # (hw, cp)
    res_s[...] = resf.reshape(oh, 2 * W, cp)

    # ---- conv1 (3x3, pad=1) + LeakyReLU: register accumulation, one store
    # per 128-row chunk (no accumulator read-modify-writes). ----
    for ci in range(nchunk):                                       # static
        h0 = ci * rows
        acc = b1_ref[0, h0:h0 + rows, :, :].reshape(mchunk, cout)  # f32 init
        for t in range(9):                                         # static
            dy, dx = divmod(t, 3)
            tap = xp[h0 + dy:h0 + dy + rows, dx:dx + W, :].reshape(mchunk, cin)
            acc = acc + jnp.dot(tap, w1_ref[t],
                                preferred_element_type=jnp.float32)
        y1p[1 + h0:1 + h0 + rows, 1:W + 1, :] = (
            lrelu(acc).reshape(rows, W, cout).astype(y1p.dtype))

    # ---- conv2 (3x3, pad=1) + LeakyReLU.  AvgPool's 0.25 is pre-folded into
    # w2 / b2, so the pooling below is pure adds. ----
    for ci in range(nchunk):
        h0 = ci * rows
        acc = b2_ref[0, h0:h0 + rows, :, :].reshape(mchunk, cp)
        for t in range(9):
            dy, dx = divmod(t, 3)
            tap = y1p[h0 + dy:h0 + dy + rows, dx:dx + W, :].reshape(mchunk, cout)
            acc = acc + jnp.dot(tap, w2_ref[t],
                                preferred_element_type=jnp.float32)
        y2s[h0 // 2:h0 // 2 + rows // 2, :, :] = (
            lrelu(acc).reshape(rows // 2, 2 * W, cp))

    # ---- 2x2 sum pool (scale folded) + stride-2 residual + residual bias ----
    pooled = (y2s[:, pl.ds(0, ow, 2), :] + y2s[:, pl.ds(1, ow, 2), :]
              + y2s[:, pl.ds(W, ow, 2), :] + y2s[:, pl.ds(W + 1, ow, 2), :])
    res = res_s[:, pl.ds(0, ow, 2), :]
    o_ref[...] = (pooled + res + bres_ref[0])[None].astype(o_ref.dtype)


# --------------------------- parameter preprocessing --------------------------

def _coord_maps(H, W, dtype=jnp.float32):
    # Matches get_grid(): xx varies along H, yy along W, both in [-1, 1].
    xi = (jnp.arange(H, dtype=dtype) / (H - 1)) * 2.0 - 1.0
    yj = (jnp.arange(W, dtype=dtype) / (W - 1)) * 2.0 - 1.0
    xx = jnp.broadcast_to(xi[:, None], (H, W))
    yy = jnp.broadcast_to(yj[None, :], (H, W))
    return xx, yy


def _prep_conv3x3(w_oihw, b, cin_data, out_cols, xx, yy, scale=1.0):
    """CoordConv3x3 -> bf16 per-tap data weights + f32 per-pixel bias map."""
    cout = w_oihw.shape[0]
    H, W = xx.shape
    # Data taps: OIHW -> (kh, kw, cin, cout) -> (9, cin, cout); pad out cols.
    wd = jnp.transpose(w_oihw[:, :cin_data], (2, 3, 1, 0)).reshape(9, cin_data, cout)
    wd = jnp.pad(wd * scale, ((0, 0), (0, 0), (0, out_cols - cout)))
    # Coordinate channels folded into a batch-independent (1,H,W,out) bias map.
    wc = jnp.transpose(w_oihw[:, cin_data:cin_data + 2], (2, 3, 1, 0)).reshape(9, 2, cout)
    coords = jnp.pad(jnp.stack([xx, yy], axis=-1), ((1, 1), (1, 1), (0, 0)))
    patches = jnp.stack([coords[dy:dy + H, dx:dx + W]
                         for dy in range(3) for dx in range(3)], axis=2)   # (H,W,9,2)
    bias_map = (jnp.einsum('hwtc,tco->hwo', patches, wc) + b) * scale
    bias_map = jnp.pad(bias_map, ((0, 0), (0, 0), (0, out_cols - cout)))
    return wd.astype(jnp.bfloat16), bias_map[None].astype(jnp.float32)


def _prep_res(w_oihw, b, cin_data, cp, xx, yy):
    """1x1 stride-2 CoordConv -> bf16 (Cin,Cp) weights + f32 (1,oh,ow,Cp) bias map."""
    cout = w_oihw.shape[0]
    wd = jnp.transpose(w_oihw[:, :cin_data, 0, 0], (1, 0))                 # (cin, cout)
    wd = jnp.pad(wd, ((0, 0), (0, cp - cout))).astype(jnp.bfloat16)
    wc = w_oihw[:, cin_data:cin_data + 2, 0, 0]                            # (cout, 2)
    bias_map = (xx[::2, ::2][..., None] * wc[:, 0]
                + yy[::2, ::2][..., None] * wc[:, 1] + b)                  # (oh, ow, cout)
    bias_map = jnp.pad(bias_map, ((0, 0), (0, 0), (0, cp - cout)))
    return wd, bias_map[None].astype(jnp.float32)


# --------------------------------- forward ----------------------------------

def discriminator_block_forward(x_nchw, params):
    N, C, H, W = x_nchw.shape
    cout = params["b_res"].shape[0]
    cp = _round_up(cout, 128)          # lane-dense output channels
    oh, ow = H // 2, W // 2
    rows = 8 if H % 8 == 0 else H      # spatial rows per M-chunk (M = rows*W)
    assert H % 2 == 0 and W % 2 == 0 and H % rows == 0 and rows % 2 == 0

    xx, yy = _coord_maps(H, W)
    x = jnp.transpose(x_nchw, (0, 2, 3, 1)).astype(jnp.bfloat16)   # NHWC bf16

    # bf16 data taps + f32 coord/channel bias maps; AvgPool's 1/4 folded into
    # conv2 (lrelu(z/4) == lrelu(z)/4).
    w1, b1 = _prep_conv3x3(params["w1"], params["b1"], C, cout, xx, yy)
    w2, b2 = _prep_conv3x3(params["w2"], params["b2"], cout, cp, xx, yy, scale=0.25)
    wres, bres = _prep_res(params["w_res"], params["b_res"], C, cp, xx, yy)

    kernel = functools.partial(_block_kernel, H=H, W=W, rows=rows, slope=0.2)
    out = pl.pallas_call(
        kernel,
        out_shape=jax.ShapeDtypeStruct((N, oh, ow, cp), jnp.float32),
        grid=(N,),
        in_specs=[
            pl.BlockSpec((1, H, W, C), lambda n: (n, 0, 0, 0)),
            pl.BlockSpec((9, C, cout), lambda n: (0, 0, 0)),
            pl.BlockSpec((1, H, W, cout), lambda n: (0, 0, 0, 0)),
            pl.BlockSpec((9, cout, cp), lambda n: (0, 0, 0)),
            pl.BlockSpec((1, H, W, cp), lambda n: (0, 0, 0, 0)),
            pl.BlockSpec((C, cp), lambda n: (0, 0)),
            pl.BlockSpec((1, oh, ow, cp), lambda n: (0, 0, 0, 0)),
        ],
        out_specs=pl.BlockSpec((1, oh, ow, cp), lambda n: (n, 0, 0, 0)),
        scratch_shapes=[
            pltpu.VMEM((H + 2, W + 2, C), jnp.bfloat16),     # padded input
            pltpu.VMEM((H + 2, W + 2, cout), jnp.bfloat16),  # padded y1 (real C)
            pltpu.VMEM((oh, 2 * W, cp), jnp.float32),        # y2 (pool source)
            pltpu.VMEM((oh, 2 * W, cp), jnp.float32),        # full-res residual
        ],
        compiler_params=pltpu.CompilerParams(dimension_semantics=("parallel",)),
    )(x, w1, b1, w2, b2, wres, bres)

    return jnp.transpose(out[..., :cout], (0, 3, 1, 2))             # NCHW f32


# --------------------------- reference (pure JAX) ---------------------------

def _ref_forward(x_nchw, params):
    def addc(t):
        nb, _, hh, ww = t.shape
        xi = (jnp.arange(hh, dtype=t.dtype) / (hh - 1)) * 2 - 1
        yj = (jnp.arange(ww, dtype=t.dtype) / (ww - 1)) * 2 - 1
        xx = jnp.broadcast_to(xi[:, None], (hh, ww))[None, None]
        yy = jnp.broadcast_to(yj[None, :], (hh, ww))[None, None]
        xx = jnp.broadcast_to(xx, (nb, 1, hh, ww))
        yy = jnp.broadcast_to(yy, (nb, 1, hh, ww))
        return jnp.concatenate([t, xx, yy], axis=1)

    def conv(t, wgt, b, stride=1, pad=0):
        out = jax.lax.conv_general_dilated(
            t, wgt, (stride, stride), [(pad, pad), (pad, pad)],
            dimension_numbers=("NCHW", "OIHW", "NCHW"))
        return out + b[None, :, None, None]

    res = conv(addc(x_nchw), params["w_res"], params["b_res"], stride=2)
    y = conv(addc(x_nchw), params["w1"], params["b1"], pad=1)
    y = jnp.where(y > 0, y, 0.2 * y)
    y = conv(addc(y), params["w2"], params["b2"], pad=1)
    y = jnp.where(y > 0, y, 0.2 * y)
    nb, cc, hh, ww = y.shape
    y = y.reshape(nb, cc, hh // 2, 2, ww // 2, 2).mean(axis=(3, 5))
    return y + res


# ----------------------------------- main -----------------------------------

if __name__ == "__main__":
    key = jax.random.PRNGKey(0)
    N, DIM, DIM_OUT, H, W = 2, 4, 8, 16, 16

    k = jax.random.split(key, 7)
    params = {
        "w_res": jax.random.normal(k[0], (DIM_OUT, DIM + 2, 1, 1), jnp.float32) * 0.1,
        "b_res": jax.random.normal(k[1], (DIM_OUT,), jnp.float32) * 0.1,
        "w1":    jax.random.normal(k[2], (DIM_OUT, DIM + 2, 3, 3), jnp.float32) * 0.1,
        "b1":    jax.random.normal(k[3], (DIM_OUT,), jnp.float32) * 0.1,
        "w2":    jax.random.normal(k[4], (DIM_OUT, DIM_OUT + 2, 3, 3), jnp.float32) * 0.1,
        "b2":    jax.random.normal(k[5], (DIM_OUT,), jnp.float32) * 0.1,
    }
    x = jax.random.normal(k[6], (N, DIM, H, W), jnp.float32)

    out = jax.jit(discriminator_block_forward)(x, params)
    out = jax.block_until_ready(out)
    assert out.shape == (N, DIM_OUT, H // 2, W // 2), out.shape

    ref = jax.block_until_ready(_ref_forward(x, params))
    # bf16 matmul operands (f32 accumulation) -> loosened tolerance vs f32 ref.
    assert jnp.allclose(out, ref, rtol=5e-2, atol=5e-2), \
        float(jnp.max(jnp.abs(out - ref)))

    print("KERNEL_OK")
</pallas_src>

<mosaic_0001>
module attributes {stable_mosaic.version = 11 : i64} {
  func.func @_block_kernel(%arg0: i32, %arg1: memref<1x16x16x4xbf16, #tpu.memory_space<vmem>>, %arg2: memref<9x4x8xbf16, #tpu.memory_space<vmem>>, %arg3: memref<1x16x16x8xf32, #tpu.memory_space<vmem>>, %arg4: memref<9x8x128xbf16, #tpu.memory_space<vmem>>, %arg5: memref<1x16x16x128xf32, #tpu.memory_space<vmem>>, %arg6: memref<4x128xbf16, #tpu.memory_space<vmem>>, %arg7: memref<1x8x8x128xf32, #tpu.memory_space<vmem>>, %arg8: memref<1x8x8x128xf32, #tpu.memory_space<vmem>>, %arg9: memref<18x18x4xbf16, #tpu.memory_space<vmem>>, %arg10: memref<18x18x8xbf16, #tpu.memory_space<vmem>>, %arg11: memref<8x32x128xf32, #tpu.memory_space<vmem>>, %arg12: memref<8x32x128xf32, #tpu.memory_space<vmem>>) attributes {dimension_semantics = [#tpu.dimension_semantics<parallel>], iteration_bounds = array<i64: 2>, scalar_prefetch = 0 : i64, scratch_operands = 4 : i64, tpu.core_type = #tpu.core_type<tc>, window_params = [{transform_indices = @transform_0, window_bounds = array<i64: 1, 16, 16, 4>}, {pipeline_mode = #tpu.pipeline_mode<synchronous>, transform_indices = @transform_1, window_bounds = array<i64: 9, 4, 8>}, {pipeline_mode = #tpu.pipeline_mode<synchronous>, transform_indices = @transform_2, window_bounds = array<i64: 1, 16, 16, 8>}, {pipeline_mode = #tpu.pipeline_mode<synchronous>, transform_indices = @transform_3, window_bounds = array<i64: 9, 8, 128>}, {pipeline_mode = #tpu.pipeline_mode<synchronous>, transform_indices = @transform_4, window_bounds = array<i64: 1, 16, 16, 128>}, {pipeline_mode = #tpu.pipeline_mode<synchronous>, transform_indices = @transform_5, window_bounds = array<i64: 4, 128>}, {pipeline_mode = #tpu.pipeline_mode<synchronous>, transform_indices = @transform_6, window_bounds = array<i64: 1, 8, 8, 128>}, {transform_indices = @transform_7, window_bounds = array<i64: 1, 8, 8, 128>}]} {
    %cst = arith.constant 0.000000e+00 : bf16
    %0 = vector.broadcast %cst : bf16 to vector<18x18x4xbf16>
    %c0 = arith.constant 0 : index
    %c0_0 = arith.constant 0 : index
    %c0_1 = arith.constant 0 : index
    %1 = vector.load %arg9[%c0, %c0_0, %c0_1] : memref<18x18x4xbf16, #tpu.memory_space<vmem>>, vector<18x18x4xbf16>
    tpu.vector_store %arg9[%c0, %c0_0, %c0_1], %0 {strides = array<i32>} : memref<18x18x4xbf16, #tpu.memory_space<vmem>>, vector<18x18x4xbf16>,
    %cst_2 = arith.constant 0.000000e+00 : bf16
    %2 = vector.broadcast %cst_2 : bf16 to vector<18x18x8xbf16>
    %c0_3 = arith.constant 0 : index
    %c0_4 = arith.constant 0 : index
    %c0_5 = arith.constant 0 : index
    %3 = vector.load %arg10[%c0_3, %c0_4, %c0_5] : memref<18x18x8xbf16, #tpu.memory_space<vmem>>, vector<18x18x8xbf16>
    tpu.vector_store %arg10[%c0_3, %c0_4, %c0_5], %2 {strides = array<i32>} : memref<18x18x8xbf16, #tpu.memory_space<vmem>>, vector<18x18x8xbf16>,
    %c0_6 = arith.constant 0 : index
    %c0_7 = arith.constant 0 : index
    %c0_8 = arith.constant 0 : index
    %c0_9 = arith.constant 0 : index
    %4 = vector.load %arg1[%c0_6, %c0_7, %c0_8, %c0_9] : memref<1x16x16x4xbf16, #tpu.memory_space<vmem>>, vector<1x16x16x4xbf16>
    %5 = vector.shape_cast %4 : vector<1x16x16x4xbf16> to vector<16x16x4xbf16>
    %c1 = arith.constant 1 : index
    %c1_10 = arith.constant 1 : index
    %c0_11 = arith.constant 0 : index
    %6 = vector.load %arg9[%c1, %c1_10, %c0_11] : memref<18x18x4xbf16, #tpu.memory_space<vmem>>, vector<16x16x4xbf16>
    tpu.vector_store %arg9[%c1, %c1_10, %c0_11], %5 {strides = array<i32>} : memref<18x18x4xbf16, #tpu.memory_space<vmem>>, vector<16x16x4xbf16>,
    %c0_12 = arith.constant 0 : index
    %c0_13 = arith.constant 0 : index
    %c0_14 = arith.constant 0 : index
    %c0_15 = arith.constant 0 : index
    %7 = vector.load %arg1[%c0_12, %c0_13, %c0_14, %c0_15] : memref<1x16x16x4xbf16, #tpu.memory_space<vmem>>, vector<1x16x16x4xbf16>
    %8 = vector.shape_cast %7 : vector<1x16x16x4xbf16> to vector<16x16x4xbf16>
    %9 = vector.shape_cast %8 : vector<16x16x4xbf16> to vector<256x4xbf16>
    %c0_16 = arith.constant 0 : index
    %c0_17 = arith.constant 0 : index
    %10 = vector.load %arg6[%c0_16, %c0_17] : memref<4x128xbf16, #tpu.memory_space<vmem>>, vector<4x128xbf16>
    %cst_18 = arith.constant dense<0.000000e+00> : vector<256x128xf32>
    %11 = tpu.matmul %9, %10, %cst_18 {dimension_numbers = #tpu.dot_dimension_numbers<[1], [0], [0], [1], [0, 0, 1, 1], [], []>} : vector<256x4xbf16>, vector<4x128xbf16>, vector<256x128xf32> -> vector<256x128xf32>
    %12 = vector.shape_cast %11 : vector<256x128xf32> to vector<8x32x128xf32>
    %c0_19 = arith.constant 0 : index
    %c0_20 = arith.constant 0 : index
    %c0_21 = arith.constant 0 : index
    %13 = vector.load %arg12[%c0_19, %c0_20, %c0_21] : memref<8x32x128xf32, #tpu.memory_space<vmem>>, vector<8x32x128xf32>
    tpu.vector_store %arg12[%c0_19, %c0_20, %c0_21], %12 {strides = array<i32>} : memref<8x32x128xf32, #tpu.memory_space<vmem>>, vector<8x32x128xf32>,
    %c0_22 = arith.constant 0 : index
    %c0_23 = arith.constant 0 : index
    %c0_24 = arith.constant 0 : index
    %c0_25 = arith.constant 0 : index
    %14 = vector.load %arg3[%c0_22, %c0_23, %c0_24, %c0_25] : memref<1x16x16x8xf32, #tpu.memory_space<vmem>>, vector<1x8x16x8xf32>
    %15 = vector.shape_cast %14 : vector<1x8x16x8xf32> to vector<8x16x8xf32>
    %16 = vector.shape_cast %15 : vector<8x16x8xf32> to vector<128x8xf32>
    %c0_26 = arith.constant 0 : index
    %c0_27 = arith.constant 0 : index
    %c0_28 = arith.constant 0 : index
    %17 = vector.load %arg9[%c0_26, %c0_27, %c0_28] : memref<18x18x4xbf16, #tpu.memory_space<vmem>>, vector<8x16x4xbf16>
    %18 = vector.shape_cast %17 : vector<8x16x4xbf16> to vector<128x4xbf16>
    %c0_29 = arith.constant 0 : index
    %c0_30 = arith.constant 0 : index
    %c0_31 = arith.constant 0 : index
    %19 = vector.load %arg2[%c0_29, %c0_30, %c0_31] : memref<9x4x8xbf16, #tpu.memory_space<vmem>>, vector<1x4x8xbf16>
    %20 = vector.shape_cast %19 : vector<1x4x8xbf16> to vector<4x8xbf16>
    %cst_32 = arith.constant dense<0.000000e+00> : vector<128x8xf32>
    %21 = tpu.matmul %18, %20, %cst_32 {dimension_numbers = #tpu.dot_dimension_numbers<[1], [0], [0], [1], [0, 0, 1, 1], [], []>} : vector<128x4xbf16>, vector<4x8xbf16>, vector<128x8xf32> -> vector<128x8xf32>
    %22 = arith.addf %16, %21 : vector<128x8xf32>
    %c0_33 = arith.constant 0 : index
    %c1_34 = arith.constant 1 : index
    %c0_35 = arith.constant 0 : index
    %23 = vector.load %arg9[%c0_33, %c1_34, %c0_35] : memref<18x18x4xbf16, #tpu.memory_space<vmem>>, vector<8x16x4xbf16>
    %24 = vector.shape_cast %23 : vector<8x16x4xbf16> to vector<128x4xbf16>
    %c1_36 = arith.constant 1 : index
    %c0_37 = arith.constant 0 : index
    %c0_38 = arith.constant 0 : index
    %25 = vector.load %arg2[%c1_36, %c0_37, %c0_38] : memref<9x4x8xbf16, #tpu.memory_space<vmem>>, vector<1x4x8xbf16>
    %26 = vector.shape_cast %25 : vector<1x4x8xbf16> to vector<4x8xbf16>
    %cst_39 = arith.constant dense<0.000000e+00> : vector<128x8xf32>
    %27 = tpu.matmul %24, %26, %cst_39 {dimension_numbers = #tpu.dot_dimension_numbers<[1], [0], [0], [1], [0, 0, 1, 1], [], []>} : vector<128x4xbf16>, vector<4x8xbf16>, vector<128x8xf32> -> vector<128x8xf32>
    %28 = arith.addf %22, %27 : vector<128x8xf32>
    %c0_40 = arith.constant 0 : index
    %c2 = arith.constant 2 : index
    %c0_41 = arith.constant 0 : index
    %29 = vector.load %arg9[%c0_40, %c2, %c0_41] : memref<18x18x4xbf16, #tpu.memory_space<vmem>>, vector<8x16x4xbf16>
    %30 = vector.shape_cast %29 : vector<8x16x4xbf16> to vector<128x4xbf16>
    %c2_42 = arith.constant 2 : index
    %c0_43 = arith.constant 0 : index
    %c0_44 = arith.constant 0 : index
    %31 = vector.load %arg2[%c2_42, %c0_43, %c0_44] : memref<9x4x8xbf16, #tpu.memory_space<vmem>>, vector<1x4x8xbf16>
    %32 = vector.shape_cast %31 : vector<1x4x8xbf16> to vector<4x8xbf16>
    %cst_45 = arith.constant dense<0.000000e+00> : vector<128x8xf32>
    %33 = tpu.matmul %30, %32, %cst_45 {dimension_numbers = #tpu.dot_dimension_numbers<[1], [0], [0], [1], [0, 0, 1, 1], [], []>} : vector<128x4xbf16>, vector<4x8xbf16>, vector<128x8xf32> -> vector<128x8xf32>
    %34 = arith.addf %28, %33 : vector<128x8xf32>
    %c1_46 = arith.constant 1 : index
    %c0_47 = arith.constant 0 : index
    %c0_48 = arith.constant 0 : index
    %35 = vector.load %arg9[%c1_46, %c0_47, %c0_48] : memref<18x18x4xbf16, #tpu.memory_space<vmem>>, vector<8x16x4xbf16>
    %36 = vector.shape_cast %35 : vector<8x16x4xbf16> to vector<128x4xbf16>
    %c3 = arith.constant 3 : index
    %c0_49 = arith.constant 0 : index
    %c0_50 = arith.constant 0 : index
    %37 = vector.load %arg2[%c3, %c0_49, %c0_50] : memref<9x4x8xbf16, #tpu.memory_space<vmem>>, vector<1x4x8xbf16>
    %38 = vector.shape_cast %37 : vector<1x4x8xbf16> to vector<4x8xbf16>
    %cst_51 = arith.constant dense<0.000000e+00> : vector<128x8xf32>
    %39 = tpu.matmul %36, %38, %cst_51 {dimension_numbers = #tpu.dot_dimension_numbers<[1], [0], [0], [1], [0, 0, 1, 1], [], []>} : vector<128x4xbf16>, vector<4x8xbf16>, vector<128x8xf32> -> vector<128x8xf32>
    %40 = arith.addf %34, %39 : vector<128x8xf32>
    %c1_52 = arith.constant 1 : index
    %c1_53 = arith.constant 1 : index
    %c0_54 = arith.constant 0 : index
    %41 = vector.load %arg9[%c1_52, %c1_53, %c0_54] : memref<18x18x4xbf16, #tpu.memory_space<vmem>>, vector<8x16x4xbf16>
    %42 = vector.shape_cast %41 : vector<8x16x4xbf16> to vector<128x4xbf16>
    %c4 = arith.constant 4 : index
    %c0_55 = arith.constant 0 : index
    %c0_56 = arith.constant 0 : index
    %43 = vector.load %arg2[%c4, %c0_55, %c0_56] : memref<9x4x8xbf16, #tpu.memory_space<vmem>>, vector<1x4x8xbf16>
    %44 = vector.shape_cast %43 : vector<1x4x8xbf16> to vector<4x8xbf16>
    %cst_57 = arith.constant dense<0.000000e+00> : vector<128x8xf32>
    %45 = tpu.matmul %42, %44, %cst_57 {dimension_numbers = #tpu.dot_dimension_numbers<[1], [0], [0], [1], [0, 0, 1, 1], [], []>} : vector<128x4xbf16>, vector<4x8xbf16>, vector<128x8xf32> -> vector<128x8xf32>
    %46 = arith.addf %40, %45 : vector<128x8xf32>
    %c1_58 = arith.constant 1 : index
    %c2_59 = arith.constant 2 : index
    %c0_60 = arith.constant 0 : index
    %47 = vector.load %arg9[%c1_58, %c2_59, %c0_60] : memref<18x18x4xbf16, #tpu.memory_space<vmem>>, vector<8x16x4xbf16>
    %48 = vector.shape_cast %47 : vector<8x16x4xbf16> to vector<128x4xbf16>
    %c5 = arith.constant 5 : index
    %c0_61 = arith.constant 0 : index
    %c0_62 = arith.constant 0 : index
    %49 = vector.load %arg2[%c5, %c0_61, %c0_62] : memref<9x4x8xbf16, #tpu.memory_space<vmem>>, vector<1x4x8xbf16>
    %50 = vector.shape_cast %49 : vector<1x4x8xbf16> to vector<4x8xbf16>
    %cst_63 = arith.constant dense<0.000000e+00> : vector<128x8xf32>
    %51 = tpu.matmul %48, %50, %cst_63 {dimension_numbers = #tpu.dot_dimension_numbers<[1], [0], [0], [1], [0, 0, 1, 1], [], []>} : vector<128x4xbf16>, vector<4x8xbf16>, vector<128x8xf32> -> vector<128x8xf32>
    %52 = arith.addf %46, %51 : vector<128x8xf32>
    %c2_64 = arith.constant 2 : index
    %c0_65 = arith.constant 0 : index
    %c0_66 = arith.constant 0 : index
    %53 = vector.load %arg9[%c2_64, %c0_65, %c0_66] : memref<18x18x4xbf16, #tpu.memory_space<vmem>>, vector<8x16x4xbf16>
    %54 = vector.shape_cast %53 : vector<8x16x4xbf16> to vector<128x4xbf16>
    %c6 = arith.constant 6 : index
    %c0_67 = arith.constant 0 : index
    %c0_68 = arith.constant 0 : index
    %55 = vector.load %arg2[%c6, %c0_67, %c0_68] : memref<9x4x8xbf16, #tpu.memory_space<vmem>>, vector<1x4x8xbf16>
    %56 = vector.shape_cast %55 : vector<1x4x8xbf16> to vector<4x8xbf16>
    %cst_69 = arith.constant dense<0.000000e+00> : vector<128x8xf32>
    %57 = tpu.matmul %54, %56, %cst_69 {dimension_numbers = #tpu.dot_dimension_numbers<[1], [0], [0], [1], [0, 0, 1, 1], [], []>} : vector<128x4xbf16>, vector<4x8xbf16>, vector<128x8xf32> -> vector<128x8xf32>
    %58 = arith.addf %52, %57 : vector<128x8xf32>
    %c2_70 = arith.constant 2 : index
    %c1_71 = arith.constant 1 : index
    %c0_72 = arith.constant 0 : index
    %59 = vector.load %arg9[%c2_70, %c1_71, %c0_72] : memref<18x18x4xbf16, #tpu.memory_space<vmem>>, vector<8x16x4xbf16>
    %60 = vector.shape_cast %59 : vector<8x16x4xbf16> to vector<128x4xbf16>
    %c7 = arith.constant 7 : index
    %c0_73 = arith.constant 0 : index
    %c0_74 = arith.constant 0 : index
    %61 = vector.load %arg2[%c7, %c0_73, %c0_74] : memref<9x4x8xbf16, #tpu.memory_space<vmem>>, vector<1x4x8xbf16>
    %62 = vector.shape_cast %61 : vector<1x4x8xbf16> to vector<4x8xbf16>
    %cst_75 = arith.constant dense<0.000000e+00> : vector<128x8xf32>
    %63 = tpu.matmul %60, %62, %cst_75 {dimension_numbers = #tpu.dot_dimension_numbers<[1], [0], [0], [1], [0, 0, 1, 1], [], []>} : vector<128x4xbf16>, vector<4x8xbf16>, vector<128x8xf32> -> vector<128x8xf32>
    %64 = arith.addf %58, %63 : vector<128x8xf32>
    %c2_76 = arith.constant 2 : index
    %c2_77 = arith.constant 2 : index
    %c0_78 = arith.constant 0 : index
    %65 = vector.load %arg9[%c2_76, %c2_77, %c0_78] : memref<18x18x4xbf16, #tpu.memory_space<vmem>>, vector<8x16x4xbf16>
    %66 = vector.shape_cast %65 : vector<8x16x4xbf16> to vector<128x4xbf16>
    %c8 = arith.constant 8 : index
    %c0_79 = arith.constant 0 : index
    %c0_80 = arith.constant 0 : index
    %67 = vector.load %arg2[%c8, %c0_79, %c0_80] : memref<9x4x8xbf16, #tpu.memory_space<vmem>>, vector<1x4x8xbf16>
    %68 = vector.shape_cast %67 : vector<1x4x8xbf16> to vector<4x8xbf16>
    %cst_81 = arith.constant dense<0.000000e+00> : vector<128x8xf32>
    %69 = tpu.matmul %66, %68, %cst_81 {dimension_numbers = #tpu.dot_dimension_numbers<[1], [0], [0], [1], [0, 0, 1, 1], [], []>} : vector<128x4xbf16>, vector<4x8xbf16>, vector<128x8xf32> -> vector<128x8xf32>
    %70 = arith.addf %64, %69 : vector<128x8xf32>
    %cst_82 = arith.constant 0.000000e+00 : f32
    %71 = vector.broadcast %cst_82 : f32 to vector<128x8xf32>
    %72 = arith.cmpf ogt, %70, %71 : vector<128x8xf32>
    %cst_83 = arith.constant 2.000000e-01 : f32
    %73 = vector.broadcast %cst_83 : f32 to vector<128x8xf32>
    %74 = arith.mulf %73, %70 : vector<128x8xf32>
    %75 = arith.select %72, %70, %74 : vector<128x8xi1>, vector<128x8xf32>
    %76 = vector.shape_cast %75 : vector<128x8xf32> to vector<8x16x8xf32>
    %77 = arith.truncf %76 : vector<8x16x8xf32> to vector<8x16x8xbf16>
    %c1_84 = arith.constant 1 : index
    %c1_85 = arith.constant 1 : index
    %c0_86 = arith.constant 0 : index
    %78 = vector.load %arg10[%c1_84, %c1_85, %c0_86] : memref<18x18x8xbf16, #tpu.memory_space<vmem>>, vector<8x16x8xbf16>
    tpu.vector_store %arg10[%c1_84, %c1_85, %c0_86], %77 {strides = array<i32>} : memref<18x18x8xbf16, #tpu.memory_space<vmem>>, vector<8x16x8xbf16>,
    %c0_87 = arith.constant 0 : index
    %c8_88 = arith.constant 8 : index
    %c0_89 = arith.constant 0 : index
    %c0_90 = arith.constant 0 : index
    %79 = vector.load %arg3[%c0_87, %c8_88, %c0_89, %c0_90] : memref<1x16x16x8xf32, #tpu.memory_space<vmem>>, vector<1x8x16x8xf32>
    %80 = vector.shape_cast %79 : vector<1x8x16x8xf32> to vector<8x16x8xf32>
    %81 = vector.shape_cast %80 : vector<8x16x8xf32> to vector<128x8xf32>
    %c8_91 = arith.constant 8 : index
    %c0_92 = arith.constant 0 : index
    %c0_93 = arith.constant 0 : index
    %82 = vector.load %arg9[%c8_91, %c0_92, %c0_93] : memref<18x18x4xbf16, #tpu.memory_space<vmem>>, vector<8x16x4xbf16>
    %83 = vector.shape_cast %82 : vector<8x16x4xbf16> to vector<128x4xbf16>
    %c0_94 = arith.constant 0 : index
    %c0_95 = arith.constant 0 : index
    %c0_96 = arith.constant 0 : index
    %84 = vector.load %arg2[%c0_94, %c0_95, %c0_96] : memref<9x4x8xbf16, #tpu.memory_space<vmem>>, vector<1x4x8xbf16>
    %85 = vector.shape_cast %84 : vector<1x4x8xbf16> to vector<4x8xbf16>
    %cst_97 = arith.constant dense<0.000000e+00> : vector<128x8xf32>
    %86 = tpu.matmul %83, %85, %cst_97 {dimension_numbers = #tpu.dot_dimension_numbers<[1], [0], [0], [1], [0, 0, 1, 1], [], []>} : vector<128x4xbf16>, vector<4x8xbf16>, vector<128x8xf32> -> vector<128x8xf32>
    %87 = arith.addf %81, %86 : vector<128x8xf32>
    %c8_98 = arith.constant 8 : index
    %c1_99 = arith.constant 1 : index
    %c0_100 = arith.constant 0 : index
    %88 = vector.load %arg9[%c8_98, %c1_99, %c0_100] : memref<18x18x4xbf16, #tpu.memory_space<vmem>>, vector<8x16x4xbf16>
    %89 = vector.shape_cast %88 : vector<8x16x4xbf16> to vector<128x4xbf16>
    %c1_101 = arith.constant 1 : index
    %c0_102 = arith.constant 0 : index
    %c0_103 = arith.constant 0 : index
    %90 = vector.load %arg2[%c1_101, %c0_102, %c0_103] : memref<9x4x8xbf16, #tpu.memory_space<vmem>>, vector<1x4x8xbf16>
    %91 = vector.shape_cast %90 : vector<1x4x8xbf16> to vector<4x8xbf16>
    %cst_104 = arith.constant dense<0.000000e+00> : vector<128x8xf32>
    %92 = tpu.matmul %89, %91, %cst_104 {dimension_numbers = #tpu.dot_dimension_numbers<[1], [0], [0], [1], [0, 0, 1, 1], [], []>} : vector<128x4xbf16>, vector<4x8xbf16>, vector<128x8xf32> -> vector<128x8xf32>
    %93 = arith.addf %87, %92 : vector<128x8xf32>
    %c8_105 = arith.constant 8 : index
    %c2_106 = arith.constant 2 : index
    %c0_107 = arith.constant 0 : index
    %94 = vector.load %arg9[%c8_105, %c2_106, %c0_107] : memref<18x18x4xbf16, #tpu.memory_space<vmem>>, vector<8x16x4xbf16>
    %95 = vector.shape_cast %94 : vector<8x16x4xbf16> to vector<128x4xbf16>
    %c2_108 = arith.constant 2 : index
    %c0_109 = arith.constant 0 : index
    %c0_110 = arith.constant 0 : index
    %96 = vector.load %arg2[%c2_108, %c0_109, %c0_110] : memref<9x4x8xbf16, #tpu.memory_space<vmem>>, vector<1x4x8xbf16>
    %97 = vector.shape_cast %96 : vector<1x4x8xbf16> to vector<4x8xbf16>
    %cst_111 = arith.constant dense<0.000000e+00> : vector<128x8xf32>
    %98 = tpu.matmul %95, %97, %cst_111 {dimension_numbers = #tpu.dot_dimension_numbers<[1], [0], [0], [1], [0, 0, 1, 1], [], []>} : vector<128x4xbf16>, vector<4x8xbf16>, vector<128x8xf32> -> vector<128x8xf32>
    %99 = arith.addf %93, %98 : vector<128x8xf32>
    %c9 = arith.constant 9 : index
    %c0_112 = arith.constant 0 : index
    %c0_113 = arith.constant 0 : index
    %100 = vector.load %arg9[%c9, %c0_112, %c0_113] : memref<18x18x4xbf16, #tpu.memory_space<vmem>>, vector<8x16x4xbf16>
    %101 = vector.shape_cast %100 : vector<8x16x4xbf16> to vector<128x4xbf16>
    %c3_114 = arith.constant 3 : index
    %c0_115 = arith.constant 0 : index
    %c0_116 = arith.constant 0 : index
    %102 = vector.load %arg2[%c3_114, %c0_115, %c0_116] : memref<9x4x8xbf16, #tpu.memory_space<vmem>>, vector<1x4x8xbf16>
    %103 = vector.shape_cast %102 : vector<1x4x8xbf16> to vector<4x8xbf16>
    %cst_117 = arith.constant dense<0.000000e+00> : vector<128x8xf32>
    %104 = tpu.matmul %101, %103, %cst_117 {dimension_numbers = #tpu.dot_dimension_numbers<[1], [0], [0], [1], [0, 0, 1, 1], [], []>} : vector<128x4xbf16>, vector<4x8xbf16>, vector<128x8xf32> -> vector<128x8xf32>
    %105 = arith.addf %99, %104 : vector<128x8xf32>
    %c9_118 = arith.constant 9 : index
    %c1_119 = arith.constant 1 : index
    %c0_120 = arith.constant 0 : index
    %106 = vector.load %arg9[%c9_118, %c1_119, %c0_120] : memref<18x18x4xbf16, #tpu.memory_space<vmem>>, vector<8x16x4xbf16>
    %107 = vector.shape_cast %106 : vector<8x16x4xbf16> to vector<128x4xbf16>
    %c4_121 = arith.constant 4 : index
    %c0_122 = arith.constant 0 : index
    %c0_123 = arith.constant 0 : index
    %108 = vector.load %arg2[%c4_121, %c0_122, %c0_123] : memref<9x4x8xbf16, #tpu.memory_space<vmem>>, vector<1x4x8xbf16>
    %109 = vector.shape_cast %108 : vector<1x4x8xbf16> to vector<4x8xbf16>
    %cst_124 = arith.constant dense<0.000000e+00> : vector<128x8xf32>
    %110 = tpu.matmul %107, %109, %cst_124 {dimension_numbers = #tpu.dot_dimension_numbers<[1], [0], [0], [1], [0, 0, 1, 1], [], []>} : vector<128x4xbf16>, vector<4x8xbf16>, vector<128x8xf32> -> vector<128x8xf32>
    %111 = arith.addf %105, %110 : vector<128x8xf32>
    %c9_125 = arith.constant 9 : index
    %c2_126 = arith.constant 2 : index
    %c0_127 = arith.constant 0 : index
    %112 = vector.load %arg9[%c9_125, %c2_126, %c0_127] : memref<18x18x4xbf16, #tpu.memory_space<vmem>>, vector<8x16x4xbf16>
    %113 = vector.shape_cast %112 : vector<8x16x4xbf16> to vector<128x4xbf16>
    %c5_128 = arith.constant 5 : index
    %c0_129 = arith.constant 0 : index
    %c0_130 = arith.constant 0 : index
    %114 = vector.load %arg2[%c5_128, %c0_129, %c0_130] : memref<9x4x8xbf16, #tpu.memory_space<vmem>>, vector<1x4x8xbf16>
    %115 = vector.shape_cast %114 : vector<1x4x8xbf16> to vector<4x8xbf16>
    %cst_131 = arith.constant dense<0.000000e+00> : vector<128x8xf32>
    %116 = tpu.matmul %113, %115, %cst_131 {dimension_numbers = #tpu.dot_dimension_numbers<[1], [0], [0], [1], [0, 0, 1, 1], [], []>} : vector<128x4xbf16>, vector<4x8xbf16>, vector<128x8xf32> -> vector<128x8xf32>
    %117 = arith.addf %111, %116 : vector<128x8xf32>
    %c10 = arith.constant 10 : index
    %c0_132 = arith.constant 0 : index
    %c0_133 = arith.constant 0 : index
    %118 = vector.load %arg9[%c10, %c0_132, %c0_133] : memref<18x18x4xbf16, #tpu.memory_space<vmem>>, vector<8x16x4xbf16>
    %119 = vector.shape_cast %118 : vector<8x16x4xbf16> to vector<128x4xbf16>
    %c6_134 = arith.constant 6 : index
    %c0_135 = arith.constant 0 : index
    %c0_136 = arith.constant 0 : index
    %120 = vector.load %arg2[%c6_134, %c0_135, %c0_136] : memref<9x4x8xbf16, #tpu.memory_space<vmem>>, vector<1x4x8xbf16>
    %121 = vector.shape_cast %120 : vector<1x4x8xbf16> to vector<4x8xbf16>
    %cst_137 = arith.constant dense<0.000000e+00> : vector<128x8xf32>
    %122 = tpu.matmul %119, %121, %cst_137 {dimension_numbers = #tpu.dot_dimension_numbers<[1], [0], [0], [1], [0, 0, 1, 1], [], []>} : vector<128x4xbf16>, vector<4x8xbf16>, vector<128x8xf32> -> vector<128x8xf32>
    %123 = arith.addf %117, %122 : vector<128x8xf32>
    %c10_138 = arith.constant 10 : index
    %c1_139 = arith.constant 1 : index
    %c0_140 = arith.constant 0 : index
    %124 = vector.load %arg9[%c10_138, %c1_139, %c0_140] : memref<18x18x4xbf16, #tpu.memory_space<vmem>>, vector<8x16x4xbf16>
    %125 = vector.shape_cast %124 : vector<8x16x4xbf16> to vector<128x4xbf16>
    %c7_141 = arith.constant 7 : index
    %c0_142 = arith.constant 0 : index
    %c0_143 = arith.constant 0 : index
    %126 = vector.load %arg2[%c7_141, %c0_142, %c0_143] : memref<9x4x8xbf16, #tpu.memory_space<vmem>>, vector<1x4x8xbf16>
    %127 = vector.shape_cast %126 : vector<1x4x8xbf16> to vector<4x8xbf16>
    %cst_144 = arith.constant dense<0.000000e+00> : vector<128x8xf32>
    %128 = tpu.matmul %125, %127, %cst_144 {dimension_numbers = #tpu.dot_dimension_numbers<[1], [0], [0], [1], [0, 0, 1, 1], [], []>} : vector<128x4xbf16>, vector<4x8xbf16>, vector<128x8xf32> -> vector<128x8xf32>
    %129 = arith.addf %123, %128 : vector<128x8xf32>
    %c10_145 = arith.constant 10 : index
    %c2_146 = arith.constant 2 : index
    %c0_147 = arith.constant 0 : index
    %130 = vector.load %arg9[%c10_145, %c2_146, %c0_147] : memref<18x18x4xbf16, #tpu.memory_space<vmem>>, vector<8x16x4xbf16>
    %131 = vector.shape_cast %130 : vector<8x16x4xbf16> to vector<128x4xbf16>
    %c8_148 = arith.constant 8 : index
    %c0_149 = arith.constant 0 : index
    %c0_150 = arith.constant 0 : index
    %132 = vector.load %arg2[%c8_148, %c0_149, %c0_150] : memref<9x4x8xbf16, #tpu.memory_space<vmem>>, vector<1x4x8xbf16>
    %133 = vector.shape_cast %132 : vector<1x4x8xbf16> to vector<4x8xbf16>
    %cst_151 = arith.constant dense<0.000000e+00> : vector<128x8xf32>
    %134 = tpu.matmul %131, %133, %cst_151 {dimension_numbers = #tpu.dot_dimension_numbers<[1], [0], [0], [1], [0, 0, 1, 1], [], []>} : vector<128x4xbf16>, vector<4x8xbf16>, vector<128x8xf32> -> vector<128x8xf32>
    %135 = arith.addf %129, %134 : vector<128x8xf32>
    %cst_152 = arith.constant 0.000000e+00 : f32
    %136 = vector.broadcast %cst_152 : f32 to vector<128x8xf32>
    %137 = arith.cmpf ogt, %135, %136 : vector<128x8xf32>
    %cst_153 = arith.constant 2.000000e-01 : f32
    %138 = vector.broadcast %cst_153 : f32 to vector<128x8xf32>
    %139 = arith.mulf %138, %135 : vector<128x8xf32>
    %140 = arith.select %137, %135, %139 : vector<128x8xi1>, vector<128x8xf32>
    %141 = vector.shape_cast %140 : vector<128x8xf32> to vector<8x16x8xf32>
    %142 = arith.truncf %141 : vector<8x16x8xf32> to vector<8x16x8xbf16>
    %c9_154 = arith.constant 9 : index
    %c1_155 = arith.constant 1 : index
    %c0_156 = arith.constant 0 : index
    %143 = vector.load %arg10[%c9_154, %c1_155, %c0_156] : memref<18x18x8xbf16, #tpu.memory_space<vmem>>, vector<8x16x8xbf16>
    tpu.vector_store %arg10[%c9_154, %c1_155, %c0_156], %142 {strides = array<i32>} : memref<18x18x8xbf16, #tpu.memory_space<vmem>>, vector<8x16x8xbf16>,
    %c0_157 = arith.constant 0 : index
    %c0_158 = arith.constant 0 : index
    %c0_159 = arith.constant 0 : index
    %c0_160 = arith.constant 0 : index
    %144 = vector.load %arg5[%c0_157, %c0_158, %c0_159, %c0_160] : memref<1x16x16x128xf32, #tpu.memory_space<vmem>>, vector<1x8x16x128xf32>
    %145 = vector.shape_cast %144 : vector<1x8x16x128xf32> to vector<8x16x128xf32>
    %146 = vector.shape_cast %145 : vector<8x16x128xf32> to vector<128x128xf32>
    %c0_161 = arith.constant 0 : index
    %c0_162 = arith.constant 0 : index
    %c0_163 = arith.constant 0 : index
    %147 = vector.load %arg10[%c0_161, %c0_162, %c0_163] : memref<18x18x8xbf16, #tpu.memory_space<vmem>>, vector<8x16x8xbf16>
    %148 = vector.shape_cast %147 : vector<8x16x8xbf16> to vector<128x8xbf16>
    %c0_164 = arith.constant 0 : index
    %c0_165 = arith.constant 0 : index
    %c0_166 = arith.constant 0 : index
    %149 = vector.load %arg4[%c0_164, %c0_165, %c0_166] : memref<9x8x128xbf16, #tpu.memory_space<vmem>>, vector<1x8x128xbf16>
    %150 = vector.shape_cast %149 : vector<1x8x128xbf16> to vector<8x128xbf16>
    %cst_167 = arith.constant dense<0.000000e+00> : vector<128x128xf32>
    %151 = tpu.matmul %148, %150, %cst_167 {dimension_numbers = #tpu.dot_dimension_numbers<[1], [0], [0], [1], [0, 0, 1, 1], [], []>} : vector<128x8xbf16>, vector<8x128xbf16>, vector<128x128xf32> -> vector<128x128xf32>
    %152 = arith.addf %146, %151 : vector<128x128xf32>
    %c0_168 = arith.constant 0 : index
    %c1_169 = arith.constant 1 : index
    %c0_170 = arith.constant 0 : index
    %153 = vector.load %arg10[%c0_168, %c1_169, %c0_170] : memref<18x18x8xbf16, #tpu.memory_space<vmem>>, vector<8x16x8xbf16>
    %154 = vector.shape_cast %153 : vector<8x16x8xbf16> to vector<128x8xbf16>
    %c1_171 = arith.constant 1 : index
    %c0_172 = arith.constant 0 : index
    %c0_173 = arith.constant 0 : index
    %155 = vector.load %arg4[%c1_171, %c0_172, %c0_173] : memref<9x8x128xbf16, #tpu.memory_space<vmem>>, vector<1x8x128xbf16>
    %156 = vector.shape_cast %155 : vector<1x8x128xbf16> to vector<8x128xbf16>
    %cst_174 = arith.constant dense<0.000000e+00> : vector<128x128xf32>
    %157 = tpu.matmul %154, %156, %cst_174 {dimension_numbers = #tpu.dot_dimension_numbers<[1], [0], [0], [1], [0, 0, 1, 1], [], []>} : vector<128x8xbf16>, vector<8x128xbf16>, vector<128x128xf32> -> vector<128x128xf32>
    %158 = arith.addf %152, %157 : vector<128x128xf32>
    %c0_175 = arith.constant 0 : index
    %c2_176 = arith.constant 2 : index
    %c0_177 = arith.constant 0 : index
    %159 = vector.load %arg10[%c0_175, %c2_176, %c0_177] : memref<18x18x8xbf16, #tpu.memory_space<vmem>>, vector<8x16x8xbf16>
    %160 = vector.shape_cast %159 : vector<8x16x8xbf16> to vector<128x8xbf16>
    %c2_178 = arith.constant 2 : index
    %c0_179 = arith.constant 0 : index
    %c0_180 = arith.constant 0 : index
    %161 = vector.load %arg4[%c2_178, %c0_179, %c0_180] : memref<9x8x128xbf16, #tpu.memory_space<vmem>>, vector<1x8x128xbf16>
    %162 = vector.shape_cast %161 : vector<1x8x128xbf16> to vector<8x128xbf16>
    %cst_181 = arith.constant dense<0.000000e+00> : vector<128x128xf32>
    %163 = tpu.matmul %160, %162, %cst_181 {dimension_numbers = #tpu.dot_dimension_numbers<[1], [0], [0], [1], [0, 0, 1, 1], [], []>} : vector<128x8xbf16>, vector<8x128xbf16>, vector<128x128xf32> -> vector<128x128xf32>
    %164 = arith.addf %158, %163 : vector<128x128xf32>
    %c1_182 = arith.constant 1 : index
    %c0_183 = arith.constant 0 : index
    %c0_184 = arith.constant 0 : index
    %165 = vector.load %arg10[%c1_182, %c0_183, %c0_184] : memref<18x18x8xbf16, #tpu.memory_space<vmem>>, vector<8x16x8xbf16>
    %166 = vector.shape_cast %165 : vector<8x16x8xbf16> to vector<128x8xbf16>
    %c3_185 = arith.constant 3 : index
    %c0_186 = arith.constant 0 : index
    %c0_187 = arith.constant 0 : index
    %167 = vector.load %arg4[%c3_185, %c0_186, %c0_187] : memref<9x8x128xbf16, #tpu.memory_space<vmem>>, vector<1x8x128xbf16>
    %168 = vector.shape_cast %167 : vector<1x8x128xbf16> to vector<8x128xbf16>
    %cst_188 = arith.constant dense<0.000000e+00> : vector<128x128xf32>
    %169 = tpu.matmul %166, %168, %cst_188 {dimension_numbers = #tpu.dot_dimension_numbers<[1], [0], [0], [1], [0, 0, 1, 1], [], []>} : vector<128x8xbf16>, vector<8x128xbf16>, vector<128x128xf32> -> vector<128x128xf32>
    %170 = arith.addf %164, %169 : vector<128x128xf32>
    %c1_189 = arith.constant 1 : index
    %c1_190 = arith.constant 1 : index
    %c0_191 = arith.constant 0 : index
    %171 = vector.load %arg10[%c1_189, %c1_190, %c0_191] : memref<18x18x8xbf16, #tpu.memory_space<vmem>>, vector<8x16x8xbf16>
    %172 = vector.shape_cast %171 : vector<8x16x8xbf16> to vector<128x8xbf16>
    %c4_192 = arith.constant 4 : index
    %c0_193 = arith.constant 0 : index
    %c0_194 = arith.constant 0 : index
    %173 = vector.load %arg4[%c4_192, %c0_193, %c0_194] : memref<9x8x128xbf16, #tpu.memory_space<vmem>>, vector<1x8x128xbf16>
    %174 = vector.shape_cast %173 : vector<1x8x128xbf16> to vector<8x128xbf16>
    %cst_195 = arith.constant dense<0.000000e+00> : vector<128x128xf32>
    %175 = tpu.matmul %172, %174, %cst_195 {dimension_numbers = #tpu.dot_dimension_numbers<[1], [0], [0], [1], [0, 0, 1, 1], [], []>} : vector<128x8xbf16>, vector<8x128xbf16>, vector<128x128xf32> -> vector<128x128xf32>
    %176 = arith.addf %170, %175 : vector<128x128xf32>
    %c1_196 = arith.constant 1 : index
    %c2_197 = arith.constant 2 : index
    %c0_198 = arith.constant 0 : index
    %177 = vector.load %arg10[%c1_196, %c2_197, %c0_198] : memref<18x18x8xbf16, #tpu.memory_space<vmem>>, vector<8x16x8xbf16>
    %178 = vector.shape_cast %177 : vector<8x16x8xbf16> to vector<128x8xbf16>
    %c5_199 = arith.constant 5 : index
    %c0_200 = arith.constant 0 : index
    %c0_201 = arith.constant 0 : index
    %179 = vector.load %arg4[%c5_199, %c0_200, %c0_201] : memref<9x8x128xbf16, #tpu.memory_space<vmem>>, vector<1x8x128xbf16>
    %180 = vector.shape_cast %179 : vector<1x8x128xbf16> to vector<8x128xbf16>
    %cst_202 = arith.constant dense<0.000000e+00> : vector<128x128xf32>
    %181 = tpu.matmul %178, %180, %cst_202 {dimension_numbers = #tpu.dot_dimension_numbers<[1], [0], [0], [1], [0, 0, 1, 1], [], []>} : vector<128x8xbf16>, vector<8x128xbf16>, vector<128x128xf32> -> vector<128x128xf32>
    %182 = arith.addf %176, %181 : vector<128x128xf32>
    %c2_203 = arith.constant 2 : index
    %c0_204 = arith.constant 0 : index
    %c0_205 = arith.constant 0 : index
    %183 = vector.load %arg10[%c2_203, %c0_204, %c0_205] : memref<18x18x8xbf16, #tpu.memory_space<vmem>>, vector<8x16x8xbf16>
    %184 = vector.shape_cast %183 : vector<8x16x8xbf16> to vector<128x8xbf16>
    %c6_206 = arith.constant 6 : index
    %c0_207 = arith.constant 0 : index
    %c0_208 = arith.constant 0 : index
    %185 = vector.load %arg4[%c6_206, %c0_207, %c0_208] : memref<9x8x128xbf16, #tpu.memory_space<vmem>>, vector<1x8x128xbf16>
    %186 = vector.shape_cast %185 : vector<1x8x128xbf16> to vector<8x128xbf16>
    %cst_209 = arith.constant dense<0.000000e+00> : vector<128x128xf32>
    %187 = tpu.matmul %184, %186, %cst_209 {dimension_numbers = #tpu.dot_dimension_numbers<[1], [0], [0], [1], [0, 0, 1, 1], [], []>} : vector<128x8xbf16>, vector<8x128xbf16>, vector<128x128xf32> -> vector<128x128xf32>
    %188 = arith.addf %182, %187 : vector<128x128xf32>
    %c2_210 = arith.constant 2 : index
    %c1_211 = arith.constant 1 : index
    %c0_212 = arith.constant 0 : index
    %189 = vector.load %arg10[%c2_210, %c1_211, %c0_212] : memref<18x18x8xbf16, #tpu.memory_space<vmem>>, vector<8x16x8xbf16>
    %190 = vector.shape_cast %189 : vector<8x16x8xbf16> to vector<128x8xbf16>
    %c7_213 = arith.constant 7 : index
    %c0_214 = arith.constant 0 : index
    %c0_215 = arith.constant 0 : index
    %191 = vector.load %arg4[%c7_213, %c0_214, %c0_215] : memref<9x8x128xbf16, #tpu.memory_space<vmem>>, vector<1x8x128xbf16>
    %192 = vector.shape_cast %191 : vector<1x8x128xbf16> to vector<8x128xbf16>
    %cst_216 = arith.constant dense<0.000000e+00> : vector<128x128xf32>
    %193 = tpu.matmul %190, %192, %cst_216 {dimension_numbers = #tpu.dot_dimension_numbers<[1], [0], [0], [1], [0, 0, 1, 1], [], []>} : vector<128x8xbf16>, vector<8x128xbf16>, vector<128x128xf32> -> vector<128x128xf32>
    %194 = arith.addf %188, %193 : vector<128x128xf32>
    %c2_217 = arith.constant 2 : index
    %c2_218 = arith.constant 2 : index
    %c0_219 = arith.constant 0 : index
    %195 = vector.load %arg10[%c2_217, %c2_218, %c0_219] : memref<18x18x8xbf16, #tpu.memory_space<vmem>>, vector<8x16x8xbf16>
    %196 = vector.shape_cast %195 : vector<8x16x8xbf16> to vector<128x8xbf16>
    %c8_220 = arith.constant 8 : index
    %c0_221 = arith.constant 0 : index
    %c0_222 = arith.constant 0 : index
    %197 = vector.load %arg4[%c8_220, %c0_221, %c0_222] : memref<9x8x128xbf16, #tpu.memory_space<vmem>>, vector<1x8x128xbf16>
    %198 = vector.shape_cast %197 : vector<1x8x128xbf16> to vector<8x128xbf16>
    %cst_223 = arith.constant dense<0.000000e+00> : vector<128x128xf32>
    %199 = tpu.matmul %196, %198, %cst_223 {dimension_numbers = #tpu.dot_dimension_numbers<[1], [0], [0], [1], [0, 0, 1, 1], [], []>} : vector<128x8xbf16>, vector<8x128xbf16>, vector<128x128xf32> -> vector<128x128xf32>
    %200 = arith.addf %194, %199 : vector<128x128xf32>
    %cst_224 = arith.constant 0.000000e+00 : f32
    %201 = vector.broadcast %cst_224 : f32 to vector<128x128xf32>
    %202 = arith.cmpf ogt, %200, %201 : vector<128x128xf32>
    %cst_225 = arith.constant 2.000000e-01 : f32
    %203 = vector.broadcast %cst_225 : f32 to vector<128x128xf32>
    %204 = arith.mulf %203, %200 : vector<128x128xf32>
    %205 = arith.select %202, %200, %204 : vector<128x128xi1>, vector<128x128xf32>
    %206 = vector.shape_cast %205 : vector<128x128xf32> to vector<4x32x128xf32>
    %c0_226 = arith.constant 0 : index
    %c0_227 = arith.constant 0 : index
    %c0_228 = arith.constant 0 : index
    %207 = vector.load %arg11[%c0_226, %c0_227, %c0_228] : memref<8x32x128xf32, #tpu.memory_space<vmem>>, vector<4x32x128xf32>
    tpu.vector_store %arg11[%c0_226, %c0_227, %c0_228], %206 {strides = array<i32>} : memref<8x32x128xf32, #tpu.memory_space<vmem>>, vector<4x32x128xf32>,
    %c0_229 = arith.constant 0 : index
    %c8_230 = arith.constant 8 : index
    %c0_231 = arith.constant 0 : index
    %c0_232 = arith.constant 0 : index
    %208 = vector.load %arg5[%c0_229, %c8_230, %c0_231, %c0_232] : memref<1x16x16x128xf32, #tpu.memory_space<vmem>>, vector<1x8x16x128xf32>
    %209 = vector.shape_cast %208 : vector<1x8x16x128xf32> to vector<8x16x128xf32>
    %210 = vector.shape_cast %209 : vector<8x16x128xf32> to vector<128x128xf32>
    %c8_233 = arith.constant 8 : index
    %c0_234 = arith.constant 0 : index
    %c0_235 = arith.constant 0 : index
    %211 = vector.load %arg10[%c8_233, %c0_234, %c0_235] : memref<18x18x8xbf16, #tpu.memory_space<vmem>>, vector<8x16x8xbf16>
    %212 = vector.shape_cast %211 : vector<8x16x8xbf16> to vector<128x8xbf16>
    %c0_236 = arith.constant 0 : index
    %c0_237 = arith.constant 0 : index
    %c0_238 = arith.constant 0 : index
    %213 = vector.load %arg4[%c0_236, %c0_237, %c0_238] : memref<9x8x128xbf16, #tpu.memory_space<vmem>>, vector<1x8x128xbf16>
    %214 = vector.shape_cast %213 : vector<1x8x128xbf16> to vector<8x128xbf16>
    %cst_239 = arith.constant dense<0.000000e+00> : vector<128x128xf32>
    %215 = tpu.matmul %212, %214, %cst_239 {dimension_numbers = #tpu.dot_dimension_numbers<[1], [0], [0], [1], [0, 0, 1, 1], [], []>} : vector<128x8xbf16>, vector<8x128xbf16>, vector<128x128xf32> -> vector<128x128xf32>
    %216 = arith.addf %210, %215 : vector<128x128xf32>
    %c8_240 = arith.constant 8 : index
    %c1_241 = arith.constant 1 : index
    %c0_242 = arith.constant 0 : index
    %217 = vector.load %arg10[%c8_240, %c1_241, %c0_242] : memref<18x18x8xbf16, #tpu.memory_space<vmem>>, vector<8x16x8xbf16>
    %218 = vector.shape_cast %217 : vector<8x16x8xbf16> to vector<128x8xbf16>
    %c1_243 = arith.constant 1 : index
    %c0_244 = arith.constant 0 : index
    %c0_245 = arith.constant 0 : index
    %219 = vector.load %arg4[%c1_243, %c0_244, %c0_245] : memref<9x8x128xbf16, #tpu.memory_space<vmem>>, vector<1x8x128xbf16>
    %220 = vector.shape_cast %219 : vector<1x8x128xbf16> to vector<8x128xbf16>
    %cst_246 = arith.constant dense<0.000000e+00> : vector<128x128xf32>
    %221 = tpu.matmul %218, %220, %cst_246 {dimension_numbers = #tpu.dot_dimension_numbers<[1], [0], [0], [1], [0, 0, 1, 1], [], []>} : vector<128x8xbf16>, vector<8x128xbf16>, vector<128x128xf32> -> vector<128x128xf32>
    %222 = arith.addf %216, %221 : vector<128x128xf32>
    %c8_247 = arith.constant 8 : index
    %c2_248 = arith.constant 2 : index
    %c0_249 = arith.constant 0 : index
    %223 = vector.load %arg10[%c8_247, %c2_248, %c0_249] : memref<18x18x8xbf16, #tpu.memory_space<vmem>>, vector<8x16x8xbf16>
    %224 = vector.shape_cast %223 : vector<8x16x8xbf16> to vector<128x8xbf16>
    %c2_250 = arith.constant 2 : index
    %c0_251 = arith.constant 0 : index
    %c0_252 = arith.constant 0 : index
    %225 = vector.load %arg4[%c2_250, %c0_251, %c0_252] : memref<9x8x128xbf16, #tpu.memory_space<vmem>>, vector<1x8x128xbf16>
    %226 = vector.shape_cast %225 : vector<1x8x128xbf16> to vector<8x128xbf16>
    %cst_253 = arith.constant dense<0.000000e+00> : vector<128x128xf32>
    %227 = tpu.matmul %224, %226, %cst_253 {dimension_numbers = #tpu.dot_dimension_numbers<[1], [0], [0], [1], [0, 0, 1, 1], [], []>} : vector<128x8xbf16>, vector<8x128xbf16>, vector<128x128xf32> -> vector<128x128xf32>
    %228 = arith.addf %222, %227 : vector<128x128xf32>
    %c9_254 = arith.constant 9 : index
    %c0_255 = arith.constant 0 : index
    %c0_256 = arith.constant 0 : index
    %229 = vector.load %arg10[%c9_254, %c0_255, %c0_256] : memref<18x18x8xbf16, #tpu.memory_space<vmem>>, vector<8x16x8xbf16>
    %230 = vector.shape_cast %229 : vector<8x16x8xbf16> to vector<128x8xbf16>
    %c3_257 = arith.constant 3 : index
    %c0_258 = arith.constant 0 : index
    %c0_259 = arith.constant 0 : index
    %231 = vector.load %arg4[%c3_257, %c0_258, %c0_259] : memref<9x8x128xbf16, #tpu.memory_space<vmem>>, vector<1x8x128xbf16>
    %232 = vector.shape_cast %231 : vector<1x8x128xbf16> to vector<8x128xbf16>
    %cst_260 = arith.constant dense<0.000000e+00> : vector<128x128xf32>
    %233 = tpu.matmul %230, %232, %cst_260 {dimension_numbers = #tpu.dot_dimension_numbers<[1], [0], [0], [1], [0, 0, 1, 1], [], []>} : vector<128x8xbf16>, vector<8x128xbf16>, vector<128x128xf32> -> vector<128x128xf32>
    %234 = arith.addf %228, %233 : vector<128x128xf32>
    %c9_261 = arith.constant 9 : index
    %c1_262 = arith.constant 1 : index
    %c0_263 = arith.constant 0 : index
    %235 = vector.load %arg10[%c9_261, %c1_262, %c0_263] : memref<18x18x8xbf16, #tpu.memory_space<vmem>>, vector<8x16x8xbf16>
    %236 = vector.shape_cast %235 : vector<8x16x8xbf16> to vector<128x8xbf16>
    %c4_264 = arith.constant 4 : index
    %c0_265 = arith.constant 0 : index
    %c0_266 = arith.constant 0 : index
    %237 = vector.load %arg4[%c4_264, %c0_265, %c0_266] : memref<9x8x128xbf16, #tpu.memory_space<vmem>>, vector<1x8x128xbf16>
    %238 = vector.shape_cast %237 : vector<1x8x128xbf16> to vector<8x128xbf16>
    %cst_267 = arith.constant dense<0.000000e+00> : vector<128x128xf32>
    %239 = tpu.matmul %236, %238, %cst_267 {dimension_numbers = #tpu.dot_dimension_numbers<[1], [0], [0], [1], [0, 0, 1, 1], [], []>} : vector<128x8xbf16>, vector<8x128xbf16>, vector<128x128xf32> -> vector<128x128xf32>
    %240 = arith.addf %234, %239 : vector<128x128xf32>
    %c9_268 = arith.constant 9 : index
    %c2_269 = arith.constant 2 : index
    %c0_270 = arith.constant 0 : index
    %241 = vector.load %arg10[%c9_268, %c2_269, %c0_270] : memref<18x18x8xbf16, #tpu.memory_space<vmem>>, vector<8x16x8xbf16>
    %242 = vector.shape_cast %241 : vector<8x16x8xbf16> to vector<128x8xbf16>
    %c5_271 = arith.constant 5 : index
    %c0_272 = arith.constant 0 : index
    %c0_273 = arith.constant 0 : index
    %243 = vector.load %arg4[%c5_271, %c0_272, %c0_273] : memref<9x8x128xbf16, #tpu.memory_space<vmem>>, vector<1x8x128xbf16>
    %244 = vector.shape_cast %243 : vector<1x8x128xbf16> to vector<8x128xbf16>
    %cst_274 = arith.constant dense<0.000000e+00> : vector<128x128xf32>
    %245 = tpu.matmul %242, %244, %cst_274 {dimension_numbers = #tpu.dot_dimension_numbers<[1], [0], [0], [1], [0, 0, 1, 1], [], []>} : vector<128x8xbf16>, vector<8x128xbf16>, vector<128x128xf32> -> vector<128x128xf32>
    %246 = arith.addf %240, %245 : vector<128x128xf32>
    %c10_275 = arith.constant 10 : index
    %c0_276 = arith.constant 0 : index
    %c0_277 = arith.constant 0 : index
    %247 = vector.load %arg10[%c10_275, %c0_276, %c0_277] : memref<18x18x8xbf16, #tpu.memory_space<vmem>>, vector<8x16x8xbf16>
    %248 = vector.shape_cast %247 : vector<8x16x8xbf16> to vector<128x8xbf16>
    %c6_278 = arith.constant 6 : index
    %c0_279 = arith.constant 0 : index
    %c0_280 = arith.constant 0 : index
    %249 = vector.load %arg4[%c6_278, %c0_279, %c0_280] : memref<9x8x128xbf16, #tpu.memory_space<vmem>>, vector<1x8x128xbf16>
    %250 = vector.shape_cast %249 : vector<1x8x128xbf16> to vector<8x128xbf16>
    %cst_281 = arith.constant dense<0.000000e+00> : vector<128x128xf32>
    %251 = tpu.matmul %248, %250, %cst_281 {dimension_numbers = #tpu.dot_dimension_numbers<[1], [0], [0], [1], [0, 0, 1, 1], [], []>} : vector<128x8xbf16>, vector<8x128xbf16>, vector<128x128xf32> -> vector<128x128xf32>
    %252 = arith.addf %246, %251 : vector<128x128xf32>
    %c10_282 = arith.constant 10 : index
    %c1_283 = arith.constant 1 : index
    %c0_284 = arith.constant 0 : index
    %253 = vector.load %arg10[%c10_282, %c1_283, %c0_284] : memref<18x18x8xbf16, #tpu.memory_space<vmem>>, vector<8x16x8xbf16>
    %254 = vector.shape_cast %253 : vector<8x16x8xbf16> to vector<128x8xbf16>
    %c7_285 = arith.constant 7 : index
    %c0_286 = arith.constant 0 : index
    %c0_287 = arith.constant 0 : index
    %255 = vector.load %arg4[%c7_285, %c0_286, %c0_287] : memref<9x8x128xbf16, #tpu.memory_space<vmem>>, vector<1x8x128xbf16>
    %256 = vector.shape_cast %255 : vector<1x8x128xbf16> to vector<8x128xbf16>
    %cst_288 = arith.constant dense<0.000000e+00> : vector<128x128xf32>
    %257 = tpu.matmul %254, %256, %cst_288 {dimension_numbers = #tpu.dot_dimension_numbers<[1], [0], [0], [1], [0, 0, 1, 1], [], []>} : vector<128x8xbf16>, vector<8x128xbf16>, vector<128x128xf32> -> vector<128x128xf32>
    %258 = arith.addf %252, %257 : vector<128x128xf32>
    %c10_289 = arith.constant 10 : index
    %c2_290 = arith.constant 2 : index
    %c0_291 = arith.constant 0 : index
    %259 = vector.load %arg10[%c10_289, %c2_290, %c0_291] : memref<18x18x8xbf16, #tpu.memory_space<vmem>>, vector<8x16x8xbf16>
    %260 = vector.shape_cast %259 : vector<8x16x8xbf16> to vector<128x8xbf16>
    %c8_292 = arith.constant 8 : index
    %c0_293 = arith.constant 0 : index
    %c0_294 = arith.constant 0 : index
    %261 = vector.load %arg4[%c8_292, %c0_293, %c0_294] : memref<9x8x128xbf16, #tpu.memory_space<vmem>>, vector<1x8x128xbf16>
    %262 = vector.shape_cast %261 : vector<1x8x128xbf16> to vector<8x128xbf16>
    %cst_295 = arith.constant dense<0.000000e+00> : vector<128x128xf32>
    %263 = tpu.matmul %260, %262, %cst_295 {dimension_numbers = #tpu.dot_dimension_numbers<[1], [0], [0], [1], [0, 0, 1, 1], [], []>} : vector<128x8xbf16>, vector<8x128xbf16>, vector<128x128xf32> -> vector<128x128xf32>
    %264 = arith.addf %258, %263 : vector<128x128xf32>
    %cst_296 = arith.constant 0.000000e+00 : f32
    %265 = vector.broadcast %cst_296 : f32 to vector<128x128xf32>
    %266 = arith.cmpf ogt, %264, %265 : vector<128x128xf32>
    %cst_297 = arith.constant 2.000000e-01 : f32
    %267 = vector.broadcast %cst_297 : f32 to vector<128x128xf32>
    %268 = arith.mulf %267, %264 : vector<128x128xf32>
    %269 = arith.select %266, %264, %268 : vector<128x128xi1>, vector<128x128xf32>
    %270 = vector.shape_cast %269 : vector<128x128xf32> to vector<4x32x128xf32>
    %c4_298 = arith.constant 4 : index
    %c0_299 = arith.constant 0 : index
    %c0_300 = arith.constant 0 : index
    %271 = vector.load %arg11[%c4_298, %c0_299, %c0_300] : memref<8x32x128xf32, #tpu.memory_space<vmem>>, vector<4x32x128xf32>
    tpu.vector_store %arg11[%c4_298, %c0_299, %c0_300], %270 {strides = array<i32>} : memref<8x32x128xf32, #tpu.memory_space<vmem>>, vector<4x32x128xf32>,
    %c0_301 = arith.constant 0 : index
    %c0_302 = arith.constant 0 : index
    %c0_303 = arith.constant 0 : index
    %272 = tpu.strided_load %arg11[%c0_301, %c0_302, %c0_303] {strides = array<i32: 1, 2, 1>} : memref<8x32x128xf32, #tpu.memory_space<vmem>>, vector<8x8x128xf32>
    %c0_304 = arith.constant 0 : index
    %c1_305 = arith.constant 1 : index
    %c0_306 = arith.constant 0 : index
    %273 = tpu.strided_load %arg11[%c0_304, %c1_305, %c0_306] {strides = array<i32: 1, 2, 1>} : memref<8x32x128xf32, #tpu.memory_space<vmem>>, vector<8x8x128xf32>
    %274 = arith.addf %272, %273 : vector<8x8x128xf32>
    %c0_307 = arith.constant 0 : index
    %c16 = arith.constant 16 : index
    %c0_308 = arith.constant 0 : index
    %275 = tpu.strided_load %arg11[%c0_307, %c16, %c0_308] {strides = array<i32: 1, 2, 1>} : memref<8x32x128xf32, #tpu.memory_space<vmem>>, vector<8x8x128xf32>
    %276 = arith.addf %274, %275 : vector<8x8x128xf32>
    %c0_309 = arith.constant 0 : index
    %c17 = arith.constant 17 : index
    %c0_310 = arith.constant 0 : index
    %277 = tpu.strided_load %arg11[%c0_309, %c17, %c0_310] {strides = array<i32: 1, 2, 1>} : memref<8x32x128xf32, #tpu.memory_space<vmem>>, vector<8x8x128xf32>
    %278 = arith.addf %276, %277 : vector<8x8x128xf32>
    %c0_311 = arith.constant 0 : index
    %c0_312 = arith.constant 0 : index
    %c0_313 = arith.constant 0 : index
    %279 = tpu.strided_load %arg12[%c0_311, %c0_312, %c0_313] {strides = array<i32: 1, 2, 1>} : memref<8x32x128xf32, #tpu.memory_space<vmem>>, vector<8x8x128xf32>
    %280 = arith.addf %278, %279 : vector<8x8x128xf32>
    %c0_314 = arith.constant 0 : index
    %c0_315 = arith.constant 0 : index
    %c0_316 = arith.constant 0 : index
    %c0_317 = arith.constant 0 : index
    %281 = vector.load %arg7[%c0_314, %c0_315, %c0_316, %c0_317] : memref<1x8x8x128xf32, #tpu.memory_space<vmem>>, vector<1x8x8x128xf32>
    %282 = vector.shape_cast %281 : vector<1x8x8x128xf32> to vector<8x8x128xf32>
    %283 = arith.addf %280, %282 : vector<8x8x128xf32>
    %284 = vector.shape_cast %283 : vector<8x8x128xf32> to vector<1x8x8x128xf32>
    %c0_318 = arith.constant 0 : index
    %c0_319 = arith.constant 0 : index
    %c0_320 = arith.constant 0 : index
    %c0_321 = arith.constant 0 : index
    %285 = vector.load %arg8[%c0_318, %c0_319, %c0_320, %c0_321] : memref<1x8x8x128xf32, #tpu.memory_space<vmem>>, vector<1x8x8x128xf32>
    tpu.vector_store %arg8[%c0_318, %c0_319, %c0_320, %c0_321], %284 {strides = array<i32>} : memref<1x8x8x128xf32, #tpu.memory_space<vmem>>, vector<1x8x8x128xf32>,
    return
  }
  func.func @transform_0(%arg0: i32) -> (i32, i32, i32, i32) {
    %c0_i32 = arith.constant 0 : i32
    %c0_i32_0 = arith.constant 0 : i32
    %c0_i32_1 = arith.constant 0 : i32
    %c0_i32_2 = arith.constant 0 : i32
    return %arg0, %c0_i32, %c0_i32_0, %c0_i32_1 : i32, i32, i32, i32
  }
  func.func @transform_1(%arg0: i32) -> (i32, i32, i32) {
    %c0_i32 = arith.constant 0 : i32
    %c0_i32_0 = arith.constant 0 : i32
    %c0_i32_1 = arith.constant 0 : i32
    %c0_i32_2 = arith.constant 0 : i32
    return %c0_i32, %c0_i32_0, %c0_i32_1 : i32, i32, i32
  }
  func.func @transform_2(%arg0: i32) -> (i32, i32, i32, i32) {
    %c0_i32 = arith.constant 0 : i32
    %c0_i32_0 = arith.constant 0 : i32
    %c0_i32_1 = arith.constant 0 : i32
    %c0_i32_2 = arith.constant 0 : i32
    %c0_i32_3 = arith.constant 0 : i32
    return %c0_i32, %c0_i32_0, %c0_i32_1, %c0_i32_2 : i32, i32, i32, i32
  }
  func.func @transform_3(%arg0: i32) -> (i32, i32, i32) {
    %c0_i32 = arith.constant 0 : i32
    %c0_i32_0 = arith.constant 0 : i32
    %c0_i32_1 = arith.constant 0 : i32
    %c0_i32_2 = arith.constant 0 : i32
    return %c0_i32, %c0_i32_0, %c0_i32_1 : i32, i32, i32
  }
  func.func @transform_4(%arg0: i32) -> (i32, i32, i32, i32) {
    %c0_i32 = arith.constant 0 : i32
    %c0_i32_0 = arith.constant 0 : i32
    %c0_i32_1 = arith.constant 0 : i32
    %c0_i32_2 = arith.constant 0 : i32
    %c0_i32_3 = arith.constant 0 : i32
    return %c0_i32, %c0_i32_0, %c0_i32_1, %c0_i32_2 : i32, i32, i32, i32
  }
  func.func @transform_5(%arg0: i32) -> (i32, i32) {
    %c0_i32 = arith.constant 0 : i32
    %c0_i32_0 = arith.constant 0 : i32
    %c0_i32_1 = arith.constant 0 : i32
    return %c0_i32, %c0_i32_0 : i32, i32
  }
  func.func @transform_6(%arg0: i32) -> (i32, i32, i32, i32) {
    %c0_i32 = arith.constant 0 : i32
    %c0_i32_0 = arith.constant 0 : i32
    %c0_i32_1 = arith.constant 0 : i32
    %c0_i32_2 = arith.constant 0 : i32
    %c0_i32_3 = arith.constant 0 : i32
    return %c0_i32, %c0_i32_0, %c0_i32_1, %c0_i32_2 : i32, i32, i32, i32
  }
  func.func @transform_7(%arg0: i32) -> (i32, i32, i32, i32) {
    %c0_i32 = arith.constant 0 : i32
    %c0_i32_0 = arith.constant 0 : i32
    %c0_i32_1 = arith.constant 0 : i32
    %c0_i32_2 = arith.constant 0 : i32
    return %arg0, %c0_i32, %c0_i32_0, %c0_i32_1 : i32, i32, i32, i32
  }
}

</mosaic_0001>

<llo_original>
// kernel: discriminator_block_forward.1
$region0: #{discriminator_block_forward.1}
  #allocation0 [shape = 'u32[]', space=smem, size = 0x4, offset = 0x4, fixed_abs, tag = 'smem constant byte address 0x4 - core index']
  #allocation1 [shape = 'u32[144,128]{1,0:T(1,128)}', space=vmem, size = 0x12000, scoped, tag = 'internal scratch']
  #allocation2 [shape = 'bf16[18,18,4]{2,1,0:T(8,128)(2,1)}', space=vmem, size = 0x1b000, scoped, tag = 'scratch operand']
  #allocation3 [shape = 'bf16[18,18,8]{2,1,0:T(8,128)(2,1)}', space=vmem, size = 0x1b000, scoped, tag = 'scratch operand']
  #allocation4 [shape = 'f32[8,32,128]{2,1,0:T(8,128)}', space=vmem, size = 0x20000, scoped, tag = 'scratch operand']
  #allocation5 [shape = 'f32[8,32,128]{2,1,0:T(8,128)}', space=vmem, size = 0x20000, scoped, tag = 'scratch operand']
  %s0 = inlined_call_operand.vmem [shape: bf16[2,16,16,4], index: 0, kind: input, shape index: {}]
  %s1 = inlined_call_operand.vmem [shape: bf16[9,4,8], index: 1, kind: input, shape index: {}]
  %s2 = inlined_call_operand.vmem [shape: f32[1,16,16,8], index: 2, kind: input, shape index: {}]
  %s3 = inlined_call_operand.vmem [shape: bf16[9,8,128], index: 3, kind: input, shape index: {}]
  %s4 = inlined_call_operand.vmem [shape: f32[1,16,16,128], index: 4, kind: input, shape index: {}]
  %s5 = inlined_call_operand.vmem [shape: bf16[4,128], index: 5, kind: input, shape index: {}]
  %s6 = inlined_call_operand.vmem [shape: f32[1,8,8,128], index: 6, kind: input, shape index: {}]
  %s7 = inlined_call_operand.vmem [shape: f32[2,8,8,128], index: 7, kind: output, shape index: {}]
  %s8 = sld [smem:[#allocation0]]
  $region61: #{discriminator_block_forward.1} parent=0
    _
  %s10 = ssub.s32 1, %s8
  %s11 = scalar_select 0, %s10, %s8
  loop: start=0, step=1, limit=4
  $region2: #{discriminator_block_forward.1} parent=0 // loop_pre_header
    _
  $region3: #{discriminator_block_forward.1} parent=0 // loop_header
    %s13 = sphi 0, %s17
    %p14 = scmp.ge.s32.totalorder %s13, 4
    %s23 = sphi 0, %s25
    %s26 = sphi 0, %s23
    %s27 = sphi 0, %s26
    %s43 = sphi 0, %s27
    %s47 = sphi 0, %s47
    %s49 = sphi 0, %s47
    %s50 = sphi 0, %s49
    %s64 = sphi 0, %s50
    %s68 = sphi 0, %s68
    %s70 = sphi 0, %s68
    %s71 = sphi 0, %s70
    %s85 = sphi 0, %s71
    %s89 = sphi 0, %s89
    %s91 = sphi 0, %s89
    %s92 = sphi 0, %s91
    %s106 = sphi 0, %s92
    %s110 = sphi 0, %s110
    %s112 = sphi 0, %s110
    %s113 = sphi 0, %s112
    %s127 = sphi 0, %s113
    %s131 = sphi 0, %s131
    %s133 = sphi 0, %s131
    %s134 = sphi 0, %s133
    %s148 = sphi 0, %s134
    %s152 = sphi 0, %s152
    %s154 = sphi 0, %s152
    %s155 = sphi 0, %s154
    %s169 = sphi 0, %s155
    %s175 = sphi 0, %s177
    %s178 = sphi 0, %s175
    %s179 = sphi 0, %s178
    %s195 = sphi 0, %s179
  $region4: #{discriminator_block_forward.1} parent=0 // loop_header_branch
    %16 = sbr.rel (%p14) target = $region8
  $region5: #{discriminator_block_forward.1} parent=0 // loop_body
    %s18 = ssub.s32 %s13, 1
    %s19 = ssub.s32 %s13, 2
    %s20 = sadd.s32 %s13, 1
    %s21 = ssub.s32 %s13, %s20
    %p22 = scmp.eq.s32.totalorder %s21, 0
    %s24 = sadd.s32 %s23, 1
    %s25 = scalar_select %p22, %s23, %s24
    %p28 = pneg %p22
    %p29 = scmp.eq.s32.totalorder %s13, 1
    %p30 = por %p28, %p29
    %p31 = scmp.ne.s32.totalorder %s23, %s26
    %p32 = scmp.eq.s32.totalorder %s13, 0
    %p33 = por %p31, %p32
    %p34 = scmp.ne.s32.totalorder %s23, %s26
    %p35 = scmp.eq.s32.totalorder %s18, 1
    %p36 = por %p34, %p35
    %p37 = scmp.ne.s32.totalorder %s26, %s27
    %p38 = scmp.eq.s32.totalorder %s18, 0
    %p39 = por %p37, %p38
    %p40 = scmp.ne.s32.totalorder %s26, %s27
    %p41 = scmp.eq.s32.totalorder %s19, 1
    %p42 = por %p40, %p41
    %p44 = scmp.ne.s32.totalorder %s27, %s43
    %p45 = scmp.eq.s32.totalorder %s19, 0
    %p46 = por %p44, %p45
    %s48 = sadd.s32 %s47, 1
    %p51 = scmp.eq.s32.totalorder %s13, 1
    %p52 = scmp.ne.s32.totalorder %s47, %s49
    %p53 = scmp.eq.s32.totalorder %s13, 0
    %p54 = por %p52, %p53
    %p55 = scmp.ne.s32.totalorder %s47, %s49
    %p56 = scmp.eq.s32.totalorder %s18, 1
    %p57 = por %p55, %p56
    %p58 = scmp.ne.s32.totalorder %s49, %s50
    %p59 = scmp.eq.s32.totalorder %s18, 0
    %p60 = por %p58, %p59
    %p61 = scmp.ne.s32.totalorder %s49, %s50
    %p62 = scmp.eq.s32.totalorder %s19, 1
    %p63 = por %p61, %p62
    %p65 = scmp.ne.s32.totalorder %s50, %s64
    %p66 = scmp.eq.s32.totalorder %s19, 0
    %p67 = por %p65, %p66
    %s69 = sadd.s32 %s68, 1
    %p72 = scmp.eq.s32.totalorder %s13, 1
    %p73 = scmp.ne.s32.totalorder %s68, %s70
    %p74 = scmp.eq.s32.totalorder %s13, 0
    %p75 = por %p73, %p74
    %p76 = scmp.ne.s32.totalorder %s68, %s70
    %p77 = scmp.eq.s32.totalorder %s18, 1
    %p78 = por %p76, %p77
    %p79 = scmp.ne.s32.totalorder %s70, %s71
    %p80 = scmp.eq.s32.totalorder %s18, 0
    %p81 = por %p79, %p80
    %p82 = scmp.ne.s32.totalorder %s70, %s71
    %p83 = scmp.eq.s32.totalorder %s19, 1
    %p84 = por %p82, %p83
    %p86 = scmp.ne.s32.totalorder %s71, %s85
    %p87 = scmp.eq.s32.totalorder %s19, 0
    %p88 = por %p86, %p87
    %s90 = sadd.s32 %s89, 1
    %p93 = scmp.eq.s32.totalorder %s13, 1
    %p94 = scmp.ne.s32.totalorder %s89, %s91
    %p95 = scmp.eq.s32.totalorder %s13, 0
    %p96 = por %p94, %p95
    %p97 = scmp.ne.s32.totalorder %s89, %s91
    %p98 = scmp.eq.s32.totalorder %s18, 1
    %p99 = por %p97, %p98
    %p100 = scmp.ne.s32.totalorder %s91, %s92
    %p101 = scmp.eq.s32.totalorder %s18, 0
    %p102 = por %p100, %p101
    %p103 = scmp.ne.s32.totalorder %s91, %s92
    %p104 = scmp.eq.s32.totalorder %s19, 1
    %p105 = por %p103, %p104
    %p107 = scmp.ne.s32.totalorder %s92, %s106
    %p108 = scmp.eq.s32.totalorder %s19, 0
    %p109 = por %p107, %p108
    %s111 = sadd.s32 %s110, 1
    %p114 = scmp.eq.s32.totalorder %s13, 1
    %p115 = scmp.ne.s32.totalorder %s110, %s112
    %p116 = scmp.eq.s32.totalorder %s13, 0
    %p117 = por %p115, %p116
    %p118 = scmp.ne.s32.totalorder %s110, %s112
    %p119 = scmp.eq.s32.totalorder %s18, 1
    %p120 = por %p118, %p119
    %p121 = scmp.ne.s32.totalorder %s112, %s113
    %p122 = scmp.eq.s32.totalorder %s18, 0
    %p123 = por %p121, %p122
    %p124 = scmp.ne.s32.totalorder %s112, %s113
    %p125 = scmp.eq.s32.totalorder %s19, 1
    %p126 = por %p124, %p125
    %p128 = scmp.ne.s32.totalorder %s113, %s127
    %p129 = scmp.eq.s32.totalorder %s19, 0
    %p130 = por %p128, %p129
    %s132 = sadd.s32 %s131, 1
    %p135 = scmp.eq.s32.totalorder %s13, 1
    %p136 = scmp.ne.s32.totalorder %s131, %s133
    %p137 = scmp.eq.s32.totalorder %s13, 0
    %p138 = por %p136, %p137
    %p139 = scmp.ne.s32.totalorder %s131, %s133
    %p140 = scmp.eq.s32.totalorder %s18, 1
    %p141 = por %p139, %p140
    %p142 = scmp.ne.s32.totalorder %s133, %s134
    %p143 = scmp.eq.s32.totalorder %s18, 0
    %p144 = por %p142, %p143
    %p145 = scmp.ne.s32.totalorder %s133, %s134
    %p146 = scmp.eq.s32.totalorder %s19, 1
    %p147 = por %p145, %p146
    %p149 = scmp.ne.s32.totalorder %s134, %s148
    %p150 = scmp.eq.s32.totalorder %s19, 0
    %p151 = por %p149, %p150
    %s153 = sadd.s32 %s152, 1
    %p156 = scmp.eq.s32.totalorder %s13, 1
    %p157 = scmp.ne.s32.totalorder %s152, %s154
    %p158 = scmp.eq.s32.totalorder %s13, 0
    %p159 = por %p157, %p158
    %p160 = scmp.ne.s32.totalorder %s152, %s154
    %p161 = scmp.eq.s32.totalorder %s18, 1
    %p162 = por %p160, %p161
    %p163 = scmp.ne.s32.totalorder %s154, %s155
    %p164 = scmp.eq.s32.totalorder %s18, 0
    %p165 = por %p163, %p164
    %p166 = scmp.ne.s32.totalorder %s154, %s155
    %p167 = scmp.eq.s32.totalorder %s19, 1
    %p168 = por %p166, %p167
    %p170 = scmp.ne.s32.totalorder %s155, %s169
    %p171 = scmp.eq.s32.totalorder %s19, 0
    %p172 = por %p170, %p171
    %s173 = ssub.s32 %s13, %s20
    %p174 = scmp.eq.s32.totalorder %s173, 0
    %s176 = sadd.s32 %s175, 1
    %s177 = scalar_select %p174, %s175, %s176
    %p180 = pneg %p174
    %p181 = scmp.eq.s32.totalorder %s13, 1
    %p182 = por %p180, %p181
    %p183 = scmp.ne.s32.totalorder %s175, %s178
    %p184 = scmp.eq.s32.totalorder %s13, 0
    %p185 = por %p183, %p184
    %p186 = scmp.ne.s32.totalorder %s175, %s178
    %p187 = scmp.eq.s32.totalorder %s18, 1
    %p188 = por %p186, %p187
    %p189 = scmp.ne.s32.totalorder %s178, %s179
    %p190 = scmp.eq.s32.totalorder %s18, 0
    %p191 = por %p189, %p190
    %p192 = scmp.ne.s32.totalorder %s178, %s179
    %p193 = scmp.eq.s32.totalorder %s19, 1
    %p194 = por %p192, %p193
    %p196 = scmp.ne.s32.totalorder %s179, %s195
    %p197 = scmp.eq.s32.totalorder %s19, 0
    %p198 = por %p196, %p197
    %p199 = scmp.le.s32.totalorder 1, %s13
    %p200 = scmp.lt.s32.totalorder %s13, 3
    %p201 = pnand %p199, %p200
    %p202 = pneg %p201
    // Predicated region
    $region9: #{discriminator_block_forward.1} parent=5 // pred_check
      _
    $region10: #{discriminator_block_forward.1} parent=5 // pred_check_branch
      %204 = sbr.rel (%p201) target = $region12
    $region11: #{discriminator_block_forward.1} parent=5 // pred_region
      %s205 = ssub.s32 %s13, 1
      // Predicated region
      $region13: #{discriminator_block_forward.1} parent=11 // pred_check
        %p206 = pneg %p60
      $region14: #{discriminator_block_forward.1} parent=11 // pred_check_branch
        %208 = sbr.rel (%p206) target = $region16
      $region15: #{discriminator_block_forward.1} parent=11 // pred_region
        _
      $region16: #{discriminator_block_forward.1} parent=11 // pred_fallthru
        _
      // Predicated region
      $region17: #{discriminator_block_forward.1} parent=11 // pred_check
        %p209 = pneg %p81
      $region18: #{discriminator_block_forward.1} parent=11 // pred_check_branch
        %211 = sbr.rel (%p209) target = $region20
      $region19: #{discriminator_block_forward.1} parent=11 // pred_region
        _
      $region20: #{discriminator_block_forward.1} parent=11 // pred_fallthru
        _
      // Predicated region
      $region21: #{discriminator_block_forward.1} parent=11 // pred_check
        %p212 = pneg %p102
      $region22: #{discriminator_block_forward.1} parent=11 // pred_check_branch
        %214 = sbr.rel (%p212) target = $region24
      $region23: #{discriminator_block_forward.1} parent=11 // pred_region
        _
      $region24: #{discriminator_block_forward.1} parent=11 // pred_fallthru
        _
      // Predicated region
      $region25: #{discriminator_block_forward.1} parent=11 // pred_check
        %p215 = pneg %p123
      $region26: #{discriminator_block_forward.1} parent=11 // pred_check_branch
        %217 = sbr.rel (%p215) target = $region28
      $region27: #{discriminator_block_forward.1} parent=11 // pred_region
        _
      $region28: #{discriminator_block_forward.1} parent=11 // pred_fallthru
        _
      // Predicated region
      $region29: #{discriminator_block_forward.1} parent=11 // pred_check
        %p218 = pneg %p144
      $region30: #{discriminator_block_forward.1} parent=11 // pred_check_branch
        %220 = sbr.rel (%p218) target = $region32
      $region31: #{discriminator_block_forward.1} parent=11 // pred_region
        _
      $region32: #{discriminator_block_forward.1} parent=11 // pred_fallthru
        _
      // Predicated region
      $region33: #{discriminator_block_forward.1} parent=11 // pred_check
        %p221 = pneg %p165
      $region34: #{discriminator_block_forward.1} parent=11 // pred_check_branch
        %223 = sbr.rel (%p221) target = $region36
      $region35: #{discriminator_block_forward.1} parent=11 // pred_region
        _
      $region36: #{discriminator_block_forward.1} parent=11 // pred_fallthru
        _
    $region12: #{discriminator_block_forward.1} parent=5 // pred_fallthru
      _
    %p224 = scmp.lt.s32.totalorder %s13, 2
    // Predicated region
    $region37: #{discriminator_block_forward.1} parent=5 // pred_check
      %p225 = pneg %p224
    $region38: #{discriminator_block_forward.1} parent=5 // pred_check_branch
      %227 = sbr.rel (%p225) target = $region40
    $region39: #{discriminator_block_forward.1} parent=5 // pred_region
      // Predicated region
      $region41: #{discriminator_block_forward.1} parent=39 // pred_check
        %p228 = pneg %p33
      $region42: #{discriminator_block_forward.1} parent=39 // pred_check_branch
        %230 = sbr.rel (%p228) target = $region44
      $region43: #{discriminator_block_forward.1} parent=39 // pred_region
        %p231 = scmp.lt.s32.totalorder %s13, 1
        %s232 = scalar_select %p231, %s13, 1
        %s233 = smul.addr %s232, 32
        %s234 = smul.addr %s233, 4
        %s235 = scalar_lea.vmem %s0, %s234
      $region44: #{discriminator_block_forward.1} parent=39 // pred_fallthru
        _
    $region40: #{discriminator_block_forward.1} parent=5 // pred_fallthru
      _
    %p236 = scmp.le.s32.totalorder 1, %s13
    %p237 = scmp.lt.s32.totalorder %s13, 3
    %p238 = pnand %p236, %p237
    %p239 = pneg %p238
    // Predicated region
    $region45: #{discriminator_block_forward.1} parent=5 // pred_check
      _
    $region46: #{discriminator_block_forward.1} parent=5 // pred_check_branch
      %241 = sbr.rel (%p238) target = $region48
    $region47: #{discriminator_block_forward.1} parent=5 // pred_region
      %s242 = ssub.s32 %s13, 1
      %p243 = scmp.lt.s32.totalorder %s18, 1
      %s244 = scalar_select %p243, %s18, 1
      %s245 = smul.addr %s244, 32
      %s246 = smul.addr %s245, 4
      %s247 = scalar_lea.vmem %s0, %s246
      %p248 = pneg %p39
      %p249 = pneg %p36
      %p250 = pneg %p60
      %p251 = pneg %p57
      %p252 = pneg %p81
      %p253 = pneg %p78
      %p254 = pneg %p102
      %p255 = pneg %p99
      %p256 = pneg %p123
      %p257 = pneg %p120
      %p258 = pneg %p144
      %p259 = pneg %p141
      %p260 = pneg %p165
      %p261 = pneg %p162
      %p262 = pneg %p191
      %p263 = pneg %p188
      %p264 = scmp.lt.s32.totalorder %s18, 1
      %s265 = scalar_select %p264, %s18, 1
      %s266 = smul.addr %s265, 8
      %s267 = smul.addr %s266, 8
      %s268 = scalar_lea.vmem %s7, %s267
      %p269 = scmp.lt.s32.totalorder %s18, 1
      %s270 = scalar_select %p269, %s18, 1
      %s271 = smul.addr %s270, 32
      %s272 = smul.addr %s271, 4
      %s273 = scalar_lea.vmem %s0, %s272
      %p274 = scmp.lt.s32.totalorder %s18, 1
      %s275 = scalar_select %p274, %s18, 1
      %s276 = smul.addr %s275, 8
      %s277 = smul.addr %s276, 8
      %s278 = scalar_lea.vmem %s7, %s277
      %vm280 = vcmask 27648
      %281 = vst.msk [vmem:[#allocation2] sm:$0xf] %vm280, 0
      %282 = vst.msk [vmem:[#allocation2 + $0x4] sm:$0xf] %vm280, 0
      %vm283 = vcmask 24576
      %284 = vst.msk [vmem:[#allocation2 + $0x8] sm:$0x1] %vm283, 0
      %285 = vst.msk [vmem:[#allocation2 + $0xc] sm:$0xf] %vm280, 0
      %286 = vst.msk [vmem:[#allocation2 + $0x10] sm:$0xf] %vm280, 0
      %287 = vst.msk [vmem:[#allocation2 + $0x14] sm:$0x1] %vm283, 0
      %288 = vst.msk [vmem:[#allocation2 + $0x18] sm:$0xf] %vm280, 0
      %289 = vst.msk [vmem:[#allocation2 + $0x1c] sm:$0xf] %vm280, 0
      %290 = vst.msk [vmem:[#allocation2 + $0x20] sm:$0x1] %vm283, 0
      %291 = vst.msk [vmem:[#allocation2 + $0x24] sm:$0xf] %vm280, 0
      %292 = vst.msk [vmem:[#allocation2 + $0x28] sm:$0xf] %vm280, 0
      %293 = vst.msk [vmem:[#allocation2 + $0x2c] sm:$0x1] %vm283, 0
      %294 = vst.msk [vmem:[#allocation2 + $0x30] sm:$0xf] %vm280, 0
      %295 = vst.msk [vmem:[#allocation2 + $0x34] sm:$0xf] %vm280, 0
      %296 = vst.msk [vmem:[#allocation2 + $0x38] sm:$0x1] %vm283, 0
      %297 = vst.msk [vmem:[#allocation2 + $0x3c] sm:$0xf] %vm280, 0
      %298 = vst.msk [vmem:[#allocation2 + $0x40] sm:$0xf] %vm280, 0
      %299 = vst.msk [vmem:[#allocation2 + $0x44] sm:$0x1] %vm283, 0
      %300 = vst.msk [vmem:[#allocation2 + $0x48] sm:$0xf] %vm280, 0
      %301 = vst.msk [vmem:[#allocation2 + $0x4c] sm:$0xf] %vm280, 0
      %302 = vst.msk [vmem:[#allocation2 + $0x50] sm:$0x1] %vm283, 0
      %303 = vst.msk [vmem:[#allocation2 + $0x54] sm:$0xf] %vm280, 0
      %304 = vst.msk [vmem:[#allocation2 + $0x58] sm:$0xf] %vm280, 0
      %305 = vst.msk [vmem:[#allocation2 + $0x5c] sm:$0x1] %vm283, 0
      %306 = vst.msk [vmem:[#allocation2 + $0x60] sm:$0xf] %vm280, 0
      %307 = vst.msk [vmem:[#allocation2 + $0x64] sm:$0xf] %vm280, 0
      %308 = vst.msk [vmem:[#allocation2 + $0x68] sm:$0x1] %vm283, 0
      %309 = vst.msk [vmem:[#allocation2 + $0x6c] sm:$0xf] %vm280, 0
      %310 = vst.msk [vmem:[#allocation2 + $0x70] sm:$0xf] %vm280, 0
      %311 = vst.msk [vmem:[#allocation2 + $0x74] sm:$0x1] %vm283, 0
      %312 = vst.msk [vmem:[#allocation2 + $0x78] sm:$0xf] %vm280, 0
      %313 = vst.msk [vmem:[#allocation2 + $0x7c] sm:$0xf] %vm280, 0
      %314 = vst.msk [vmem:[#allocation2 + $0x80] sm:$0x1] %vm283, 0
      %315 = vst.msk [vmem:[#allocation2 + $0x84] sm:$0xf] %vm280, 0
      %316 = vst.msk [vmem:[#allocation2 + $0x88] sm:$0xf] %vm280, 0
      %317 = vst.msk [vmem:[#allocation2 + $0x8c] sm:$0x1] %vm283, 0
      %318 = vst.msk [vmem:[#allocation2 + $0x90] sm:$0xf] %vm280, 0
      %319 = vst.msk [vmem:[#allocation2 + $0x94] sm:$0xf] %vm280, 0
      %320 = vst.msk [vmem:[#allocation2 + $0x98] sm:$0x1] %vm283, 0
      %321 = vst.msk [vmem:[#allocation2 + $0x9c] sm:$0xf] %vm280, 0
      %322 = vst.msk [vmem:[#allocation2 + $0xa0] sm:$0xf] %vm280, 0
      %323 = vst.msk [vmem:[#allocation2 + $0xa4] sm:$0x1] %vm283, 0
      %324 = vst.msk [vmem:[#allocation2 + $0xa8] sm:$0xf] %vm280, 0
      %325 = vst.msk [vmem:[#allocation2 + $0xac] sm:$0xf] %vm280, 0
      %326 = vst.msk [vmem:[#allocation2 + $0xb0] sm:$0x1] %vm283, 0
      %327 = vst.msk [vmem:[#allocation2 + $0xb4] sm:$0xf] %vm280, 0
      %328 = vst.msk [vmem:[#allocation2 + $0xb8] sm:$0xf] %vm280, 0
      %329 = vst.msk [vmem:[#allocation2 + $0xbc] sm:$0x1] %vm283, 0
      %330 = vst.msk [vmem:[#allocation2 + $0xc0] sm:$0xf] %vm280, 0
      %331 = vst.msk [vmem:[#allocation2 + $0xc4] sm:$0xf] %vm280, 0
      %332 = vst.msk [vmem:[#allocation2 + $0xc8] sm:$0x1] %vm283, 0
      %333 = vst.msk [vmem:[#allocation2 + $0xcc] sm:$0xf] %vm280, 0
      %334 = vst.msk [vmem:[#allocation2 + $0xd0] sm:$0xf] %vm280, 0
      %335 = vst.msk [vmem:[#allocation2 + $0xd4] sm:$0x1] %vm283, 0
      %vm336 = vcmask 60416
      %337 = vst.msk [vmem:[#allocation3] sm:$0xf] %vm336, 0
      %338 = vst.msk [vmem:[#allocation3 + $0x4] sm:$0xf] %vm336, 0
      %vm339 = vcmask 57344
      %340 = vst.msk [vmem:[#allocation3 + $0x8] sm:$0x1] %vm339, 0
      %341 = vst.msk [vmem:[#allocation3 + $0xc] sm:$0xf] %vm336, 0
      %342 = vst.msk [vmem:[#allocation3 + $0x10] sm:$0xf] %vm336, 0
      %343 = vst.msk [vmem:[#allocation3 + $0x14] sm:$0x1] %vm339, 0
      %344 = vst.msk [vmem:[#allocation3 + $0x18] sm:$0xf] %vm336, 0
      %345 = vst.msk [vmem:[#allocation3 + $0x1c] sm:$0xf] %vm336, 0
      %346 = vst.msk [vmem:[#allocation3 + $0x20] sm:$0x1] %vm339, 0
      %347 = vst.msk [vmem:[#allocation3 + $0x24] sm:$0xf] %vm336, 0
      %348 = vst.msk [vmem:[#allocation3 + $0x28] sm:$0xf] %vm336, 0
      %349 = vst.msk [vmem:[#allocation3 + $0x2c] sm:$0x1] %vm339, 0
      %350 = vst.msk [vmem:[#allocation3 + $0x30] sm:$0xf] %vm336, 0
      %351 = vst.msk [vmem:[#allocation3 + $0x34] sm:$0xf] %vm336, 0
      %352 = vst.msk [vmem:[#allocation3 + $0x38] sm:$0x1] %vm339, 0
      %353 = vst.msk [vmem:[#allocation3 + $0x3c] sm:$0xf] %vm336, 0
      %354 = vst.msk [vmem:[#allocation3 + $0x40] sm:$0xf] %vm336, 0
      %355 = vst.msk [vmem:[#allocation3 + $0x44] sm:$0x1] %vm339, 0
      %356 = vst.msk [vmem:[#allocation3 + $0x48] sm:$0xf] %vm336, 0
      %357 = vst.msk [vmem:[#allocation3 + $0x4c] sm:$0xf] %vm336, 0
      %358 = vst.msk [vmem:[#allocation3 + $0x50] sm:$0x1] %vm339, 0
      %359 = vst.msk [vmem:[#allocation3 + $0x54] sm:$0xf] %vm336, 0
      %360 = vst.msk [vmem:[#allocation3 + $0x58] sm:$0xf] %vm336, 0
      %361 = vst.msk [vmem:[#allocation3 + $0x5c] sm:$0x1] %vm339, 0
      %362 = vst.msk [vmem:[#allocation3 + $0x60] sm:$0xf] %vm336, 0
      %363 = vst.msk [vmem:[#allocation3 + $0x64] sm:$0xf] %vm336, 0
      %364 = vst.msk [vmem:[#allocation3 + $0x68] sm:$0x1] %vm339, 0
      %365 = vst.msk [vmem:[#allocation3 + $0x6c] sm:$0xf] %vm336, 0
      %366 = vst.msk [vmem:[#allocation3 + $0x70] sm:$0xf] %vm336, 0
      %367 = vst.msk [vmem:[#allocation3 + $0x74] sm:$0x1] %vm339, 0
      %368 = vst.msk [vmem:[#allocation3 + $0x78] sm:$0xf] %vm336, 0
      %369 = vst.msk [vmem:[#allocation3 + $0x7c] sm:$0xf] %vm336, 0
      %370 = vst.msk [vmem:[#allocation3 + $0x80] sm:$0x1] %vm339, 0
      %371 = vst.msk [vmem:[#allocation3 + $0x84] sm:$0xf] %vm336, 0
      %372 = vst.msk [vmem:[#allocation3 + $0x88] sm:$0xf] %vm336, 0
      %373 = vst.msk [vmem:[#allocation3 + $0x8c] sm:$0x1] %vm339, 0
      %374 = vst.msk [vmem:[#allocation3 + $0x90] sm:$0xf] %vm336, 0
      %375 = vst.msk [vmem:[#allocation3 + $0x94] sm:$0xf] %vm336, 0
      %376 = vst.msk [vmem:[#allocation3 + $0x98] sm:$0x1] %vm339, 0
      %377 = vst.msk [vmem:[#allocation3 + $0x9c] sm:$0xf] %vm336, 0
      %378 = vst.msk [vmem:[#allocation3 + $0xa0] sm:$0xf] %vm336, 0
      %379 = vst.msk [vmem:[#allocation3 + $0xa4] sm:$0x1] %vm339, 0
      %380 = vst.msk [vmem:[#allocation3 + $0xa8] sm:$0xf] %vm336, 0
      %381 = vst.msk [vmem:[#allocation3 + $0xac] sm:$0xf] %vm336, 0
      %382 = vst.msk [vmem:[#allocation3 + $0xb0] sm:$0x1] %vm339, 0
      %383 = vst.msk [vmem:[#allocation3 + $0xb4] sm:$0xf] %vm336, 0
      %384 = vst.msk [vmem:[#allocation3 + $0xb8] sm:$0xf] %vm336, 0
      %385 = vst.msk [vmem:[#allocation3 + $0xbc] sm:$0x1] %vm339, 0
      %386 = vst.msk [vmem:[#allocation3 + $0xc0] sm:$0xf] %vm336, 0
      %387 = vst.msk [vmem:[#allocation3 + $0xc4] sm:$0xf] %vm336, 0
      %388 = vst.msk [vmem:[#allocation3 + $0xc8] sm:$0x1] %vm339, 0
      %389 = vst.msk [vmem:[#allocation3 + $0xcc] sm:$0xf] %vm336, 0
      %390 = vst.msk [vmem:[#allocation3 + $0xd0] sm:$0xf] %vm336, 0
      %391 = vst.msk [vmem:[#allocation3 + $0xd4] sm:$0x1] %vm339, 0
      %v392 = vld [vmem:[%s273] sm:$0xf]
      %v393 = vld [vmem:[%s273 + $0x4] sm:$0xf]
      %v394 = vld [vmem:[%s273 + $0x8] sm:$0xf]
      %v395 = vld [vmem:[%s273 + $0xc] sm:$0xf]
      %v396 = vld [vmem:[%s273 + $0x10] sm:$0xf]
      %v397 = vld [vmem:[%s273 + $0x14] sm:$0xf]
      %v398 = vld [vmem:[%s273 + $0x18] sm:$0xf]
      %v399 = vld [vmem:[%s273 + $0x1c] sm:$0xf]
      %v400 = vld [vmem:[%s273 + $0x20] sm:$0xf]
      %v401 = vld [vmem:[%s273 + $0x24] sm:$0xf]
      %v402 = vld [vmem:[%s273 + $0x28] sm:$0xf]
      %v403 = vld [vmem:[%s273 + $0x2c] sm:$0xf]
      %v404 = vld [vmem:[%s273 + $0x30] sm:$0xf]
      %v405 = vld [vmem:[%s273 + $0x34] sm:$0xf]
      %v406 = vld [vmem:[%s273 + $0x38] sm:$0xf]
      %v407 = vld [vmem:[%s273 + $0x3c] sm:$0xf]
      %v408 = vld [vmem:[%s273 + $0x40] sm:$0xf]
      %v409 = vld [vmem:[%s273 + $0x44] sm:$0xf]
      %v410 = vld [vmem:[%s273 + $0x48] sm:$0xf]
      %v411 = vld [vmem:[%s273 + $0x4c] sm:$0xf]
      %v412 = vld [vmem:[%s273 + $0x50] sm:$0xf]
      %v413 = vld [vmem:[%s273 + $0x54] sm:$0xf]
      %v414 = vld [vmem:[%s273 + $0x58] sm:$0xf]
      %v415 = vld [vmem:[%s273 + $0x5c] sm:$0xf]
      %v416 = vld [vmem:[%s273 + $0x60] sm:$0xf]
      %v417 = vld [vmem:[%s273 + $0x64] sm:$0xf]
      %v418 = vld [vmem:[%s273 + $0x68] sm:$0xf]
      %v419 = vld [vmem:[%s273 + $0x6c] sm:$0xf]
      %v420 = vld [vmem:[%s273 + $0x70] sm:$0xf]
      %v421 = vld [vmem:[%s273 + $0x74] sm:$0xf]
      %v422 = vld [vmem:[%s273 + $0x78] sm:$0xf]
      %v423 = vld [vmem:[%s273 + $0x7c] sm:$0xf]
      %vm424 = vsmask.f32 256
      %vm425 = vsmask.f32 4368
      %vm426 = vmor %vm424, %vm425
      %v428 = vshrl.u32 %v392, 16
      %v430 = vrot.slane %v428, 7
      %v431 = vshll.u32 %v392, 16
      %v433 = vor.u32 %v430, %v431
      %v434 = vrot.slane %v430, 4
      %v436 = vshrl.u32 %v393, 16
      %v438 = vrot.slane %v436, 7
      %v439 = vshll.u32 %v393, 16
      %v441 = vor.u32 %v438, %v439
      %v442 = vsel %vm426, %v434, %v441
      %v443 = vrot.slane %v438, 4
      %v445 = vshrl.u32 %v394, 16
      %v447 = vrot.slane %v445, 7
      %v448 = vshll.u32 %v394, 16
      %v450 = vor.u32 %v447, %v448
      %v451 = vrot.slane %v447, 4
      %v453 = vshrl.u32 %v395, 16
      %v455 = vrot.slane %v453, 7
      %v456 = vshll.u32 %v395, 16
      %v458 = vor.u32 %v455, %v456
      %v459 = vsel %vm426, %v451, %v458
      %v460 = vrot.slane %v455, 4
      %v462 = vshrl.u32 %v396, 16
      %v464 = vrot.slane %v462, 7
      %v465 = vshll.u32 %v396, 16
      %v467 = vor.u32 %v464, %v465
      %v468 = vrot.slane %v464, 4
      %v470 = vshrl.u32 %v397, 16
      %v472 = vrot.slane %v470, 7
      %v473 = vshll.u32 %v397, 16
      %v475 = vor.u32 %v472, %v473
      %v476 = vsel %vm426, %v468, %v475
      %v477 = vrot.slane %v472, 4
      %v479 = vshrl.u32 %v398, 16
      %v481 = vrot.slane %v479, 7
      %v482 = vshll.u32 %v398, 16
      %v484 = vor.u32 %v481, %v482
      %v485 = vrot.slane %v481, 4
      %v487 = vshrl.u32 %v399, 16
      %v489 = vrot.slane %v487, 7
      %v490 = vshll.u32 %v399, 16
      %v492 = vor.u32 %v489, %v490
      %v493 = vsel %vm426, %v485, %v492
      %v494 = vrot.slane %v489, 4
      %v496 = vshrl.u32 %v400, 16
      %v498 = vrot.slane %v496, 7
      %v499 = vshll.u32 %v400, 16
      %v501 = vor.u32 %v498, %v499
      %v502 = vrot.slane %v498, 4
      %v504 = vshrl.u32 %v401, 16
      %v506 = vrot.slane %v504, 7
      %v507 = vshll.u32 %v401, 16
      %v509 = vor.u32 %v506, %v507
      %v510 = vsel %vm426, %v502, %v509
      %v511 = vrot.slane %v506, 4
      %v513 = vshrl.u32 %v402, 16
      %v515 = vrot.slane %v513, 7
      %v516 = vshll.u32 %v402, 16
      %v518 = vor.u32 %v515, %v516
      %v519 = vrot.slane %v515, 4
      %v521 = vshrl.u32 %v403, 16
      %v523 = vrot.slane %v521, 7
      %v524 = vshll.u32 %v403, 16
      %v526 = vor.u32 %v523, %v524
      %v527 = vsel %vm426, %v519, %v526
      %v528 = vrot.slane %v523, 4
      %v530 = vshrl.u32 %v404, 16
      %v532 = vrot.slane %v530, 7
      %v533 = vshll.u32 %v404, 16
      %v535 = vor.u32 %v532, %v533
      %v536 = vrot.slane %v532, 4
      %v538 = vshrl.u32 %v405, 16
      %v540 = vrot.slane %v538, 7
      %v541 = vshll.u32 %v405, 16
      %v543 = vor.u32 %v540, %v541
      %v544 = vsel %vm426, %v536, %v543
      %v545 = vrot.slane %v540, 4
      %v547 = vshrl.u32 %v406, 16
      %v549 = vrot.slane %v547, 7
      %v550 = vshll.u32 %v406, 16
      %v552 = vor.u32 %v549, %v550
      %v553 = vrot.slane %v549, 4
      %v555 = vshrl.u32 %v407, 16
      %v557 = vrot.slane %v555, 7
      %v558 = vshll.u32 %v407, 16
      %v560 = vor.u32 %v557, %v558
      %v561 = vsel %vm426, %v553, %v560
      %v562 = vrot.slane %v557, 4
      %v564 = vshrl.u32 %v408, 16
      %v566 = vrot.slane %v564, 7
      %v567 = vshll.u32 %v408, 16
      %v569 = vor.u32 %v566, %v567
      %v570 = vrot.slane %v566, 4
      %v572 = vshrl.u32 %v409, 16
      %v574 = vrot.slane %v572, 7
      %v575 = vshll.u32 %v409, 16
      %v577 = vor.u32 %v574, %v575
      %v578 = vsel %vm426, %v570, %v577
      %v579 = vrot.slane %v574, 4
      %v581 = vshrl.u32 %v410, 16
      %v583 = vrot.slane %v581, 7
      %v584 = vshll.u32 %v410, 16
      %v586 = vor.u32 %v583, %v584
      %v587 = vrot.slane %v583, 4
      %v589 = vshrl.u32 %v411, 16
      %v591 = vrot.slane %v589, 7
      %v592 = vshll.u32 %v411, 16
      %v594 = vor.u32 %v591, %v592
      %v595 = vsel %vm426, %v587, %v594
      %v596 = vrot.slane %v591, 4
      %v598 = vshrl.u32 %v412, 16
      %v600 = vrot.slane %v598, 7
      %v601 = vshll.u32 %v412, 16
      %v603 = vor.u32 %v600, %v601
      %v604 = vrot.slane %v600, 4
      %v606 = vshrl.u32 %v413, 16
      %v608 = vrot.slane %v606, 7
      %v609 = vshll.u32 %v413, 16
      %v611 = vor.u32 %v608, %v609
      %v612 = vsel %vm426, %v604, %v611
      %v613 = vrot.slane %v608, 4
      %v615 = vshrl.u32 %v414, 16
      %v617 = vrot.slane %v615, 7
      %v618 = vshll.u32 %v414, 16
      %v620 = vor.u32 %v617, %v618
      %v621 = vrot.slane %v617, 4
      %v623 = vshrl.u32 %v415, 16
      %v625 = vrot.slane %v623, 7
      %v626 = vshll.u32 %v415, 16
      %v628 = vor.u32 %v625, %v626
      %v629 = vsel %vm426, %v621, %v628
      %v630 = vrot.slane %v625, 4
      %v632 = vshrl.u32 %v416, 16
      %v634 = vrot.slane %v632, 7
      %v635 = vshll.u32 %v416, 16
      %v637 = vor.u32 %v634, %v635
      %v638 = vrot.slane %v634, 4
      %v640 = vshrl.u32 %v417, 16
      %v642 = vrot.slane %v640, 7
      %v643 = vshll.u32 %v417, 16
      %v645 = vor.u32 %v642, %v643
      %v646 = vsel %vm426, %v638, %v645
      %v647 = vrot.slane %v642, 4
      %v649 = vshrl.u32 %v418, 16
      %v651 = vrot.slane %v649, 7
      %v652 = vshll.u32 %v418, 16
      %v654 = vor.u32 %v651, %v652
      %v655 = vrot.slane %v651, 4
      %v657 = vshrl.u32 %v419, 16
      %v659 = vrot.slane %v657, 7
      %v660 = vshll.u32 %v419, 16
      %v662 = vor.u32 %v659, %v660
      %v663 = vsel %vm426, %v655, %v662
      %v664 = vrot.slane %v659, 4
      %v666 = vshrl.u32 %v420, 16
      %v668 = vrot.slane %v666, 7
      %v669 = vshll.u32 %v420, 16
      %v671 = vor.u32 %v668, %v669
      %v672 = vrot.slane %v668, 4
      %v674 = vshrl.u32 %v421, 16
      %v676 = vrot.slane %v674, 7
      %v677 = vshll.u32 %v421, 16
      %v679 = vor.u32 %v676, %v677
      %v680 = vsel %vm426, %v672, %v679
      %v681 = vrot.slane %v676, 4
      %v683 = vshrl.u32 %v422, 16
      %v685 = vrot.slane %v683, 7
      %v686 = vshll.u32 %v422, 16
      %v688 = vor.u32 %v685, %v686
      %v689 = vrot.slane %v685, 4
      %v691 = vshrl.u32 %v423, 16
      %v693 = vrot.slane %v691, 7
      %v694 = vshll.u32 %v423, 16
      %v696 = vor.u32 %v693, %v694
      %v697 = vsel %vm426, %v689, %v696
      %v698 = vrot.slane %v693, 4
      %s747 = scalar_lea.vmem [#allocation2], 12
      %vm748 = vcmask 27648
      %vm749 = vsmask.f32 7938
      %vm750 = vmand %vm748, %vm749
      %v751 = vld [vmem:[%s747] sm:$0xf]
      %v752 = vsel %vm750, %v433, %v751
      %753 = vst [vmem:[%s747] sm:$0xf] %v752
      %754 = vst.msk [vmem:[%s747 + $0x4] sm:$0xf] %vm280, %v442
      %vm755 = vcmask 24576
      %vm756 = vmand %vm755, %vm424
      %v757 = vld [vmem:[%s747 + $0x8] sm:$0x1]
      %v758 = vsel %vm756, %v443, %v757
      %759 = vst [vmem:[%s747 + $0x8] sm:$0x1] %v758
      %v760 = vld [vmem:[%s747 + $0xc] sm:$0xf]
      %v761 = vsel %vm750, %v450, %v760
      %762 = vst [vmem:[%s747 + $0xc] sm:$0xf] %v761
      %763 = vst.msk [vmem:[%s747 + $0x10] sm:$0xf] %vm280, %v459
      %v764 = vld [vmem:[%s747 + $0x14] sm:$0x1]
      %v765 = vsel %vm756, %v460, %v764
      %766 = vst [vmem:[%s747 + $0x14] sm:$0x1] %v765
      %v767 = vld [vmem:[%s747 + $0x18] sm:$0xf]
      %v768 = vsel %vm750, %v467, %v767
      %769 = vst [vmem:[%s747 + $0x18] sm:$0xf] %v768
      %770 = vst.msk [vmem:[%s747 + $0x1c] sm:$0xf] %vm280, %v476
      %v771 = vld [vmem:[%s747 + $0x20] sm:$0x1]
      %v772 = vsel %vm756, %v477, %v771
      %773 = vst [vmem:[%s747 + $0x20] sm:$0x1] %v772
      %v774 = vld [vmem:[%s747 + $0x24] sm:$0xf]
      %v775 = vsel %vm750, %v484, %v774
      %776 = vst [vmem:[%s747 + $0x24] sm:$0xf] %v775
      %777 = vst.msk [vmem:[%s747 + $0x28] sm:$0xf] %vm280, %v493
      %v778 = vld [vmem:[%s747 + $0x2c] sm:$0x1]
      %v779 = vsel %vm756, %v494, %v778
      %780 = vst [vmem:[%s747 + $0x2c] sm:$0x1] %v779
      %v781 = vld [vmem:[%s747 + $0x30] sm:$0xf]
      %v782 = vsel %vm750, %v501, %v781
      %783 = vst [vmem:[%s747 + $0x30] sm:$0xf] %v782
      %784 = vst.msk [vmem:[%s747 + $0x34] sm:$0xf] %vm280, %v510
      %v785 = vld [vmem:[%s747 + $0x38] sm:$0x1]
      %v786 = vsel %vm756, %v511, %v785
      %787 = vst [vmem:[%s747 + $0x38] sm:$0x1] %v786
      %v788 = vld [vmem:[%s747 + $0x3c] sm:$0xf]
      %v789 = vsel %vm750, %v518, %v788
      %790 = vst [vmem:[%s747 + $0x3c] sm:$0xf] %v789
      %791 = vst.msk [vmem:[%s747 + $0x40] sm:$0xf] %vm280, %v527
      %v792 = vld [vmem:[%s747 + $0x44] sm:$0x1]
      %v793 = vsel %vm756, %v528, %v792
      %794 = vst [vmem:[%s747 + $0x44] sm:$0x1] %v793
      %v795 = vld [vmem:[%s747 + $0x48] sm:$0xf]
      %v796 = vsel %vm750, %v535, %v795
      %797 = vst [vmem:[%s747 + $0x48] sm:$0xf] %v796
      %798 = vst.msk [vmem:[%s747 + $0x4c] sm:$0xf] %vm280, %v544
      %v799 = vld [vmem:[%s747 + $0x50] sm:$0x1]
      %v800 = vsel %vm756, %v545, %v799
      %801 = vst [vmem:[%s747 + $0x50] sm:$0x1] %v800
      %v802 = vld [vmem:[%s747 + $0x54] sm:$0xf]
      %v803 = vsel %vm750, %v552, %v802
      %804 = vst [vmem:[%s747 + $0x54] sm:$0xf] %v803
      %805 = vst.msk [vmem:[%s747 + $0x58] sm:$0xf] %vm280, %v561
      %v806 = vld [vmem:[%s747 + $0x5c] sm:$0x1]
      %v807 = vsel %vm756, %v562, %v806
      %808 = vst [vmem:[%s747 + $0x5c] sm:$0x1] %v807
      %v809 = vld [vmem:[%s747 + $0x60] sm:$0xf]
      %v810 = vsel %vm750, %v569, %v809
      %811 = vst [vmem:[%s747 + $0x60] sm:$0xf] %v810
      %812 = vst.msk [vmem:[%s747 + $0x64] sm:$0xf] %vm280, %v578
      %v813 = vld [vmem:[%s747 + $0x68] sm:$0x1]
      %v814 = vsel %vm756, %v579, %v813
      %815 = vst [vmem:[%s747 + $0x68] sm:$0x1] %v814
      %v816 = vld [vmem:[%s747 + $0x6c] sm:$0xf]
      %v817 = vsel %vm750, %v586, %v816
      %818 = vst [vmem:[%s747 + $0x6c] sm:$0xf] %v817
      %819 = vst.msk [vmem:[%s747 + $0x70] sm:$0xf] %vm280, %v595
      %v820 = vld [vmem:[%s747 + $0x74] sm:$0x1]
      %v821 = vsel %vm756, %v596, %v820
      %822 = vst [vmem:[%s747 + $0x74] sm:$0x1] %v821
      %v823 = vld [vmem:[%s747 + $0x78] sm:$0xf]
      %v824 = vsel %vm750, %v603, %v823
      %825 = vst [vmem:[%s747 + $0x78] sm:$0xf] %v824
      %826 = vst.msk [vmem:[%s747 + $0x7c] sm:$0xf] %vm280, %v612
      %v827 = vld [vmem:[%s747 + $0x80] sm:$0x1]
      %v828 = vsel %vm756, %v613, %v827
      %829 = vst [vmem:[%s747 + $0x80] sm:$0x1] %v828
      %v830 = vld [vmem:[%s747 + $0x84] sm:$0xf]
      %v831 = vsel %vm750, %v620, %v830
      %832 = vst [vmem:[%s747 + $0x84] sm:$0xf] %v831
      %833 = vst.msk [vmem:[%s747 + $0x88] sm:$0xf] %vm280, %v629
      %v834 = vld [vmem:[%s747 + $0x8c] sm:$0x1]
      %v835 = vsel %vm756, %v630, %v834
      %836 = vst [vmem:[%s747 + $0x8c] sm:$0x1] %v835
      %v837 = vld [vmem:[%s747 + $0x90] sm:$0xf]
      %v838 = vsel %vm750, %v637, %v837
      %839 = vst [vmem:[%s747 + $0x90] sm:$0xf] %v838
      %840 = vst.msk [vmem:[%s747 + $0x94] sm:$0xf] %vm280, %v646
      %v841 = vld [vmem:[%s747 + $0x98] sm:$0x1]
      %v842 = vsel %vm756, %v647, %v841
      %843 = vst [vmem:[%s747 + $0x98] sm:$0x1] %v842
      %v844 = vld [vmem:[%s747 + $0x9c] sm:$0xf]
      %v845 = vsel %vm750, %v654, %v844
      %846 = vst [vmem:[%s747 + $0x9c] sm:$0xf] %v845
      %847 = vst.msk [vmem:[%s747 + $0xa0] sm:$0xf] %vm280, %v663
      %v848 = vld [vmem:[%s747 + $0xa4] sm:$0x1]
      %v849 = vsel %vm756, %v664, %v848
      %850 = vst [vmem:[%s747 + $0xa4] sm:$0x1] %v849
      %v851 = vld [vmem:[%s747 + $0xa8] sm:$0xf]
      %v852 = vsel %vm750, %v671, %v851
      %853 = vst [vmem:[%s747 + $0xa8] sm:$0xf] %v852
      %854 = vst.msk [vmem:[%s747 + $0xac] sm:$0xf] %vm280, %v680
      %v855 = vld [vmem:[%s747 + $0xb0] sm:$0x1]
      %v856 = vsel %vm756, %v681, %v855
      %857 = vst [vmem:[%s747 + $0xb0] sm:$0x1] %v856
      %v858 = vld [vmem:[%s747 + $0xb4] sm:$0xf]
      %v859 = vsel %vm750, %v688, %v858
      %860 = vst [vmem:[%s747 + $0xb4] sm:$0xf] %v859
      %861 = vst.msk [vmem:[%s747 + $0xb8] sm:$0xf] %vm280, %v697
      %v862 = vld [vmem:[%s747 + $0xbc] sm:$0x1]
      %v863 = vsel %vm756, %v698, %v862
      %864 = vst [vmem:[%s747 + $0xbc] sm:$0x1] %v863
      %v865 = vld [vmem:[%s273] sm:$0xf]
      %v866 = vld [vmem:[%s273 + $0x4] sm:$0xf]
      %v867 = vld [vmem:[%s273 + $0x8] sm:$0xf]
      %v868 = vld [vmem:[%s273 + $0xc] sm:$0xf]
      %v869 = vld [vmem:[%s273 + $0x10] sm:$0xf]
      %v870 = vld [vmem:[%s273 + $0x14] sm:$0xf]
      %v871 = vld [vmem:[%s273 + $0x18] sm:$0xf]
      %v872 = vld [vmem:[%s273 + $0x1c] sm:$0xf]
      %v873 = vld [vmem:[%s273 + $0x20] sm:$0xf]
      %v874 = vld [vmem:[%s273 + $0x24] sm:$0xf]
      %v875 = vld [vmem:[%s273 + $0x28] sm:$0xf]
      %v876 = vld [vmem:[%s273 + $0x2c] sm:$0xf]
      %v877 = vld [vmem:[%s273 + $0x30] sm:$0xf]
      %v878 = vld [vmem:[%s273 + $0x34] sm:$0xf]
      %v879 = vld [vmem:[%s273 + $0x38] sm:$0xf]
      %v880 = vld [vmem:[%s273 + $0x3c] sm:$0xf]
      %v881 = vld [vmem:[%s273 + $0x40] sm:$0xf]
      %v882 = vld [vmem:[%s273 + $0x44] sm:$0xf]
      %v883 = vld [vmem:[%s273 + $0x48] sm:$0xf]
      %v884 = vld [vmem:[%s273 + $0x4c] sm:$0xf]
      %v885 = vld [vmem:[%s273 + $0x50] sm:$0xf]
      %v886 = vld [vmem:[%s273 + $0x54] sm:$0xf]
      %v887 = vld [vmem:[%s273 + $0x58] sm:$0xf]
      %v888 = vld [vmem:[%s273 + $0x5c] sm:$0xf]
      %v889 = vld [vmem:[%s273 + $0x60] sm:$0xf]
      %v890 = vld [vmem:[%s273 + $0x64] sm:$0xf]
      %v891 = vld [vmem:[%s273 + $0x68] sm:$0xf]
      %v892 = vld [vmem:[%s273 + $0x6c] sm:$0xf]
      %v893 = vld [vmem:[%s273 + $0x70] sm:$0xf]
      %v894 = vld [vmem:[%s273 + $0x74] sm:$0xf]
      %v895 = vld [vmem:[%s273 + $0x78] sm:$0xf]
      %v896 = vld [vmem:[%s273 + $0x7c] sm:$0xf]
      %v897 = vld [vmem:[%s5] sm:$0x3]
      %v930 = vunpack.c.l.b16 %v865
      %v931 = vunpack.c.l.b16 %v866
      %v932 = vunpack.c.l.b16 %v867
      %v933 = vunpack.c.l.b16 %v868
      %v934 = vunpack.c.l.b16 %v869
      %v935 = vunpack.c.l.b16 %v870
      %v936 = vunpack.c.l.b16 %v871
      %v937 = vunpack.c.l.b16 %v872
      %v938 = vunpack.c.l.b16 %v873
      %v939 = vunpack.c.l.b16 %v874
      %v940 = vunpack.c.l.b16 %v875
      %v941 = vunpack.c.l.b16 %v876
      %v942 = vunpack.c.l.b16 %v877
      %v943 = vunpack.c.l.b16 %v878
      %v944 = vunpack.c.l.b16 %v879
      %v945 = vunpack.c.l.b16 %v880
      %v946 = vunpack.c.l.b16 %v881
      %v947 = vunpack.c.l.b16 %v882
      %v948 = vunpack.c.l.b16 %v883
      %v949 = vunpack.c.l.b16 %v884
      %v950 = vunpack.c.l.b16 %v885
      %v951 = vunpack.c.l.b16 %v886
      %v952 = vunpack.c.l.b16 %v887
      %v953 = vunpack.c.l.b16 %v888
      %v954 = vunpack.c.l.b16 %v889
      %v955 = vunpack.c.l.b16 %v890
      %v956 = vunpack.c.l.b16 %v891
      %v957 = vunpack.c.l.b16 %v892
      %v958 = vunpack.c.l.b16 %v893
      %v959 = vunpack.c.l.b16 %v894
      %v960 = vunpack.c.l.b16 %v895
      %v961 = vunpack.c.l.b16 %v896
      %v962 = vpack.c.b16 %v931, %v930
      %v963 = vpack.c.b16 %v933, %v932
      %v964 = vpack.c.b16 %v935, %v934
      %v965 = vpack.c.b16 %v937, %v936
      %v966 = vpack.c.b16 %v939, %v938
      %v967 = vpack.c.b16 %v941, %v940
      %v968 = vpack.c.b16 %v943, %v942
      %v969 = vpack.c.b16 %v945, %v944
      %v970 = vpack.c.b16 %v947, %v946
      %v971 = vpack.c.b16 %v949, %v948
      %v972 = vpack.c.b16 %v951, %v950
      %v973 = vpack.c.b16 %v953, %v952
      %v974 = vpack.c.b16 %v955, %v954
      %v975 = vpack.c.b16 %v957, %v956
      %v976 = vpack.c.b16 %v959, %v958
      %v977 = vpack.c.b16 %v961, %v960
      %vm978 = vcmask 31744
      %v980 = vsel %vm978, %v962, 0
      %v983 = vsel %vm978, %v963, 0
      %v986 = vsel %vm978, %v964, 0
      %v989 = vsel %vm978, %v965, 0
      %v992 = vsel %vm978, %v966, 0
      %v995 = vsel %vm978, %v967, 0
      %v998 = vsel %vm978, %v968, 0
      %v1001 = vsel %vm978, %v969, 0
      %v1004 = vsel %vm978, %v970, 0
      %v1007 = vsel %vm978, %v971, 0
      %v1010 = vsel %vm978, %v972, 0
      %v1013 = vsel %vm978, %v973, 0
      %v1016 = vsel %vm978, %v974, 0
      %v1019 = vsel %vm978, %v975, 0
      %v1022 = vsel %vm978, %v976, 0
      %v1025 = vsel %vm978, %v977, 0
      %vm1027 = vcmask 1041408
      %v1029 = vsel %vm1027, %v897, 0
      %1031 = vmatprep.subr.bf16.mxu0 0
      %1032 = vmatpush1.bf16.msra.mxu0 %v1029
      %1033 = vmatprep.subr.bf16.mxu0 0
      %1034 = vmatpush1.bf16.msra.mxu0 0
      %1035 = vmatprep.subr.bf16.mxu0 0
      %1036 = vmatpush1.bf16.msra.mxu0 0
      %1037 = vmatprep.subr.bf16.mxu0 0
      %1038 = vmatpush1.bf16.msra.mxu0 0
      %1039 = vmatprep.subr.bf16.mxu0 0
      %1040 = vmatpush1.bf16.msra.mxu0 0
      %1041 = vmatprep.subr.bf16.mxu0 0
      %1042 = vmatpush1.bf16.msra.mxu0 0
      %1043 = vmatprep.subr.bf16.mxu0 0
      %1044 = vmatpush1.bf16.msra.mxu0 0
      %1045 = vmatprep.subr.bf16.mxu0 0
      %1046 = vmatpush1.bf16.msra.mxu0 0
      %1047 = vmatprep.subr.bf16.mxu0 0
      %1048 = vmatpush1.bf16.msra.mxu0 0
      %1049 = vmatprep.subr.bf16.mxu0 0
      %1050 = vmatpush1.bf16.msra.mxu0 0
      %1051 = vmatprep.subr.bf16.mxu0 0
      %1052 = vmatpush1.bf16.msra.mxu0 0
      %1053 = vmatprep.subr.bf16.mxu0 0
      %1054 = vmatpush1.bf16.msra.mxu0 0
      %1055 = vmatprep.subr.bf16.mxu0 0
      %1056 = vmatpush1.bf16.msra.mxu0 0
      %1057 = vmatprep.subr.bf16.mxu0 0
      %1058 = vmatpush1.bf16.msra.mxu0 0
      %1059 = vmatprep.subr.bf16.mxu0 0
      %1060 = vmatpush1.bf16.msra.mxu0 0
      %1061 = vmatprep.subr.bf16.mxu0 0
      %1062 = vmatpush1.bf16.msra.mxu0 0
      %1063 = vmatprep.mubr.bf16.mxu0 0
      %1064 = vmatmul.mubr.bf16.gmra.mrb[0].mxu0 %v980
      %v1065 = vpop.f32.mrb[0].mxu0
      %v1066 = vadd.f32 0.0, %v1065
      %v1067 = vpop.f32.mrb[0].mxu0
      %v1068 = vpop.f32.mrb[0].mxu0
      %v1069 = vadd.f32 0.0, %v1068
      %v1070 = vpop.f32.mrb[0].mxu0
      %1071 = vmatprep.mubr.bf16.mxu0 0
      %1072 = vmatmul.mubr.bf16.gmra.mrb[0].mxu0 %v983
      %v1073 = vpop.f32.mrb[0].mxu0
      %v1074 = vadd.f32 0.0, %v1073
      %v1075 = vpop.f32.mrb[0].mxu0
      %v1076 = vpop.f32.mrb[0].mxu0
      %v1077 = vadd.f32 0.0, %v1076
      %v1078 = vpop.f32.mrb[0].mxu0
      %1079 = vmatprep.mubr.bf16.mxu0 0
      %1080 = vmatmul.mubr.bf16.gmra.mrb[0].mxu0 %v986
      %v1081 = vpop.f32.mrb[0].mxu0
      %v1082 = vadd.f32 0.0, %v1081
      %v1083 = vpop.f32.mrb[0].mxu0
      %v1084 = vpop.f32.mrb[0].mxu0
      %v1085 = vadd.f32 0.0, %v1084
      %v1086 = vpop.f32.mrb[0].mxu0
      %1087 = vmatprep.mubr.bf16.mxu0 0
      %1088 = vmatmul.mubr.bf16.gmra.mrb[0].mxu0 %v989
      %v1089 = vpop.f32.mrb[0].mxu0
      %v1090 = vadd.f32 0.0, %v1089
      %v1091 = vpop.f32.mrb[0].mxu0
      %v1092 = vpop.f32.mrb[0].mxu0
      %v1093 = vadd.f32 0.0, %v1092
      %v1094 = vpop.f32.mrb[0].mxu0
      %1095 = vmatprep.mubr.bf16.mxu0 0
      %1096 = vmatmul.mubr.bf16.gmra.mrb[0].mxu0 %v992
      %v1097 = vpop.f32.mrb[0].mxu0
      %v1098 = vadd.f32 0.0, %v1097
      %v1099 = vpop.f32.mrb[0].mxu0
      %v1100 = vpop.f32.mrb[0].mxu0
      %v1101 = vadd.f32 0.0, %v1100
      %v1102 = vpop.f32.mrb[0].mxu0
      %1103 = vmatprep.mubr.bf16.mxu0 0
      %1104 = vmatmul.mubr.bf16.gmra.mrb[0].mxu0 %v995
      %v1105 = vpop.f32.mrb[0].mxu0
      %v1106 = vadd.f32 0.0, %v1105
      %v1107 = vpop.f32.mrb[0].mxu0
      %v1108 = vpop.f32.mrb[0].mxu0
      %v1109 = vadd.f32 0.0, %v1108
      %v1110 = vpop.f32.mrb[0].mxu0
      %1111 = vmatprep.mubr.bf16.mxu0 0
      %1112 = vmatmul.mubr.bf16.gmra.mrb[0].mxu0 %v998
      %v1113 = vpop.f32.mrb[0].mxu0
      %v1114 = vadd.f32 0.0, %v1113
      %v1115 = vpop.f32.mrb[0].mxu0
      %v1116 = vpop.f32.mrb[0].mxu0
      %v1117 = vadd.f32 0.0, %v1116
      %v1118 = vpop.f32.mrb[0].mxu0
      %1119 = vmatprep.mubr.bf16.mxu0 0
      %1120 = vmatmul.mubr.bf16.gmra.mrb[0].mxu0 %v1001
      %v1121 = vpop.f32.mrb[0].mxu0
      %v1122 = vadd.f32 0.0, %v1121
      %v1123 = vpop.f32.mrb[0].mxu0
      %v1124 = vpop.f32.mrb[0].mxu0
      %v1125 = vadd.f32 0.0, %v1124
      %v1126 = vpop.f32.mrb[0].mxu0
      %1127 = vmatprep.mubr.bf16.mxu0 0
      %1128 = vmatmul.mubr.bf16.gmra.mrb[0].mxu0 %v1004
      %v1129 = vpop.f32.mrb[0].mxu0
      %v1130 = vadd.f32 0.0, %v1129
      %v1131 = vpop.f32.mrb[0].mxu0
      %v1132 = vpop.f32.mrb[0].mxu0
      %v1133 = vadd.f32 0.0, %v1132
      %v1134 = vpop.f32.mrb[0].mxu0
      %1135 = vmatprep.mubr.bf16.mxu0 0
      %1136 = vmatmul.mubr.bf16.gmra.mrb[0].mxu0 %v1007
      %v1137 = vpop.f32.mrb[0].mxu0
      %v1138 = vadd.f32 0.0, %v1137
      %v1139 = vpop.f32.mrb[0].mxu0
      %v1140 = vpop.f32.mrb[0].mxu0
      %v1141 = vadd.f32 0.0, %v1140
      %v1142 = vpop.f32.mrb[0].mxu0
      %1143 = vmatprep.mubr.bf16.mxu0 0
      %1144 = vmatmul.mubr.bf16.gmra.mrb[0].mxu0 %v1010
      %v1145 = vpop.f32.mrb[0].mxu0
      %v1146 = vadd.f32 0.0, %v1145
      %v1147 = vpop.f32.mrb[0].mxu0
      %v1148 = vpop.f32.mrb[0].mxu0
      %v1149 = vadd.f32 0.0, %v1148
      %v1150 = vpop.f32.mrb[0].mxu0
      %1151 = vmatprep.mubr.bf16.mxu0 0
      %1152 = vmatmul.mubr.bf16.gmra.mrb[0].mxu0 %v1013
      %v1153 = vpop.f32.mrb[0].mxu0
      %v1154 = vadd.f32 0.0, %v1153
      %v1155 = vpop.f32.mrb[0].mxu0
      %v1156 = vpop.f32.mrb[0].mxu0
      %v1157 = vadd.f32 0.0, %v1156
      %v1158 = vpop.f32.mrb[0].mxu0
      %1159 = vmatprep.mubr.bf16.mxu0 0
      %1160 = vmatmul.mubr.bf16.gmra.mrb[0].mxu0 %v1016
      %v1161 = vpop.f32.mrb[0].mxu0
      %v1162 = vadd.f32 0.0, %v1161
      %v1163 = vpop.f32.mrb[0].mxu0
      %v1164 = vpop.f32.mrb[0].mxu0
      %v1165 = vadd.f32 0.0, %v1164
      %v1166 = vpop.f32.mrb[0].mxu0
      %1167 = vmatprep.mubr.bf16.mxu0 0
      %1168 = vmatmul.mubr.bf16.gmra.mrb[0].mxu0 %v1019
      %v1169 = vpop.f32.mrb[0].mxu0
      %v1170 = vadd.f32 0.0, %v1169
      %v1171 = vpop.f32.mrb[0].mxu0
      %v1172 = vpop.f32.mrb[0].mxu0
      %v1173 = vadd.f32 0.0, %v1172
      %v1174 = vpop.f32.mrb[0].mxu0
      %1175 = vmatprep.mubr.bf16.mxu0 0
      %1176 = vmatmul.mubr.bf16.gmra.mrb[0].mxu0 %v1022
      %v1177 = vpop.f32.mrb[0].mxu0
      %v1178 = vadd.f32 0.0, %v1177
      %v1179 = vpop.f32.mrb[0].mxu0
      %v1180 = vpop.f32.mrb[0].mxu0
      %v1181 = vadd.f32 0.0, %v1180
      %v1182 = vpop.f32.mrb[0].mxu0
      %1183 = vmatprep.mubr.bf16.mxu0 0
      %1184 = vmatmul.mubr.bf16.gmra.mrb[0].mxu0 %v1025
      %v1185 = vpop.f32.mrb[0].mxu0
      %v1186 = vadd.f32 0.0, %v1185
      %v1187 = vpop.f32.mrb[0].mxu0
      %v1188 = vpop.f32.mrb[0].mxu0
      %v1189 = vadd.f32 0.0, %v1188
      %v1190 = vpop.f32.mrb[0].mxu0
      %1191 = vdwg.mxu0
      %1192 = vst [vmem:[#allocation5] sm:$0xff] %v1066
      %1193 = vst [vmem:[#allocation5 + $0x8] sm:$0xff] %v1069
      %1194 = vst [vmem:[#allocation5 + $0x10] sm:$0xff] %v1074
      %1195 = vst [vmem:[#allocation5 + $0x18] sm:$0xff] %v1077
      %1196 = vst [vmem:[#allocation5 + $0x20] sm:$0xff] %v1082
      %1197 = vst [vmem:[#allocation5 + $0x28] sm:$0xff] %v1085
      %1198 = vst [vmem:[#allocation5 + $0x30] sm:$0xff] %v1090
      %1199 = vst [vmem:[#allocation5 + $0x38] sm:$0xff] %v1093
      %1200 = vst [vmem:[#allocation5 + $0x40] sm:$0xff] %v1098
      %1201 = vst [vmem:[#allocation5 + $0x48] sm:$0xff] %v1101
      %1202 = vst [vmem:[#allocation5 + $0x50] sm:$0xff] %v1106
      %1203 = vst [vmem:[#allocation5 + $0x58] sm:$0xff] %v1109
      %1204 = vst [vmem:[#allocation5 + $0x60] sm:$0xff] %v1114
      %1205 = vst [vmem:[#allocation5 + $0x68] sm:$0xff] %v1117
      %1206 = vst [vmem:[#allocation5 + $0x70] sm:$0xff] %v1122
      %1207 = vst [vmem:[#allocation5 + $0x78] sm:$0xff] %v1125
      %1208 = vst [vmem:[#allocation5 + $0x80] sm:$0xff] %v1130
      %1209 = vst [vmem:[#allocation5 + $0x88] sm:$0xff] %v1133
      %1210 = vst [vmem:[#allocation5 + $0x90] sm:$0xff] %v1138
      %1211 = vst [vmem:[#allocation5 + $0x98] sm:$0xff] %v1141
      %1212 = vst [vmem:[#allocation5 + $0xa0] sm:$0xff] %v1146
      %1213 = vst [vmem:[#allocation5 + $0xa8] sm:$0xff] %v1149
      %1214 = vst [vmem:[#allocation5 + $0xb0] sm:$0xff] %v1154
      %1215 = vst [vmem:[#allocation5 + $0xb8] sm:$0xff] %v1157
      %1216 = vst [vmem:[#allocation5 + $0xc0] sm:$0xff] %v1162
      %1217 = vst [vmem:[#allocation5 + $0xc8] sm:$0xff] %v1165
      %1218 = vst [vmem:[#allocation5 + $0xd0] sm:$0xff] %v1170
      %1219 = vst [vmem:[#allocation5 + $0xd8] sm:$0xff] %v1173
      %1220 = vst [vmem:[#allocation5 + $0xe0] sm:$0xff] %v1178
      %1221 = vst [vmem:[#allocation5 + $0xe8] sm:$0xff] %v1181
      %1222 = vst [vmem:[#allocation5 + $0xf0] sm:$0xff] %v1186
      %1223 = vst [vmem:[#allocation5 + $0xf8] sm:$0xff] %v1189
      %v1224 = vld [vmem:[%s2] sm:$0xff]
      %v1225 = vld [vmem:[%s2 + $0x8] sm:$0xff]
      %v1226 = vld [vmem:[%s2 + $0x10] sm:$0xff]
      %v1227 = vld [vmem:[%s2 + $0x18] sm:$0xff]
      %v1228 = vld [vmem:[%s2 + $0x20] sm:$0xff]
      %v1229 = vld [vmem:[%s2 + $0x28] sm:$0xff]
      %v1230 = vld [vmem:[%s2 + $0x30] sm:$0xff]
      %v1231 = vld [vmem:[%s2 + $0x38] sm:$0xff]
      %v1232 = vld [vmem:[%s2 + $0x40] sm:$0xff]
      %v1233 = vld [vmem:[%s2 + $0x48] sm:$0xff]
      %v1234 = vld [vmem:[%s2 + $0x50] sm:$0xff]
      %v1235 = vld [vmem:[%s2 + $0x58] sm:$0xff]
      %v1236 = vld [vmem:[%s2 + $0x60] sm:$0xff]
      %v1237 = vld [vmem:[%s2 + $0x68] sm:$0xff]
      %v1238 = vld [vmem:[%s2 + $0x70] sm:$0xff]
      %v1239 = vld [vmem:[%s2 + $0x78] sm:$0xff]
      %v1240 = vld [vmem:[#allocation2] sm:$0xf]
      %v1241 = vld [vmem:[#allocation2 + $0x4] sm:$0xf]
      %v1242 = vld [vmem:[#allocation2 + $0xc] sm:$0xf]
      %v1243 = vld [vmem:[#allocation2 + $0x10] sm:$0xf]
      %v1244 = vld [vmem:[#allocation2 + $0x18] sm:$0xf]
      %v1245 = vld [vmem:[#allocation2 + $0x1c] sm:$0xf]
      %v1246 = vld [vmem:[#allocation2 + $0x24] sm:$0xf]
      %v1247 = vld [vmem:[#allocation2 + $0x28] sm:$0xf]
      %v1248 = vld [vmem:[#allocation2 + $0x30] sm:$0xf]
      %v1249 = vld [vmem:[#allocation2 + $0x34] sm:$0xf]
      %v1250 = vld [vmem:[#allocation2 + $0x3c] sm:$0xf]
      %v1251 = vld [vmem:[#allocation2 + $0x40] sm:$0xf]
      %v1252 = vld [vmem:[#allocation2 + $0x48] sm:$0xf]
      %v1253 = vld [vmem:[#allocation2 + $0x4c] sm:$0xf]
      %v1254 = vld [vmem:[#allocation2 + $0x54] sm:$0xf]
      %v1255 = vld [vmem:[#allocation2 + $0x58] sm:$0xf]
      %v1256 = vld [vmem:[%s1] sm:$0x3]
      %v1273 = vunpack.c.l.b16 %v1240
      %v1274 = vunpack.c.l.b16 %v1241
      %v1275 = vunpack.c.l.b16 %v1242
      %v1276 = vunpack.c.l.b16 %v1243
      %v1277 = vunpack.c.l.b16 %v1244
      %v1278 = vunpack.c.l.b16 %v1245
      %v1279 = vunpack.c.l.b16 %v1246
      %v1280 = vunpack.c.l.b16 %v1247
      %v1281 = vunpack.c.l.b16 %v1248
      %v1282 = vunpack.c.l.b16 %v1249
      %v1283 = vunpack.c.l.b16 %v1250
      %v1284 = vunpack.c.l.b16 %v1251
      %v1285 = vunpack.c.l.b16 %v1252
      %v1286 = vunpack.c.l.b16 %v1253
      %v1287 = vunpack.c.l.b16 %v1254
      %v1288 = vunpack.c.l.b16 %v1255
      %v1289 = vpack.c.b16 %v1274, %v1273
      %v1290 = vpack.c.b16 %v1276, %v1275
      %v1291 = vpack.c.b16 %v1278, %v1277
      %v1292 = vpack.c.b16 %v1280, %v1279
      %v1293 = vpack.c.b16 %v1282, %v1281
      %v1294 = vpack.c.b16 %v1284, %v1283
      %v1295 = vpack.c.b16 %v1286, %v1285
      %v1296 = vpack.c.b16 %v1288, %v1287
      %v1298 = vsel %vm978, %v1289, 0
      %v1301 = vsel %vm978, %v1290, 0
      %v1304 = vsel %vm978, %v1291, 0
      %v1307 = vsel %vm978, %v1292, 0
      %v1310 = vsel %vm978, %v1293, 0
      %v1313 = vsel %vm978, %v1294, 0
      %v1316 = vsel %vm978, %v1295, 0
      %v1319 = vsel %vm978, %v1296, 0
      %v1322 = vsel %vm1027, %v1256, 0
      %1324 = vmatprep.subr.bf16.mxu0 0
      %1325 = vmatpush1.bf16.msra.mxu0 %v1322
      %1326 = vmatprep.subr.bf16.mxu0 0
      %1327 = vmatpush1.bf16.msra.mxu0 0
      %1328 = vmatprep.subr.bf16.mxu0 0
      %1329 = vmatpush1.bf16.msra.mxu0 0
      %1330 = vmatprep.subr.bf16.mxu0 0
      %1331 = vmatpush1.bf16.msra.mxu0 0
      %1332 = vmatprep.subr.bf16.mxu0 0
      %1333 = vmatpush1.bf16.msra.mxu0 0
      %1334 = vmatprep.subr.bf16.mxu0 0
      %1335 = vmatpush1.bf16.msra.mxu0 0
      %1336 = vmatprep.subr.bf16.mxu0 0
      %1337 = vmatpush1.bf16.msra.mxu0 0
      %1338 = vmatprep.subr.bf16.mxu0 0
      %1339 = vmatpush1.bf16.msra.mxu0 0
      %1340 = vmatprep.subr.bf16.mxu0 0
      %1341 = vmatpush1.bf16.msra.mxu0 0
      %1342 = vmatprep.subr.bf16.mxu0 0
      %1343 = vmatpush1.bf16.msra.mxu0 0
      %1344 = vmatprep.subr.bf16.mxu0 0
      %1345 = vmatpush1.bf16.msra.mxu0 0
      %1346 = vmatprep.subr.bf16.mxu0 0
      %1347 = vmatpush1.bf16.msra.mxu0 0
      %1348 = vmatprep.subr.bf16.mxu0 0
      %1349 = vmatpush1.bf16.msra.mxu0 0
      %1350 = vmatprep.subr.bf16.mxu0 0
      %1351 = vmatpush1.bf16.msra.mxu0 0
      %1352 = vmatprep.subr.bf16.mxu0 0
      %1353 = vmatpush1.bf16.msra.mxu0 0
      %1354 = vmatprep.subr.bf16.mxu0 0
      %1355 = vmatpush1.bf16.msra.mxu0 0
      %1356 = vmatprep.mubr.bf16.mxu0 0
      %1357 = vmatmul.mubr.bf16.gmra.mrb[0].mxu0 %v1298
      %v1358 = vpop.f32.mrb[0].mxu0
      %v1359 = vadd.f32 0.0, %v1358
      %v1360 = vpop.f32.mrb[0].mxu0
      %v1361 = vpop.f32.mrb[0].mxu0
      %v1362 = vadd.f32 0.0, %v1361
      %v1363 = vpop.f32.mrb[0].mxu0
      %1364 = vmatprep.mubr.bf16.mxu0 0
      %1365 = vmatmul.mubr.bf16.gmra.mrb[0].mxu0 %v1301
      %v1366 = vpop.f32.mrb[0].mxu0
      %v1367 = vadd.f32 0.0, %v1366
      %v1368 = vpop.f32.mrb[0].mxu0
      %v1369 = vpop.f32.mrb[0].mxu0
      %v1370 = vadd.f32 0.0, %v1369
      %v1371 = vpop.f32.mrb[0].mxu0
      %1372 = vmatprep.mubr.bf16.mxu0 0
      %1373 = vmatmul.mubr.bf16.gmra.mrb[0].mxu0 %v1304
      %v1374 = vpop.f32.mrb[0].mxu0
      %v1375 = vadd.f32 0.0, %v1374
      %v1376 = vpop.f32.mrb[0].mxu0
      %v1377 = vpop.f32.mrb[0].mxu0
      %v1378 = vadd.f32 0.0, %v1377
      %v1379 = vpop.f32.mrb[0].mxu0
      %1380 = vmatprep.mubr.bf16.mxu0 0
      %1381 = vmatmul.mubr.bf16.gmra.mrb[0].mxu0 %v1307
      %v1382 = vpop.f32.mrb[0].mxu0
      %v1383 = vadd.f32 0.0, %v1382
      %v1384 = vpop.f32.mrb[0].mxu0
      %v1385 = vpop.f32.mrb[0].mxu0
      %v1386 = vadd.f32 0.0, %v1385
      %v1387 = vpop.f32.mrb[0].mxu0
      %1388 = vmatprep.mubr.bf16.mxu0 0
      %1389 = vmatmul.mubr.bf16.gmra.mrb[0].mxu0 %v1310
      %v1390 = vpop.f32.mrb[0].mxu0
      %v1391 = vadd.f32 0.0, %v1390
      %v1392 = vpop.f32.mrb[0].mxu0
      %v1393 = vpop.f32.mrb[0].mxu0
      %v1394 = vadd.f32 0.0, %v1393
      %v1395 = vpop.f32.mrb[0].mxu0
      %1396 = vmatprep.mubr.bf16.mxu0 0
      %1397 = vmatmul.mubr.bf16.gmra.mrb[0].mxu0 %v1313
      %v1398 = vpop.f32.mrb[0].mxu0
      %v1399 = vadd.f32 0.0, %v1398
      %v1400 = vpop.f32.mrb[0].mxu0
      %v1401 = vpop.f32.mrb[0].mxu0
      %v1402 = vadd.f32 0.0, %v1401
      %v1403 = vpop.f32.mrb[0].mxu0
      %1404 = vmatprep.mubr.bf16.mxu0 0
      %1405 = vmatmul.mubr.bf16.gmra.mrb[0].mxu0 %v1316
      %v1406 = vpop.f32.mrb[0].mxu0
      %v1407 = vadd.f32 0.0, %v1406
      %v1408 = vpop.f32.mrb[0].mxu0
      %v1409 = vpop.f32.mrb[0].mxu0
      %v1410 = vadd.f32 0.0, %v1409
      %v1411 = vpop.f32.mrb[0].mxu0
      %1412 = vmatprep.mubr.bf16.mxu0 0
      %1413 = vmatmul.mubr.bf16.gmra.mrb[0].mxu0 %v1319
      %v1414 = vpop.f32.mrb[0].mxu0
      %v1415 = vadd.f32 0.0, %v1414
      %v1416 = vpop.f32.mrb[0].mxu0
      %v1417 = vpop.f32.mrb[0].mxu0
      %v1418 = vadd.f32 0.0, %v1417
      %v1419 = vpop.f32.mrb[0].mxu0
      %1420 = vdwg.mxu0
      %v1421 = vadd.f32 %v1224, %v1359
      %v1422 = vadd.f32 %v1225, %v1362
      %v1423 = vadd.f32 %v1226, %v1367
      %v1424 = vadd.f32 %v1227, %v1370
      %v1425 = vadd.f32 %v1228, %v1375
      %v1426 = vadd.f32 %v1229, %v1378
      %v1427 = vadd.f32 %v1230, %v1383
      %v1428 = vadd.f32 %v1231, %v1386
      %v1429 = vadd.f32 %v1232, %v1391
      %v1430 = vadd.f32 %v1233, %v1394
      %v1431 = vadd.f32 %v1234, %v1399
      %v1432 = vadd.f32 %v1235, %v1402
      %v1433 = vadd.f32 %v1236, %v1407
      %v1434 = vadd.f32 %v1237, %v1410
      %v1435 = vadd.f32 %v1238, %v1415
      %v1436 = vadd.f32 %v1239, %v1418
      %v1437 = vld [vmem:[#allocation2] sm:$0xf]
      %v1438 = vld [vmem:[#allocation2 + $0x4] sm:$0xf]
      %v1439 = vld [vmem:[#allocation2 + $0x8] sm:$0x1]
      %v1440 = vld [vmem:[#allocation2 + $0xc] sm:$0xf]
      %v1441 = vld [vmem:[#allocation2 + $0x10] sm:$0xf]
      %v1442 = vld [vmem:[#allocation2 + $0x14] sm:$0x1]
      %v1443 = vld [vmem:[#allocation2 + $0x18] sm:$0xf]
      %v1444 = vld [vmem:[#allocation2 + $0x1c] sm:$0xf]
      %v1445 = vld [vmem:[#allocation2 + $0x20] sm:$0x1]
      %v1446 = vld [vmem:[#allocation2 + $0x24] sm:$0xf]
      %v1447 = vld [vmem:[#allocation2 + $0x28] sm:$0xf]
      %v1448 = vld [vmem:[#allocation2 + $0x2c] sm:$0x1]
      %v1449 = vld [vmem:[#allocation2 + $0x30] sm:$0xf]
      %v1450 = vld [vmem:[#allocation2 + $0x34] sm:$0xf]
      %v1451 = vld [vmem:[#allocation2 + $0x38] sm:$0x1]
      %v1452 = vld [vmem:[#allocation2 + $0x3c] sm:$0xf]
      %v1453 = vld [vmem:[#allocation2 + $0x40] sm:$0xf]
      %v1454 = vld [vmem:[#allocation2 + $0x44] sm:$0x1]
      %v1455 = vld [vmem:[#allocation2 + $0x48] sm:$0xf]
      %v1456 = vld [vmem:[#allocation2 + $0x4c] sm:$0xf]
      %v1457 = vld [vmem:[#allocation2 + $0x50] sm:$0x1]
      %v1458 = vld [vmem:[#allocation2 + $0x54] sm:$0xf]
      %v1459 = vld [vmem:[#allocation2 + $0x58] sm:$0xf]
      %v1460 = vld [vmem:[#allocation2 + $0x5c] sm:$0x1]
      %vm1461 = vsmask.f32 3328
      %vm1462 = vsmask.f32 7440
      %vm1463 = vmor %vm1461, %vm1462
      %v1465 = vshrl.u32 %v1437, 16
      %v1467 = vrot.slane %v1465, 4
      %v1468 = vshll.u32 %v1437, 16
      %v1470 = vrot.slane %v1468, 5
      %v1471 = vor.u32 %v1467, %v1470
      %v1472 = vrot.slane %v1471, 4
      %v1474 = vshll.u32 %v1438, 16
      %v1476 = vrot.slane %v1474, 5
      %v1477 = vsel %vm1463, %v1472, %v1476
      %v1478 = vshrl.u32 %v1438, 16
      %v1480 = vrot.slane %v1478, 4
      %v1481 = vor.u32 %v1480, %v1476
      %v1482 = vrot.slane %v1481, 4
      %v1484 = vshll.u32 %v1439, 16
      %v1486 = vrot.slane %v1484, 5
      %v1487 = vsel %vm1463, %v1482, %v1486
      %v1489 = vshrl.u32 %v1440, 16
      %v1491 = vrot.slane %v1489, 4
      %v1492 = vshll.u32 %v1440, 16
      %v1494 = vrot.slane %v1492, 5
      %v1495 = vor.u32 %v1491, %v1494
      %v1496 = vrot.slane %v1495, 4
      %v1498 = vshll.u32 %v1441, 16
      %v1500 = vrot.slane %v1498, 5
      %v1501 = vsel %vm1463, %v1496, %v1500
      %v1502 = vshrl.u32 %v1441, 16
      %v1504 = vrot.slane %v1502, 4
      %v1505 = vor.u32 %v1504, %v1500
      %v1506 = vrot.slane %v1505, 4
      %v1508 = vshll.u32 %v1442, 16
      %v1510 = vrot.slane %v1508, 5
      %v1511 = vsel %vm1463, %v1506, %v1510
      %v1513 = vshrl.u32 %v1443, 16
      %v1515 = vrot.slane %v1513, 4
      %v1516 = vshll.u32 %v1443, 16
      %v1518 = vrot.slane %v1516, 5
      %v1519 = vor.u32 %v1515, %v1518
      %v1520 = vrot.slane %v1519, 4
      %v1522 = vshll.u32 %v1444, 16
      %v1524 = vrot.slane %v1522, 5
      %v1525 = vsel %vm1463, %v1520, %v1524
      %v1526 = vshrl.u32 %v1444, 16
      %v1528 = vrot.slane %v1526, 4
      %v1529 = vor.u32 %v1528, %v1524
      %v1530 = vrot.slane %v1529, 4
      %v1532 = vshll.u32 %v1445, 16
      %v1534 = vrot.slane %v1532, 5
      %v1535 = vsel %vm1463, %v1530, %v1534
      %v1537 = vshrl.u32 %v1446, 16
      %v1539 = vrot.slane %v1537, 4
      %v1540 = vshll.u32 %v1446, 16
      %v1542 = vrot.slane %v1540, 5
      %v1543 = vor.u32 %v1539, %v1542
      %v1544 = vrot.slane %v1543, 4
      %v1546 = vshll.u32 %v1447, 16
      %v1548 = vrot.slane %v1546, 5
      %v1549 = vsel %vm1463, %v1544, %v1548
      %v1550 = vshrl.u32 %v1447, 16
      %v1552 = vrot.slane %v1550, 4
      %v1553 = vor.u32 %v1552, %v1548
      %v1554 = vrot.slane %v1553, 4
      %v1556 = vshll.u32 %v1448, 16
      %v1558 = vrot.slane %v1556, 5
      %v1559 = vsel %vm1463, %v1554, %v1558
      %v1561 = vshrl.u32 %v1449, 16
      %v1563 = vrot.slane %v1561, 4
      %v1564 = vshll.u32 %v1449, 16
      %v1566 = vrot.slane %v1564, 5
      %v1567 = vor.u32 %v1563, %v1566
      %v1568 = vrot.slane %v1567, 4
      %v1570 = vshll.u32 %v1450, 16
      %v1572 = vrot.slane %v1570, 5
      %v1573 = vsel %vm1463, %v1568, %v1572
      %v1574 = vshrl.u32 %v1450, 16
      %v1576 = vrot.slane %v1574, 4
      %v1577 = vor.u32 %v1576, %v1572
      %v1578 = vrot.slane %v1577, 4
      %v1580 = vshll.u32 %v1451, 16
      %v1582 = vrot.slane %v1580, 5
      %v1583 = vsel %vm1463, %v1578, %v1582
      %v1585 = vshrl.u32 %v1452, 16
      %v1587 = vrot.slane %v1585, 4
      %v1588 = vshll.u32 %v1452, 16
      %v1590 = vrot.slane %v1588, 5
      %v1591 = vor.u32 %v1587, %v1590
      %v1592 = vrot.slane %v1591, 4
      %v1594 = vshll.u32 %v1453, 16
      %v1596 = vrot.slane %v1594, 5
      %v1597 = vsel %vm1463, %v1592, %v1596
      %v1598 = vshrl.u32 %v1453, 16
      %v1600 = vrot.slane %v1598, 4
      %v1601 = vor.u32 %v1600, %v1596
      %v1602 = vrot.slane %v1601, 4
      %v1604 = vshll.u32 %v1454, 16
      %v1606 = vrot.slane %v1604, 5
      %v1607 = vsel %vm1463, %v1602, %v1606
      %v1609 = vshrl.u32 %v1455, 16
      %v1611 = vrot.slane %v1609, 4
      %v1612 = vshll.u32 %v1455, 16
      %v1614 = vrot.slane %v1612, 5
      %v1615 = vor.u32 %v1611, %v1614
      %v1616 = vrot.slane %v1615, 4
      %v1618 = vshll.u32 %v1456, 16
      %v1620 = vrot.slane %v1618, 5
      %v1621 = vsel %vm1463, %v1616, %v1620
      %v1622 = vshrl.u32 %v1456, 16
      %v1624 = vrot.slane %v1622, 4
      %v1625 = vor.u32 %v1624, %v1620
      %v1626 = vrot.slane %v1625, 4
      %v1628 = vshll.u32 %v1457, 16
      %v1630 = vrot.slane %v1628, 5
      %v1631 = vsel %vm1463, %v1626, %v1630
      %v1633 = vshrl.u32 %v1458, 16
      %v1635 = vrot.slane %v1633, 4
      %v1636 = vshll.u32 %v1458, 16
      %v1638 = vrot.slane %v1636, 5
      %v1639 = vor.u32 %v1635, %v1638
      %v1640 = vrot.slane %v1639, 4
      %v1642 = vshll.u32 %v1459, 16
      %v1644 = vrot.slane %v1642, 5
      %v1645 = vsel %vm1463, %v1640, %v1644
      %v1646 = vshrl.u32 %v1459, 16
      %v1648 = vrot.slane %v1646, 4
      %v1649 = vor.u32 %v1648, %v1644
      %v1650 = vrot.slane %v1649, 4
      %v1652 = vshll.u32 %v1460, 16
      %v1654 = vrot.slane %v1652, 5
      %v1655 = vsel %vm1463, %v1650, %v1654
      %s1656 = scalar_lea.vmem %s1, 2
      %v1657 = vld [vmem:[%s1656] sm:$0x3]
      %v1658 = vunpack.c.l.b16 %v1477
      %v1659 = vunpack.c.l.b16 %v1487
      %v1660 = vunpack.c.l.b16 %v1501
      %v1661 = vunpack.c.l.b16 %v1511
      %v1662 = vunpack.c.l.b16 %v1525
      %v1663 = vunpack.c.l.b16 %v1535
      %v1664 = vunpack.c.l.b16 %v1549
      %v1665 = vunpack.c.l.b16 %v1559
      %v1666 = vunpack.c.l.b16 %v1573
      %v1667 = vunpack.c.l.b16 %v1583
      %v1668 = vunpack.c.l.b16 %v1597
      %v1669 = vunpack.c.l.b16 %v1607
      %v1670 = vunpack.c.l.b16 %v1621
      %v1671 = vunpack.c.l.b16 %v1631
      %v1672 = vunpack.c.l.b16 %v1645
      %v1673 = vunpack.c.l.b16 %v1655
      %v1674 = vpack.c.b16 %v1659, %v1658
      %v1675 = vpack.c.b16 %v1661, %v1660
      %v1676 = vpack.c.b16 %v1663, %v1662
      %v1677 = vpack.c.b16 %v1665, %v1664
      %v1678 = vpack.c.b16 %v1667, %v1666
      %v1679 = vpack.c.b16 %v1669, %v1668
      %v1680 = vpack.c.b16 %v1671, %v1670
      %v1681 = vpack.c.b16 %v1673, %v1672
      %v1683 = vsel %vm978, %v1674, 0
      %v1686 = vsel %vm978, %v1675, 0
      %v1689 = vsel %vm978, %v1676, 0
      %v1692 = vsel %vm978, %v1677, 0
      %v1695 = vsel %vm978, %v1678, 0
      %v1698 = vsel %vm978, %v1679, 0
      %v1701 = vsel %vm978, %v1680, 0
      %v1704 = vsel %vm978, %v1681, 0
      %v1707 = vsel %vm1027, %v1657, 0
      %1709 = vmatprep.subr.bf16.mxu0 0
      %1710 = vmatpush1.bf16.msra.mxu0 %v1707
      %1711 = vmatprep.subr.bf16.mxu0 0
      %1712 = vmatpush1.bf16.msra.mxu0 0
      %1713 = vmatprep.subr.bf16.mxu0 0
      %1714 = vmatpush1.bf16.msra.mxu0 0
      %1715 = vmatprep.subr.bf16.mxu0 0
      %1716 = vmatpush1.bf16.msra.mxu0 0
      %1717 = vmatprep.subr.bf16.mxu0 0
      %1718 = vmatpush1.bf16.msra.mxu0 0
      %1719 = vmatprep.subr.bf16.mxu0 0
      %1720 = vmatpush1.bf16.msra.mxu0 0
      %1721 = vmatprep.subr.bf16.mxu0 0
      %1722 = vmatpush1.bf16.msra.mxu0 0
      %1723 = vmatprep.subr.bf16.mxu0 0
      %1724 = vmatpush1.bf16.msra.mxu0 0
      %1725 = vmatprep.subr.bf16.mxu0 0
      %1726 = vmatpush1.bf16.msra.mxu0 0
      %1727 = vmatprep.subr.bf16.mxu0 0
      %1728 = vmatpush1.bf16.msra.mxu0 0
      %1729 = vmatprep.subr.bf16.mxu0 0
      %1730 = vmatpush1.bf16.msra.mxu0 0
      %1731 = vmatprep.subr.bf16.mxu0 0
      %1732 = vmatpush1.bf16.msra.mxu0 0
      %1733 = vmatprep.subr.bf16.mxu0 0
      %1734 = vmatpush1.bf16.msra.mxu0 0
      %1735 = vmatprep.subr.bf16.mxu0 0
      %1736 = vmatpush1.bf16.msra.mxu0 0
      %1737 = vmatprep.subr.bf16.mxu0 0
      %1738 = vmatpush1.bf16.msra.mxu0 0
      %1739 = vmatprep.subr.bf16.mxu0 0
      %1740 = vmatpush1.bf16.msra.mxu0 0
      %1741 = vmatprep.mubr.bf16.mxu0 0
      %1742 = vmatmul.mubr.bf16.gmra.mrb[0].mxu0 %v1683
      %v1743 = vpop.f32.mrb[0].mxu0
      %v1744 = vadd.f32 0.0, %v1743
      %v1745 = vpop.f32.mrb[0].mxu0
      %v1746 = vpop.f32.mrb[0].mxu0
      %v1747 = vadd.f32 0.0, %v1746
      %v1748 = vpop.f32.mrb[0].mxu0
      %1749 = vmatprep.mubr.bf16.mxu0 0
      %1750 = vmatmul.mubr.bf16.gmra.mrb[0].mxu0 %v1686
      %v1751 = vpop.f32.mrb[0].mxu0
      %v1752 = vadd.f32 0.0, %v1751
      %v1753 = vpop.f32.mrb[0].mxu0
      %v1754 = vpop.f32.mrb[0].mxu0
      %v1755 = vadd.f32 0.0, %v1754
      %v1756 = vpop.f32.mrb[0].mxu0
      %1757 = vmatprep.mubr.bf16.mxu0 0
      %1758 = vmatmul.mubr.bf16.gmra.mrb[0].mxu0 %v1689
      %v1759 = vpop.f32.mrb[0].mxu0
      %v1760 = vadd.f32 0.0, %v1759
      %v1761 = vpop.f32.mrb[0].mxu0
      %v1762 = vpop.f32.mrb[0].mxu0
      %v1763 = vadd.f32 0.0, %v1762
      %v1764 = vpop.f32.mrb[0].mxu0
      %1765 = vmatprep.mubr.bf16.mxu0 0
      %1766 = vmatmul.mubr.bf16.gmra.mrb[0].mxu0 %v1692
      %v1767 = vpop.f32.mrb[0].mxu0
      %v1768 = vadd.f32 0.0, %v1767
      %v1769 = vpop.f32.mrb[0].mxu0
      %v1770 = vpop.f32.mrb[0].mxu0
      %v1771 = vadd.f32 0.0, %v1770
      %v1772 = vpop.f32.mrb[0].mxu0
      %1773 = vmatprep.mubr.bf16.mxu0 0
      %1774 = vmatmul.mubr.bf16.gmra.mrb[0].mxu0 %v1695
      %v1775 = vpop.f32.mrb[0].mxu0
      %v1776 = vadd.f32 0.0, %v1775
      %v1777 = vpop.f32.mrb[0].mxu0
      %v1778 = vpop.f32.mrb[0].mxu0
      %v1779 = vadd.f32 0.0, %v1778
      %v1780 = vpop.f32.mrb[0].mxu0
      %1781 = vmatprep.mubr.bf16.mxu0 0
      %1782 = vmatmul.mubr.bf16.gmra.mrb[0].mxu0 %v1698
      %v1783 = vpop.f32.mrb[0].mxu0
      %v1784 = vadd.f32 0.0, %v1783
      %v1785 = vpop.f32.mrb[0].mxu0
      %v1786 = vpop.f32.mrb[0].mxu0
      %v1787 = vadd.f32 0.0, %v1786
      %v1788 = vpop.f32.mrb[0].mxu0
      %1789 = vmatprep.mubr.bf16.mxu0 0
      %1790 = vmatmul.mubr.bf16.gmra.mrb[0].mxu0 %v1701
      %v1791 = vpop.f32.mrb[0].mxu0
      %v1792 = vadd.f32 0.0, %v1791
      %v1793 = vpop.f32.mrb[0].mxu0
      %v1794 = vpop.f32.mrb[0].mxu0
      %v1795 = vadd.f32 0.0, %v1794
      %v1796 = vpop.f32.mrb[0].mxu0
      %1797 = vmatprep.mubr.bf16.mxu0 0
      %1798 = vmatmul.mubr.bf16.gmra.mrb[0].mxu0 %v1704
      %v1799 = vpop.f32.mrb[0].mxu0
      %v1800 = vadd.f32 0.0, %v1799
      %v1801 = vpop.f32.mrb[0].mxu0
      %v1802 = vpop.f32.mrb[0].mxu0
      %v1803 = vadd.f32 0.0, %v1802
      %v1804 = vpop.f32.mrb[0].mxu0
      %1805 = vdwg.mxu0
      %v1806 = vadd.f32 %v1421, %v1744
      %v1807 = vadd.f32 %v1422, %v1747
      %v1808 = vadd.f32 %v1423, %v1752
      %v1809 = vadd.f32 %v1424, %v1755
      %v1810 = vadd.f32 %v1425, %v1760
      %v1811 = vadd.f32 %v1426, %v1763
      %v1812 = vadd.f32 %v1427, %v1768
      %v1813 = vadd.f32 %v1428, %v1771
      %v1814 = vadd.f32 %v1429, %v1776
      %v1815 = vadd.f32 %v1430, %v1779
      %v1816 = vadd.f32 %v1431, %v1784
      %v1817 = vadd.f32 %v1432, %v1787
      %v1818 = vadd.f32 %v1433, %v1792
      %v1819 = vadd.f32 %v1434, %v1795
      %v1820 = vadd.f32 %v1435, %v1800
      %v1821 = vadd.f32 %v1436, %v1803
      %v1822 = vld [vmem:[#allocation2] sm:$0xe]
      %v1823 = vld [vmem:[#allocation2 + $0xc] sm:$0xe]
      %v1824 = vld [vmem:[#allocation2 + $0x18] sm:$0xe]
      %v1825 = vld [vmem:[#allocation2 + $0x24] sm:$0xe]
      %v1826 = vld [vmem:[#allocation2 + $0x30] sm:$0xe]
      %v1827 = vld [vmem:[#allocation2 + $0x3c] sm:$0xe]
      %v1828 = vld [vmem:[#allocation2 + $0x48] sm:$0xe]
      %v1829 = vld [vmem:[#allocation2 + $0x54] sm:$0xe]
      %vm1854 = vcmask 1042432
      %vm1855 = vcmask 1046532
      %vm1856 = vmor %vm1854, %vm1855
      %v1857 = vrot.slane %v1822, 5
      %v1858 = vrot.slane %v1857, 4
      %v1859 = vrot.slane %v1438, 5
      %v1860 = vsel %vm1856, %v1858, %v1859
      %v1861 = vrot.slane %v1859, 4
      %v1862 = vrot.slane %v1439, 5
      %v1863 = vsel %vm1856, %v1861, %v1862
      %v1864 = vrot.slane %v1823, 5
      %v1865 = vrot.slane %v1864, 4
      %v1866 = vrot.slane %v1441, 5
      %v1867 = vsel %vm1856, %v1865, %v1866
      %v1868 = vrot.slane %v1866, 4
      %v1869 = vrot.slane %v1442, 5
      %v1870 = vsel %vm1856, %v1868, %v1869
      %v1871 = vrot.slane %v1824, 5
      %v1872 = vrot.slane %v1871, 4
      %v1873 = vrot.slane %v1444, 5
      %v1874 = vsel %vm1856, %v1872, %v1873
      %v1875 = vrot.slane %v1873, 4
      %v1876 = vrot.slane %v1445, 5
      %v1877 = vsel %vm1856, %v1875, %v1876
      %v1878 = vrot.slane %v1825, 5
      %v1879 = vrot.slane %v1878, 4
      %v1880 = vrot.slane %v1447, 5
      %v1881 = vsel %vm1856, %v1879, %v1880
      %v1882 = vrot.slane %v1880, 4
      %v1883 = vrot.slane %v1448, 5
      %v1884 = vsel %vm1856, %v1882, %v1883
      %v1885 = vrot.slane %v1826, 5
      %v1886 = vrot.slane %v1885, 4
      %v1887 = vrot.slane %v1450, 5
      %v1888 = vsel %vm1856, %v1886, %v1887
      %v1889 = vrot.slane %v1887, 4
      %v1890 = vrot.slane %v1451, 5
      %v1891 = vsel %vm1856, %v1889, %v1890
      %v1892 = vrot.slane %v1827, 5
      %v1893 = vrot.slane %v1892, 4
      %v1894 = vrot.slane %v1453, 5
      %v1895 = vsel %vm1856, %v1893, %v1894
      %v1896 = vrot.slane %v1894, 4
      %v1897 = vrot.slane %v1454, 5
      %v1898 = vsel %vm1856, %v1896, %v1897
      %v1899 = vrot.slane %v1828, 5
      %v1900 = vrot.slane %v1899, 4
      %v1901 = vrot.slane %v1456, 5
      %v1902 = vsel %vm1856, %v1900, %v1901
      %v1903 = vrot.slane %v1901, 4
      %v1904 = vrot.slane %v1457, 5
      %v1905 = vsel %vm1856, %v1903, %v1904
      %v1906 = vrot.slane %v1829, 5
      %v1907 = vrot.slane %v1906, 4
      %v1908 = vrot.slane %v1459, 5
      %v1909 = vsel %vm1856, %v1907, %v1908
      %v1910 = vrot.slane %v1908, 4
      %v1911 = vrot.slane %v1460, 5
      %v1912 = vsel %vm1856, %v1910, %v1911
      %s1913 = scalar_lea.vmem %s1, 4
      %v1914 = vld [vmem:[%s1913] sm:$0x3]
      %v1915 = vunpack.c.l.b16 %v1860
      %v1916 = vunpack.c.l.b16 %v1863
      %v1917 = vunpack.c.l.b16 %v1867
      %v1918 = vunpack.c.l.b16 %v1870
      %v1919 = vunpack.c.l.b16 %v1874
      %v1920 = vunpack.c.l.b16 %v1877
      %v1921 = vunpack.c.l.b16 %v1881
      %v1922 = vunpack.c.l.b16 %v1884
      %v1923 = vunpack.c.l.b16 %v1888
      %v1924 = vunpack.c.l.b16 %v1891
      %v1925 = vunpack.c.l.b16 %v1895
      %v1926 = vunpack.c.l.b16 %v1898
      %v1927 = vunpack.c.l.b16 %v1902
      %v1928 = vunpack.c.l.b16 %v1905
      %v1929 = vunpack.c.l.b16 %v1909
      %v1930 = vunpack.c.l.b16 %v1912
      %v1931 = vpack.c.b16 %v1916, %v1915
      %v1932 = vpack.c.b16 %v1918, %v1917
      %v1933 = vpack.c.b16 %v1920, %v1919
      %v1934 = vpack.c.b16 %v1922, %v1921
      %v1935 = vpack.c.b16 %v1924, %v1923
      %v1936 = vpack.c.b16 %v1926, %v1925
      %v1937 = vpack.c.b16 %v1928, %v1927
      %v1938 = vpack.c.b16 %v1930, %v1929
      %v1940 = vsel %vm978, %v1931, 0
      %v1943 = vsel %vm978, %v1932, 0
      %v1946 = vsel %vm978, %v1933, 0
      %v1949 = vsel %vm978, %v1934, 0
      %v1952 = vsel %vm978, %v1935, 0
      %v1955 = vsel %vm978, %v1936, 0
      %v1958 = vsel %vm978, %v1937, 0
      %v1961 = vsel %vm978, %v1938, 0
      %v1964 = vsel %vm1027, %v1914, 0
      %1966 = vmatprep.subr.bf16.mxu0 0
      %1967 = vmatpush1.bf16.msra.mxu0 %v1964
      %1968 = vmatprep.subr.bf16.mxu0 0
      %1969 = vmatpush1.bf16.msra.mxu0 0
      %1970 = vmatprep.subr.bf16.mxu0 0
      %1971 = vmatpush1.bf16.msra.mxu0 0
      %1972 = vmatprep.subr.bf16.mxu0 0
      %1973 = vmatpush1.bf16.msra.mxu0 0
      %1974 = vmatprep.subr.bf16.mxu0 0
      %1975 = vmatpush1.bf16.msra.mxu0 0
      %1976 = vmatprep.subr.bf16.mxu0 0
      %1977 = vmatpush1.bf16.msra.mxu0 0
      %1978 = vmatprep.subr.bf16.mxu0 0
      %1979 = vmatpush1.bf16.msra.mxu0 0
      %1980 = vmatprep.subr.bf16.mxu0 0
      %1981 = vmatpush1.bf16.msra.mxu0 0
      %1982 = vmatprep.subr.bf16.mxu0 0
      %1983 = vmatpush1.bf16.msra.mxu0 0
      %1984 = vmatprep.subr.bf16.mxu0 0
      %1985 = vmatpush1.bf16.msra.mxu0 0
      %1986 = vmatprep.subr.bf16.mxu0 0
      %1987 = vmatpush1.bf16.msra.mxu0 0
      %1988 = vmatprep.subr.bf16.mxu0 0
      %1989 = vmatpush1.bf16.msra.mxu0 0
      %1990 = vmatprep.subr.bf16.mxu0 0
      %1991 = vmatpush1.bf16.msra.mxu0 0
      %1992 = vmatprep.subr.bf16.mxu0 0
      %1993 = vmatpush1.bf16.msra.mxu0 0
      %1994 = vmatprep.subr.bf16.mxu0 0
      %1995 = vmatpush1.bf16.msra.mxu0 0
      %1996 = vmatprep.subr.bf16.mxu0 0
      %1997 = vmatpush1.bf16.msra.mxu0 0
      %1998 = vmatprep.mubr.bf16.mxu0 0
      %1999 = vmatmul.mubr.bf16.gmra.mrb[0].mxu0 %v1940
      %v2000 = vpop.f32.mrb[0].mxu0
      %v2001 = vadd.f32 0.0, %v2000
      %v2002 = vpop.f32.mrb[0].mxu0
      %v2003 = vpop.f32.mrb[0].mxu0
      %v2004 = vadd.f32 0.0, %v2003
      %v2005 = vpop.f32.mrb[0].mxu0
      %2006 = vmatprep.mubr.bf16.mxu0 0
      %2007 = vmatmul.mubr.bf16.gmra.mrb[0].mxu0 %v1943
      %v2008 = vpop.f32.mrb[0].mxu0
      %v2009 = vadd.f32 0.0, %v2008
      %v2010 = vpop.f32.mrb[0].mxu0
      %v2011 = vpop.f32.mrb[0].mxu0
      %v2012 = vadd.f32 0.0, %v2011
      %v2013 = vpop.f32.mrb[0].mxu0
      %2014 = vmatprep.mubr.bf16.mxu0 0
      %2015 = vmatmul.mubr.bf16.gmra.mrb[0].mxu0 %v1946
      %v2016 = vpop.f32.mrb[0].mxu0
      %v2017 = vadd.f32 0.0, %v2016
      %v2018 = vpop.f32.mrb[0].mxu0
      %v2019 = vpop.f32.mrb[0].mxu0
      %v2020 = vadd.f32 0.0, %v2019
      %v2021 = vpop.f32.mrb[0].mxu0
      %2022 = vmatprep.mubr.bf16.mxu0 0
      %2023 = vmatmul.mubr.bf16.gmra.mrb[0].mxu0 %v1949
      %v2024 = vpop.f32.mrb[0].mxu0
      %v2025 = vadd.f32 0.0, %v2024
      %v2026 = vpop.f32.mrb[0].mxu0
      %v2027 = vpop.f32.mrb[0].mxu0
      %v2028 = vadd.f32 0.0, %v2027
      %v2029 = vpop.f32.mrb[0].mxu0
      %2030 = vmatprep.mubr.bf16.mxu0 0
      %2031 = vmatmul.mubr.bf16.gmra.mrb[0].mxu0 %v1952
      %v2032 = vpop.f32.mrb[0].mxu0
      %v2033 = vadd.f32 0.0, %v2032
      %v2034 = vpop.f32.mrb[0].mxu0
      %v2035 = vpop.f32.mrb[0].mxu0
      %v2036 = vadd.f32 0.0, %v2035
      %v2037 = vpop.f32.mrb[0].mxu0
      %2038 = vmatprep.mubr.bf16.mxu0 0
      %2039 = vmatmul.mubr.bf16.gmra.mrb[0].mxu0 %v1955
      %v2040 = vpop.f32.mrb[0].mxu0
      %v2041 = vadd.f32 0.0, %v2040
      %v2042 = vpop.f32.mrb[0].mxu0
      %v2043 = vpop.f32.mrb[0].mxu0
      %v2044 = vadd.f32 0.0, %v2043
      %v2045 = vpop.f32.mrb[0].mxu0
      %2046 = vmatprep.mubr.bf16.mxu0 0
      %2047 = vmatmul.mubr.bf16.gmra.mrb[0].mxu0 %v1958
      %v2048 = vpop.f32.mrb[0].mxu0
      %v2049 = vadd.f32 0.0, %v2048
      %v2050 = vpop.f32.mrb[0].mxu0
      %v2051 = vpop.f32.mrb[0].mxu0
      %v2052 = vadd.f32 0.0, %v2051
      %v2053 = vpop.f32.mrb[0].mxu0
      %2054 = vmatprep.mubr.bf16.mxu0 0
      %2055 = vmatmul.mubr.bf16.gmra.mrb[0].mxu0 %v1961
      %v2056 = vpop.f32.mrb[0].mxu0
      %v2057 = vadd.f32 0.0, %v2056
      %v2058 = vpop.f32.mrb[0].mxu0
      %v2059 = vpop.f32.mrb[0].mxu0
      %v2060 = vadd.f32 0.0, %v2059
      %v2061 = vpop.f32.mrb[0].mxu0
      %2062 = vdwg.mxu0
      %v2063 = vadd.f32 %v1806, %v2001
      %v2064 = vadd.f32 %v1807, %v2004
      %v2065 = vadd.f32 %v1808, %v2009
      %v2066 = vadd.f32 %v1809, %v2012
      %v2067 = vadd.f32 %v1810, %v2017
      %v2068 = vadd.f32 %v1811, %v2020
      %v2069 = vadd.f32 %v1812, %v2025
      %v2070 = vadd.f32 %v1813, %v2028
      %v2071 = vadd.f32 %v1814, %v2033
      %v2072 = vadd.f32 %v1815, %v2036
      %v2073 = vadd.f32 %v1816, %v2041
      %v2074 = vadd.f32 %v1817, %v2044
      %v2075 = vadd.f32 %v1818, %v2049
      %v2076 = vadd.f32 %v1819, %v2052
      %v2077 = vadd.f32 %v1820, %v2057
      %v2078 = vadd.f32 %v1821, %v2060
      %v2079 = vld [vmem:[%s747] sm:$0xf]
      %v2080 = vld [vmem:[%s747 + $0x4] sm:$0xf]
      %v2081 = vld [vmem:[%s747 + $0xc] sm:$0xf]
      %v2082 = vld [vmem:[%s747 + $0x10] sm:$0xf]
      %v2083 = vld [vmem:[%s747 + $0x18] sm:$0xf]
      %v2084 = vld [vmem:[%s747 + $0x1c] sm:$0xf]
      %v2085 = vld [vmem:[%s747 + $0x24] sm:$0xf]
      %v2086 = vld [vmem:[%s747 + $0x28] sm:$0xf]
      %v2087 = vld [vmem:[%s747 + $0x30] sm:$0xf]
      %v2088 = vld [vmem:[%s747 + $0x34] sm:$0xf]
      %v2089 = vld [vmem:[%s747 + $0x3c] sm:$0xf]
      %v2090 = vld [vmem:[%s747 + $0x40] sm:$0xf]
      %v2091 = vld [vmem:[%s747 + $0x48] sm:$0xf]
      %v2092 = vld [vmem:[%s747 + $0x4c] sm:$0xf]
      %v2093 = vld [vmem:[%s747 + $0x54] sm:$0xf]
      %v2094 = vld [vmem:[%s747 + $0x58] sm:$0xf]
      %s2095 = scalar_lea.vmem %s1, 6
      %v2096 = vld [vmem:[%s2095] sm:$0x3]
      %v2113 = vunpack.c.l.b16 %v2079
      %v2114 = vunpack.c.l.b16 %v2080
      %v2115 = vunpack.c.l.b16 %v2081
      %v2116 = vunpack.c.l.b16 %v2082
      %v2117 = vunpack.c.l.b16 %v2083
      %v2118 = vunpack.c.l.b16 %v2084
      %v2119 = vunpack.c.l.b16 %v2085
      %v2120 = vunpack.c.l.b16 %v2086
      %v2121 = vunpack.c.l.b16 %v2087
      %v2122 = vunpack.c.l.b16 %v2088
      %v2123 = vunpack.c.l.b16 %v2089
      %v2124 = vunpack.c.l.b16 %v2090
      %v2125 = vunpack.c.l.b16 %v2091
      %v2126 = vunpack.c.l.b16 %v2092
      %v2127 = vunpack.c.l.b16 %v2093
      %v2128 = vunpack.c.l.b16 %v2094
      %v2129 = vpack.c.b16 %v2114, %v2113
      %v2130 = vpack.c.b16 %v2116, %v2115
      %v2131 = vpack.c.b16 %v2118, %v2117
      %v2132 = vpack.c.b16 %v2120, %v2119
      %v2133 = vpack.c.b16 %v2122, %v2121
      %v2134 = vpack.c.b16 %v2124, %v2123
      %v2135 = vpack.c.b16 %v2126, %v2125
      %v2136 = vpack.c.b16 %v2128, %v2127
      %v2138 = vsel %vm978, %v2129, 0
      %v2141 = vsel %vm978, %v2130, 0
      %v2144 = vsel %vm978, %v2131, 0
      %v2147 = vsel %vm978, %v2132, 0
      %v2150 = vsel %vm978, %v2133, 0
      %v2153 = vsel %vm978, %v2134, 0
      %v2156 = vsel %vm978, %v2135, 0
      %v2159 = vsel %vm978, %v2136, 0
      %v2162 = vsel %vm1027, %v2096, 0
      %2164 = vmatprep.subr.bf16.mxu0 0
      %2165 = vmatpush1.bf16.msra.mxu0 %v2162
      %2166 = vmatprep.subr.bf16.mxu0 0
      %2167 = vmatpush1.bf16.msra.mxu0 0
      %2168 = vmatprep.subr.bf16.mxu0 0
      %2169 = vmatpush1.bf16.msra.mxu0 0
      %2170 = vmatprep.subr.bf16.mxu0 0
      %2171 = vmatpush1.bf16.msra.mxu0 0
      %2172 = vmatprep.subr.bf16.mxu0 0
      %2173 = vmatpush1.bf16.msra.mxu0 0
      %2174 = vmatprep.subr.bf16.mxu0 0
      %2175 = vmatpush1.bf16.msra.mxu0 0
      %2176 = vmatprep.subr.bf16.mxu0 0
      %2177 = vmatpush1.bf16.msra.mxu0 0
      %2178 = vmatprep.subr.bf16.mxu0 0
      %2179 = vmatpush1.bf16.msra.mxu0 0
      %2180 = vmatprep.subr.bf16.mxu0 0
      %2181 = vmatpush1.bf16.msra.mxu0 0
      %2182 = vmatprep.subr.bf16.mxu0 0
      %2183 = vmatpush1.bf16.msra.mxu0 0
      %2184 = vmatprep.subr.bf16.mxu0 0
      %2185 = vmatpush1.bf16.msra.mxu0 0
      %2186 = vmatprep.subr.bf16.mxu0 0
      %2187 = vmatpush1.bf16.msra.mxu0 0
      %2188 = vmatprep.subr.bf16.mxu0 0
      %2189 = vmatpush1.bf16.msra.mxu0 0
      %2190 = vmatprep.subr.bf16.mxu0 0
      %2191 = vmatpush1.bf16.msra.mxu0 0
      %2192 = vmatprep.subr.bf16.mxu0 0
      %2193 = vmatpush1.bf16.msra.mxu0 0
      %2194 = vmatprep.subr.bf16.mxu0 0
      %2195 = vmatpush1.bf16.msra.mxu0 0
      %2196 = vmatprep.mubr.bf16.mxu0 0
      %2197 = vmatmul.mubr.bf16.gmra.mrb[0].mxu0 %v2138
      %v2198 = vpop.f32.mrb[0].mxu0
      %v2199 = vadd.f32 0.0, %v2198
      %v2200 = vpop.f32.mrb[0].mxu0
      %v2201 = vpop.f32.mrb[0].mxu0
      %v2202 = vadd.f32 0.0, %v2201
      %v2203 = vpop.f32.mrb[0].mxu0
      %2204 = vmatprep.mubr.bf16.mxu0 0
      %2205 = vmatmul.mubr.bf16.gmra.mrb[0].mxu0 %v2141
      %v2206 = vpop.f32.mrb[0].mxu0
      %v2207 = vadd.f32 0.0, %v2206
      %v2208 = vpop.f32.mrb[0].mxu0
      %v2209 = vpop.f32.mrb[0].mxu0
      %v2210 = vadd.f32 0.0, %v2209
      %v2211 = vpop.f32.mrb[0].mxu0
      %2212 = vmatprep.mubr.bf16.mxu0 0
      %2213 = vmatmul.mubr.bf16.gmra.mrb[0].mxu0 %v2144
      %v2214 = vpop.f32.mrb[0].mxu0
      %v2215 = vadd.f32 0.0, %v2214
      %v2216 = vpop.f32.mrb[0].mxu0
      %v2217 = vpop.f32.mrb[0].mxu0
      %v2218 = vadd.f32 0.0, %v2217
      %v2219 = vpop.f32.mrb[0].mxu0
      %2220 = vmatprep.mubr.bf16.mxu0 0
      %2221 = vmatmul.mubr.bf16.gmra.mrb[0].mxu0 %v2147
      %v2222 = vpop.f32.mrb[0].mxu0
      %v2223 = vadd.f32 0.0, %v2222
      %v2224 = vpop.f32.mrb[0].mxu0
      %v2225 = vpop.f32.mrb[0].mxu0
      %v2226 = vadd.f32 0.0, %v2225
      %v2227 = vpop.f32.mrb[0].mxu0
      %2228 = vmatprep.mubr.bf16.mxu0 0
      %2229 = vmatmul.mubr.bf16.gmra.mrb[0].mxu0 %v2150
      %v2230 = vpop.f32.mrb[0].mxu0
      %v2231 = vadd.f32 0.0, %v2230
      %v2232 = vpop.f32.mrb[0].mxu0
      %v2233 = vpop.f32.mrb[0].mxu0
      %v2234 = vadd.f32 0.0, %v2233
      %v2235 = vpop.f32.mrb[0].mxu0
      %2236 = vmatprep.mubr.bf16.mxu0 0
      %2237 = vmatmul.mubr.bf16.gmra.mrb[0].mxu0 %v2153
      %v2238 = vpop.f32.mrb[0].mxu0
      %v2239 = vadd.f32 0.0, %v2238
      %v2240 = vpop.f32.mrb[0].mxu0
      %v2241 = vpop.f32.mrb[0].mxu0
      %v2242 = vadd.f32 0.0, %v2241
      %v2243 = vpop.f32.mrb[0].mxu0
      %2244 = vmatprep.mubr.bf16.mxu0 0
      %2245 = vmatmul.mubr.bf16.gmra.mrb[0].mxu0 %v2156
      %v2246 = vpop.f32.mrb[0].mxu0
      %v2247 = vadd.f32 0.0, %v2246
      %v2248 = vpop.f32.mrb[0].mxu0
      %v2249 = vpop.f32.mrb[0].mxu0
      %v2250 = vadd.f32 0.0, %v2249
      %v2251 = vpop.f32.mrb[0].mxu0
      %2252 = vmatprep.mubr.bf16.mxu0 0
      %2253 = vmatmul.mubr.bf16.gmra.mrb[0].mxu0 %v2159
      %v2254 = vpop.f32.mrb[0].mxu0
      %v2255 = vadd.f32 0.0, %v2254
      %v2256 = vpop.f32.mrb[0].mxu0
      %v2257 = vpop.f32.mrb[0].mxu0
      %v2258 = vadd.f32 0.0, %v2257
      %v2259 = vpop.f32.mrb[0].mxu0
      %2260 = vdwg.mxu0
      %v2261 = vadd.f32 %v2063, %v2199
      %v2262 = vadd.f32 %v2064, %v2202
      %v2263 = vadd.f32 %v2065, %v2207
      %v2264 = vadd.f32 %v2066, %v2210
      %v2265 = vadd.f32 %v2067, %v2215
      %v2266 = vadd.f32 %v2068, %v2218
      %v2267 = vadd.f32 %v2069, %v2223
      %v2268 = vadd.f32 %v2070, %v2226
      %v2269 = vadd.f32 %v2071, %v2231
      %v2270 = vadd.f32 %v2072, %v2234
      %v2271 = vadd.f32 %v2073, %v2239
      %v2272 = vadd.f32 %v2074, %v2242
      %v2273 = vadd.f32 %v2075, %v2247
      %v2274 = vadd.f32 %v2076, %v2250
      %v2275 = vadd.f32 %v2077, %v2255
      %v2276 = vadd.f32 %v2078, %v2258
      %v2277 = vld [vmem:[%s747] sm:$0xf]
      %v2278 = vld [vmem:[%s747 + $0x4] sm:$0xf]
      %v2279 = vld [vmem:[%s747 + $0x8] sm:$0x1]
      %v2280 = vld [vmem:[%s747 + $0xc] sm:$0xf]
      %v2281 = vld [vmem:[%s747 + $0x10] sm:$0xf]
      %v2282 = vld [vmem:[%s747 + $0x14] sm:$0x1]
      %v2283 = vld [vmem:[%s747 + $0x18] sm:$0xf]
      %v2284 = vld [vmem:[%s747 + $0x1c] sm:$0xf]
      %v2285 = vld [vmem:[%s747 + $0x20] sm:$0x1]
      %v2286 = vld [vmem:[%s747 + $0x24] sm:$0xf]
      %v2287 = vld [vmem:[%s747 + $0x28] sm:$0xf]
      %v2288 = vld [vmem:[%s747 + $0x2c] sm:$0x1]
      %v2289 = vld [vmem:[%s747 + $0x30] sm:$0xf]
      %v2290 = vld [vmem:[%s747 + $0x34] sm:$0xf]
      %v2291 = vld [vmem:[%s747 + $0x38] sm:$0x1]
      %v2292 = vld [vmem:[%s747 + $0x3c] sm:$0xf]
      %v2293 = vld [vmem:[%s747 + $0x40] sm:$0xf]
      %v2294 = vld [vmem:[%s747 + $0x44] sm:$0x1]
      %v2295 = vld [vmem:[%s747 + $0x48] sm:$0xf]
      %v2296 = vld [vmem:[%s747 + $0x4c] sm:$0xf]
      %v2297 = vld [vmem:[%s747 + $0x50] sm:$0x1]
      %v2298 = vld [vmem:[%s747 + $0x54] sm:$0xf]
      %v2299 = vld [vmem:[%s747 + $0x58] sm:$0xf]
      %v2300 = vld [vmem:[%s747 + $0x5c] sm:$0x1]
      %v2302 = vshrl.u32 %v2277, 16
      %v2304 = vrot.slane %v2302, 4
      %v2305 = vshll.u32 %v2277, 16
      %v2307 = vrot.slane %v2305, 5
      %v2308 = vor.u32 %v2304, %v2307
      %v2309 = vrot.slane %v2308, 4
      %v2311 = vshll.u32 %v2278, 16
      %v2313 = vrot.slane %v2311, 5
      %v2314 = vsel %vm1463, %v2309, %v2313
      %v2315 = vshrl.u32 %v2278, 16
      %v2317 = vrot.slane %v2315, 4
      %v2318 = vor.u32 %v2317, %v2313
      %v2319 = vrot.slane %v2318, 4
      %v2321 = vshll.u32 %v2279, 16
      %v2323 = vrot.slane %v2321, 5
      %v2324 = vsel %vm1463, %v2319, %v2323
      %v2326 = vshrl.u32 %v2280, 16
      %v2328 = vrot.slane %v2326, 4
      %v2329 = vshll.u32 %v2280, 16
      %v2331 = vrot.slane %v2329, 5
      %v2332 = vor.u32 %v2328, %v2331
      %v2333 = vrot.slane %v2332, 4
      %v2335 = vshll.u32 %v2281, 16
      %v2337 = vrot.slane %v2335, 5
      %v2338 = vsel %vm1463, %v2333, %v2337
      %v2339 = vshrl.u32 %v2281, 16
      %v2341 = vrot.slane %v2339, 4
      %v2342 = vor.u32 %v2341, %v2337
      %v2343 = vrot.slane %v2342, 4
      %v2345 = vshll.u32 %v2282, 16
      %v2347 = vrot.slane %v2345, 5
      %v2348 = vsel %vm1463, %v2343, %v2347
      %v2350 = vshrl.u32 %v2283, 16
      %v2352 = vrot.slane %v2350, 4
      %v2353 = vshll.u32 %v2283, 16
      %v2355 = vrot.slane %v2353, 5
      %v2356 = vor.u32 %v2352, %v2355
      %v2357 = vrot.slane %v2356, 4
      %v2359 = vshll.u32 %v2284, 16
      %v2361 = vrot.slane %v2359, 5
      %v2362 = vsel %vm1463, %v2357, %v2361
      %v2363 = vshrl.u32 %v2284, 16
      %v2365 = vrot.slane %v2363, 4
      %v2366 = vor.u32 %v2365, %v2361
      %v2367 = vrot.slane %v2366, 4
      %v2369 = vshll.u32 %v2285, 16
      %v2371 = vrot.slane %v2369, 5
      %v2372 = vsel %vm1463, %v2367, %v2371
      %v2374 = vshrl.u32 %v2286, 16
      %v2376 = vrot.slane %v2374, 4
      %v2377 = vshll.u32 %v2286, 16
      %v2379 = vrot.slane %v2377, 5
      %v2380 = vor.u32 %v2376, %v2379
      %v2381 = vrot.slane %v2380, 4
      %v2383 = vshll.u32 %v2287, 16
      %v2385 = vrot.slane %v2383, 5
      %v2386 = vsel %vm1463, %v2381, %v2385
      %v2387 = vshrl.u32 %v2287, 16
      %v2389 = vrot.slane %v2387, 4
      %v2390 = vor.u32 %v2389, %v2385
      %v2391 = vrot.slane %v2390, 4
      %v2393 = vshll.u32 %v2288, 16
      %v2395 = vrot.slane %v2393, 5
      %v2396 = vsel %vm1463, %v2391, %v2395
      %v2398 = vshrl.u32 %v2289, 16
      %v2400 = vrot.slane %v2398, 4
      %v2401 = vshll.u32 %v2289, 16
      %v2403 = vrot.slane %v2401, 5
      %v2404 = vor.u32 %v2400, %v2403
      %v2405 = vrot.slane %v2404, 4
      %v2407 = vshll.u32 %v2290, 16
      %v2409 = vrot.slane %v2407, 5
      %v2410 = vsel %vm1463, %v2405, %v2409
      %v2411 = vshrl.u32 %v2290, 16
      %v2413 = vrot.slane %v2411, 4
      %v2414 = vor.u32 %v2413, %v2409
      %v2415 = vrot.slane %v2414, 4
      %v2417 = vshll.u32 %v2291, 16
      %v2419 = vrot.slane %v2417, 5
      %v2420 = vsel %vm1463, %v2415, %v2419
      %v2422 = vshrl.u32 %v2292, 16
      %v2424 = vrot.slane %v2422, 4
      %v2425 = vshll.u32 %v2292, 16
      %v2427 = vrot.slane %v2425, 5
      %v2428 = vor.u32 %v2424, %v2427
      %v2429 = vrot.slane %v2428, 4
      %v2431 = vshll.u32 %v2293, 16
      %v2433 = vrot.slane %v2431, 5
      %v2434 = vsel %vm1463, %v2429, %v2433
      %v2435 = vshrl.u32 %v2293, 16
      %v2437 = vrot.slane %v2435, 4
      %v2438 = vor.u32 %v2437, %v2433
      %v2439 = vrot.slane %v2438, 4
      %v2441 = vshll.u32 %v2294, 16
      %v2443 = vrot.slane %v2441, 5
      %v2444 = vsel %vm1463, %v2439, %v2443
      %v2446 = vshrl.u32 %v2295, 16
      %v2448 = vrot.slane %v2446, 4
      %v2449 = vshll.u32 %v2295, 16
      %v2451 = vrot.slane %v2449, 5
      %v2452 = vor.u32 %v2448, %v2451
      %v2453 = vrot.slane %v2452, 4
      %v2455 = vshll.u32 %v2296, 16
      %v2457 = vrot.slane %v2455, 5
      %v2458 = vsel %vm1463, %v2453, %v2457
      %v2459 = vshrl.u32 %v2296, 16
      %v2461 = vrot.slane %v2459, 4
      %v2462 = vor.u32 %v2461, %v2457
      %v2463 = vrot.slane %v2462, 4
      %v2465 = vshll.u32 %v2297, 16
      %v2467 = vrot.slane %v2465, 5
      %v2468 = vsel %vm1463, %v2463, %v2467
      %v2470 = vshrl.u32 %v2298, 16
      %v2472 = vrot.slane %v2470, 4
      %v2473 = vshll.u32 %v2298, 16
      %v2475 = vrot.slane %v2473, 5
      %v2476 = vor.u32 %v2472, %v2475
      %v2477 = vrot.slane %v2476, 4
      %v2479 = vshll.u32 %v2299, 16
      %v2481 = vrot.slane %v2479, 5
      %v2482 = vsel %vm1463, %v2477, %v2481
      %v2483 = vshrl.u32 %v2299, 16
      %v2485 = vrot.slane %v2483, 4
      %v2486 = vor.u32 %v2485, %v2481
      %v2487 = vrot.slane %v2486, 4
      %v2489 = vshll.u32 %v2300, 16
      %v2491 = vrot.slane %v2489, 5
      %v2492 = vsel %vm1463, %v2487, %v2491
      %s2493 = scalar_lea.vmem %s1, 8
      %v2494 = vld [vmem:[%s2493] sm:$0x3]
      %v2495 = vunpack.c.l.b16 %v2314
      %v2496 = vunpack.c.l.b16 %v2324
      %v2497 = vunpack.c.l.b16 %v2338
      %v2498 = vunpack.c.l.b16 %v2348
      %v2499 = vunpack.c.l.b16 %v2362
      %v2500 = vunpack.c.l.b16 %v2372
      %v2501 = vunpack.c.l.b16 %v2386
      %v2502 = vunpack.c.l.b16 %v2396
      %v2503 = vunpack.c.l.b16 %v2410
      %v2504 = vunpack.c.l.b16 %v2420
      %v2505 = vunpack.c.l.b16 %v2434
      %v2506 = vunpack.c.l.b16 %v2444
      %v2507 = vunpack.c.l.b16 %v2458
      %v2508 = vunpack.c.l.b16 %v2468
      %v2509 = vunpack.c.l.b16 %v2482
      %v2510 = vunpack.c.l.b16 %v2492
      %v2511 = vpack.c.b16 %v2496, %v2495
      %v2512 = vpack.c.b16 %v2498, %v2497
      %v2513 = vpack.c.b16 %v2500, %v2499
      %v2514 = vpack.c.b16 %v2502, %v2501
      %v2515 = vpack.c.b16 %v2504, %v2503
      %v2516 = vpack.c.b16 %v2506, %v2505
      %v2517 = vpack.c.b16 %v2508, %v2507
      %v2518 = vpack.c.b16 %v2510, %v2509
      %v2520 = vsel %vm978, %v2511, 0
      %v2523 = vsel %vm978, %v2512, 0
      %v2526 = vsel %vm978, %v2513, 0
      %v2529 = vsel %vm978, %v2514, 0
      %v2532 = vsel %vm978, %v2515, 0
      %v2535 = vsel %vm978, %v2516, 0
      %v2538 = vsel %vm978, %v2517, 0
      %v2541 = vsel %vm978, %v2518, 0
      %v2544 = vsel %vm1027, %v2494, 0
      %2546 = vmatprep.subr.bf16.mxu0 0
      %2547 = vmatpush1.bf16.msra.mxu0 %v2544
      %2548 = vmatprep.subr.bf16.mxu0 0
      %2549 = vmatpush1.bf16.msra.mxu0 0
      %2550 = vmatprep.subr.bf16.mxu0 0
      %2551 = vmatpush1.bf16.msra.mxu0 0
      %2552 = vmatprep.subr.bf16.mxu0 0
      %2553 = vmatpush1.bf16.msra.mxu0 0
      %2554 = vmatprep.subr.bf16.mxu0 0
      %2555 = vmatpush1.bf16.msra.mxu0 0
      %2556 = vmatprep.subr.bf16.mxu0 0
      %2557 = vmatpush1.bf16.msra.mxu0 0
      %2558 = vmatprep.subr.bf16.mxu0 0
      %2559 = vmatpush1.bf16.msra.mxu0 0
      %2560 = vmatprep.subr.bf16.mxu0 0
      %2561 = vmatpush1.bf16.msra.mxu0 0
      %2562 = vmatprep.subr.bf16.mxu0 0
      %2563 = vmatpush1.bf16.msra.mxu0 0
      %2564 = vmatprep.subr.bf16.mxu0 0
      %2565 = vmatpush1.bf16.msra.mxu0 0
      %2566 = vmatprep.subr.bf16.mxu0 0
      %2567 = vmatpush1.bf16.msra.mxu0 0
      %2568 = vmatprep.subr.bf16.mxu0 0
      %2569 = vmatpush1.bf16.msra.mxu0 0
      %2570 = vmatprep.subr.bf16.mxu0 0
      %2571 = vmatpush1.bf16.msra.mxu0 0
      %2572 = vmatprep.subr.bf16.mxu0 0
      %2573 = vmatpush1.bf16.msra.mxu0 0
      %2574 = vmatprep.subr.bf16.mxu0 0
      %2575 = vmatpush1.bf16.msra.mxu0 0
      %2576 = vmatprep.subr.bf16.mxu0 0
      %2577 = vmatpush1.bf16.msra.mxu0 0
      %2578 = vmatprep.mubr.bf16.mxu0 0
      %2579 = vmatmul.mubr.bf16.gmra.mrb[0].mxu0 %v2520
      %v2580 = vpop.f32.mrb[0].mxu0
      %v2581 = vadd.f32 0.0, %v2580
      %v2582 = vpop.f32.mrb[0].mxu0
      %v2583 = vpop.f32.mrb[0].mxu0
      %v2584 = vadd.f32 0.0, %v2583
      %v2585 = vpop.f32.mrb[0].mxu0
      %2586 = vmatprep.mubr.bf16.mxu0 0
      %2587 = vmatmul.mubr.bf16.gmra.mrb[0].mxu0 %v2523
      %v2588 = vpop.f32.mrb[0].mxu0
      %v2589 = vadd.f32 0.0, %v2588
      %v2590 = vpop.f32.mrb[0].mxu0
      %v2591 = vpop.f32.mrb[0].mxu0
      %v2592 = vadd.f32 0.0, %v2591
      %v2593 = vpop.f32.mrb[0].mxu0
      %2594 = vmatprep.mubr.bf16.mxu0 0
      %2595 = vmatmul.mubr.bf16.gmra.mrb[0].mxu0 %v2526
      %v2596 = vpop.f32.mrb[0].mxu0
      %v2597 = vadd.f32 0.0, %v2596
      %v2598 = vpop.f32.mrb[0].mxu0
      %v2599 = vpop.f32.mrb[0].mxu0
      %v2600 = vadd.f32 0.0, %v2599
      %v2601 = vpop.f32.mrb[0].mxu0
      %2602 = vmatprep.mubr.bf16.mxu0 0
      %2603 = vmatmul.mubr.bf16.gmra.mrb[0].mxu0 %v2529
      %v2604 = vpop.f32.mrb[0].mxu0
      %v2605 = vadd.f32 0.0, %v2604
      %v2606 = vpop.f32.mrb[0].mxu0
      %v2607 = vpop.f32.mrb[0].mxu0
      %v2608 = vadd.f32 0.0, %v2607
      %v2609 = vpop.f32.mrb[0].mxu0
      %2610 = vmatprep.mubr.bf16.mxu0 0
      %2611 = vmatmul.mubr.bf16.gmra.mrb[0].mxu0 %v2532
      %v2612 = vpop.f32.mrb[0].mxu0
      %v2613 = vadd.f32 0.0, %v2612
      %v2614 = vpop.f32.mrb[0].mxu0
      %v2615 = vpop.f32.mrb[0].mxu0
      %v2616 = vadd.f32 0.0, %v2615
      %v2617 = vpop.f32.mrb[0].mxu0
      %2618 = vmatprep.mubr.bf16.mxu0 0
      %2619 = vmatmul.mubr.bf16.gmra.mrb[0].mxu0 %v2535
      %v2620 = vpop.f32.mrb[0].mxu0
      %v2621 = vadd.f32 0.0, %v2620
      %v2622 = vpop.f32.mrb[0].mxu0
      %v2623 = vpop.f32.mrb[0].mxu0
      %v2624 = vadd.f32 0.0, %v2623
      %v2625 = vpop.f32.mrb[0].mxu0
      %2626 = vmatprep.mubr.bf16.mxu0 0
      %2627 = vmatmul.mubr.bf16.gmra.mrb[0].mxu0 %v2538
      %v2628 = vpop.f32.mrb[0].mxu0
      %v2629 = vadd.f32 0.0, %v2628
      %v2630 = vpop.f32.mrb[0].mxu0
      %v2631 = vpop.f32.mrb[0].mxu0
      %v2632 = vadd.f32 0.0, %v2631
      %v2633 = vpop.f32.mrb[0].mxu0
      %2634 = vmatprep.mubr.bf16.mxu0 0
      %2635 = vmatmul.mubr.bf16.gmra.mrb[0].mxu0 %v2541
      %v2636 = vpop.f32.mrb[0].mxu0
      %v2637 = vadd.f32 0.0, %v2636
      %v2638 = vpop.f32.mrb[0].mxu0
      %v2639 = vpop.f32.mrb[0].mxu0
      %v2640 = vadd.f32 0.0, %v2639
      %v2641 = vpop.f32.mrb[0].mxu0
      %2642 = vdwg.mxu0
      %v2643 = vadd.f32 %v2261, %v2581
      %v2644 = vadd.f32 %v2262, %v2584
      %v2645 = vadd.f32 %v2263, %v2589
      %v2646 = vadd.f32 %v2264, %v2592
      %v2647 = vadd.f32 %v2265, %v2597
      %v2648 = vadd.f32 %v2266, %v2600
      %v2649 = vadd.f32 %v2267, %v2605
      %v2650 = vadd.f32 %v2268, %v2608
      %v2651 = vadd.f32 %v2269, %v2613
      %v2652 = vadd.f32 %v2270, %v2616
      %v2653 = vadd.f32 %v2271, %v2621
      %v2654 = vadd.f32 %v2272, %v2624
      %v2655 = vadd.f32 %v2273, %v2629
      %v2656 = vadd.f32 %v2274, %v2632
      %v2657 = vadd.f32 %v2275, %v2637
      %v2658 = vadd.f32 %v2276, %v2640
      %v2659 = vld [vmem:[%s747] sm:$0xe]
      %v2660 = vld [vmem:[%s747 + $0xc] sm:$0xe]
      %v2661 = vld [vmem:[%s747 + $0x18] sm:$0xe]
      %v2662 = vld [vmem:[%s747 + $0x24] sm:$0xe]
      %v2663 = vld [vmem:[%s747 + $0x30] sm:$0xe]
      %v2664 = vld [vmem:[%s747 + $0x3c] sm:$0xe]
      %v2665 = vld [vmem:[%s747 + $0x48] sm:$0xe]
      %v2666 = vld [vmem:[%s747 + $0x54] sm:$0xe]
      %v2691 = vrot.slane %v2659, 5
      %v2692 = vrot.slane %v2691, 4
      %v2693 = vrot.slane %v2278, 5
      %v2694 = vsel %vm1856, %v2692, %v2693
      %v2695 = vrot.slane %v2693, 4
      %v2696 = vrot.slane %v2279, 5
      %v2697 = vsel %vm1856, %v2695, %v2696
      %v2698 = vrot.slane %v2660, 5
      %v2699 = vrot.slane %v2698, 4
      %v2700 = vrot.slane %v2281, 5
      %v2701 = vsel %vm1856, %v2699, %v2700
      %v2702 = vrot.slane %v2700, 4
      %v2703 = vrot.slane %v2282, 5
      %v2704 = vsel %vm1856, %v2702, %v2703
      %v2705 = vrot.slane %v2661, 5
      %v2706 = vrot.slane %v2705, 4
      %v2707 = vrot.slane %v2284, 5
      %v2708 = vsel %vm1856, %v2706, %v2707
      %v2709 = vrot.slane %v2707, 4
      %v2710 = vrot.slane %v2285, 5
      %v2711 = vsel %vm1856, %v2709, %v2710
      %v2712 = vrot.slane %v2662, 5
      %v2713 = vrot.slane %v2712, 4
      %v2714 = vrot.slane %v2287, 5
      %v2715 = vsel %vm1856, %v2713, %v2714
      %v2716 = vrot.slane %v2714, 4
      %v2717 = vrot.slane %v2288, 5
      %v2718 = vsel %vm1856, %v2716, %v2717
      %v2719 = vrot.slane %v2663, 5
      %v2720 = vrot.slane %v2719, 4
      %v2721 = vrot.slane %v2290, 5
      %v2722 = vsel %vm1856, %v2720, %v2721
      %v2723 = vrot.slane %v2721, 4
      %v2724 = vrot.slane %v2291, 5
      %v2725 = vsel %vm1856, %v2723, %v2724
      %v2726 = vrot.slane %v2664, 5
      %v2727 = vrot.slane %v2726, 4
      %v2728 = vrot.slane %v2293, 5
      %v2729 = vsel %vm1856, %v2727, %v2728
      %v2730 = vrot.slane %v2728, 4
      %v2731 = vrot.slane %v2294, 5
      %v2732 = vsel %vm1856, %v2730, %v2731
      %v2733 = vrot.slane %v2665, 5
      %v2734 = vrot.slane %v2733, 4
      %v2735 = vrot.slane %v2296, 5
      %v2736 = vsel %vm1856, %v2734, %v2735
      %v2737 = vrot.slane %v2735, 4
      %v2738 = vrot.slane %v2297, 5
      %v2739 = vsel %vm1856, %v2737, %v2738
      %v2740 = vrot.slane %v2666, 5
      %v2741 = vrot.slane %v2740, 4
      %v2742 = vrot.slane %v2299, 5
      %v2743 = vsel %vm1856, %v2741, %v2742
      %v2744 = vrot.slane %v2742, 4
      %v2745 = vrot.slane %v2300, 5
      %v2746 = vsel %vm1856, %v2744, %v2745
      %s2747 = scalar_lea.vmem %s1, 10
      %v2748 = vld [vmem:[%s2747] sm:$0x3]
      %v2749 = vunpack.c.l.b16 %v2694
      %v2750 = vunpack.c.l.b16 %v2697
      %v2751 = vunpack.c.l.b16 %v2701
      %v2752 = vunpack.c.l.b16 %v2704
      %v2753 = vunpack.c.l.b16 %v2708
      %v2754 = vunpack.c.l.b16 %v2711
      %v2755 = vunpack.c.l.b16 %v2715
      %v2756 = vunpack.c.l.b16 %v2718
      %v2757 = vunpack.c.l.b16 %v2722
      %v2758 = vunpack.c.l.b16 %v2725
      %v2759 = vunpack.c.l.b16 %v2729
      %v2760 = vunpack.c.l.b16 %v2732
      %v2761 = vunpack.c.l.b16 %v2736
      %v2762 = vunpack.c.l.b16 %v2739
      %v2763 = vunpack.c.l.b16 %v2743
      %v2764 = vunpack.c.l.b16 %v2746
      %v2765 = vpack.c.b16 %v2750, %v2749
      %v2766 = vpack.c.b16 %v2752, %v2751
      %v2767 = vpack.c.b16 %v2754, %v2753
      %v2768 = vpack.c.b16 %v2756, %v2755
      %v2769 = vpack.c.b16 %v2758, %v2757
      %v2770 = vpack.c.b16 %v2760, %v2759
      %v2771 = vpack.c.b16 %v2762, %v2761
      %v2772 = vpack.c.b16 %v2764, %v2763
      %v2774 = vsel %vm978, %v2765, 0
      %v2777 = vsel %vm978, %v2766, 0
      %v2780 = vsel %vm978, %v2767, 0
      %v2783 = vsel %vm978, %v2768, 0
      %v2786 = vsel %vm978, %v2769, 0
      %v2789 = vsel %vm978, %v2770, 0
      %v2792 = vsel %vm978, %v2771, 0
      %v2795 = vsel %vm978, %v2772, 0
      %v2798 = vsel %vm1027, %v2748, 0
      %2800 = vmatprep.subr.bf16.mxu0 0
      %2801 = vmatpush1.bf16.msra.mxu0 %v2798
      %2802 = vmatprep.subr.bf16.mxu0 0
      %2803 = vmatpush1.bf16.msra.mxu0 0
      %2804 = vmatprep.subr.bf16.mxu0 0
      %2805 = vmatpush1.bf16.msra.mxu0 0
      %2806 = vmatprep.subr.bf16.mxu0 0
      %2807 = vmatpush1.bf16.msra.mxu0 0
      %2808 = vmatprep.subr.bf16.mxu0 0
      %2809 = vmatpush1.bf16.msra.mxu0 0
      %2810 = vmatprep.subr.bf16.mxu0 0
      %2811 = vmatpush1.bf16.msra.mxu0 0
      %2812 = vmatprep.subr.bf16.mxu0 0
      %2813 = vmatpush1.bf16.msra.mxu0 0
      %2814 = vmatprep.subr.bf16.mxu0 0
      %2815 = vmatpush1.bf16.msra.mxu0 0
      %2816 = vmatprep.subr.bf16.mxu0 0
      %2817 = vmatpush1.bf16.msra.mxu0 0
      %2818 = vmatprep.subr.bf16.mxu0 0
      %2819 = vmatpush1.bf16.msra.mxu0 0
      %2820 = vmatprep.subr.bf16.mxu0 0
      %2821 = vmatpush1.bf16.msra.mxu0 0
      %2822 = vmatprep.subr.bf16.mxu0 0
      %2823 = vmatpush1.bf16.msra.mxu0 0
      %2824 = vmatprep.subr.bf16.mxu0 0
      %2825 = vmatpush1.bf16.msra.mxu0 0
      %2826 = vmatprep.subr.bf16.mxu0 0
      %2827 = vmatpush1.bf16.msra.mxu0 0
      %2828 = vmatprep.subr.bf16.mxu0 0
      %2829 = vmatpush1.bf16.msra.mxu0 0
      %2830 = vmatprep.subr.bf16.mxu0 0
      %2831 = vmatpush1.bf16.msra.mxu0 0
      %2832 = vmatprep.mubr.bf16.mxu0 0
      %2833 = vmatmul.mubr.bf16.gmra.mrb[0].mxu0 %v2774
      %v2834 = vpop.f32.mrb[0].mxu0
      %v2835 = vadd.f32 0.0, %v2834
      %v2836 = vpop.f32.mrb[0].mxu0
      %v2837 = vpop.f32.mrb[0].mxu0
      %v2838 = vadd.f32 0.0, %v2837
      %v2839 = vpop.f32.mrb[0].mxu0
      %2840 = vmatprep.mubr.bf16.mxu0 0
      %2841 = vmatmul.mubr.bf16.gmra.mrb[0].mxu0 %v2777
      %v2842 = vpop.f32.mrb[0].mxu0
      %v2843 = vadd.f32 0.0, %v2842
      %v2844 = vpop.f32.mrb[0].mxu0
      %v2845 = vpop.f32.mrb[0].mxu0
      %v2846 = vadd.f32 0.0, %v2845
      %v2847 = vpop.f32.mrb[0].mxu0
      %2848 = vmatprep.mubr.bf16.mxu0 0
      %2849 = vmatmul.mubr.bf16.gmra.mrb[0].mxu0 %v2780
      %v2850 = vpop.f32.mrb[0].mxu0
      %v2851 = vadd.f32 0.0, %v2850
      %v2852 = vpop.f32.mrb[0].mxu0
      %v2853 = vpop.f32.mrb[0].mxu0
      %v2854 = vadd.f32 0.0, %v2853
      %v2855 = vpop.f32.mrb[0].mxu0
      %2856 = vmatprep.mubr.bf16.mxu0 0
      %2857 = vmatmul.mubr.bf16.gmra.mrb[0].mxu0 %v2783
      %v2858 = vpop.f32.mrb[0].mxu0
      %v2859 = vadd.f32 0.0, %v2858
      %v2860 = vpop.f32.mrb[0].mxu0
      %v2861 = vpop.f32.mrb[0].mxu0
      %v2862 = vadd.f32 0.0, %v2861
      %v2863 = vpop.f32.mrb[0].mxu0
      %2864 = vmatprep.mubr.bf16.mxu0 0
      %2865 = vmatmul.mubr.bf16.gmra.mrb[0].mxu0 %v2786
      %v2866 = vpop.f32.mrb[0].mxu0
      %v2867 = vadd.f32 0.0, %v2866
      %v2868 = vpop.f32.mrb[0].mxu0
      %v2869 = vpop.f32.mrb[0].mxu0
      %v2870 = vadd.f32 0.0, %v2869
      %v2871 = vpop.f32.mrb[0].mxu0
      %2872 = vmatprep.mubr.bf16.mxu0 0
      %2873 = vmatmul.mubr.bf16.gmra.mrb[0].mxu0 %v2789
      %v2874 = vpop.f32.mrb[0].mxu0
      %v2875 = vadd.f32 0.0, %v2874
      %v2876 = vpop.f32.mrb[0].mxu0
      %v2877 = vpop.f32.mrb[0].mxu0
      %v2878 = vadd.f32 0.0, %v2877
      %v2879 = vpop.f32.mrb[0].mxu0
      %2880 = vmatprep.mubr.bf16.mxu0 0
      %2881 = vmatmul.mubr.bf16.gmra.mrb[0].mxu0 %v2792
      %v2882 = vpop.f32.mrb[0].mxu0
      %v2883 = vadd.f32 0.0, %v2882
      %v2884 = vpop.f32.mrb[0].mxu0
      %v2885 = vpop.f32.mrb[0].mxu0
      %v2886 = vadd.f32 0.0, %v2885
      %v2887 = vpop.f32.mrb[0].mxu0
      %2888 = vmatprep.mubr.bf16.mxu0 0
      %2889 = vmatmul.mubr.bf16.gmra.mrb[0].mxu0 %v2795
      %v2890 = vpop.f32.mrb[0].mxu0
      %v2891 = vadd.f32 0.0, %v2890
      %v2892 = vpop.f32.mrb[0].mxu0
      %v2893 = vpop.f32.mrb[0].mxu0
      %v2894 = vadd.f32 0.0, %v2893
      %v2895 = vpop.f32.mrb[0].mxu0
      %2896 = vdwg.mxu0
      %v2897 = vadd.f32 %v2643, %v2835
      %v2898 = vadd.f32 %v2644, %v2838
      %v2899 = vadd.f32 %v2645, %v2843
      %v2900 = vadd.f32 %v2646, %v2846
      %v2901 = vadd.f32 %v2647, %v2851
      %v2902 = vadd.f32 %v2648, %v2854
      %v2903 = vadd.f32 %v2649, %v2859
      %v2904 = vadd.f32 %v2650, %v2862
      %v2905 = vadd.f32 %v2651, %v2867
      %v2906 = vadd.f32 %v2652, %v2870
      %v2907 = vadd.f32 %v2653, %v2875
      %v2908 = vadd.f32 %v2654, %v2878
      %v2909 = vadd.f32 %v2655, %v2883
      %v2910 = vadd.f32 %v2656, %v2886
      %v2911 = vadd.f32 %v2657, %v2891
      %v2912 = vadd.f32 %v2658, %v2894
      %s2913 = scalar_lea.vmem [#allocation2], 24
      %v2914 = vld [vmem:[%s2913] sm:$0xf]
      %v2915 = vld [vmem:[%s2913 + $0x4] sm:$0xf]
      %v2916 = vld [vmem:[%s2913 + $0xc] sm:$0xf]
      %v2917 = vld [vmem:[%s2913 + $0x10] sm:$0xf]
      %v2918 = vld [vmem:[%s2913 + $0x18] sm:$0xf]
      %v2919 = vld [vmem:[%s2913 + $0x1c] sm:$0xf]
      %v2920 = vld [vmem:[%s2913 + $0x24] sm:$0xf]
      %v2921 = vld [vmem:[%s2913 + $0x28] sm:$0xf]
      %v2922 = vld [vmem:[%s2913 + $0x30] sm:$0xf]
      %v2923 = vld [vmem:[%s2913 + $0x34] sm:$0xf]
      %v2924 = vld [vmem:[%s2913 + $0x3c] sm:$0xf]
      %v2925 = vld [vmem:[%s2913 + $0x40] sm:$0xf]
      %v2926 = vld [vmem:[%s2913 + $0x48] sm:$0xf]
      %v2927 = vld [vmem:[%s2913 + $0x4c] sm:$0xf]
      %v2928 = vld [vmem:[%s2913 + $0x54] sm:$0xf]
      %v2929 = vld [vmem:[%s2913 + $0x58] sm:$0xf]
      %s2930 = scalar_lea.vmem %s1, 12
      %v2931 = vld [vmem:[%s2930] sm:$0x3]
      %v2948 = vunpack.c.l.b16 %v2914
      %v2949 = vunpack.c.l.b16 %v2915
      %v2950 = vunpack.c.l.b16 %v2916
      %v2951 = vunpack.c.l.b16 %v2917
      %v2952 = vunpack.c.l.b16 %v2918
      %v2953 = vunpack.c.l.b16 %v2919
      %v2954 = vunpack.c.l.b16 %v2920
      %v2955 = vunpack.c.l.b16 %v2921
      %v2956 = vunpack.c.l.b16 %v2922
      %v2957 = vunpack.c.l.b16 %v2923
      %v2958 = vunpack.c.l.b16 %v2924
      %v2959 = vunpack.c.l.b16 %v2925
      %v2960 = vunpack.c.l.b16 %v2926
      %v2961 = vunpack.c.l.b16 %v2927
      %v2962 = vunpack.c.l.b16 %v2928
      %v2963 = vunpack.c.l.b16 %v2929
      %v2964 = vpack.c.b16 %v2949, %v2948
      %v2965 = vpack.c.b16 %v2951, %v2950
      %v2966 = vpack.c.b16 %v2953, %v2952
      %v2967 = vpack.c.b16 %v2955, %v2954
      %v2968 = vpack.c.b16 %v2957, %v2956
      %v2969 = vpack.c.b16 %v2959, %v2958
      %v2970 = vpack.c.b16 %v2961, %v2960
      %v2971 = vpack.c.b16 %v2963, %v2962
      %v2973 = vsel %vm978, %v2964, 0
      %v2976 = vsel %vm978, %v2965, 0
      %v2979 = vsel %vm978, %v2966, 0
      %v2982 = vsel %vm978, %v2967, 0
      %v2985 = vsel %vm978, %v2968, 0
      %v2988 = vsel %vm978, %v2969, 0
      %v2991 = vsel %vm978, %v2970, 0
      %v2994 = vsel %vm978, %v2971, 0
      %v2997 = vsel %vm1027, %v2931, 0
      %2999 = vmatprep.subr.bf16.mxu0 0
      %3000 = vmatpush1.bf16.msra.mxu0 %v2997
      %3001 = vmatprep.subr.bf16.mxu0 0
      %3002 = vmatpush1.bf16.msra.mxu0 0
      %3003 = vmatprep.subr.bf16.mxu0 0
      %3004 = vmatpush1.bf16.msra.mxu0 0
      %3005 = vmatprep.subr.bf16.mxu0 0
      %3006 = vmatpush1.bf16.msra.mxu0 0
      %3007 = vmatprep.subr.bf16.mxu0 0
      %3008 = vmatpush1.bf16.msra.mxu0 0
      %3009 = vmatprep.subr.bf16.mxu0 0
      %3010 = vmatpush1.bf16.msra.mxu0 0
      %3011 = vmatprep.subr.bf16.mxu0 0
      %3012 = vmatpush1.bf16.msra.mxu0 0
      %3013 = vmatprep.subr.bf16.mxu0 0
      %3014 = vmatpush1.bf16.msra.mxu0 0
      %3015 = vmatprep.subr.bf16.mxu0 0
      %3016 = vmatpush1.bf16.msra.mxu0 0
      %3017 = vmatprep.subr.bf16.mxu0 0
      %3018 = vmatpush1.bf16.msra.mxu0 0
      %3019 = vmatprep.subr.bf16.mxu0 0
      %3020 = vmatpush1.bf16.msra.mxu0 0
      %3021 = vmatprep.subr.bf16.mxu0 0
      %3022 = vmatpush1.bf16.msra.mxu0 0
      %3023 = vmatprep.subr.bf16.mxu0 0
      %3024 = vmatpush1.bf16.msra.mxu0 0
      %3025 = vmatprep.subr.bf16.mxu0 0
      %3026 = vmatpush1.bf16.msra.mxu0 0
      %3027 = vmatprep.subr.bf16.mxu0 0
      %3028 = vmatpush1.bf16.msra.mxu0 0
      %3029 = vmatprep.subr.bf16.mxu0 0
      %3030 = vmatpush1.bf16.msra.mxu0 0
      %3031 = vmatprep.mubr.bf16.mxu0 0
      %3032 = vmatmul.mubr.bf16.gmra.mrb[0].mxu0 %v2973
      %v3033 = vpop.f32.mrb[0].mxu0
      %v3034 = vadd.f32 0.0, %v3033
      %v3035 = vpop.f32.mrb[0].mxu0
      %v3036 = vpop.f32.mrb[0].mxu0
      %v3037 = vadd.f32 0.0, %v3036
      %v3038 = vpop.f32.mrb[0].mxu0
      %3039 = vmatprep.mubr.bf16.mxu0 0
      %3040 = vmatmul.mubr.bf16.gmra.mrb[0].mxu0 %v2976
      %v3041 = vpop.f32.mrb[0].mxu0
      %v3042 = vadd.f32 0.0, %v3041
      %v3043 = vpop.f32.mrb[0].mxu0
      %v3044 = vpop.f32.mrb[0].mxu0
      %v3045 = vadd.f32 0.0, %v3044
      %v3046 = vpop.f32.mrb[0].mxu0
      %3047 = vmatprep.mubr.bf16.mxu0 0
      %3048 = vmatmul.mubr.bf16.gmra.mrb[0].mxu0 %v2979
      %v3049 = vpop.f32.mrb[0].mxu0
      %v3050 = vadd.f32 0.0, %v3049
      %v3051 = vpop.f32.mrb[0].mxu0
      %v3052 = vpop.f32.mrb[0].mxu0
      %v3053 = vadd.f32 0.0, %v3052
      %v3054 = vpop.f32.mrb[0].mxu0
      %3055 = vmatprep.mubr.bf16.mxu0 0
      %3056 = vmatmul.mubr.bf16.gmra.mrb[0].mxu0 %v2982
      %v3057 = vpop.f32.mrb[0].mxu0
      %v3058 = vadd.f32 0.0, %v3057
      %v3059 = vpop.f32.mrb[0].mxu0
      %v3060 = vpop.f32.mrb[0].mxu0
      %v3061 = vadd.f32 0.0, %v3060
      %v3062 = vpop.f32.mrb[0].mxu0
      %3063 = vmatprep.mubr.bf16.mxu0 0
      %3064 = vmatmul.mubr.bf16.gmra.mrb[0].mxu0 %v2985
      %v3065 = vpop.f32.mrb[0].mxu0
      %v3066 = vadd.f32 0.0, %v3065
      %v3067 = vpop.f32.mrb[0].mxu0
      %v3068 = vpop.f32.mrb[0].mxu0
      %v3069 = vadd.f32 0.0, %v3068
      %v3070 = vpop.f32.mrb[0].mxu0
      %3071 = vmatprep.mubr.bf16.mxu0 0
      %3072 = vmatmul.mubr.bf16.gmra.mrb[0].mxu0 %v2988
      %v3073 = vpop.f32.mrb[0].mxu0
      %v3074 = vadd.f32 0.0, %v3073
      %v3075 = vpop.f32.mrb[0].mxu0
      %v3076 = vpop.f32.mrb[0].mxu0
      %v3077 = vadd.f32 0.0, %v3076
      %v3078 = vpop.f32.mrb[0].mxu0
      %3079 = vmatprep.mubr.bf16.mxu0 0
      %3080 = vmatmul.mubr.bf16.gmra.mrb[0].mxu0 %v2991
      %v3081 = vpop.f32.mrb[0].mxu0
      %v3082 = vadd.f32 0.0, %v3081
      %v3083 = vpop.f32.mrb[0].mxu0
      %v3084 = vpop.f32.mrb[0].mxu0
      %v3085 = vadd.f32 0.0, %v3084
      %v3086 = vpop.f32.mrb[0].mxu0
      %3087 = vmatprep.mubr.bf16.mxu0 0
      %3088 = vmatmul.mubr.bf16.gmra.mrb[0].mxu0 %v2994
      %v3089 = vpop.f32.mrb[0].mxu0
      %v3090 = vadd.f32 0.0, %v3089
      %v3091 = vpop.f32.mrb[0].mxu0
      %v3092 = vpop.f32.mrb[0].mxu0
      %v3093 = vadd.f32 0.0, %v3092
      %v3094 = vpop.f32.mrb[0].mxu0
      %3095 = vdwg.mxu0
      %v3096 = vadd.f32 %v2897, %v3034
      %v3097 = vadd.f32 %v2898, %v3037
      %v3098 = vadd.f32 %v2899, %v3042
      %v3099 = vadd.f32 %v2900, %v3045
      %v3100 = vadd.f32 %v2901, %v3050
      %v3101 = vadd.f32 %v2902, %v3053
      %v3102 = vadd.f32 %v2903, %v3058
      %v3103 = vadd.f32 %v2904, %v3061
      %v3104 = vadd.f32 %v2905, %v3066
      %v3105 = vadd.f32 %v2906, %v3069
      %v3106 = vadd.f32 %v2907, %v3074
      %v3107 = vadd.f32 %v2908, %v3077
      %v3108 = vadd.f32 %v2909, %v3082
      %v3109 = vadd.f32 %v2910, %v3085
      %v3110 = vadd.f32 %v2911, %v3090
      %v3111 = vadd.f32 %v2912, %v3093
      %v3112 = vld [vmem:[%s2913] sm:$0xf]
      %v3113 = vld [vmem:[%s2913 + $0x4] sm:$0xf]
      %v3114 = vld [vmem:[%s2913 + $0x8] sm:$0x1]
      %v3115 = vld [vmem:[%s2913 + $0xc] sm:$0xf]
      %v3116 = vld [vmem:[%s2913 + $0x10] sm:$0xf]
      %v3117 = vld [vmem:[%s2913 + $0x14] sm:$0x1]
      %v3118 = vld [vmem:[%s2913 + $0x18] sm:$0xf]
      %v3119 = vld [vmem:[%s2913 + $0x1c] sm:$0xf]
      %v3120 = vld [vmem:[%s2913 + $0x20] sm:$0x1]
      %v3121 = vld [vmem:[%s2913 + $0x24] sm:$0xf]
      %v3122 = vld [vmem:[%s2913 + $0x28] sm:$0xf]
      %v3123 = vld [vmem:[%s2913 + $0x2c] sm:$0x1]
      %v3124 = vld [vmem:[%s2913 + $0x30] sm:$0xf]
      %v3125 = vld [vmem:[%s2913 + $0x34] sm:$0xf]
      %v3126 = vld [vmem:[%s2913 + $0x38] sm:$0x1]
      %v3127 = vld [vmem:[%s2913 + $0x3c] sm:$0xf]
      %v3128 = vld [vmem:[%s2913 + $0x40] sm:$0xf]
      %v3129 = vld [vmem:[%s2913 + $0x44] sm:$0x1]
      %v3130 = vld [vmem:[%s2913 + $0x48] sm:$0xf]
      %v3131 = vld [vmem:[%s2913 + $0x4c] sm:$0xf]
      %v3132 = vld [vmem:[%s2913 + $0x50] sm:$0x1]
      %v3133 = vld [vmem:[%s2913 + $0x54] sm:$0xf]
      %v3134 = vld [vmem:[%s2913 + $0x58] sm:$0xf]
      %v3135 = vld [vmem:[%s2913 + $0x5c] sm:$0x1]
      %v3137 = vshrl.u32 %v3112, 16
      %v3139 = vrot.slane %v3137, 4
      %v3140 = vshll.u32 %v3112, 16
      %v3142 = vrot.slane %v3140, 5
      %v3143 = vor.u32 %v3139, %v3142
      %v3144 = vrot.slane %v3143, 4
      %v3146 = vshll.u32 %v3113, 16
      %v3148 = vrot.slane %v3146, 5
      %v3149 = vsel %vm1463, %v3144, %v3148
      %v3150 = vshrl.u32 %v3113, 16
      %v3152 = vrot.slane %v3150, 4
      %v3153 = vor.u32 %v3152, %v3148
      %v3154 = vrot.slane %v3153, 4
      %v3156 = vshll.u32 %v3114, 16
      %v3158 = vrot.slane %v3156, 5
      %v3159 = vsel %vm1463, %v3154, %v3158
      %v3161 = vshrl.u32 %v3115, 16
      %v3163 = vrot.slane %v3161, 4
      %v3164 = vshll.u32 %v3115, 16
      %v3166 = vrot.slane %v3164, 5
      %v3167 = vor.u32 %v3163, %v3166
      %v3168 = vrot.slane %v3167, 4
      %v3170 = vshll.u32 %v3116, 16
      %v3172 = vrot.slane %v3170, 5
      %v3173 = vsel %vm1463, %v3168, %v3172
      %v3174 = vshrl.u32 %v3116, 16
      %v3176 = vrot.slane %v3174, 4
      %v3177 = vor.u32 %v3176, %v3172
      %v3178 = vrot.slane %v3177, 4
      %v3180 = vshll.u32 %v3117, 16
      %v3182 = vrot.slane %v3180, 5
      %v3183 = vsel %vm1463, %v3178, %v3182
      %v3185 = vshrl.u32 %v3118, 16
      %v3187 = vrot.slane %v3185, 4
      %v3188 = vshll.u32 %v3118, 16
      %v3190 = vrot.slane %v3188, 5
      %v3191 = vor.u32 %v3187, %v3190
      %v3192 = vrot.slane %v3191, 4
      %v3194 = vshll.u32 %v3119, 16
      %v3196 = vrot.slane %v3194, 5
      %v3197 = vsel %vm1463, %v3192, %v3196
      %v3198 = vshrl.u32 %v3119, 16
      %v3200 = vrot.slane %v3198, 4
      %v3201 = vor.u32 %v3200, %v3196
      %v3202 = vrot.slane %v3201, 4
      %v3204 = vshll.u32 %v3120, 16
      %v3206 = vrot.slane %v3204, 5
      %v3207 = vsel %vm1463, %v3202, %v3206
      %v3209 = vshrl.u32 %v3121, 16
      %v3211 = vrot.slane %v3209, 4
      %v3212 = vshll.u32 %v3121, 16
      %v3214 = vrot.slane %v3212, 5
      %v3215 = vor.u32 %v3211, %v3214
      %v3216 = vrot.slane %v3215, 4
      %v3218 = vshll.u32 %v3122, 16
      %v3220 = vrot.slane %v3218, 5
      %v3221 = vsel %vm1463, %v3216, %v3220
      %v3222 = vshrl.u32 %v3122, 16
      %v3224 = vrot.slane %v3222, 4
      %v3225 = vor.u32 %v3224, %v3220
      %v3226 = vrot.slane %v3225, 4
      %v3228 = vshll.u32 %v3123, 16
      %v3230 = vrot.slane %v3228, 5
      %v3231 = vsel %vm1463, %v3226, %v3230
      %v3233 = vshrl.u32 %v3124, 16
      %v3235 = vrot.slane %v3233, 4
      %v3236 = vshll.u32 %v3124, 16
      %v3238 = vrot.slane %v3236, 5
      %v3239 = vor.u32 %v3235, %v3238
      %v3240 = vrot.slane %v3239, 4
      %v3242 = vshll.u32 %v3125, 16
      %v3244 = vrot.slane %v3242, 5
      %v3245 = vsel %vm1463, %v3240, %v3244
      %v3246 = vshrl.u32 %v3125, 16
      %v3248 = vrot.slane %v3246, 4
      %v3249 = vor.u32 %v3248, %v3244
      %v3250 = vrot.slane %v3249, 4
      %v3252 = vshll.u32 %v3126, 16
      %v3254 = vrot.slane %v3252, 5
      %v3255 = vsel %vm1463, %v3250, %v3254
      %v3257 = vshrl.u32 %v3127, 16
      %v3259 = vrot.slane %v3257, 4
      %v3260 = vshll.u32 %v3127, 16
      %v3262 = vrot.slane %v3260, 5
      %v3263 = vor.u32 %v3259, %v3262
      %v3264 = vrot.slane %v3263, 4
      %v3266 = vshll.u32 %v3128, 16
      %v3268 = vrot.slane %v3266, 5
      %v3269 = vsel %vm1463, %v3264, %v3268
      %v3270 = vshrl.u32 %v3128, 16
      %v3272 = vrot.slane %v3270, 4
      %v3273 = vor.u32 %v3272, %v3268
      %v3274 = vrot.slane %v3273, 4
      %v3276 = vshll.u32 %v3129, 16
      %v3278 = vrot.slane %v3276, 5
      %v3279 = vsel %vm1463, %v3274, %v3278
      %v3281 = vshrl.u32 %v3130, 16
      %v3283 = vrot.slane %v3281, 4
      %v3284 = vshll.u32 %v3130, 16
      %v3286 = vrot.slane %v3284, 5
      %v3287 = vor.u32 %v3283, %v3286
      %v3288 = vrot.slane %v3287, 4
      %v3290 = vshll.u32 %v3131, 16
      %v3292 = vrot.slane %v3290, 5
      %v3293 = vsel %vm1463, %v3288, %v3292
      %v3294 = vshrl.u32 %v3131, 16
      %v3296 = vrot.slane %v3294, 4
      %v3297 = vor.u32 %v3296, %v3292
      %v3298 = vrot.slane %v3297, 4
      %v3300 = vshll.u32 %v3132, 16
      %v3302 = vrot.slane %v3300, 5
      %v3303 = vsel %vm1463, %v3298, %v3302
      %v3305 = vshrl.u32 %v3133, 16
      %v3307 = vrot.slane %v3305, 4
      %v3308 = vshll.u32 %v3133, 16
      %v3310 = vrot.slane %v3308, 5
      %v3311 = vor.u32 %v3307, %v3310
      %v3312 = vrot.slane %v3311, 4
      %v3314 = vshll.u32 %v3134, 16
      %v3316 = vrot.slane %v3314, 5
      %v3317 = vsel %vm1463, %v3312, %v3316
      %v3318 = vshrl.u32 %v3134, 16
      %v3320 = vrot.slane %v3318, 4
      %v3321 = vor.u32 %v3320, %v3316
      %v3322 = vrot.slane %v3321, 4
      %v3324 = vshll.u32 %v3135, 16
      %v3326 = vrot.slane %v3324, 5
      %v3327 = vsel %vm1463, %v3322, %v3326
      %s3328 = scalar_lea.vmem %s1, 14
      %v3329 = vld [vmem:[%s3328] sm:$0x3]
      %v3330 = vunpack.c.l.b16 %v3149
      %v3331 = vunpack.c.l.b16 %v3159
      %v3332 = vunpack.c.l.b16 %v3173
      %v3333 = vunpack.c.l.b16 %v3183
      %v3334 = vunpack.c.l.b16 %v3197
      %v3335 = vunpack.c.l.b16 %v3207
      %v3336 = vunpack.c.l.b16 %v3221
      %v3337 = vunpack.c.l.b16 %v3231
      %v3338 = vunpack.c.l.b16 %v3245
      %v3339 = vunpack.c.l.b16 %v3255
      %v3340 = vunpack.c.l.b16 %v3269
      %v3341 = vunpack.c.l.b16 %v3279
      %v3342 = vunpack.c.l.b16 %v3293
      %v3343 = vunpack.c.l.b16 %v3303
      %v3344 = vunpack.c.l.b16 %v3317
      %v3345 = vunpack.c.l.b16 %v3327
      %v3346 = vpack.c.b16 %v3331, %v3330
      %v3347 = vpack.c.b16 %v3333, %v3332
      %v3348 = vpack.c.b16 %v3335, %v3334
      %v3349 = vpack.c.b16 %v3337, %v3336
      %v3350 = vpack.c.b16 %v3339, %v3338
      %v3351 = vpack.c.b16 %v3341, %v3340
      %v3352 = vpack.c.b16 %v3343, %v3342
      %v3353 = vpack.c.b16 %v3345, %v3344
      %v3355 = vsel %vm978, %v3346, 0
      %v3358 = vsel %vm978, %v3347, 0
      %v3361 = vsel %vm978, %v3348, 0
      %v3364 = vsel %vm978, %v3349, 0
      %v3367 = vsel %vm978, %v3350, 0
      %v3370 = vsel %vm978, %v3351, 0
      %v3373 = vsel %vm978, %v3352, 0
      %v3376 = vsel %vm978, %v3353, 0
      %v3379 = vsel %vm1027, %v3329, 0
      %3381 = vmatprep.subr.bf16.mxu0 0
      %3382 = vmatpush1.bf16.msra.mxu0 %v3379
      %3383 = vmatprep.subr.bf16.mxu0 0
      %3384 = vmatpush1.bf16.msra.mxu0 0
      %3385 = vmatprep.subr.bf16.mxu0 0
      %3386 = vmatpush1.bf16.msra.mxu0 0
      %3387 = vmatprep.subr.bf16.mxu0 0
      %3388 = vmatpush1.bf16.msra.mxu0 0
      %3389 = vmatprep.subr.bf16.mxu0 0
      %3390 = vmatpush1.bf16.msra.mxu0 0
      %3391 = vmatprep.subr.bf16.mxu0 0
      %3392 = vmatpush1.bf16.msra.mxu0 0
      %3393 = vmatprep.subr.bf16.mxu0 0
      %3394 = vmatpush1.bf16.msra.mxu0 0
      %3395 = vmatprep.subr.bf16.mxu0 0
      %3396 = vmatpush1.bf16.msra.mxu0 0
      %3397 = vmatprep.subr.bf16.mxu0 0
      %3398 = vmatpush1.bf16.msra.mxu0 0
      %3399 = vmatprep.subr.bf16.mxu0 0
      %3400 = vmatpush1.bf16.msra.mxu0 0
      %3401 = vmatprep.subr.bf16.mxu0 0
      %3402 = vmatpush1.bf16.msra.mxu0 0
      %3403 = vmatprep.subr.bf16.mxu0 0
      %3404 = vmatpush1.bf16.msra.mxu0 0
      %3405 = vmatprep.subr.bf16.mxu0 0
      %3406 = vmatpush1.bf16.msra.mxu0 0
      %3407 = vmatprep.subr.bf16.mxu0 0
      %3408 = vmatpush1.bf16.msra.mxu0 0
      %3409 = vmatprep.subr.bf16.mxu0 0
      %3410 = vmatpush1.bf16.msra.mxu0 0
      %3411 = vmatprep.subr.bf16.mxu0 0
      %3412 = vmatpush1.bf16.msra.mxu0 0
      %3413 = vmatprep.mubr.bf16.mxu0 0
      %3414 = vmatmul.mubr.bf16.gmra.mrb[0].mxu0 %v3355
      %v3415 = vpop.f32.mrb[0].mxu0
      %v3416 = vadd.f32 0.0, %v3415
      %v3417 = vpop.f32.mrb[0].mxu0
      %v3418 = vpop.f32.mrb[0].mxu0
      %v3419 = vadd.f32 0.0, %v3418
      %v3420 = vpop.f32.mrb[0].mxu0
      %3421 = vmatprep.mubr.bf16.mxu0 0
      %3422 = vmatmul.mubr.bf16.gmra.mrb[0].mxu0 %v3358
      %v3423 = vpop.f32.mrb[0].mxu0
      %v3424 = vadd.f32 0.0, %v3423
      %v3425 = vpop.f32.mrb[0].mxu0
      %v3426 = vpop.f32.mrb[0].mxu0
      %v3427 = vadd.f32 0.0, %v3426
      %v3428 = vpop.f32.mrb[0].mxu0
      %3429 = vmatprep.mubr.bf16.mxu0 0
      %3430 = vmatmul.mubr.bf16.gmra.mrb[0].mxu0 %v3361
      %v3431 = vpop.f32.mrb[0].mxu0
      %v3432 = vadd.f32 0.0, %v3431
      %v3433 = vpop.f32.mrb[0].mxu0
      %v3434 = vpop.f32.mrb[0].mxu0
      %v3435 = vadd.f32 0.0, %v3434
      %v3436 = vpop.f32.mrb[0].mxu0
      %3437 = vmatprep.mubr.bf16.mxu0 0
      %3438 = vmatmul.mubr.bf16.gmra.mrb[0].mxu0 %v3364
      %v3439 = vpop.f32.mrb[0].mxu0
      %v3440 = vadd.f32 0.0, %v3439
      %v3441 = vpop.f32.mrb[0].mxu0
      %v3442 = vpop.f32.mrb[0].mxu0
      %v3443 = vadd.f32 0.0, %v3442
      %v3444 = vpop.f32.mrb[0].mxu0
      %3445 = vmatprep.mubr.bf16.mxu0 0
      %3446 = vmatmul.mubr.bf16.gmra.mrb[0].mxu0 %v3367
      %v3447 = vpop.f32.mrb[0].mxu0
      %v3448 = vadd.f32 0.0, %v3447
      %v3449 = vpop.f32.mrb[0].mxu0
      %v3450 = vpop.f32.mrb[0].mxu0
      %v3451 = vadd.f32 0.0, %v3450
      %v3452 = vpop.f32.mrb[0].mxu0
      %3453 = vmatprep.mubr.bf16.mxu0 0
      %3454 = vmatmul.mubr.bf16.gmra.mrb[0].mxu0 %v3370
      %v3455 = vpop.f32.mrb[0].mxu0
      %v3456 = vadd.f32 0.0, %v3455
      %v3457 = vpop.f32.mrb[0].mxu0
      %v3458 = vpop.f32.mrb[0].mxu0
      %v3459 = vadd.f32 0.0, %v3458
      %v3460 = vpop.f32.mrb[0].mxu0
      %3461 = vmatprep.mubr.bf16.mxu0 0
      %3462 = vmatmul.mubr.bf16.gmra.mrb[0].mxu0 %v3373
      %v3463 = vpop.f32.mrb[0].mxu0
      %v3464 = vadd.f32 0.0, %v3463
      %v3465 = vpop.f32.mrb[0].mxu0
      %v3466 = vpop.f32.mrb[0].mxu0
      %v3467 = vadd.f32 0.0, %v3466
      %v3468 = vpop.f32.mrb[0].mxu0
      %3469 = vmatprep.mubr.bf16.mxu0 0
      %3470 = vmatmul.mubr.bf16.gmra.mrb[0].mxu0 %v3376
      %v3471 = vpop.f32.mrb[0].mxu0
      %v3472 = vadd.f32 0.0, %v3471
      %v3473 = vpop.f32.mrb[0].mxu0
      %v3474 = vpop.f32.mrb[0].mxu0
      %v3475 = vadd.f32 0.0, %v3474
      %v3476 = vpop.f32.mrb[0].mxu0
      %3477 = vdwg.mxu0
      %v3478 = vadd.f32 %v3096, %v3416
      %v3479 = vadd.f32 %v3097, %v3419
      %v3480 = vadd.f32 %v3098, %v3424
      %v3481 = vadd.f32 %v3099, %v3427
      %v3482 = vadd.f32 %v3100, %v3432
      %v3483 = vadd.f32 %v3101, %v3435
      %v3484 = vadd.f32 %v3102, %v3440
      %v3485 = vadd.f32 %v3103, %v3443
      %v3486 = vadd.f32 %v3104, %v3448
      %v3487 = vadd.f32 %v3105, %v3451
      %v3488 = vadd.f32 %v3106, %v3456
      %v3489 = vadd.f32 %v3107, %v3459
      %v3490 = vadd.f32 %v3108, %v3464
      %v3491 = vadd.f32 %v3109, %v3467
      %v3492 = vadd.f32 %v3110, %v3472
      %v3493 = vadd.f32 %v3111, %v3475
      %v3494 = vld [vmem:[%s2913] sm:$0xe]
      %v3495 = vld [vmem:[%s2913 + $0xc] sm:$0xe]
      %v3496 = vld [vmem:[%s2913 + $0x18] sm:$0xe]
      %v3497 = vld [vmem:[%s2913 + $0x24] sm:$0xe]
      %v3498 = vld [vmem:[%s2913 + $0x30] sm:$0xe]
      %v3499 = vld [vmem:[%s2913 + $0x3c] sm:$0xe]
      %v3500 = vld [vmem:[%s2913 + $0x48] sm:$0xe]
      %v3501 = vld [vmem:[%s2913 + $0x54] sm:$0xe]
      %v3526 = vrot.slane %v3494, 5
      %v3527 = vrot.slane %v3526, 4
      %v3528 = vrot.slane %v3113, 5
      %v3529 = vsel %vm1856, %v3527, %v3528
      %v3530 = vrot.slane %v3528, 4
      %v3531 = vrot.slane %v3114, 5
      %v3532 = vsel %vm1856, %v3530, %v3531
      %v3533 = vrot.slane %v3495, 5
      %v3534 = vrot.slane %v3533, 4
      %v3535 = vrot.slane %v3116, 5
      %v3536 = vsel %vm1856, %v3534, %v3535
      %v3537 = vrot.slane %v3535, 4
      %v3538 = vrot.slane %v3117, 5
      %v3539 = vsel %vm1856, %v3537, %v3538
      %v3540 = vrot.slane %v3496, 5
      %v3541 = vrot.slane %v3540, 4
      %v3542 = vrot.slane %v3119, 5
      %v3543 = vsel %vm1856, %v3541, %v3542
      %v3544 = vrot.slane %v3542, 4
      %v3545 = vrot.slane %v3120, 5
      %v3546 = vsel %vm1856, %v3544, %v3545
      %v3547 = vrot.slane %v3497, 5
      %v3548 = vrot.slane %v3547, 4
      %v3549 = vrot.slane %v3122, 5
      %v3550 = vsel %vm1856, %v3548, %v3549
      %v3551 = vrot.slane %v3549, 4
      %v3552 = vrot.slane %v3123, 5
      %v3553 = vsel %vm1856, %v3551, %v3552
      %v3554 = vrot.slane %v3498, 5
      %v3555 = vrot.slane %v3554, 4
      %v3556 = vrot.slane %v3125, 5
      %v3557 = vsel %vm1856, %v3555, %v3556
      %v3558 = vrot.slane %v3556, 4
      %v3559 = vrot.slane %v3126, 5
      %v3560 = vsel %vm1856, %v3558, %v3559
      %v3561 = vrot.slane %v3499, 5
      %v3562 = vrot.slane %v3561, 4
      %v3563 = vrot.slane %v3128, 5
      %v3564 = vsel %vm1856, %v3562, %v3563
      %v3565 = vrot.slane %v3563, 4
      %v3566 = vrot.slane %v3129, 5
      %v3567 = vsel %vm1856, %v3565, %v3566
      %v3568 = vrot.slane %v3500, 5
      %v3569 = vrot.slane %v3568, 4
      %v3570 = vrot.slane %v3131, 5
      %v3571 = vsel %vm1856, %v3569, %v3570
      %v3572 = vrot.slane %v3570, 4
      %v3573 = vrot.slane %v3132, 5
      %v3574 = vsel %vm1856, %v3572, %v3573
      %v3575 = vrot.slane %v3501, 5
      %v3576 = vrot.slane %v3575, 4
      %v3577 = vrot.slane %v3134, 5
      %v3578 = vsel %vm1856, %v3576, %v3577
      %v3579 = vrot.slane %v3577, 4
      %v3580 = vrot.slane %v3135, 5
      %v3581 = vsel %vm1856, %v3579, %v3580
      %s3582 = scalar_lea.vmem %s1, 16
      %v3583 = vld [vmem:[%s3582] sm:$0x3]
      %v3584 = vunpack.c.l.b16 %v3529
      %v3585 = vunpack.c.l.b16 %v3532
      %v3586 = vunpack.c.l.b16 %v3536
      %v3587 = vunpack.c.l.b16 %v3539
      %v3588 = vunpack.c.l.b16 %v3543
      %v3589 = vunpack.c.l.b16 %v3546
      %v3590 = vunpack.c.l.b16 %v3550
      %v3591 = vunpack.c.l.b16 %v3553
      %v3592 = vunpack.c.l.b16 %v3557
      %v3593 = vunpack.c.l.b16 %v3560
      %v3594 = vunpack.c.l.b16 %v3564
      %v3595 = vunpack.c.l.b16 %v3567
      %v3596 = vunpack.c.l.b16 %v3571
      %v3597 = vunpack.c.l.b16 %v3574
      %v3598 = vunpack.c.l.b16 %v3578
      %v3599 = vunpack.c.l.b16 %v3581
      %v3600 = vpack.c.b16 %v3585, %v3584
      %v3601 = vpack.c.b16 %v3587, %v3586
      %v3602 = vpack.c.b16 %v3589, %v3588
      %v3603 = vpack.c.b16 %v3591, %v3590
      %v3604 = vpack.c.b16 %v3593, %v3592
      %v3605 = vpack.c.b16 %v3595, %v3594
      %v3606 = vpack.c.b16 %v3597, %v3596
      %v3607 = vpack.c.b16 %v3599, %v3598
      %v3609 = vsel %vm978, %v3600, 0
      %v3612 = vsel %vm978, %v3601, 0
      %v3615 = vsel %vm978, %v3602, 0
      %v3618 = vsel %vm978, %v3603, 0
      %v3621 = vsel %vm978, %v3604, 0
      %v3624 = vsel %vm978, %v3605, 0
      %v3627 = vsel %vm978, %v3606, 0
      %v3630 = vsel %vm978, %v3607, 0
      %v3633 = vsel %vm1027, %v3583, 0
      %3635 = vmatprep.subr.bf16.mxu0 0
      %3636 = vmatpush1.bf16.msra.mxu0 %v3633
      %3637 = vmatprep.subr.bf16.mxu0 0
      %3638 = vmatpush1.bf16.msra.mxu0 0
      %3639 = vmatprep.subr.bf16.mxu0 0
      %3640 = vmatpush1.bf16.msra.mxu0 0
      %3641 = vmatprep.subr.bf16.mxu0 0
      %3642 = vmatpush1.bf16.msra.mxu0 0
      %3643 = vmatprep.subr.bf16.mxu0 0
      %3644 = vmatpush1.bf16.msra.mxu0 0
      %3645 = vmatprep.subr.bf16.mxu0 0
      %3646 = vmatpush1.bf16.msra.mxu0 0
      %3647 = vmatprep.subr.bf16.mxu0 0
      %3648 = vmatpush1.bf16.msra.mxu0 0
      %3649 = vmatprep.subr.bf16.mxu0 0
      %3650 = vmatpush1.bf16.msra.mxu0 0
      %3651 = vmatprep.subr.bf16.mxu0 0
      %3652 = vmatpush1.bf16.msra.mxu0 0
      %3653 = vmatprep.subr.bf16.mxu0 0
      %3654 = vmatpush1.bf16.msra.mxu0 0
      %3655 = vmatprep.subr.bf16.mxu0 0
      %3656 = vmatpush1.bf16.msra.mxu0 0
      %3657 = vmatprep.subr.bf16.mxu0 0
      %3658 = vmatpush1.bf16.msra.mxu0 0
      %3659 = vmatprep.subr.bf16.mxu0 0
      %3660 = vmatpush1.bf16.msra.mxu0 0
      %3661 = vmatprep.subr.bf16.mxu0 0
      %3662 = vmatpush1.bf16.msra.mxu0 0
      %3663 = vmatprep.subr.bf16.mxu0 0
      %3664 = vmatpush1.bf16.msra.mxu0 0
      %3665 = vmatprep.subr.bf16.mxu0 0
      %3666 = vmatpush1.bf16.msra.mxu0 0
      %3667 = vmatprep.mubr.bf16.mxu0 0
      %3668 = vmatmul.mubr.bf16.gmra.mrb[0].mxu0 %v3609
      %v3669 = vpop.f32.mrb[0].mxu0
      %v3670 = vadd.f32 0.0, %v3669
      %v3671 = vpop.f32.mrb[0].mxu0
      %v3672 = vpop.f32.mrb[0].mxu0
      %v3673 = vadd.f32 0.0, %v3672
      %v3674 = vpop.f32.mrb[0].mxu0
      %3675 = vmatprep.mubr.bf16.mxu0 0
      %3676 = vmatmul.mubr.bf16.gmra.mrb[0].mxu0 %v3612
      %v3677 = vpop.f32.mrb[0].mxu0
      %v3678 = vadd.f32 0.0, %v3677
      %v3679 = vpop.f32.mrb[0].mxu0
      %v3680 = vpop.f32.mrb[0].mxu0
      %v3681 = vadd.f32 0.0, %v3680
      %v3682 = vpop.f32.mrb[0].mxu0
      %3683 = vmatprep.mubr.bf16.mxu0 0
      %3684 = vmatmul.mubr.bf16.gmra.mrb[0].mxu0 %v3615
      %v3685 = vpop.f32.mrb[0].mxu0
      %v3686 = vadd.f32 0.0, %v3685
      %v3687 = vpop.f32.mrb[0].mxu0
      %v3688 = vpop.f32.mrb[0].mxu0
      %v3689 = vadd.f32 0.0, %v3688
      %v3690 = vpop.f32.mrb[0].mxu0
      %3691 = vmatprep.mubr.bf16.mxu0 0
      %3692 = vmatmul.mubr.bf16.gmra.mrb[0].mxu0 %v3618
      %v3693 = vpop.f32.mrb[0].mxu0
      %v3694 = vadd.f32 0.0, %v3693
      %v3695 = vpop.f32.mrb[0].mxu0
      %v3696 = vpop.f32.mrb[0].mxu0
      %v3697 = vadd.f32 0.0, %v3696
      %v3698 = vpop.f32.mrb[0].mxu0
      %3699 = vmatprep.mubr.bf16.mxu0 0
      %3700 = vmatmul.mubr.bf16.gmra.mrb[0].mxu0 %v3621
      %v3701 = vpop.f32.mrb[0].mxu0
      %v3702 = vadd.f32 0.0, %v3701
      %v3703 = vpop.f32.mrb[0].mxu0
      %v3704 = vpop.f32.mrb[0].mxu0
      %v3705 = vadd.f32 0.0, %v3704
      %v3706 = vpop.f32.mrb[0].mxu0
      %3707 = vmatprep.mubr.bf16.mxu0 0
      %3708 = vmatmul.mubr.bf16.gmra.mrb[0].mxu0 %v3624
      %v3709 = vpop.f32.mrb[0].mxu0
      %v3710 = vadd.f32 0.0, %v3709
      %v3711 = vpop.f32.mrb[0].mxu0
      %v3712 = vpop.f32.mrb[0].mxu0
      %v3713 = vadd.f32 0.0, %v3712
      %v3714 = vpop.f32.mrb[0].mxu0
      %3715 = vmatprep.mubr.bf16.mxu0 0
      %3716 = vmatmul.mubr.bf16.gmra.mrb[0].mxu0 %v3627
      %v3717 = vpop.f32.mrb[0].mxu0
      %v3718 = vadd.f32 0.0, %v3717
      %v3719 = vpop.f32.mrb[0].mxu0
      %v3720 = vpop.f32.mrb[0].mxu0
      %v3721 = vadd.f32 0.0, %v3720
      %v3722 = vpop.f32.mrb[0].mxu0
      %3723 = vmatprep.mubr.bf16.mxu0 0
      %3724 = vmatmul.mubr.bf16.gmra.mrb[0].mxu0 %v3630
      %v3725 = vpop.f32.mrb[0].mxu0
      %v3726 = vadd.f32 0.0, %v3725
      %v3727 = vpop.f32.mrb[0].mxu0
      %v3728 = vpop.f32.mrb[0].mxu0
      %v3729 = vadd.f32 0.0, %v3728
      %v3730 = vpop.f32.mrb[0].mxu0
      %3731 = vdwg.mxu0
      %v3732 = vadd.f32 %v3478, %v3670
      %v3733 = vadd.f32 %v3479, %v3673
      %v3734 = vadd.f32 %v3480, %v3678
      %v3735 = vadd.f32 %v3481, %v3681
      %v3736 = vadd.f32 %v3482, %v3686
      %v3737 = vadd.f32 %v3483, %v3689
      %v3738 = vadd.f32 %v3484, %v3694
      %v3739 = vadd.f32 %v3485, %v3697
      %v3740 = vadd.f32 %v3486, %v3702
      %v3741 = vadd.f32 %v3487, %v3705
      %v3742 = vadd.f32 %v3488, %v3710
      %v3743 = vadd.f32 %v3489, %v3713
      %v3744 = vadd.f32 %v3490, %v3718
      %v3745 = vadd.f32 %v3491, %v3721
      %v3746 = vadd.f32 %v3492, %v3726
      %v3747 = vadd.f32 %v3493, %v3729
      %vm3748 = vcmp.gt.f32.partialorder %v3732, 0.0
      %vm3749 = vcmp.gt.f32.partialorder %v3733, 0.0
      %vm3750 = vcmp.gt.f32.partialorder %v3734, 0.0
      %vm3751 = vcmp.gt.f32.partialorder %v3735, 0.0
      %vm3752 = vcmp.gt.f32.partialorder %v3736, 0.0
      %vm3753 = vcmp.gt.f32.partialorder %v3737, 0.0
      %vm3754 = vcmp.gt.f32.partialorder %v3738, 0.0
      %vm3755 = vcmp.gt.f32.partialorder %v3739, 0.0
      %vm3756 = vcmp.gt.f32.partialorder %v3740, 0.0
      %vm3757 = vcmp.gt.f32.partialorder %v3741, 0.0
      %vm3758 = vcmp.gt.f32.partialorder %v3742, 0.0
      %vm3759 = vcmp.gt.f32.partialorder %v3743, 0.0
      %vm3760 = vcmp.gt.f32.partialorder %v3744, 0.0
      %vm3761 = vcmp.gt.f32.partialorder %v3745, 0.0
      %vm3762 = vcmp.gt.f32.partialorder %v3746, 0.0
      %vm3763 = vcmp.gt.f32.partialorder %v3747, 0.0
      %v3764 = vmul.f32 %v3732, 0.2
      %v3765 = vmul.f32 %v3733, 0.2
      %v3766 = vmul.f32 %v3734, 0.2
      %v3767 = vmul.f32 %v3735, 0.2
      %v3768 = vmul.f32 %v3736, 0.2
      %v3769 = vmul.f32 %v3737, 0.2
      %v3770 = vmul.f32 %v3738, 0.2
      %v3771 = vmul.f32 %v3739, 0.2
      %v3772 = vmul.f32 %v3740, 0.2
      %v3773 = vmul.f32 %v3741, 0.2
      %v3774 = vmul.f32 %v3742, 0.2
      %v3775 = vmul.f32 %v3743, 0.2
      %v3776 = vmul.f32 %v3744, 0.2
      %v3777 = vmul.f32 %v3745, 0.2
      %v3778 = vmul.f32 %v3746, 0.2
      %v3779 = vmul.f32 %v3747, 0.2
      %v3780 = vsel %vm3748, %v3732, %v3764
      %v3781 = vsel %vm3749, %v3733, %v3765
      %v3782 = vsel %vm3750, %v3734, %v3766
      %v3783 = vsel %vm3751, %v3735, %v3767
      %v3784 = vsel %vm3752, %v3736, %v3768
      %v3785 = vsel %vm3753, %v3737, %v3769
      %v3786 = vsel %vm3754, %v3738, %v3770
      %v3787 = vsel %vm3755, %v3739, %v3771
      %v3788 = vsel %vm3756, %v3740, %v3772
      %v3789 = vsel %vm3757, %v3741, %v3773
      %v3790 = vsel %vm3758, %v3742, %v3774
      %v3791 = vsel %vm3759, %v3743, %v3775
      %v3792 = vsel %vm3760, %v3744, %v3776
      %v3793 = vsel %vm3761, %v3745, %v3777
      %v3794 = vsel %vm3762, %v3746, %v3778
      %v3795 = vsel %vm3763, %v3747, %v3779
      %v3796 = vpack.c.bf16 %v3781, %v3780
      %v3797 = vpack.c.bf16 %v3783, %v3782
      %v3798 = vpack.c.bf16 %v3785, %v3784
      %v3799 = vpack.c.bf16 %v3787, %v3786
      %v3800 = vpack.c.bf16 %v3789, %v3788
      %v3801 = vpack.c.bf16 %v3791, %v3790
      %v3802 = vpack.c.bf16 %v3793, %v3792
      %v3803 = vpack.c.bf16 %v3795, %v3794
      %v3812 = vunpack.c.l.b16 %v3796
      %v3813 = vunpack.c.h.b16 %v3796
      %v3814 = vunpack.c.l.b16 %v3797
      %v3815 = vunpack.c.h.b16 %v3797
      %v3816 = vunpack.c.l.b16 %v3798
      %v3817 = vunpack.c.h.b16 %v3798
      %v3818 = vunpack.c.l.b16 %v3799
      %v3819 = vunpack.c.h.b16 %v3799
      %v3820 = vunpack.c.l.b16 %v3800
      %v3821 = vunpack.c.h.b16 %v3800
      %v3822 = vunpack.c.l.b16 %v3801
      %v3823 = vunpack.c.h.b16 %v3801
      %v3824 = vunpack.c.l.b16 %v3802
      %v3825 = vunpack.c.h.b16 %v3802
      %v3826 = vunpack.c.l.b16 %v3803
      %v3827 = vunpack.c.h.b16 %v3803
      %v3828 = vpack.c.b16 %v3812, %v3812
      %v3829 = vpack.c.b16 %v3813, %v3813
      %v3830 = vpack.c.b16 %v3814, %v3814
      %v3831 = vpack.c.b16 %v3815, %v3815
      %v3832 = vpack.c.b16 %v3816, %v3816
      %v3833 = vpack.c.b16 %v3817, %v3817
      %v3834 = vpack.c.b16 %v3818, %v3818
      %v3835 = vpack.c.b16 %v3819, %v3819
      %v3836 = vpack.c.b16 %v3820, %v3820
      %v3837 = vpack.c.b16 %v3821, %v3821
      %v3838 = vpack.c.b16 %v3822, %v3822
      %v3839 = vpack.c.b16 %v3823, %v3823
      %v3840 = vpack.c.b16 %v3824, %v3824
      %v3841 = vpack.c.b16 %v3825, %v3825
      %v3842 = vpack.c.b16 %v3826, %v3826
      %v3843 = vpack.c.b16 %v3827, %v3827
      %v3845 = vshrl.u32 %v3828, 16
      %v3847 = vrot.slane %v3845, 7
      %v3848 = vshll.u32 %v3828, 16
      %v3850 = vor.u32 %v3847, %v3848
      %v3851 = vrot.slane %v3847, 4
      %v3853 = vshrl.u32 %v3829, 16
      %v3855 = vrot.slane %v3853, 7
      %v3856 = vshll.u32 %v3829, 16
      %v3858 = vor.u32 %v3855, %v3856
      %v3859 = vsel %vm426, %v3851, %v3858
      %v3860 = vrot.slane %v3855, 4
      %v3862 = vshrl.u32 %v3830, 16
      %v3864 = vrot.slane %v3862, 7
      %v3865 = vshll.u32 %v3830, 16
      %v3867 = vor.u32 %v3864, %v3865
      %v3868 = vrot.slane %v3864, 4
      %v3870 = vshrl.u32 %v3831, 16
      %v3872 = vrot.slane %v3870, 7
      %v3873 = vshll.u32 %v3831, 16
      %v3875 = vor.u32 %v3872, %v3873
      %v3876 = vsel %vm426, %v3868, %v3875
      %v3877 = vrot.slane %v3872, 4
      %v3879 = vshrl.u32 %v3832, 16
      %v3881 = vrot.slane %v3879, 7
      %v3882 = vshll.u32 %v3832, 16
      %v3884 = vor.u32 %v3881, %v3882
      %v3885 = vrot.slane %v3881, 4
      %v3887 = vshrl.u32 %v3833, 16
      %v3889 = vrot.slane %v3887, 7
      %v3890 = vshll.u32 %v3833, 16
      %v3892 = vor.u32 %v3889, %v3890
      %v3893 = vsel %vm426, %v3885, %v3892
      %v3894 = vrot.slane %v3889, 4
      %v3896 = vshrl.u32 %v3834, 16
      %v3898 = vrot.slane %v3896, 7
      %v3899 = vshll.u32 %v3834, 16
      %v3901 = vor.u32 %v3898, %v3899
      %v3902 = vrot.slane %v3898, 4
      %v3904 = vshrl.u32 %v3835, 16
      %v3906 = vrot.slane %v3904, 7
      %v3907 = vshll.u32 %v3835, 16
      %v3909 = vor.u32 %v3906, %v3907
      %v3910 = vsel %vm426, %v3902, %v3909
      %v3911 = vrot.slane %v3906, 4
      %v3913 = vshrl.u32 %v3836, 16
      %v3915 = vrot.slane %v3913, 7
      %v3916 = vshll.u32 %v3836, 16
      %v3918 = vor.u32 %v3915, %v3916
      %v3919 = vrot.slane %v3915, 4
      %v3921 = vshrl.u32 %v3837, 16
      %v3923 = vrot.slane %v3921, 7
      %v3924 = vshll.u32 %v3837, 16
      %v3926 = vor.u32 %v3923, %v3924
      %v3927 = vsel %vm426, %v3919, %v3926
      %v3928 = vrot.slane %v3923, 4
      %v3930 = vshrl.u32 %v3838, 16
      %v3932 = vrot.slane %v3930, 7
      %v3933 = vshll.u32 %v3838, 16
      %v3935 = vor.u32 %v3932, %v3933
      %v3936 = vrot.slane %v3932, 4
      %v3938 = vshrl.u32 %v3839, 16
      %v3940 = vrot.slane %v3938, 7
      %v3941 = vshll.u32 %v3839, 16
      %v3943 = vor.u32 %v3940, %v3941
      %v3944 = vsel %vm426, %v3936, %v3943
      %v3945 = vrot.slane %v3940, 4
      %v3947 = vshrl.u32 %v3840, 16
      %v3949 = vrot.slane %v3947, 7
      %v3950 = vshll.u32 %v3840, 16
      %v3952 = vor.u32 %v3949, %v3950
      %v3953 = vrot.slane %v3949, 4
      %v3955 = vshrl.u32 %v3841, 16
      %v3957 = vrot.slane %v3955, 7
      %v3958 = vshll.u32 %v3841, 16
      %v3960 = vor.u32 %v3957, %v3958
      %v3961 = vsel %vm426, %v3953, %v3960
      %v3962 = vrot.slane %v3957, 4
      %v3964 = vshrl.u32 %v3842, 16
      %v3966 = vrot.slane %v3964, 7
      %v3967 = vshll.u32 %v3842, 16
      %v3969 = vor.u32 %v3966, %v3967
      %v3970 = vrot.slane %v3966, 4
      %v3972 = vshrl.u32 %v3843, 16
      %v3974 = vrot.slane %v3972, 7
      %v3975 = vshll.u32 %v3843, 16
      %v3977 = vor.u32 %v3974, %v3975
      %v3978 = vsel %vm426, %v3970, %v3977
      %v3979 = vrot.slane %v3974, 4
      %s4004 = scalar_lea.vmem [#allocation3], 12
      %vm4005 = vcmask 60416
      %vm4006 = vmand %vm4005, %vm749
      %v4007 = vld [vmem:[%s4004] sm:$0xf]
      %v4008 = vsel %vm4006, %v3850, %v4007
      %4009 = vst [vmem:[%s4004] sm:$0xf] %v4008
      %4010 = vst.msk [vmem:[%s4004 + $0x4] sm:$0xf] %vm336, %v3859
      %vm4011 = vcmask 57344
      %vm4012 = vmand %vm4011, %vm424
      %v4013 = vld [vmem:[%s4004 + $0x8] sm:$0x1]
      %v4014 = vsel %vm4012, %v3860, %v4013
      %4015 = vst [vmem:[%s4004 + $0x8] sm:$0x1] %v4014
      %v4016 = vld [vmem:[%s4004 + $0xc] sm:$0xf]
      %v4017 = vsel %vm4006, %v3867, %v4016
      %4018 = vst [vmem:[%s4004 + $0xc] sm:$0xf] %v4017
      %4019 = vst.msk [vmem:[%s4004 + $0x10] sm:$0xf] %vm336, %v3876
      %v4020 = vld [vmem:[%s4004 + $0x14] sm:$0x1]
      %v4021 = vsel %vm4012, %v3877, %v4020
      %4022 = vst [vmem:[%s4004 + $0x14] sm:$0x1] %v4021
      %v4023 = vld [vmem:[%s4004 + $0x18] sm:$0xf]
      %v4024 = vsel %vm4006, %v3884, %v4023
      %4025 = vst [vmem:[%s4004 + $0x18] sm:$0xf] %v4024
      %4026 = vst.msk [vmem:[%s4004 + $0x1c] sm:$0xf] %vm336, %v3893
      %v4027 = vld [vmem:[%s4004 + $0x20] sm:$0x1]
      %v4028 = vsel %vm4012, %v3894, %v4027
      %4029 = vst [vmem:[%s4004 + $0x20] sm:$0x1] %v4028
      %v4030 = vld [vmem:[%s4004 + $0x24] sm:$0xf]
      %v4031 = vsel %vm4006, %v3901, %v4030
      %4032 = vst [vmem:[%s4004 + $0x24] sm:$0xf] %v4031
      %4033 = vst.msk [vmem:[%s4004 + $0x28] sm:$0xf] %vm336, %v3910
      %v4034 = vld [vmem:[%s4004 + $0x2c] sm:$0x1]
      %v4035 = vsel %vm4012, %v3911, %v4034
      %4036 = vst [vmem:[%s4004 + $0x2c] sm:$0x1] %v4035
      %v4037 = vld [vmem:[%s4004 + $0x30] sm:$0xf]
      %v4038 = vsel %vm4006, %v3918, %v4037
      %4039 = vst [vmem:[%s4004 + $0x30] sm:$0xf] %v4038
      %4040 = vst.msk [vmem:[%s4004 + $0x34] sm:$0xf] %vm336, %v3927
      %v4041 = vld [vmem:[%s4004 + $0x38] sm:$0x1]
      %v4042 = vsel %vm4012, %v3928, %v4041
      %4043 = vst [vmem:[%s4004 + $0x38] sm:$0x1] %v4042
      %v4044 = vld [vmem:[%s4004 + $0x3c] sm:$0xf]
      %v4045 = vsel %vm4006, %v3935, %v4044
      %4046 = vst [vmem:[%s4004 + $0x3c] sm:$0xf] %v4045
      %4047 = vst.msk [vmem:[%s4004 + $0x40] sm:$0xf] %vm336, %v3944
      %v4048 = vld [vmem:[%s4004 + $0x44] sm:$0x1]
      %v4049 = vsel %vm4012, %v3945, %v4048
      %4050 = vst [vmem:[%s4004 + $0x44] sm:$0x1] %v4049
      %v4051 = vld [vmem:[%s4004 + $0x48] sm:$0xf]
      %v4052 = vsel %vm4006, %v3952, %v4051
      %4053 = vst [vmem:[%s4004 + $0x48] sm:$0xf] %v4052
      %4054 = vst.msk [vmem:[%s4004 + $0x4c] sm:$0xf] %vm336, %v3961
      %v4055 = vld [vmem:[%s4004 + $0x50] sm:$0x1]
      %v4056 = vsel %vm4012, %v3962, %v4055
      %4057 = vst [vmem:[%s4004 + $0x50] sm:$0x1] %v4056
      %v4058 = vld [vmem:[%s4004 + $0x54] sm:$0xf]
      %v4059 = vsel %vm4006, %v3969, %v4058
      %4060 = vst [vmem:[%s4004 + $0x54] sm:$0xf] %v4059
      %4061 = vst.msk [vmem:[%s4004 + $0x58] sm:$0xf] %vm336, %v3978
      %v4062 = vld [vmem:[%s4004 + $0x5c] sm:$0x1]
      %v4063 = vsel %vm4012, %v3979, %v4062
      %4064 = vst [vmem:[%s4004 + $0x5c] sm:$0x1] %v4063
      %s4065 = scalar_lea.vmem %s2, 128
      %v4066 = vld [vmem:[%s4065] sm:$0xff]
      %v4067 = vld [vmem:[%s4065 + $0x8] sm:$0xff]
      %v4068 = vld [vmem:[%s4065 + $0x10] sm:$0xff]
      %v4069 = vld [vmem:[%s4065 + $0x18] sm:$0xff]
      %v4070 = vld [vmem:[%s4065 + $0x20] sm:$0xff]
      %v4071 = vld [vmem:[%s4065 + $0x28] sm:$0xff]
      %v4072 = vld [vmem:[%s4065 + $0x30] sm:$0xff]
      %v4073 = vld [vmem:[%s4065 + $0x38] sm:$0xff]
      %v4074 = vld [vmem:[%s4065 + $0x40] sm:$0xff]
      %v4075 = vld [vmem:[%s4065 + $0x48] sm:$0xff]
      %v4076 = vld [vmem:[%s4065 + $0x50] sm:$0xff]
      %v4077 = vld [vmem:[%s4065 + $0x58] sm:$0xff]
      %v4078 = vld [vmem:[%s4065 + $0x60] sm:$0xff]
      %v4079 = vld [vmem:[%s4065 + $0x68] sm:$0xff]
      %v4080 = vld [vmem:[%s4065 + $0x70] sm:$0xff]
      %v4081 = vld [vmem:[%s4065 + $0x78] sm:$0xff]
      %s4082 = scalar_lea.vmem [#allocation2], 96
      %v4083 = vld [vmem:[%s4082] sm:$0xf]
      %v4084 = vld [vmem:[%s4082 + $0x4] sm:$0xf]
      %v4085 = vld [vmem:[%s4082 + $0xc] sm:$0xf]
      %v4086 = vld [vmem:[%s4082 + $0x10] sm:$0xf]
      %v4087 = vld [vmem:[%s4082 + $0x18] sm:$0xf]
      %v4088 = vld [vmem:[%s4082 + $0x1c] sm:$0xf]
      %v4089 = vld [vmem:[%s4082 + $0x24] sm:$0xf]
      %v4090 = vld [vmem:[%s4082 + $0x28] sm:$0xf]
      %v4091 = vld [vmem:[%s4082 + $0x30] sm:$0xf]
      %v4092 = vld [vmem:[%s4082 + $0x34] sm:$0xf]
      %v4093 = vld [vmem:[%s4082 + $0x3c] sm:$0xf]
      %v4094 = vld [vmem:[%s4082 + $0x40] sm:$0xf]
      %v4095 = vld [vmem:[%s4082 + $0x48] sm:$0xf]
      %v4096 = vld [vmem:[%s4082 + $0x4c] sm:$0xf]
      %v4097 = vld [vmem:[%s4082 + $0x54] sm:$0xf]
      %v4098 = vld [vmem:[%s4082 + $0x58] sm:$0xf]
      %v4099 = vld [vmem:[%s1] sm:$0x3]
      %v4116 = vunpack.c.l.b16 %v4083
      %v4117 = vunpack.c.l.b16 %v4084
      %v4118 = vunpack.c.l.b16 %v4085
      %v4119 = vunpack.c.l.b16 %v4086
      %v4120 = vunpack.c.l.b16 %v4087
      %v4121 = vunpack.c.l.b16 %v4088
      %v4122 = vunpack.c.l.b16 %v4089
      %v4123 = vunpack.c.l.b16 %v4090
      %v4124 = vunpack.c.l.b16 %v4091
      %v4125 = vunpack.c.l.b16 %v4092
      %v4126 = vunpack.c.l.b16 %v4093
      %v4127 = vunpack.c.l.b16 %v4094
      %v4128 = vunpack.c.l.b16 %v4095
      %v4129 = vunpack.c.l.b16 %v4096
      %v4130 = vunpack.c.l.b16 %v4097
      %v4131 = vunpack.c.l.b16 %v4098
      %v4132 = vpack.c.b16 %v4117, %v4116
      %v4133 = vpack.c.b16 %v4119, %v4118
      %v4134 = vpack.c.b16 %v4121, %v4120
      %v4135 = vpack.c.b16 %v4123, %v4122
      %v4136 = vpack.c.b16 %v4125, %v4124
      %v4137 = vpack.c.b16 %v4127, %v4126
      %v4138 = vpack.c.b16 %v4129, %v4128
      %v4139 = vpack.c.b16 %v4131, %v4130
      %v4141 = vsel %vm978, %v4132, 0
      %v4144 = vsel %vm978, %v4133, 0
      %v4147 = vsel %vm978, %v4134, 0
      %v4150 = vsel %vm978, %v4135, 0
      %v4153 = vsel %vm978, %v4136, 0
      %v4156 = vsel %vm978, %v4137, 0
      %v4159 = vsel %vm978, %v4138, 0
      %v4162 = vsel %vm978, %v4139, 0
      %v4165 = vsel %vm1027, %v4099, 0
      %4167 = vmatprep.subr.bf16.mxu0 0
      %4168 = vmatpush1.bf16.msra.mxu0 %v4165
      %4169 = vmatprep.subr.bf16.mxu0 0
      %4170 = vmatpush1.bf16.msra.mxu0 0
      %4171 = vmatprep.subr.bf16.mxu0 0
      %4172 = vmatpush1.bf16.msra.mxu0 0
      %4173 = vmatprep.subr.bf16.mxu0 0
      %4174 = vmatpush1.bf16.msra.mxu0 0
      %4175 = vmatprep.subr.bf16.mxu0 0
      %4176 = vmatpush1.bf16.msra.mxu0 0
      %4177 = vmatprep.subr.bf16.mxu0 0
      %4178 = vmatpush1.bf16.msra.mxu0 0
      %4179 = vmatprep.subr.bf16.mxu0 0
      %4180 = vmatpush1.bf16.msra.mxu0 0
      %4181 = vmatprep.subr.bf16.mxu0 0
      %4182 = vmatpush1.bf16.msra.mxu0 0
      %4183 = vmatprep.subr.bf16.mxu0 0
      %4184 = vmatpush1.bf16.msra.mxu0 0
      %4185 = vmatprep.subr.bf16.mxu0 0
      %4186 = vmatpush1.bf16.msra.mxu0 0
      %4187 = vmatprep.subr.bf16.mxu0 0
      %4188 = vmatpush1.bf16.msra.mxu0 0
      %4189 = vmatprep.subr.bf16.mxu0 0
      %4190 = vmatpush1.bf16.msra.mxu0 0
      %4191 = vmatprep.subr.bf16.mxu0 0
      %4192 = vmatpush1.bf16.msra.mxu0 0
      %4193 = vmatprep.subr.bf16.mxu0 0
      %4194 = vmatpush1.bf16.msra.mxu0 0
      %4195 = vmatprep.subr.bf16.mxu0 0
      %4196 = vmatpush1.bf16.msra.mxu0 0
      %4197 = vmatprep.subr.bf16.mxu0 0
      %4198 = vmatpush1.bf16.msra.mxu0 0
      %4199 = vmatprep.mubr.bf16.mxu0 0
      %4200 = vmatmul.mubr.bf16.gmra.mrb[0].mxu0 %v4141
      %v4201 = vpop.f32.mrb[0].mxu0
      %v4202 = vadd.f32 0.0, %v4201
      %v4203 = vpop.f32.mrb[0].mxu0
      %v4204 = vpop.f32.mrb[0].mxu0
      %v4205 = vadd.f32 0.0, %v4204
      %v4206 = vpop.f32.mrb[0].mxu0
      %4207 = vmatprep.mubr.bf16.mxu0 0
      %4208 = vmatmul.mubr.bf16.gmra.mrb[0].mxu0 %v4144
      %v4209 = vpop.f32.mrb[0].mxu0
      %v4210 = vadd.f32 0.0, %v4209
      %v4211 = vpop.f32.mrb[0].mxu0
      %v4212 = vpop.f32.mrb[0].mxu0
      %v4213 = vadd.f32 0.0, %v4212
      %v4214 = vpop.f32.mrb[0].mxu0
      %4215 = vmatprep.mubr.bf16.mxu0 0
      %4216 = vmatmul.mubr.bf16.gmra.mrb[0].mxu0 %v4147
      %v4217 = vpop.f32.mrb[0].mxu0
      %v4218 = vadd.f32 0.0, %v4217
      %v4219 = vpop.f32.mrb[0].mxu0
      %v4220 = vpop.f32.mrb[0].mxu0
      %v4221 = vadd.f32 0.0, %v4220
      %v4222 = vpop.f32.mrb[0].mxu0
      %4223 = vmatprep.mubr.bf16.mxu0 0
      %4224 = vmatmul.mubr.bf16.gmra.mrb[0].mxu0 %v4150
      %v4225 = vpop.f32.mrb[0].mxu0
      %v4226 = vadd.f32 0.0, %v4225
      %v4227 = vpop.f32.mrb[0].mxu0
      %v4228 = vpop.f32.mrb[0].mxu0
      %v4229 = vadd.f32 0.0, %v4228
      %v4230 = vpop.f32.mrb[0].mxu0
      %4231 = vmatprep.mubr.bf16.mxu0 0
      %4232 = vmatmul.mubr.bf16.gmra.mrb[0].mxu0 %v4153
      %v4233 = vpop.f32.mrb[0].mxu0
      %v4234 = vadd.f32 0.0, %v4233
      %v4235 = vpop.f32.mrb[0].mxu0
      %v4236 = vpop.f32.mrb[0].mxu0
      %v4237 = vadd.f32 0.0, %v4236
      %v4238 = vpop.f32.mrb[0].mxu0
      %4239 = vmatprep.mubr.bf16.mxu0 0
      %4240 = vmatmul.mubr.bf16.gmra.mrb[0].mxu0 %v4156
      %v4241 = vpop.f32.mrb[0].mxu0
      %v4242 = vadd.f32 0.0, %v4241
      %v4243 = vpop.f32.mrb[0].mxu0
      %v4244 = vpop.f32.mrb[0].mxu0
      %v4245 = vadd.f32 0.0, %v4244
      %v4246 = vpop.f32.mrb[0].mxu0
      %4247 = vmatprep.mubr.bf16.mxu0 0
      %4248 = vmatmul.mubr.bf16.gmra.mrb[0].mxu0 %v4159
      %v4249 = vpop.f32.mrb[0].mxu0
      %v4250 = vadd.f32 0.0, %v4249
      %v4251 = vpop.f32.mrb[0].mxu0
      %v4252 = vpop.f32.mrb[0].mxu0
      %v4253 = vadd.f32 0.0, %v4252
      %v4254 = vpop.f32.mrb[0].mxu0
      %4255 = vmatprep.mubr.bf16.mxu0 0
      %4256 = vmatmul.mubr.bf16.gmra.mrb[0].mxu0 %v4162
      %v4257 = vpop.f32.mrb[0].mxu0
      %v4258 = vadd.f32 0.0, %v4257
      %v4259 = vpop.f32.mrb[0].mxu0
      %v4260 = vpop.f32.mrb[0].mxu0
      %v4261 = vadd.f32 0.0, %v4260
      %v4262 = vpop.f32.mrb[0].mxu0
      %4263 = vdwg.mxu0
      %v4264 = vadd.f32 %v4066, %v4202
      %v4265 = vadd.f32 %v4067, %v4205
      %v4266 = vadd.f32 %v4068, %v4210
      %v4267 = vadd.f32 %v4069, %v4213
      %v4268 = vadd.f32 %v4070, %v4218
      %v4269 = vadd.f32 %v4071, %v4221
      %v4270 = vadd.f32 %v4072, %v4226
      %v4271 = vadd.f32 %v4073, %v4229
      %v4272 = vadd.f32 %v4074, %v4234
      %v4273 = vadd.f32 %v4075, %v4237
      %v4274 = vadd.f32 %v4076, %v4242
      %v4275 = vadd.f32 %v4077, %v4245
      %v4276 = vadd.f32 %v4078, %v4250
      %v4277 = vadd.f32 %v4079, %v4253
      %v4278 = vadd.f32 %v4080, %v4258
      %v4279 = vadd.f32 %v4081, %v4261
      %v4280 = vld [vmem:[%s4082] sm:$0xf]
      %v4281 = vld [vmem:[%s4082 + $0x4] sm:$0xf]
      %v4282 = vld [vmem:[%s4082 + $0x8] sm:$0x1]
      %v4283 = vld [vmem:[%s4082 + $0xc] sm:$0xf]
      %v4284 = vld [vmem:[%s4082 + $0x10] sm:$0xf]
      %v4285 = vld [vmem:[%s4082 + $0x14] sm:$0x1]
      %v4286 = vld [vmem:[%s4082 + $0x18] sm:$0xf]
      %v4287 = vld [vmem:[%s4082 + $0x1c] sm:$0xf]
      %v4288 = vld [vmem:[%s4082 + $0x20] sm:$0x1]
      %v4289 = vld [vmem:[%s4082 + $0x24] sm:$0xf]
      %v4290 = vld [vmem:[%s4082 + $0x28] sm:$0xf]
      %v4291 = vld [vmem:[%s4082 + $0x2c] sm:$0x1]
      %v4292 = vld [vmem:[%s4082 + $0x30] sm:$0xf]
      %v4293 = vld [vmem:[%s4082 + $0x34] sm:$0xf]
      %v4294 = vld [vmem:[%s4082 + $0x38] sm:$0x1]
      %v4295 = vld [vmem:[%s4082 + $0x3c] sm:$0xf]
      %v4296 = vld [vmem:[%s4082 + $0x40] sm:$0xf]
      %v4297 = vld [vmem:[%s4082 + $0x44] sm:$0x1]
      %v4298 = vld [vmem:[%s4082 + $0x48] sm:$0xf]
      %v4299 = vld [vmem:[%s4082 + $0x4c] sm:$0xf]
      %v4300 = vld [vmem:[%s4082 + $0x50] sm:$0x1]
      %v4301 = vld [vmem:[%s4082 + $0x54] sm:$0xf]
      %v4302 = vld [vmem:[%s4082 + $0x58] sm:$0xf]
      %v4303 = vld [vmem:[%s4082 + $0x5c] sm:$0x1]
      %v4305 = vshrl.u32 %v4280, 16
      %v4307 = vrot.slane %v4305, 4
      %v4308 = vshll.u32 %v4280, 16
      %v4310 = vrot.slane %v4308, 5
      %v4311 = vor.u32 %v4307, %v4310
      %v4312 = vrot.slane %v4311, 4
      %v4314 = vshll.u32 %v4281, 16
      %v4316 = vrot.slane %v4314, 5
      %v4317 = vsel %vm1463, %v4312, %v4316
      %v4318 = vshrl.u32 %v4281, 16
      %v4320 = vrot.slane %v4318, 4
      %v4321 = vor.u32 %v4320, %v4316
      %v4322 = vrot.slane %v4321, 4
      %v4324 = vshll.u32 %v4282, 16
      %v4326 = vrot.slane %v4324, 5
      %v4327 = vsel %vm1463, %v4322, %v4326
      %v4329 = vshrl.u32 %v4283, 16
      %v4331 = vrot.slane %v4329, 4
      %v4332 = vshll.u32 %v4283, 16
      %v4334 = vrot.slane %v4332, 5
      %v4335 = vor.u32 %v4331, %v4334
      %v4336 = vrot.slane %v4335, 4
      %v4338 = vshll.u32 %v4284, 16
      %v4340 = vrot.slane %v4338, 5
      %v4341 = vsel %vm1463, %v4336, %v4340
      %v4342 = vshrl.u32 %v4284, 16
      %v4344 = vrot.slane %v4342, 4
      %v4345 = vor.u32 %v4344, %v4340
      %v4346 = vrot.slane %v4345, 4
      %v4348 = vshll.u32 %v4285, 16
      %v4350 = vrot.slane %v4348, 5
      %v4351 = vsel %vm1463, %v4346, %v4350
      %v4353 = vshrl.u32 %v4286, 16
      %v4355 = vrot.slane %v4353, 4
      %v4356 = vshll.u32 %v4286, 16
      %v4358 = vrot.slane %v4356, 5
      %v4359 = vor.u32 %v4355, %v4358
      %v4360 = vrot.slane %v4359, 4
      %v4362 = vshll.u32 %v4287, 16
      %v4364 = vrot.slane %v4362, 5
      %v4365 = vsel %vm1463, %v4360, %v4364
      %v4366 = vshrl.u32 %v4287, 16
      %v4368 = vrot.slane %v4366, 4
      %v4369 = vor.u32 %v4368, %v4364
      %v4370 = vrot.slane %v4369, 4
      %v4372 = vshll.u32 %v4288, 16
      %v4374 = vrot.slane %v4372, 5
      %v4375 = vsel %vm1463, %v4370, %v4374
      %v4377 = vshrl.u32 %v4289, 16
      %v4379 = vrot.slane %v4377, 4
      %v4380 = vshll.u32 %v4289, 16
      %v4382 = vrot.slane %v4380, 5
      %v4383 = vor.u32 %v4379, %v4382
      %v4384 = vrot.slane %v4383, 4
      %v4386 = vshll.u32 %v4290, 16
      %v4388 = vrot.slane %v4386, 5
      %v4389 = vsel %vm1463, %v4384, %v4388
      %v4390 = vshrl.u32 %v4290, 16
      %v4392 = vrot.slane %v4390, 4
      %v4393 = vor.u32 %v4392, %v4388
      %v4394 = vrot.slane %v4393, 4
      %v4396 = vshll.u32 %v4291, 16
      %v4398 = vrot.slane %v4396, 5
      %v4399 = vsel %vm1463, %v4394, %v4398
      %v4401 = vshrl.u32 %v4292, 16
      %v4403 = vrot.slane %v4401, 4
      %v4404 = vshll.u32 %v4292, 16
      %v4406 = vrot.slane %v4404, 5
      %v4407 = vor.u32 %v4403, %v4406
      %v4408 = vrot.slane %v4407, 4
      %v4410 = vshll.u32 %v4293, 16
      %v4412 = vrot.slane %v4410, 5
      %v4413 = vsel %vm1463, %v4408, %v4412
      %v4414 = vshrl.u32 %v4293, 16
      %v4416 = vrot.slane %v4414, 4
      %v4417 = vor.u32 %v4416, %v4412
      %v4418 = vrot.slane %v4417, 4
      %v4420 = vshll.u32 %v4294, 16
      %v4422 = vrot.slane %v4420, 5
      %v4423 = vsel %vm1463, %v4418, %v4422
      %v4425 = vshrl.u32 %v4295, 16
      %v4427 = vrot.slane %v4425, 4
      %v4428 = vshll.u32 %v4295, 16
      %v4430 = vrot.slane %v4428, 5
      %v4431 = vor.u32 %v4427, %v4430
      %v4432 = vrot.slane %v4431, 4
      %v4434 = vshll.u32 %v4296, 16
      %v4436 = vrot.slane %v4434, 5
      %v4437 = vsel %vm1463, %v4432, %v4436
      %v4438 = vshrl.u32 %v4296, 16
      %v4440 = vrot.slane %v4438, 4
      %v4441 = vor.u32 %v4440, %v4436
      %v4442 = vrot.slane %v4441, 4
      %v4444 = vshll.u32 %v4297, 16
      %v4446 = vrot.slane %v4444, 5
      %v4447 = vsel %vm1463, %v4442, %v4446
      %v4449 = vshrl.u32 %v4298, 16
      %v4451 = vrot.slane %v4449, 4
      %v4452 = vshll.u32 %v4298, 16
      %v4454 = vrot.slane %v4452, 5
      %v4455 = vor.u32 %v4451, %v4454
      %v4456 = vrot.slane %v4455, 4
      %v4458 = vshll.u32 %v4299, 16
      %v4460 = vrot.slane %v4458, 5
      %v4461 = vsel %vm1463, %v4456, %v4460
      %v4462 = vshrl.u32 %v4299, 16
      %v4464 = vrot.slane %v4462, 4
      %v4465 = vor.u32 %v4464, %v4460
      %v4466 = vrot.slane %v4465, 4
      %v4468 = vshll.u32 %v4300, 16
      %v4470 = vrot.slane %v4468, 5
      %v4471 = vsel %vm1463, %v4466, %v4470
      %v4473 = vshrl.u32 %v4301, 16
      %v4475 = vrot.slane %v4473, 4
      %v4476 = vshll.u32 %v4301, 16
      %v4478 = vrot.slane %v4476, 5
      %v4479 = vor.u32 %v4475, %v4478
      %v4480 = vrot.slane %v4479, 4
      %v4482 = vshll.u32 %v4302, 16
      %v4484 = vrot.slane %v4482, 5
      %v4485 = vsel %vm1463, %v4480, %v4484
      %v4486 = vshrl.u32 %v4302, 16
      %v4488 = vrot.slane %v4486, 4
      %v4489 = vor.u32 %v4488, %v4484
      %v4490 = vrot.slane %v4489, 4
      %v4492 = vshll.u32 %v4303, 16
      %v4494 = vrot.slane %v4492, 5
      %v4495 = vsel %vm1463, %v4490, %v4494
      %v4496 = vld [vmem:[%s1656] sm:$0x3]
      %v4497 = vunpack.c.l.b16 %v4317
      %v4498 = vunpack.c.l.b16 %v4327
      %v4499 = vunpack.c.l.b16 %v4341
      %v4500 = vunpack.c.l.b16 %v4351
      %v4501 = vunpack.c.l.b16 %v4365
      %v4502 = vunpack.c.l.b16 %v4375
      %v4503 = vunpack.c.l.b16 %v4389
      %v4504 = vunpack.c.l.b16 %v4399
      %v4505 = vunpack.c.l.b16 %v4413
      %v4506 = vunpack.c.l.b16 %v4423
      %v4507 = vunpack.c.l.b16 %v4437
      %v4508 = vunpack.c.l.b16 %v4447
      %v4509 = vunpack.c.l.b16 %v4461
      %v4510 = vunpack.c.l.b16 %v4471
      %v4511 = vunpack.c.l.b16 %v4485
      %v4512 = vunpack.c.l.b16 %v4495
      %v4513 = vpack.c.b16 %v4498, %v4497
      %v4514 = vpack.c.b16 %v4500, %v4499
      %v4515 = vpack.c.b16 %v4502, %v4501
      %v4516 = vpack.c.b16 %v4504, %v4503
      %v4517 = vpack.c.b16 %v4506, %v4505
      %v4518 = vpack.c.b16 %v4508, %v4507
      %v4519 = vpack.c.b16 %v4510, %v4509
      %v4520 = vpack.c.b16 %v4512, %v4511
      %v4522 = vsel %vm978, %v4513, 0
      %v4525 = vsel %vm978, %v4514, 0
      %v4528 = vsel %vm978, %v4515, 0
      %v4531 = vsel %vm978, %v4516, 0
      %v4534 = vsel %vm978, %v4517, 0
      %v4537 = vsel %vm978, %v4518, 0
      %v4540 = vsel %vm978, %v4519, 0
      %v4543 = vsel %vm978, %v4520, 0
      %v4546 = vsel %vm1027, %v4496, 0
      %4548 = vmatprep.subr.bf16.mxu0 0
      %4549 = vmatpush1.bf16.msra.mxu0 %v4546
      %4550 = vmatprep.subr.bf16.mxu0 0
      %4551 = vmatpush1.bf16.msra.mxu0 0
      %4552 = vmatprep.subr.bf16.mxu0 0
      %4553 = vmatpush1.bf16.msra.mxu0 0
      %4554 = vmatprep.subr.bf16.mxu0 0
      %4555 = vmatpush1.bf16.msra.mxu0 0
      %4556 = vmatprep.subr.bf16.mxu0 0
      %4557 = vmatpush1.bf16.msra.mxu0 0
      %4558 = vmatprep.subr.bf16.mxu0 0
      %4559 = vmatpush1.bf16.msra.mxu0 0
      %4560 = vmatprep.subr.bf16.mxu0 0
      %4561 = vmatpush1.bf16.msra.mxu0 0
      %4562 = vmatprep.subr.bf16.mxu0 0
      %4563 = vmatpush1.bf16.msra.mxu0 0
      %4564 = vmatprep.subr.bf16.mxu0 0
      %4565 = vmatpush1.bf16.msra.mxu0 0
      %4566 = vmatprep.subr.bf16.mxu0 0
      %4567 = vmatpush1.bf16.msra.mxu0 0
      %4568 = vmatprep.subr.bf16.mxu0 0
      %4569 = vmatpush1.bf16.msra.mxu0 0
      %4570 = vmatprep.subr.bf16.mxu0 0
      %4571 = vmatpush1.bf16.msra.mxu0 0
      %4572 = vmatprep.subr.bf16.mxu0 0
      %4573 = vmatpush1.bf16.msra.mxu0 0
      %4574 = vmatprep.subr.bf16.mxu0 0
      %4575 = vmatpush1.bf16.msra.mxu0 0
      %4576 = vmatprep.subr.bf16.mxu0 0
      %4577 = vmatpush1.bf16.msra.mxu0 0
      %4578 = vmatprep.subr.bf16.mxu0 0
      %4579 = vmatpush1.bf16.msra.mxu0 0
      %4580 = vmatprep.mubr.bf16.mxu0 0
      %4581 = vmatmul.mubr.bf16.gmra.mrb[0].mxu0 %v4522
      %v4582 = vpop.f32.mrb[0].mxu0
      %v4583 = vadd.f32 0.0, %v4582
      %v4584 = vpop.f32.mrb[0].mxu0
      %v4585 = vpop.f32.mrb[0].mxu0
      %v4586 = vadd.f32 0.0, %v4585
      %v4587 = vpop.f32.mrb[0].mxu0
      %4588 = vmatprep.mubr.bf16.mxu0 0
      %4589 = vmatmul.mubr.bf16.gmra.mrb[0].mxu0 %v4525
      %v4590 = vpop.f32.mrb[0].mxu0
      %v4591 = vadd.f32 0.0, %v4590
      %v4592 = vpop.f32.mrb[0].mxu0
      %v4593 = vpop.f32.mrb[0].mxu0
      %v4594 = vadd.f32 0.0, %v4593
      %v4595 = vpop.f32.mrb[0].mxu0
      %4596 = vmatprep.mubr.bf16.mxu0 0
      %4597 = vmatmul.mubr.bf16.gmra.mrb[0].mxu0 %v4528
      %v4598 = vpop.f32.mrb[0].mxu0
      %v4599 = vadd.f32 0.0, %v4598
      %v4600 = vpop.f32.mrb[0].mxu0
      %v4601 = vpop.f32.mrb[0].mxu0
      %v4602 = vadd.f32 0.0, %v4601
      %v4603 = vpop.f32.mrb[0].mxu0
      %4604 = vmatprep.mubr.bf16.mxu0 0
      %4605 = vmatmul.mubr.bf16.gmra.mrb[0].mxu0 %v4531
      %v4606 = vpop.f32.mrb[0].mxu0
      %v4607 = vadd.f32 0.0, %v4606
      %v4608 = vpop.f32.mrb[0].mxu0
      %v4609 = vpop.f32.mrb[0].mxu0
      %v4610 = vadd.f32 0.0, %v4609
      %v4611 = vpop.f32.mrb[0].mxu0
      %4612 = vmatprep.mubr.bf16.mxu0 0
      %4613 = vmatmul.mubr.bf16.gmra.mrb[0].mxu0 %v4534
      %v4614 = vpop.f32.mrb[0].mxu0
      %v4615 = vadd.f32 0.0, %v4614
      %v4616 = vpop.f32.mrb[0].mxu0
      %v4617 = vpop.f32.mrb[0].mxu0
      %v4618 = vadd.f32 0.0, %v4617
      %v4619 = vpop.f32.mrb[0].mxu0
      %4620 = vmatprep.mubr.bf16.mxu0 0
      %4621 = vmatmul.mubr.bf16.gmra.mrb[0].mxu0 %v4537
      %v4622 = vpop.f32.mrb[0].mxu0
      %v4623 = vadd.f32 0.0, %v4622
      %v4624 = vpop.f32.mrb[0].mxu0
      %v4625 = vpop.f32.mrb[0].mxu0
      %v4626 = vadd.f32 0.0, %v4625
      %v4627 = vpop.f32.mrb[0].mxu0
      %4628 = vmatprep.mubr.bf16.mxu0 0
      %4629 = vmatmul.mubr.bf16.gmra.mrb[0].mxu0 %v4540
      %v4630 = vpop.f32.mrb[0].mxu0
      %v4631 = vadd.f32 0.0, %v4630
      %v4632 = vpop.f32.mrb[0].mxu0
      %v4633 = vpop.f32.mrb[0].mxu0
      %v4634 = vadd.f32 0.0, %v4633
      %v4635 = vpop.f32.mrb[0].mxu0
      %4636 = vmatprep.mubr.bf16.mxu0 0
      %4637 = vmatmul.mubr.bf16.gmra.mrb[0].mxu0 %v4543
      %v4638 = vpop.f32.mrb[0].mxu0
      %v4639 = vadd.f32 0.0, %v4638
      %v4640 = vpop.f32.mrb[0].mxu0
      %v4641 = vpop.f32.mrb[0].mxu0
      %v4642 = vadd.f32 0.0, %v4641
      %v4643 = vpop.f32.mrb[0].mxu0
      %4644 = vdwg.mxu0
      %v4645 = vadd.f32 %v4264, %v4583
      %v4646 = vadd.f32 %v4265, %v4586
      %v4647 = vadd.f32 %v4266, %v4591
      %v4648 = vadd.f32 %v4267, %v4594
      %v4649 = vadd.f32 %v4268, %v4599
      %v4650 = vadd.f32 %v4269, %v4602
      %v4651 = vadd.f32 %v4270, %v4607
      %v4652 = vadd.f32 %v4271, %v4610
      %v4653 = vadd.f32 %v4272, %v4615
      %v4654 = vadd.f32 %v4273, %v4618
      %v4655 = vadd.f32 %v4274, %v4623
      %v4656 = vadd.f32 %v4275, %v4626
      %v4657 = vadd.f32 %v4276, %v4631
      %v4658 = vadd.f32 %v4277, %v4634
      %v4659 = vadd.f32 %v4278, %v4639
      %v4660 = vadd.f32 %v4279, %v4642
      %v4661 = vld [vmem:[%s4082] sm:$0xe]
      %v4662 = vld [vmem:[%s4082 + $0xc] sm:$0xe]
      %v4663 = vld [vmem:[%s4082 + $0x18] sm:$0xe]
      %v4664 = vld [vmem:[%s4082 + $0x24] sm:$0xe]
      %v4665 = vld [vmem:[%s4082 + $0x30] sm:$0xe]
      %v4666 = vld [vmem:[%s4082 + $0x3c] sm:$0xe]
      %v4667 = vld [vmem:[%s4082 + $0x48] sm:$0xe]
      %v4668 = vld [vmem:[%s4082 + $0x54] sm:$0xe]
      %v4693 = vrot.slane %v4661, 5
      %v4694 = vrot.slane %v4693, 4
      %v4695 = vrot.slane %v4281, 5
      %v4696 = vsel %vm1856, %v4694, %v4695
      %v4697 = vrot.slane %v4695, 4
      %v4698 = vrot.slane %v4282, 5
      %v4699 = vsel %vm1856, %v4697, %v4698
      %v4700 = vrot.slane %v4662, 5
      %v4701 = vrot.slane %v4700, 4
      %v4702 = vrot.slane %v4284, 5
      %v4703 = vsel %vm1856, %v4701, %v4702
      %v4704 = vrot.slane %v4702, 4
      %v4705 = vrot.slane %v4285, 5
      %v4706 = vsel %vm1856, %v4704, %v4705
      %v4707 = vrot.slane %v4663, 5
      %v4708 = vrot.slane %v4707, 4
      %v4709 = vrot.slane %v4287, 5
      %v4710 = vsel %vm1856, %v4708, %v4709
      %v4711 = vrot.slane %v4709, 4
      %v4712 = vrot.slane %v4288, 5
      %v4713 = vsel %vm1856, %v4711, %v4712
      %v4714 = vrot.slane %v4664, 5
      %v4715 = vrot.slane %v4714, 4
      %v4716 = vrot.slane %v4290, 5
      %v4717 = vsel %vm1856, %v4715, %v4716
      %v4718 = vrot.slane %v4716, 4
      %v4719 = vrot.slane %v4291, 5
      %v4720 = vsel %vm1856, %v4718, %v4719
      %v4721 = vrot.slane %v4665, 5
      %v4722 = vrot.slane %v4721, 4
      %v4723 = vrot.slane %v4293, 5
      %v4724 = vsel %vm1856, %v4722, %v4723
      %v4725 = vrot.slane %v4723, 4
      %v4726 = vrot.slane %v4294, 5
      %v4727 = vsel %vm1856, %v4725, %v4726
      %v4728 = vrot.slane %v4666, 5
      %v4729 = vrot.slane %v4728, 4
      %v4730 = vrot.slane %v4296, 5
      %v4731 = vsel %vm1856, %v4729, %v4730
      %v4732 = vrot.slane %v4730, 4
      %v4733 = vrot.slane %v4297, 5
      %v4734 = vsel %vm1856, %v4732, %v4733
      %v4735 = vrot.slane %v4667, 5
      %v4736 = vrot.slane %v4735, 4
      %v4737 = vrot.slane %v4299, 5
      %v4738 = vsel %vm1856, %v4736, %v4737
      %v4739 = vrot.slane %v4737, 4
      %v4740 = vrot.slane %v4300, 5
      %v4741 = vsel %vm1856, %v4739, %v4740
      %v4742 = vrot.slane %v4668, 5
      %v4743 = vrot.slane %v4742, 4
      %v4744 = vrot.slane %v4302, 5
      %v4745 = vsel %vm1856, %v4743, %v4744
      %v4746 = vrot.slane %v4744, 4
      %v4747 = vrot.slane %v4303, 5
      %v4748 = vsel %vm1856, %v4746, %v4747
      %v4749 = vld [vmem:[%s1913] sm:$0x3]
      %v4750 = vunpack.c.l.b16 %v4696
      %v4751 = vunpack.c.l.b16 %v4699
      %v4752 = vunpack.c.l.b16 %v4703
      %v4753 = vunpack.c.l.b16 %v4706
      %v4754 = vunpack.c.l.b16 %v4710
      %v4755 = vunpack.c.l.b16 %v4713
      %v4756 = vunpack.c.l.b16 %v4717
      %v4757 = vunpack.c.l.b16 %v4720
      %v4758 = vunpack.c.l.b16 %v4724
      %v4759 = vunpack.c.l.b16 %v4727
      %v4760 = vunpack.c.l.b16 %v4731
      %v4761 = vunpack.c.l.b16 %v4734
      %v4762 = vunpack.c.l.b16 %v4738
      %v4763 = vunpack.c.l.b16 %v4741
      %v4764 = vunpack.c.l.b16 %v4745
      %v4765 = vunpack.c.l.b16 %v4748
      %v4766 = vpack.c.b16 %v4751, %v4750
      %v4767 = vpack.c.b16 %v4753, %v4752
      %v4768 = vpack.c.b16 %v4755, %v4754
      %v4769 = vpack.c.b16 %v4757, %v4756
      %v4770 = vpack.c.b16 %v4759, %v4758
      %v4771 = vpack.c.b16 %v4761, %v4760
      %v4772 = vpack.c.b16 %v4763, %v4762
      %v4773 = vpack.c.b16 %v4765, %v4764
      %v4775 = vsel %vm978, %v4766, 0
      %v4778 = vsel %vm978, %v4767, 0
      %v4781 = vsel %vm978, %v4768, 0
      %v4784 = vsel %vm978, %v4769, 0
      %v4787 = vsel %vm978, %v4770, 0
      %v4790 = vsel %vm978, %v4771, 0
      %v4793 = vsel %vm978, %v4772, 0
      %v4796 = vsel %vm978, %v4773, 0
      %v4799 = vsel %vm1027, %v4749, 0
      %4801 = vmatprep.subr.bf16.mxu0 0
      %4802 = vmatpush1.bf16.msra.mxu0 %v4799
      %4803 = vmatprep.subr.bf16.mxu0 0
      %4804 = vmatpush1.bf16.msra.mxu0 0
      %4805 = vmatprep.subr.bf16.mxu0 0
      %4806 = vmatpush1.bf16.msra.mxu0 0
      %4807 = vmatprep.subr.bf16.mxu0 0
      %4808 = vmatpush1.bf16.msra.mxu0 0
      %4809 = vmatprep.subr.bf16.mxu0 0
      %4810 = vmatpush1.bf16.msra.mxu0 0
      %4811 = vmatprep.subr.bf16.mxu0 0
      %4812 = vmatpush1.bf16.msra.mxu0 0
      %4813 = vmatprep.subr.bf16.mxu0 0
      %4814 = vmatpush1.bf16.msra.mxu0 0
      %4815 = vmatprep.subr.bf16.mxu0 0
      %4816 = vmatpush1.bf16.msra.mxu0 0
      %4817 = vmatprep.subr.bf16.mxu0 0
      %4818 = vmatpush1.bf16.msra.mxu0 0
      %4819 = vmatprep.subr.bf16.mxu0 0
      %4820 = vmatpush1.bf16.msra.mxu0 0
      %4821 = vmatprep.subr.bf16.mxu0 0
      %4822 = vmatpush1.bf16.msra.mxu0 0
      %4823 = vmatprep.subr.bf16.mxu0 0
      %4824 = vmatpush1.bf16.msra.mxu0 0
      %4825 = vmatprep.subr.bf16.mxu0 0
      %4826 = vmatpush1.bf16.msra.mxu0 0
      %4827 = vmatprep.subr.bf16.mxu0 0
      %4828 = vmatpush1.bf16.msra.mxu0 0
      %4829 = vmatprep.subr.bf16.mxu0 0
      %4830 = vmatpush1.bf16.msra.mxu0 0
      %4831 = vmatprep.subr.bf16.mxu0 0
      %4832 = vmatpush1.bf16.msra.mxu0 0
      %4833 = vmatprep.mubr.bf16.mxu0 0
      %4834 = vmatmul.mubr.bf16.gmra.mrb[0].mxu0 %v4775
      %v4835 = vpop.f32.mrb[0].mxu0
      %v4836 = vadd.f32 0.0, %v4835
      %v4837 = vpop.f32.mrb[0].mxu0
      %v4838 = vpop.f32.mrb[0].mxu0
      %v4839 = vadd.f32 0.0, %v4838
      %v4840 = vpop.f32.mrb[0].mxu0
      %4841 = vmatprep.mubr.bf16.mxu0 0
      %4842 = vmatmul.mubr.bf16.gmra.mrb[0].mxu0 %v4778
      %v4843 = vpop.f32.mrb[0].mxu0
      %v4844 = vadd.f32 0.0, %v4843
      %v4845 = vpop.f32.mrb[0].mxu0
      %v4846 = vpop.f32.mrb[0].mxu0
      %v4847 = vadd.f32 0.0, %v4846
      %v4848 = vpop.f32.mrb[0].mxu0
      %4849 = vmatprep.mubr.bf16.mxu0 0
      %4850 = vmatmul.mubr.bf16.gmra.mrb[0].mxu0 %v4781
      %v4851 = vpop.f32.mrb[0].mxu0
      %v4852 = vadd.f32 0.0, %v4851
      %v4853 = vpop.f32.mrb[0].mxu0
      %v4854 = vpop.f32.mrb[0].mxu0
      %v4855 = vadd.f32 0.0, %v4854
      %v4856 = vpop.f32.mrb[0].mxu0
      %4857 = vmatprep.mubr.bf16.mxu0 0
      %4858 = vmatmul.mubr.bf16.gmra.mrb[0].mxu0 %v4784
      %v4859 = vpop.f32.mrb[0].mxu0
      %v4860 = vadd.f32 0.0, %v4859
      %v4861 = vpop.f32.mrb[0].mxu0
      %v4862 = vpop.f32.mrb[0].mxu0
      %v4863 = vadd.f32 0.0, %v4862
      %v4864 = vpop.f32.mrb[0].mxu0
      %4865 = vmatprep.mubr.bf16.mxu0 0
      %4866 = vmatmul.mubr.bf16.gmra.mrb[0].mxu0 %v4787
      %v4867 = vpop.f32.mrb[0].mxu0
      %v4868 = vadd.f32 0.0, %v4867
      %v4869 = vpop.f32.mrb[0].mxu0
      %v4870 = vpop.f32.mrb[0].mxu0
      %v4871 = vadd.f32 0.0, %v4870
      %v4872 = vpop.f32.mrb[0].mxu0
      %4873 = vmatprep.mubr.bf16.mxu0 0
      %4874 = vmatmul.mubr.bf16.gmra.mrb[0].mxu0 %v4790
      %v4875 = vpop.f32.mrb[0].mxu0
      %v4876 = vadd.f32 0.0, %v4875
      %v4877 = vpop.f32.mrb[0].mxu0
      %v4878 = vpop.f32.mrb[0].mxu0
      %v4879 = vadd.f32 0.0, %v4878
      %v4880 = vpop.f32.mrb[0].mxu0
      %4881 = vmatprep.mubr.bf16.mxu0 0
      %4882 = vmatmul.mubr.bf16.gmra.mrb[0].mxu0 %v4793
      %v4883 = vpop.f32.mrb[0].mxu0
      %v4884 = vadd.f32 0.0, %v4883
      %v4885 = vpop.f32.mrb[0].mxu0
      %v4886 = vpop.f32.mrb[0].mxu0
      %v4887 = vadd.f32 0.0, %v4886
      %v4888 = vpop.f32.mrb[0].mxu0
      %4889 = vmatprep.mubr.bf16.mxu0 0
      %4890 = vmatmul.mubr.bf16.gmra.mrb[0].mxu0 %v4796
      %v4891 = vpop.f32.mrb[0].mxu0
      %v4892 = vadd.f32 0.0, %v4891
      %v4893 = vpop.f32.mrb[0].mxu0
      %v4894 = vpop.f32.mrb[0].mxu0
      %v4895 = vadd.f32 0.0, %v4894
      %v4896 = vpop.f32.mrb[0].mxu0
      %4897 = vdwg.mxu0
      %v4898 = vadd.f32 %v4645, %v4836
      %v4899 = vadd.f32 %v4646, %v4839
      %v4900 = vadd.f32 %v4647, %v4844
      %v4901 = vadd.f32 %v4648, %v4847
      %v4902 = vadd.f32 %v4649, %v4852
      %v4903 = vadd.f32 %v4650, %v4855
      %v4904 = vadd.f32 %v4651, %v4860
      %v4905 = vadd.f32 %v4652, %v4863
      %v4906 = vadd.f32 %v4653, %v4868
      %v4907 = vadd.f32 %v4654, %v4871
      %v4908 = vadd.f32 %v4655, %v4876
      %v4909 = vadd.f32 %v4656, %v4879
      %v4910 = vadd.f32 %v4657, %v4884
      %v4911 = vadd.f32 %v4658, %v4887
      %v4912 = vadd.f32 %v4659, %v4892
      %v4913 = vadd.f32 %v4660, %v4895
      %s4914 = scalar_lea.vmem [#allocation2], 108
      %v4915 = vld [vmem:[%s4914] sm:$0xf]
      %v4916 = vld [vmem:[%s4914 + $0x4] sm:$0xf]
      %v4917 = vld [vmem:[%s4914 + $0xc] sm:$0xf]
      %v4918 = vld [vmem:[%s4914 + $0x10] sm:$0xf]
      %v4919 = vld [vmem:[%s4914 + $0x18] sm:$0xf]
      %v4920 = vld [vmem:[%s4914 + $0x1c] sm:$0xf]
      %v4921 = vld [vmem:[%s4914 + $0x24] sm:$0xf]
      %v4922 = vld [vmem:[%s4914 + $0x28] sm:$0xf]
      %v4923 = vld [vmem:[%s4914 + $0x30] sm:$0xf]
      %v4924 = vld [vmem:[%s4914 + $0x34] sm:$0xf]
      %v4925 = vld [vmem:[%s4914 + $0x3c] sm:$0xf]
      %v4926 = vld [vmem:[%s4914 + $0x40] sm:$0xf]
      %v4927 = vld [vmem:[%s4914 + $0x48] sm:$0xf]
      %v4928 = vld [vmem:[%s4914 + $0x4c] sm:$0xf]
      %v4929 = vld [vmem:[%s4914 + $0x54] sm:$0xf]
      %v4930 = vld [vmem:[%s4914 + $0x58] sm:$0xf]
      %v4931 = vld [vmem:[%s2095] sm:$0x3]
      %v4948 = vunpack.c.l.b16 %v4915
      %v4949 = vunpack.c.l.b16 %v4916
      %v4950 = vunpack.c.l.b16 %v4917
      %v4951 = vunpack.c.l.b16 %v4918
      %v4952 = vunpack.c.l.b16 %v4919
      %v4953 = vunpack.c.l.b16 %v4920
      %v4954 = vunpack.c.l.b16 %v4921
      %v4955 = vunpack.c.l.b16 %v4922
      %v4956 = vunpack.c.l.b16 %v4923
      %v4957 = vunpack.c.l.b16 %v4924
      %v4958 = vunpack.c.l.b16 %v4925
      %v4959 = vunpack.c.l.b16 %v4926
      %v4960 = vunpack.c.l.b16 %v4927
      %v4961 = vunpack.c.l.b16 %v4928
      %v4962 = vunpack.c.l.b16 %v4929
      %v4963 = vunpack.c.l.b16 %v4930
      %v4964 = vpack.c.b16 %v4949, %v4948
      %v4965 = vpack.c.b16 %v4951, %v4950
      %v4966 = vpack.c.b16 %v4953, %v4952
      %v4967 = vpack.c.b16 %v4955, %v4954
      %v4968 = vpack.c.b16 %v4957, %v4956
      %v4969 = vpack.c.b16 %v4959, %v4958
      %v4970 = vpack.c.b16 %v4961, %v4960
      %v4971 = vpack.c.b16 %v4963, %v4962
      %v4973 = vsel %vm978, %v4964, 0
      %v4976 = vsel %vm978, %v4965, 0
      %v4979 = vsel %vm978, %v4966, 0
      %v4982 = vsel %vm978, %v4967, 0
      %v4985 = vsel %vm978, %v4968, 0
      %v4988 = vsel %vm978, %v4969, 0
      %v4991 = vsel %vm978, %v4970, 0
      %v4994 = vsel %vm978, %v4971, 0
      %v4997 = vsel %vm1027, %v4931, 0
      %4999 = vmatprep.subr.bf16.mxu0 0
      %5000 = vmatpush1.bf16.msra.mxu0 %v4997
      %5001 = vmatprep.subr.bf16.mxu0 0
      %5002 = vmatpush1.bf16.msra.mxu0 0
      %5003 = vmatprep.subr.bf16.mxu0 0
      %5004 = vmatpush1.bf16.msra.mxu0 0
      %5005 = vmatprep.subr.bf16.mxu0 0
      %5006 = vmatpush1.bf16.msra.mxu0 0
      %5007 = vmatprep.subr.bf16.mxu0 0
      %5008 = vmatpush1.bf16.msra.mxu0 0
      %5009 = vmatprep.subr.bf16.mxu0 0
      %5010 = vmatpush1.bf16.msra.mxu0 0
      %5011 = vmatprep.subr.bf16.mxu0 0
      %5012 = vmatpush1.bf16.msra.mxu0 0
      %5013 = vmatprep.subr.bf16.mxu0 0
      %5014 = vmatpush1.bf16.msra.mxu0 0
      %5015 = vmatprep.subr.bf16.mxu0 0
      %5016 = vmatpush1.bf16.msra.mxu0 0
      %5017 = vmatprep.subr.bf16.mxu0 0
      %5018 = vmatpush1.bf16.msra.mxu0 0
      %5019 = vmatprep.subr.bf16.mxu0 0
      %5020 = vmatpush1.bf16.msra.mxu0 0
      %5021 = vmatprep.subr.bf16.mxu0 0
      %5022 = vmatpush1.bf16.msra.mxu0 0
      %5023 = vmatprep.subr.bf16.mxu0 0
      %5024 = vmatpush1.bf16.msra.mxu0 0
      %5025 = vmatprep.subr.bf16.mxu0 0
      %5026 = vmatpush1.bf16.msra.mxu0 0
      %5027 = vmatprep.subr.bf16.mxu0 0
      %5028 = vmatpush1.bf16.msra.mxu0 0
      %5029 = vmatprep.subr.bf16.mxu0 0
      %5030 = vmatpush1.bf16.msra.mxu0 0
      %5031 = vmatprep.mubr.bf16.mxu0 0
      %5032 = vmatmul.mubr.bf16.gmra.mrb[0].mxu0 %v4973
      %v5033 = vpop.f32.mrb[0].mxu0
      %v5034 = vadd.f32 0.0, %v5033
      %v5035 = vpop.f32.mrb[0].mxu0
      %v5036 = vpop.f32.mrb[0].mxu0
      %v5037 = vadd.f32 0.0, %v5036
      %v5038 = vpop.f32.mrb[0].mxu0
      %5039 = vmatprep.mubr.bf16.mxu0 0
      %5040 = vmatmul.mubr.bf16.gmra.mrb[0].mxu0 %v4976
      %v5041 = vpop.f32.mrb[0].mxu0
      %v5042 = vadd.f32 0.0, %v5041
      %v5043 = vpop.f32.mrb[0].mxu0
      %v5044 = vpop.f32.mrb[0].mxu0
      %v5045 = vadd.f32 0.0, %v5044
      %v5046 = vpop.f32.mrb[0].mxu0
      %5047 = vmatprep.mubr.bf16.mxu0 0
      %5048 = vmatmul.mubr.bf16.gmra.mrb[0].mxu0 %v4979
      %v5049 = vpop.f32.mrb[0].mxu0
      %v5050 = vadd.f32 0.0, %v5049
      %v5051 = vpop.f32.mrb[0].mxu0
      %v5052 = vpop.f32.mrb[0].mxu0
      %v5053 = vadd.f32 0.0, %v5052
      %v5054 = vpop.f32.mrb[0].mxu0
      %5055 = vmatprep.mubr.bf16.mxu0 0
      %5056 = vmatmul.mubr.bf16.gmra.mrb[0].mxu0 %v4982
      %v5057 = vpop.f32.mrb[0].mxu0
      %v5058 = vadd.f32 0.0, %v5057
      %v5059 = vpop.f32.mrb[0].mxu0
      %v5060 = vpop.f32.mrb[0].mxu0
      %v5061 = vadd.f32 0.0, %v5060
      %v5062 = vpop.f32.mrb[0].mxu0
      %5063 = vmatprep.mubr.bf16.mxu0 0
      %5064 = vmatmul.mubr.bf16.gmra.mrb[0].mxu0 %v4985
      %v5065 = vpop.f32.mrb[0].mxu0
      %v5066 = vadd.f32 0.0, %v5065
      %v5067 = vpop.f32.mrb[0].mxu0
      %v5068 = vpop.f32.mrb[0].mxu0
      %v5069 = vadd.f32 0.0, %v5068
      %v5070 = vpop.f32.mrb[0].mxu0
      %5071 = vmatprep.mubr.bf16.mxu0 0
      %5072 = vmatmul.mubr.bf16.gmra.mrb[0].mxu0 %v4988
      %v5073 = vpop.f32.mrb[0].mxu0
      %v5074 = vadd.f32 0.0, %v5073
      %v5075 = vpop.f32.mrb[0].mxu0
      %v5076 = vpop.f32.mrb[0].mxu0
      %v5077 = vadd.f32 0.0, %v5076
      %v5078 = vpop.f32.mrb[0].mxu0
      %5079 = vmatprep.mubr.bf16.mxu0 0
      %5080 = vmatmul.mubr.bf16.gmra.mrb[0].mxu0 %v4991
      %v5081 = vpop.f32.mrb[0].mxu0
      %v5082 = vadd.f32 0.0, %v5081
      %v5083 = vpop.f32.mrb[0].mxu0
      %v5084 = vpop.f32.mrb[0].mxu0
      %v5085 = vadd.f32 0.0, %v5084
      %v5086 = vpop.f32.mrb[0].mxu0
      %5087 = vmatprep.mubr.bf16.mxu0 0
      %5088 = vmatmul.mubr.bf16.gmra.mrb[0].mxu0 %v4994
      %v5089 = vpop.f32.mrb[0].mxu0
      %v5090 = vadd.f32 0.0, %v5089
      %v5091 = vpop.f32.mrb[0].mxu0
      %v5092 = vpop.f32.mrb[0].mxu0
      %v5093 = vadd.f32 0.0, %v5092
      %v5094 = vpop.f32.mrb[0].mxu0
      %5095 = vdwg.mxu0
      %v5096 = vadd.f32 %v4898, %v5034
      %v5097 = vadd.f32 %v4899, %v5037
      %v5098 = vadd.f32 %v4900, %v5042
      %v5099 = vadd.f32 %v4901, %v5045
      %v5100 = vadd.f32 %v4902, %v5050
      %v5101 = vadd.f32 %v4903, %v5053
      %v5102 = vadd.f32 %v4904, %v5058
      %v5103 = vadd.f32 %v4905, %v5061
      %v5104 = vadd.f32 %v4906, %v5066
      %v5105 = vadd.f32 %v4907, %v5069
      %v5106 = vadd.f32 %v4908, %v5074
      %v5107 = vadd.f32 %v4909, %v5077
      %v5108 = vadd.f32 %v4910, %v5082
      %v5109 = vadd.f32 %v4911, %v5085
      %v5110 = vadd.f32 %v4912, %v5090
      %v5111 = vadd.f32 %v4913, %v5093
      %v5112 = vld [vmem:[%s4914] sm:$0xf]
      %v5113 = vld [vmem:[%s4914 + $0x4] sm:$0xf]
      %v5114 = vld [vmem:[%s4914 + $0x8] sm:$0x1]
      %v5115 = vld [vmem:[%s4914 + $0xc] sm:$0xf]
      %v5116 = vld [vmem:[%s4914 + $0x10] sm:$0xf]
      %v5117 = vld [vmem:[%s4914 + $0x14] sm:$0x1]
      %v5118 = vld [vmem:[%s4914 + $0x18] sm:$0xf]
      %v5119 = vld [vmem:[%s4914 + $0x1c] sm:$0xf]
      %v5120 = vld [vmem:[%s4914 + $0x20] sm:$0x1]
      %v5121 = vld [vmem:[%s4914 + $0x24] sm:$0xf]
      %v5122 = vld [vmem:[%s4914 + $0x28] sm:$0xf]
      %v5123 = vld [vmem:[%s4914 + $0x2c] sm:$0x1]
      %v5124 = vld [vmem:[%s4914 + $0x30] sm:$0xf]
      %v5125 = vld [vmem:[%s4914 + $0x34] sm:$0xf]
      %v5126 = vld [vmem:[%s4914 + $0x38] sm:$0x1]
      %v5127 = vld [vmem:[%s4914 + $0x3c] sm:$0xf]
      %v5128 = vld [vmem:[%s4914 + $0x40] sm:$0xf]
      %v5129 = vld [vmem:[%s4914 + $0x44] sm:$0x1]
      %v5130 = vld [vmem:[%s4914 + $0x48] sm:$0xf]
      %v5131 = vld [vmem:[%s4914 + $0x4c] sm:$0xf]
      %v5132 = vld [vmem:[%s4914 + $0x50] sm:$0x1]
      %v5133 = vld [vmem:[%s4914 + $0x54] sm:$0xf]
      %v5134 = vld [vmem:[%s4914 + $0x58] sm:$0xf]
      %v5135 = vld [vmem:[%s4914 + $0x5c] sm:$0x1]
      %v5137 = vshrl.u32 %v5112, 16
      %v5139 = vrot.slane %v5137, 4
      %v5140 = vshll.u32 %v5112, 16
      %v5142 = vrot.slane %v5140, 5
      %v5143 = vor.u32 %v5139, %v5142
      %v5144 = vrot.slane %v5143, 4
      %v5146 = vshll.u32 %v5113, 16
      %v5148 = vrot.slane %v5146, 5
      %v5149 = vsel %vm1463, %v5144, %v5148
      %v5150 = vshrl.u32 %v5113, 16
      %v5152 = vrot.slane %v5150, 4
      %v5153 = vor.u32 %v5152, %v5148
      %v5154 = vrot.slane %v5153, 4
      %v5156 = vshll.u32 %v5114, 16
      %v5158 = vrot.slane %v5156, 5
      %v5159 = vsel %vm1463, %v5154, %v5158
      %v5161 = vshrl.u32 %v5115, 16
      %v5163 = vrot.slane %v5161, 4
      %v5164 = vshll.u32 %v5115, 16
      %v5166 = vrot.slane %v5164, 5
      %v5167 = vor.u32 %v5163, %v5166
      %v5168 = vrot.slane %v5167, 4
      %v5170 = vshll.u32 %v5116, 16
      %v5172 = vrot.slane %v5170, 5
      %v5173 = vsel %vm1463, %v5168, %v5172
      %v5174 = vshrl.u32 %v5116, 16
      %v5176 = vrot.slane %v5174, 4
      %v5177 = vor.u32 %v5176, %v5172
      %v5178 = vrot.slane %v5177, 4
      %v5180 = vshll.u32 %v5117, 16
      %v5182 = vrot.slane %v5180, 5
      %v5183 = vsel %vm1463, %v5178, %v5182
      %v5185 = vshrl.u32 %v5118, 16
      %v5187 = vrot.slane %v5185, 4
      %v5188 = vshll.u32 %v5118, 16
      %v5190 = vrot.slane %v5188, 5
      %v5191 = vor.u32 %v5187, %v5190
      %v5192 = vrot.slane %v5191, 4
      %v5194 = vshll.u32 %v5119, 16
      %v5196 = vrot.slane %v5194, 5
      %v5197 = vsel %vm1463, %v5192, %v5196
      %v5198 = vshrl.u32 %v5119, 16
      %v5200 = vrot.slane %v5198, 4
      %v5201 = vor.u32 %v5200, %v5196
      %v5202 = vrot.slane %v5201, 4
      %v5204 = vshll.u32 %v5120, 16
      %v5206 = vrot.slane %v5204, 5
      %v5207 = vsel %vm1463, %v5202, %v5206
      %v5209 = vshrl.u32 %v5121, 16
      %v5211 = vrot.slane %v5209, 4
      %v5212 = vshll.u32 %v5121, 16
      %v5214 = vrot.slane %v5212, 5
      %v5215 = vor.u32 %v5211, %v5214
      %v5216 = vrot.slane %v5215, 4
      %v5218 = vshll.u32 %v5122, 16
      %v5220 = vrot.slane %v5218, 5
      %v5221 = vsel %vm1463, %v5216, %v5220
      %v5222 = vshrl.u32 %v5122, 16
      %v5224 = vrot.slane %v5222, 4
      %v5225 = vor.u32 %v5224, %v5220
      %v5226 = vrot.slane %v5225, 4
      %v5228 = vshll.u32 %v5123, 16
      %v5230 = vrot.slane %v5228, 5
      %v5231 = vsel %vm1463, %v5226, %v5230
      %v5233 = vshrl.u32 %v5124, 16
      %v5235 = vrot.slane %v5233, 4
      %v5236 = vshll.u32 %v5124, 16
      %v5238 = vrot.slane %v5236, 5
      %v5239 = vor.u32 %v5235, %v5238
      %v5240 = vrot.slane %v5239, 4
      %v5242 = vshll.u32 %v5125, 16
      %v5244 = vrot.slane %v5242, 5
      %v5245 = vsel %vm1463, %v5240, %v5244
      %v5246 = vshrl.u32 %v5125, 16
      %v5248 = vrot.slane %v5246, 4
      %v5249 = vor.u32 %v5248, %v5244
      %v5250 = vrot.slane %v5249, 4
      %v5252 = vshll.u32 %v5126, 16
      %v5254 = vrot.slane %v5252, 5
      %v5255 = vsel %vm1463, %v5250, %v5254
      %v5257 = vshrl.u32 %v5127, 16
      %v5259 = vrot.slane %v5257, 4
      %v5260 = vshll.u32 %v5127, 16
      %v5262 = vrot.slane %v5260, 5
      %v5263 = vor.u32 %v5259, %v5262
      %v5264 = vrot.slane %v5263, 4
      %v5266 = vshll.u32 %v5128, 16
      %v5268 = vrot.slane %v5266, 5
      %v5269 = vsel %vm1463, %v5264, %v5268
      %v5270 = vshrl.u32 %v5128, 16
      %v5272 = vrot.slane %v5270, 4
      %v5273 = vor.u32 %v5272, %v5268
      %v5274 = vrot.slane %v5273, 4
      %v5276 = vshll.u32 %v5129, 16
      %v5278 = vrot.slane %v5276, 5
      %v5279 = vsel %vm1463, %v5274, %v5278
      %v5281 = vshrl.u32 %v5130, 16
      %v5283 = vrot.slane %v5281, 4
      %v5284 = vshll.u32 %v5130, 16
      %v5286 = vrot.slane %v5284, 5
      %v5287 = vor.u32 %v5283, %v5286
      %v5288 = vrot.slane %v5287, 4
      %v5290 = vshll.u32 %v5131, 16
      %v5292 = vrot.slane %v5290, 5
      %v5293 = vsel %vm1463, %v5288, %v5292
      %v5294 = vshrl.u32 %v5131, 16
      %v5296 = vrot.slane %v5294, 4
      %v5297 = vor.u32 %v5296, %v5292
      %v5298 = vrot.slane %v5297, 4
      %v5300 = vshll.u32 %v5132, 16
      %v5302 = vrot.slane %v5300, 5
      %v5303 = vsel %vm1463, %v5298, %v5302
      %v5305 = vshrl.u32 %v5133, 16
      %v5307 = vrot.slane %v5305, 4
      %v5308 = vshll.u32 %v5133, 16
      %v5310 = vrot.slane %v5308, 5
      %v5311 = vor.u32 %v5307, %v5310
      %v5312 = vrot.slane %v5311, 4
      %v5314 = vshll.u32 %v5134, 16
      %v5316 = vrot.slane %v5314, 5
      %v5317 = vsel %vm1463, %v5312, %v5316
      %v5318 = vshrl.u32 %v5134, 16
      %v5320 = vrot.slane %v5318, 4
      %v5321 = vor.u32 %v5320, %v5316
      %v5322 = vrot.slane %v5321, 4
      %v5324 = vshll.u32 %v5135, 16
      %v5326 = vrot.slane %v5324, 5
      %v5327 = vsel %vm1463, %v5322, %v5326
      %v5328 = vld [vmem:[%s2493] sm:$0x3]
      %v5329 = vunpack.c.l.b16 %v5149
      %v5330 = vunpack.c.l.b16 %v5159
      %v5331 = vunpack.c.l.b16 %v5173
      %v5332 = vunpack.c.l.b16 %v5183
      %v5333 = vunpack.c.l.b16 %v5197
      %v5334 = vunpack.c.l.b16 %v5207
      %v5335 = vunpack.c.l.b16 %v5221
      %v5336 = vunpack.c.l.b16 %v5231
      %v5337 = vunpack.c.l.b16 %v5245
      %v5338 = vunpack.c.l.b16 %v5255
      %v5339 = vunpack.c.l.b16 %v5269
      %v5340 = vunpack.c.l.b16 %v5279
      %v5341 = vunpack.c.l.b16 %v5293
      %v5342 = vunpack.c.l.b16 %v5303
      %v5343 = vunpack.c.l.b16 %v5317
      %v5344 = vunpack.c.l.b16 %v5327
      %v5345 = vpack.c.b16 %v5330, %v5329
      %v5346 = vpack.c.b16 %v5332, %v5331
      %v5347 = vpack.c.b16 %v5334, %v5333
      %v5348 = vpack.c.b16 %v5336, %v5335
      %v5349 = vpack.c.b16 %v5338, %v5337
      %v5350 = vpack.c.b16 %v5340, %v5339
      %v5351 = vpack.c.b16 %v5342, %v5341
      %v5352 = vpack.c.b16 %v5344, %v5343
      %v5354 = vsel %vm978, %v5345, 0
      %v5357 = vsel %vm978, %v5346, 0
      %v5360 = vsel %vm978, %v5347, 0
      %v5363 = vsel %vm978, %v5348, 0
      %v5366 = vsel %vm978, %v5349, 0
      %v5369 = vsel %vm978, %v5350, 0
      %v5372 = vsel %vm978, %v5351, 0
      %v5375 = vsel %vm978, %v5352, 0
      %v5378 = vsel %vm1027, %v5328, 0
      %5380 = vmatprep.subr.bf16.mxu0 0
      %5381 = vmatpush1.bf16.msra.mxu0 %v5378
      %5382 = vmatprep.subr.bf16.mxu0 0
      %5383 = vmatpush1.bf16.msra.mxu0 0
      %5384 = vmatprep.subr.bf16.mxu0 0
      %5385 = vmatpush1.bf16.msra.mxu0 0
      %5386 = vmatprep.subr.bf16.mxu0 0
      %5387 = vmatpush1.bf16.msra.mxu0 0
      %5388 = vmatprep.subr.bf16.mxu0 0
      %5389 = vmatpush1.bf16.msra.mxu0 0
      %5390 = vmatprep.subr.bf16.mxu0 0
      %5391 = vmatpush1.bf16.msra.mxu0 0
      %5392 = vmatprep.subr.bf16.mxu0 0
      %5393 = vmatpush1.bf16.msra.mxu0 0
      %5394 = vmatprep.subr.bf16.mxu0 0
      %5395 = vmatpush1.bf16.msra.mxu0 0
      %5396 = vmatprep.subr.bf16.mxu0 0
      %5397 = vmatpush1.bf16.msra.mxu0 0
      %5398 = vmatprep.subr.bf16.mxu0 0
      %5399 = vmatpush1.bf16.msra.mxu0 0
      %5400 = vmatprep.subr.bf16.mxu0 0
      %5401 = vmatpush1.bf16.msra.mxu0 0
      %5402 = vmatprep.subr.bf16.mxu0 0
      %5403 = vmatpush1.bf16.msra.mxu0 0
      %5404 = vmatprep.subr.bf16.mxu0 0
      %5405 = vmatpush1.bf16.msra.mxu0 0
      %5406 = vmatprep.subr.bf16.mxu0 0
      %5407 = vmatpush1.bf16.msra.mxu0 0
      %5408 = vmatprep.subr.bf16.mxu0 0
      %5409 = vmatpush1.bf16.msra.mxu0 0
      %5410 = vmatprep.subr.bf16.mxu0 0
      %5411 = vmatpush1.bf16.msra.mxu0 0
      %5412 = vmatprep.mubr.bf16.mxu0 0
      %5413 = vmatmul.mubr.bf16.gmra.mrb[0].mxu0 %v5354
      %v5414 = vpop.f32.mrb[0].mxu0
      %v5415 = vadd.f32 0.0, %v5414
      %v5416 = vpop.f32.mrb[0].mxu0
      %v5417 = vpop.f32.mrb[0].mxu0
      %v5418 = vadd.f32 0.0, %v5417
      %v5419 = vpop.f32.mrb[0].mxu0
      %5420 = vmatprep.mubr.bf16.mxu0 0
      %5421 = vmatmul.mubr.bf16.gmra.mrb[0].mxu0 %v5357
      %v5422 = vpop.f32.mrb[0].mxu0
      %v5423 = vadd.f32 0.0, %v5422
      %v5424 = vpop.f32.mrb[0].mxu0
      %v5425 = vpop.f32.mrb[0].mxu0
      %v5426 = vadd.f32 0.0, %v5425
      %v5427 = vpop.f32.mrb[0].mxu0
      %5428 = vmatprep.mubr.bf16.mxu0 0
      %5429 = vmatmul.mubr.bf16.gmra.mrb[0].mxu0 %v5360
      %v5430 = vpop.f32.mrb[0].mxu0
      %v5431 = vadd.f32 0.0, %v5430
      %v5432 = vpop.f32.mrb[0].mxu0
      %v5433 = vpop.f32.mrb[0].mxu0
      %v5434 = vadd.f32 0.0, %v5433
      %v5435 = vpop.f32.mrb[0].mxu0
      %5436 = vmatprep.mubr.bf16.mxu0 0
      %5437 = vmatmul.mubr.bf16.gmra.mrb[0].mxu0 %v5363
      %v5438 = vpop.f32.mrb[0].mxu0
      %v5439 = vadd.f32 0.0, %v5438
      %v5440 = vpop.f32.mrb[0].mxu0
      %v5441 = vpop.f32.mrb[0].mxu0
      %v5442 = vadd.f32 0.0, %v5441
      %v5443 = vpop.f32.mrb[0].mxu0
      %5444 = vmatprep.mubr.bf16.mxu0 0
      %5445 = vmatmul.mubr.bf16.gmra.mrb[0].mxu0 %v5366
      %v5446 = vpop.f32.mrb[0].mxu0
      %v5447 = vadd.f32 0.0, %v5446
      %v5448 = vpop.f32.mrb[0].mxu0
      %v5449 = vpop.f32.mrb[0].mxu0
      %v5450 = vadd.f32 0.0, %v5449
      %v5451 = vpop.f32.mrb[0].mxu0
      %5452 = vmatprep.mubr.bf16.mxu0 0
      %5453 = vmatmul.mubr.bf16.gmra.mrb[0].mxu0 %v5369
      %v5454 = vpop.f32.mrb[0].mxu0
      %v5455 = vadd.f32 0.0, %v5454
      %v5456 = vpop.f32.mrb[0].mxu0
      %v5457 = vpop.f32.mrb[0].mxu0
      %v5458 = vadd.f32 0.0, %v5457
      %v5459 = vpop.f32.mrb[0].mxu0
      %5460 = vmatprep.mubr.bf16.mxu0 0
      %5461 = vmatmul.mubr.bf16.gmra.mrb[0].mxu0 %v5372
      %v5462 = vpop.f32.mrb[0].mxu0
      %v5463 = vadd.f32 0.0, %v5462
      %v5464 = vpop.f32.mrb[0].mxu0
      %v5465 = vpop.f32.mrb[0].mxu0
      %v5466 = vadd.f32 0.0, %v5465
      %v5467 = vpop.f32.mrb[0].mxu0
      %5468 = vmatprep.mubr.bf16.mxu0 0
      %5469 = vmatmul.mubr.bf16.gmra.mrb[0].mxu0 %v5375
      %v5470 = vpop.f32.mrb[0].mxu0
      %v5471 = vadd.f32 0.0, %v5470
      %v5472 = vpop.f32.mrb[0].mxu0
      %v5473 = vpop.f32.mrb[0].mxu0
      %v5474 = vadd.f32 0.0, %v5473
      %v5475 = vpop.f32.mrb[0].mxu0
      %5476 = vdwg.mxu0
      %v5477 = vadd.f32 %v5096, %v5415
      %v5478 = vadd.f32 %v5097, %v5418
      %v5479 = vadd.f32 %v5098, %v5423
      %v5480 = vadd.f32 %v5099, %v5426
      %v5481 = vadd.f32 %v5100, %v5431
      %v5482 = vadd.f32 %v5101, %v5434
      %v5483 = vadd.f32 %v5102, %v5439
      %v5484 = vadd.f32 %v5103, %v5442
      %v5485 = vadd.f32 %v5104, %v5447
      %v5486 = vadd.f32 %v5105, %v5450
      %v5487 = vadd.f32 %v5106, %v5455
      %v5488 = vadd.f32 %v5107, %v5458
      %v5489 = vadd.f32 %v5108, %v5463
      %v5490 = vadd.f32 %v5109, %v5466
      %v5491 = vadd.f32 %v5110, %v5471
      %v5492 = vadd.f32 %v5111, %v5474
      %v5493 = vld [vmem:[%s4914] sm:$0xe]
      %v5494 = vld [vmem:[%s4914 + $0xc] sm:$0xe]
      %v5495 = vld [vmem:[%s4914 + $0x18] sm:$0xe]
      %v5496 = vld [vmem:[%s4914 + $0x24] sm:$0xe]
      %v5497 = vld [vmem:[%s4914 + $0x30] sm:$0xe]
      %v5498 = vld [vmem:[%s4914 + $0x3c] sm:$0xe]
      %v5499 = vld [vmem:[%s4914 + $0x48] sm:$0xe]
      %v5500 = vld [vmem:[%s4914 + $0x54] sm:$0xe]
      %v5525 = vrot.slane %v5493, 5
      %v5526 = vrot.slane %v5525, 4
      %v5527 = vrot.slane %v5113, 5
      %v5528 = vsel %vm1856, %v5526, %v5527
      %v5529 = vrot.slane %v5527, 4
      %v5530 = vrot.slane %v5114, 5
      %v5531 = vsel %vm1856, %v5529, %v5530
      %v5532 = vrot.slane %v5494, 5
      %v5533 = vrot.slane %v5532, 4
      %v5534 = vrot.slane %v5116, 5
      %v5535 = vsel %vm1856, %v5533, %v5534
      %v5536 = vrot.slane %v5534, 4
      %v5537 = vrot.slane %v5117, 5
      %v5538 = vsel %vm1856, %v5536, %v5537
      %v5539 = vrot.slane %v5495, 5
      %v5540 = vrot.slane %v5539, 4
      %v5541 = vrot.slane %v5119, 5
      %v5542 = vsel %vm1856, %v5540, %v5541
      %v5543 = vrot.slane %v5541, 4
      %v5544 = vrot.slane %v5120, 5
      %v5545 = vsel %vm1856, %v5543, %v5544
      %v5546 = vrot.slane %v5496, 5
      %v5547 = vrot.slane %v5546, 4
      %v5548 = vrot.slane %v5122, 5
      %v5549 = vsel %vm1856, %v5547, %v5548
      %v5550 = vrot.slane %v5548, 4
      %v5551 = vrot.slane %v5123, 5
      %v5552 = vsel %vm1856, %v5550, %v5551
      %v5553 = vrot.slane %v5497, 5
      %v5554 = vrot.slane %v5553, 4
      %v5555 = vrot.slane %v5125, 5
      %v5556 = vsel %vm1856, %v5554, %v5555
      %v5557 = vrot.slane %v5555, 4
      %v5558 = vrot.slane %v5126, 5
      %v5559 = vsel %vm1856, %v5557, %v5558
      %v5560 = vrot.slane %v5498, 5
      %v5561 = vrot.slane %v5560, 4
      %v5562 = vrot.slane %v5128, 5
      %v5563 = vsel %vm1856, %v5561, %v5562
      %v5564 = vrot.slane %v5562, 4
      %v5565 = vrot.slane %v5129, 5
      %v5566 = vsel %vm1856, %v5564, %v5565
      %v5567 = vrot.slane %v5499, 5
      %v5568 = vrot.slane %v5567, 4
      %v5569 = vrot.slane %v5131, 5
      %v5570 = vsel %vm1856, %v5568, %v5569
      %v5571 = vrot.slane %v5569, 4
      %v5572 = vrot.slane %v5132, 5
      %v5573 = vsel %vm1856, %v5571, %v5572
      %v5574 = vrot.slane %v5500, 5
      %v5575 = vrot.slane %v5574, 4
      %v5576 = vrot.slane %v5134, 5
      %v5577 = vsel %vm1856, %v5575, %v5576
      %v5578 = vrot.slane %v5576, 4
      %v5579 = vrot.slane %v5135, 5
      %v5580 = vsel %vm1856, %v5578, %v5579
      %v5581 = vld [vmem:[%s2747] sm:$0x3]
      %v5582 = vunpack.c.l.b16 %v5528
      %v5583 = vunpack.c.l.b16 %v5531
      %v5584 = vunpack.c.l.b16 %v5535
      %v5585 = vunpack.c.l.b16 %v5538
      %v5586 = vunpack.c.l.b16 %v5542
      %v5587 = vunpack.c.l.b16 %v5545
      %v5588 = vunpack.c.l.b16 %v5549
      %v5589 = vunpack.c.l.b16 %v5552
      %v5590 = vunpack.c.l.b16 %v5556
      %v5591 = vunpack.c.l.b16 %v5559
      %v5592 = vunpack.c.l.b16 %v5563
      %v5593 = vunpack.c.l.b16 %v5566
      %v5594 = vunpack.c.l.b16 %v5570
      %v5595 = vunpack.c.l.b16 %v5573
      %v5596 = vunpack.c.l.b16 %v5577
      %v5597 = vunpack.c.l.b16 %v5580
      %v5598 = vpack.c.b16 %v5583, %v5582
      %v5599 = vpack.c.b16 %v5585, %v5584
      %v5600 = vpack.c.b16 %v5587, %v5586
      %v5601 = vpack.c.b16 %v5589, %v5588
      %v5602 = vpack.c.b16 %v5591, %v5590
      %v5603 = vpack.c.b16 %v5593, %v5592
      %v5604 = vpack.c.b16 %v5595, %v5594
      %v5605 = vpack.c.b16 %v5597, %v5596
      %v5607 = vsel %vm978, %v5598, 0
      %v5610 = vsel %vm978, %v5599, 0
      %v5613 = vsel %vm978, %v5600, 0
      %v5616 = vsel %vm978, %v5601, 0
      %v5619 = vsel %vm978, %v5602, 0
      %v5622 = vsel %vm978, %v5603, 0
      %v5625 = vsel %vm978, %v5604, 0
      %v5628 = vsel %vm978, %v5605, 0
      %v5631 = vsel %vm1027, %v5581, 0
      %5633 = vmatprep.subr.bf16.mxu0 0
      %5634 = vmatpush1.bf16.msra.mxu0 %v5631
      %5635 = vmatprep.subr.bf16.mxu0 0
      %5636 = vmatpush1.bf16.msra.mxu0 0
      %5637 = vmatprep.subr.bf16.mxu0 0
      %5638 = vmatpush1.bf16.msra.mxu0 0
      %5639 = vmatprep.subr.bf16.mxu0 0
      %5640 = vmatpush1.bf16.msra.mxu0 0
      %5641 = vmatprep.subr.bf16.mxu0 0
      %5642 = vmatpush1.bf16.msra.mxu0 0
      %5643 = vmatprep.subr.bf16.mxu0 0
      %5644 = vmatpush1.bf16.msra.mxu0 0
      %5645 = vmatprep.subr.bf16.mxu0 0
      %5646 = vmatpush1.bf16.msra.mxu0 0
      %5647 = vmatprep.subr.bf16.mxu0 0
      %5648 = vmatpush1.bf16.msra.mxu0 0
      %5649 = vmatprep.subr.bf16.mxu0 0
      %5650 = vmatpush1.bf16.msra.mxu0 0
      %5651 = vmatprep.subr.bf16.mxu0 0
      %5652 = vmatpush1.bf16.msra.mxu0 0
      %5653 = vmatprep.subr.bf16.mxu0 0
      %5654 = vmatpush1.bf16.msra.mxu0 0
      %5655 = vmatprep.subr.bf16.mxu0 0
      %5656 = vmatpush1.bf16.msra.mxu0 0
      %5657 = vmatprep.subr.bf16.mxu0 0
      %5658 = vmatpush1.bf16.msra.mxu0 0
      %5659 = vmatprep.subr.bf16.mxu0 0
      %5660 = vmatpush1.bf16.msra.mxu0 0
      %5661 = vmatprep.subr.bf16.mxu0 0
      %5662 = vmatpush1.bf16.msra.mxu0 0
      %5663 = vmatprep.subr.bf16.mxu0 0
      %5664 = vmatpush1.bf16.msra.mxu0 0
      %5665 = vmatprep.mubr.bf16.mxu0 0
      %5666 = vmatmul.mubr.bf16.gmra.mrb[0].mxu0 %v5607
      %v5667 = vpop.f32.mrb[0].mxu0
      %v5668 = vadd.f32 0.0, %v5667
      %v5669 = vpop.f32.mrb[0].mxu0
      %v5670 = vpop.f32.mrb[0].mxu0
      %v5671 = vadd.f32 0.0, %v5670
      %v5672 = vpop.f32.mrb[0].mxu0
      %5673 = vmatprep.mubr.bf16.mxu0 0
      %5674 = vmatmul.mubr.bf16.gmra.mrb[0].mxu0 %v5610
      %v5675 = vpop.f32.mrb[0].mxu0
      %v5676 = vadd.f32 0.0, %v5675
      %v5677 = vpop.f32.mrb[0].mxu0
      %v5678 = vpop.f32.mrb[0].mxu0
      %v5679 = vadd.f32 0.0, %v5678
      %v5680 = vpop.f32.mrb[0].mxu0
      %5681 = vmatprep.mubr.bf16.mxu0 0
      %5682 = vmatmul.mubr.bf16.gmra.mrb[0].mxu0 %v5613
      %v5683 = vpop.f32.mrb[0].mxu0
      %v5684 = vadd.f32 0.0, %v5683
      %v5685 = vpop.f32.mrb[0].mxu0
      %v5686 = vpop.f32.mrb[0].mxu0
      %v5687 = vadd.f32 0.0, %v5686
      %v5688 = vpop.f32.mrb[0].mxu0
      %5689 = vmatprep.mubr.bf16.mxu0 0
      %5690 = vmatmul.mubr.bf16.gmra.mrb[0].mxu0 %v5616
      %v5691 = vpop.f32.mrb[0].mxu0
      %v5692 = vadd.f32 0.0, %v5691
      %v5693 = vpop.f32.mrb[0].mxu0
      %v5694 = vpop.f32.mrb[0].mxu0
      %v5695 = vadd.f32 0.0, %v5694
      %v5696 = vpop.f32.mrb[0].mxu0
      %5697 = vmatprep.mubr.bf16.mxu0 0
      %5698 = vmatmul.mubr.bf16.gmra.mrb[0].mxu0 %v5619
      %v5699 = vpop.f32.mrb[0].mxu0
      %v5700 = vadd.f32 0.0, %v5699
      %v5701 = vpop.f32.mrb[0].mxu0
      %v5702 = vpop.f32.mrb[0].mxu0
      %v5703 = vadd.f32 0.0, %v5702
      %v5704 = vpop.f32.mrb[0].mxu0
      %5705 = vmatprep.mubr.bf16.mxu0 0
      %5706 = vmatmul.mubr.bf16.gmra.mrb[0].mxu0 %v5622
      %v5707 = vpop.f32.mrb[0].mxu0
      %v5708 = vadd.f32 0.0, %v5707
      %v5709 = vpop.f32.mrb[0].mxu0
      %v5710 = vpop.f32.mrb[0].mxu0
      %v5711 = vadd.f32 0.0, %v5710
      %v5712 = vpop.f32.mrb[0].mxu0
      %5713 = vmatprep.mubr.bf16.mxu0 0
      %5714 = vmatmul.mubr.bf16.gmra.mrb[0].mxu0 %v5625
      %v5715 = vpop.f32.mrb[0].mxu0
      %v5716 = vadd.f32 0.0, %v5715
      %v5717 = vpop.f32.mrb[0].mxu0
      %v5718 = vpop.f32.mrb[0].mxu0
      %v5719 = vadd.f32 0.0, %v5718
      %v5720 = vpop.f32.mrb[0].mxu0
      %5721 = vmatprep.mubr.bf16.mxu0 0
      %5722 = vmatmul.mubr.bf16.gmra.mrb[0].mxu0 %v5628
      %v5723 = vpop.f32.mrb[0].mxu0
      %v5724 = vadd.f32 0.0, %v5723
      %v5725 = vpop.f32.mrb[0].mxu0
      %v5726 = vpop.f32.mrb[0].mxu0
      %v5727 = vadd.f32 0.0, %v5726
      %v5728 = vpop.f32.mrb[0].mxu0
      %5729 = vdwg.mxu0
      %v5730 = vadd.f32 %v5477, %v5668
      %v5731 = vadd.f32 %v5478, %v5671
      %v5732 = vadd.f32 %v5479, %v5676
      %v5733 = vadd.f32 %v5480, %v5679
      %v5734 = vadd.f32 %v5481, %v5684
      %v5735 = vadd.f32 %v5482, %v5687
      %v5736 = vadd.f32 %v5483, %v5692
      %v5737 = vadd.f32 %v5484, %v5695
      %v5738 = vadd.f32 %v5485, %v5700
      %v5739 = vadd.f32 %v5486, %v5703
      %v5740 = vadd.f32 %v5487, %v5708
      %v5741 = vadd.f32 %v5488, %v5711
      %v5742 = vadd.f32 %v5489, %v5716
      %v5743 = vadd.f32 %v5490, %v5719
      %v5744 = vadd.f32 %v5491, %v5724
      %v5745 = vadd.f32 %v5492, %v5727
      %s5746 = scalar_lea.vmem [#allocation2], 120
      %v5747 = vld [vmem:[%s5746] sm:$0xf]
      %v5748 = vld [vmem:[%s5746 + $0x4] sm:$0xf]
      %v5749 = vld [vmem:[%s5746 + $0xc] sm:$0xf]
      %v5750 = vld [vmem:[%s5746 + $0x10] sm:$0xf]
      %v5751 = vld [vmem:[%s5746 + $0x18] sm:$0xf]
      %v5752 = vld [vmem:[%s5746 + $0x1c] sm:$0xf]
      %v5753 = vld [vmem:[%s5746 + $0x24] sm:$0xf]
      %v5754 = vld [vmem:[%s5746 + $0x28] sm:$0xf]
      %v5755 = vld [vmem:[%s5746 + $0x30] sm:$0xf]
      %v5756 = vld [vmem:[%s5746 + $0x34] sm:$0xf]
      %v5757 = vld [vmem:[%s5746 + $0x3c] sm:$0xf]
      %v5758 = vld [vmem:[%s5746 + $0x40] sm:$0xf]
      %v5759 = vld [vmem:[%s5746 + $0x48] sm:$0xf]
      %v5760 = vld [vmem:[%s5746 + $0x4c] sm:$0xf]
      %v5761 = vld [vmem:[%s5746 + $0x54] sm:$0xf]
      %v5762 = vld [vmem:[%s5746 + $0x58] sm:$0xf]
      %v5763 = vld [vmem:[%s2930] sm:$0x3]
      %v5780 = vunpack.c.l.b16 %v5747
      %v5781 = vunpack.c.l.b16 %v5748
      %v5782 = vunpack.c.l.b16 %v5749
      %v5783 = vunpack.c.l.b16 %v5750
      %v5784 = vunpack.c.l.b16 %v5751
      %v5785 = vunpack.c.l.b16 %v5752
      %v5786 = vunpack.c.l.b16 %v5753
      %v5787 = vunpack.c.l.b16 %v5754
      %v5788 = vunpack.c.l.b16 %v5755
      %v5789 = vunpack.c.l.b16 %v5756
      %v5790 = vunpack.c.l.b16 %v5757
      %v5791 = vunpack.c.l.b16 %v5758
      %v5792 = vunpack.c.l.b16 %v5759
      %v5793 = vunpack.c.l.b16 %v5760
      %v5794 = vunpack.c.l.b16 %v5761
      %v5795 = vunpack.c.l.b16 %v5762
      %v5796 = vpack.c.b16 %v5781, %v5780
      %v5797 = vpack.c.b16 %v5783, %v5782
      %v5798 = vpack.c.b16 %v5785, %v5784
      %v5799 = vpack.c.b16 %v5787, %v5786
      %v5800 = vpack.c.b16 %v5789, %v5788
      %v5801 = vpack.c.b16 %v5791, %v5790
      %v5802 = vpack.c.b16 %v5793, %v5792
      %v5803 = vpack.c.b16 %v5795, %v5794
      %v5805 = vsel %vm978, %v5796, 0
      %v5808 = vsel %vm978, %v5797, 0
      %v5811 = vsel %vm978, %v5798, 0
      %v5814 = vsel %vm978, %v5799, 0
      %v5817 = vsel %vm978, %v5800, 0
      %v5820 = vsel %vm978, %v5801, 0
      %v5823 = vsel %vm978, %v5802, 0
      %v5826 = vsel %vm978, %v5803, 0
      %v5829 = vsel %vm1027, %v5763, 0
      %5831 = vmatprep.subr.bf16.mxu0 0
      %5832 = vmatpush1.bf16.msra.mxu0 %v5829
      %5833 = vmatprep.subr.bf16.mxu0 0
      %5834 = vmatpush1.bf16.msra.mxu0 0
      %5835 = vmatprep.subr.bf16.mxu0 0
      %5836 = vmatpush1.bf16.msra.mxu0 0
      %5837 = vmatprep.subr.bf16.mxu0 0
      %5838 = vmatpush1.bf16.msra.mxu0 0
      %5839 = vmatprep.subr.bf16.mxu0 0
      %5840 = vmatpush1.bf16.msra.mxu0 0
      %5841 = vmatprep.subr.bf16.mxu0 0
      %5842 = vmatpush1.bf16.msra.mxu0 0
      %5843 = vmatprep.subr.bf16.mxu0 0
      %5844 = vmatpush1.bf16.msra.mxu0 0
      %5845 = vmatprep.subr.bf16.mxu0 0
      %5846 = vmatpush1.bf16.msra.mxu0 0
      %5847 = vmatprep.subr.bf16.mxu0 0
      %5848 = vmatpush1.bf16.msra.mxu0 0
      %5849 = vmatprep.subr.bf16.mxu0 0
      %5850 = vmatpush1.bf16.msra.mxu0 0
      %5851 = vmatprep.subr.bf16.mxu0 0
      %5852 = vmatpush1.bf16.msra.mxu0 0
      %5853 = vmatprep.subr.bf16.mxu0 0
      %5854 = vmatpush1.bf16.msra.mxu0 0
      %5855 = vmatprep.subr.bf16.mxu0 0
      %5856 = vmatpush1.bf16.msra.mxu0 0
      %5857 = vmatprep.subr.bf16.mxu0 0
      %5858 = vmatpush1.bf16.msra.mxu0 0
      %5859 = vmatprep.subr.bf16.mxu0 0
      %5860 = vmatpush1.bf16.msra.mxu0 0
      %5861 = vmatprep.subr.bf16.mxu0 0
      %5862 = vmatpush1.bf16.msra.mxu0 0
      %5863 = vmatprep.mubr.bf16.mxu0 0
      %5864 = vmatmul.mubr.bf16.gmra.mrb[0].mxu0 %v5805
      %v5865 = vpop.f32.mrb[0].mxu0
      %v5866 = vadd.f32 0.0, %v5865
      %v5867 = vpop.f32.mrb[0].mxu0
      %v5868 = vpop.f32.mrb[0].mxu0
      %v5869 = vadd.f32 0.0, %v5868
      %v5870 = vpop.f32.mrb[0].mxu0
      %5871 = vmatprep.mubr.bf16.mxu0 0
      %5872 = vmatmul.mubr.bf16.gmra.mrb[0].mxu0 %v5808
      %v5873 = vpop.f32.mrb[0].mxu0
      %v5874 = vadd.f32 0.0, %v5873
      %v5875 = vpop.f32.mrb[0].mxu0
      %v5876 = vpop.f32.mrb[0].mxu0
      %v5877 = vadd.f32 0.0, %v5876
      %v5878 = vpop.f32.mrb[0].mxu0
      %5879 = vmatprep.mubr.bf16.mxu0 0
      %5880 = vmatmul.mubr.bf16.gmra.mrb[0].mxu0 %v5811
      %v5881 = vpop.f32.mrb[0].mxu0
      %v5882 = vadd.f32 0.0, %v5881
      %v5883 = vpop.f32.mrb[0].mxu0
      %v5884 = vpop.f32.mrb[0].mxu0
      %v5885 = vadd.f32 0.0, %v5884
      %v5886 = vpop.f32.mrb[0].mxu0
      %5887 = vmatprep.mubr.bf16.mxu0 0
      %5888 = vmatmul.mubr.bf16.gmra.mrb[0].mxu0 %v5814
      %v5889 = vpop.f32.mrb[0].mxu0
      %v5890 = vadd.f32 0.0, %v5889
      %v5891 = vpop.f32.mrb[0].mxu0
      %v5892 = vpop.f32.mrb[0].mxu0
      %v5893 = vadd.f32 0.0, %v5892
      %v5894 = vpop.f32.mrb[0].mxu0
      %5895 = vmatprep.mubr.bf16.mxu0 0
      %5896 = vmatmul.mubr.bf16.gmra.mrb[0].mxu0 %v5817
      %v5897 = vpop.f32.mrb[0].mxu0
      %v5898 = vadd.f32 0.0, %v5897
      %v5899 = vpop.f32.mrb[0].mxu0
      %v5900 = vpop.f32.mrb[0].mxu0
      %v5901 = vadd.f32 0.0, %v5900
      %v5902 = vpop.f32.mrb[0].mxu0
      %5903 = vmatprep.mubr.bf16.mxu0 0
      %5904 = vmatmul.mubr.bf16.gmra.mrb[0].mxu0 %v5820
      %v5905 = vpop.f32.mrb[0].mxu0
      %v5906 = vadd.f32 0.0, %v5905
      %v5907 = vpop.f32.mrb[0].mxu0
      %v5908 = vpop.f32.mrb[0].mxu0
      %v5909 = vadd.f32 0.0, %v5908
      %v5910 = vpop.f32.mrb[0].mxu0
      %5911 = vmatprep.mubr.bf16.mxu0 0
      %5912 = vmatmul.mubr.bf16.gmra.mrb[0].mxu0 %v5823
      %v5913 = vpop.f32.mrb[0].mxu0
      %v5914 = vadd.f32 0.0, %v5913
      %v5915 = vpop.f32.mrb[0].mxu0
      %v5916 = vpop.f32.mrb[0].mxu0
      %v5917 = vadd.f32 0.0, %v5916
      %v5918 = vpop.f32.mrb[0].mxu0
      %5919 = vmatprep.mubr.bf16.mxu0 0
      %5920 = vmatmul.mubr.bf16.gmra.mrb[0].mxu0 %v5826
      %v5921 = vpop.f32.mrb[0].mxu0
      %v5922 = vadd.f32 0.0, %v5921
      %v5923 = vpop.f32.mrb[0].mxu0
      %v5924 = vpop.f32.mrb[0].mxu0
      %v5925 = vadd.f32 0.0, %v5924
      %v5926 = vpop.f32.mrb[0].mxu0
      %5927 = vdwg.mxu0
      %v5928 = vadd.f32 %v5730, %v5866
      %v5929 = vadd.f32 %v5731, %v5869
      %v5930 = vadd.f32 %v5732, %v5874
      %v5931 = vadd.f32 %v5733, %v5877
      %v5932 = vadd.f32 %v5734, %v5882
      %v5933 = vadd.f32 %v5735, %v5885
      %v5934 = vadd.f32 %v5736, %v5890
      %v5935 = vadd.f32 %v5737, %v5893
      %v5936 = vadd.f32 %v5738, %v5898
      %v5937 = vadd.f32 %v5739, %v5901
      %v5938 = vadd.f32 %v5740, %v5906
      %v5939 = vadd.f32 %v5741, %v5909
      %v5940 = vadd.f32 %v5742, %v5914
      %v5941 = vadd.f32 %v5743, %v5917
      %v5942 = vadd.f32 %v5744, %v5922
      %v5943 = vadd.f32 %v5745, %v5925
      %v5944 = vld [vmem:[%s5746] sm:$0xf]
      %v5945 = vld [vmem:[%s5746 + $0x4] sm:$0xf]
      %v5946 = vld [vmem:[%s5746 + $0x8] sm:$0x1]
      %v5947 = vld [vmem:[%s5746 + $0xc] sm:$0xf]
      %v5948 = vld [vmem:[%s5746 + $0x10] sm:$0xf]
      %v5949 = vld [vmem:[%s5746 + $0x14] sm:$0x1]
      %v5950 = vld [vmem:[%s5746 + $0x18] sm:$0xf]
      %v5951 = vld [vmem:[%s5746 + $0x1c] sm:$0xf]
      %v5952 = vld [vmem:[%s5746 + $0x20] sm:$0x1]
      %v5953 = vld [vmem:[%s5746 + $0x24] sm:$0xf]
      %v5954 = vld [vmem:[%s5746 + $0x28] sm:$0xf]
      %v5955 = vld [vmem:[%s5746 + $0x2c] sm:$0x1]
      %v5956 = vld [vmem:[%s5746 + $0x30] sm:$0xf]
      %v5957 = vld [vmem:[%s5746 + $0x34] sm:$0xf]
      %v5958 = vld [vmem:[%s5746 + $0x38] sm:$0x1]
      %v5959 = vld [vmem:[%s5746 + $0x3c] sm:$0xf]
      %v5960 = vld [vmem:[%s5746 + $0x40] sm:$0xf]
      %v5961 = vld [vmem:[%s5746 + $0x44] sm:$0x1]
      %v5962 = vld [vmem:[%s5746 + $0x48] sm:$0xf]
      %v5963 = vld [vmem:[%s5746 + $0x4c] sm:$0xf]
      %v5964 = vld [vmem:[%s5746 + $0x50] sm:$0x1]
      %v5965 = vld [vmem:[%s5746 + $0x54] sm:$0xf]
      %v5966 = vld [vmem:[%s5746 + $0x58] sm:$0xf]
      %v5967 = vld [vmem:[%s5746 + $0x5c] sm:$0x1]
      %v5969 = vshrl.u32 %v5944, 16
      %v5971 = vrot.slane %v5969, 4
      %v5972 = vshll.u32 %v5944, 16
      %v5974 = vrot.slane %v5972, 5
      %v5975 = vor.u32 %v5971, %v5974
      %v5976 = vrot.slane %v5975, 4
      %v5978 = vshll.u32 %v5945, 16
      %v5980 = vrot.slane %v5978, 5
      %v5981 = vsel %vm1463, %v5976, %v5980
      %v5982 = vshrl.u32 %v5945, 16
      %v5984 = vrot.slane %v5982, 4
      %v5985 = vor.u32 %v5984, %v5980
      %v5986 = vrot.slane %v5985, 4
      %v5988 = vshll.u32 %v5946, 16
      %v5990 = vrot.slane %v5988, 5
      %v5991 = vsel %vm1463, %v5986, %v5990
      %v5993 = vshrl.u32 %v5947, 16
      %v5995 = vrot.slane %v5993, 4
      %v5996 = vshll.u32 %v5947, 16
      %v5998 = vrot.slane %v5996, 5
      %v5999 = vor.u32 %v5995, %v5998
      %v6000 = vrot.slane %v5999, 4
      %v6002 = vshll.u32 %v5948, 16
      %v6004 = vrot.slane %v6002, 5
      %v6005 = vsel %vm1463, %v6000, %v6004
      %v6006 = vshrl.u32 %v5948, 16
      %v6008 = vrot.slane %v6006, 4
      %v6009 = vor.u32 %v6008, %v6004
      %v6010 = vrot.slane %v6009, 4
      %v6012 = vshll.u32 %v5949, 16
      %v6014 = vrot.slane %v6012, 5
      %v6015 = vsel %vm1463, %v6010, %v6014
      %v6017 = vshrl.u32 %v5950, 16
      %v6019 = vrot.slane %v6017, 4
      %v6020 = vshll.u32 %v5950, 16
      %v6022 = vrot.slane %v6020, 5
      %v6023 = vor.u32 %v6019, %v6022
      %v6024 = vrot.slane %v6023, 4
      %v6026 = vshll.u32 %v5951, 16
      %v6028 = vrot.slane %v6026, 5
      %v6029 = vsel %vm1463, %v6024, %v6028
      %v6030 = vshrl.u32 %v5951, 16
      %v6032 = vrot.slane %v6030, 4
      %v6033 = vor.u32 %v6032, %v6028
      %v6034 = vrot.slane %v6033, 4
      %v6036 = vshll.u32 %v5952, 16
      %v6038 = vrot.slane %v6036, 5
      %v6039 = vsel %vm1463, %v6034, %v6038
      %v6041 = vshrl.u32 %v5953, 16
      %v6043 = vrot.slane %v6041, 4
      %v6044 = vshll.u32 %v5953, 16
      %v6046 = vrot.slane %v6044, 5
      %v6047 = vor.u32 %v6043, %v6046
      %v6048 = vrot.slane %v6047, 4
      %v6050 = vshll.u32 %v5954, 16
      %v6052 = vrot.slane %v6050, 5
      %v6053 = vsel %vm1463, %v6048, %v6052
      %v6054 = vshrl.u32 %v5954, 16
      %v6056 = vrot.slane %v6054, 4
      %v6057 = vor.u32 %v6056, %v6052
      %v6058 = vrot.slane %v6057, 4
      %v6060 = vshll.u32 %v5955, 16
      %v6062 = vrot.slane %v6060, 5
      %v6063 = vsel %vm1463, %v6058, %v6062
      %v6065 = vshrl.u32 %v5956, 16
      %v6067 = vrot.slane %v6065, 4
      %v6068 = vshll.u32 %v5956, 16
      %v6070 = vrot.slane %v6068, 5
      %v6071 = vor.u32 %v6067, %v6070
      %v6072 = vrot.slane %v6071, 4
      %v6074 = vshll.u32 %v5957, 16
      %v6076 = vrot.slane %v6074, 5
      %v6077 = vsel %vm1463, %v6072, %v6076
      %v6078 = vshrl.u32 %v5957, 16
      %v6080 = vrot.slane %v6078, 4
      %v6081 = vor.u32 %v6080, %v6076
      %v6082 = vrot.slane %v6081, 4
      %v6084 = vshll.u32 %v5958, 16
      %v6086 = vrot.slane %v6084, 5
      %v6087 = vsel %vm1463, %v6082, %v6086
      %v6089 = vshrl.u32 %v5959, 16
      %v6091 = vrot.slane %v6089, 4
      %v6092 = vshll.u32 %v5959, 16
      %v6094 = vrot.slane %v6092, 5
      %v6095 = vor.u32 %v6091, %v6094
      %v6096 = vrot.slane %v6095, 4
      %v6098 = vshll.u32 %v5960, 16
      %v6100 = vrot.slane %v6098, 5
      %v6101 = vsel %vm1463, %v6096, %v6100
      %v6102 = vshrl.u32 %v5960, 16
      %v6104 = vrot.slane %v6102, 4
      %v6105 = vor.u32 %v6104, %v6100
      %v6106 = vrot.slane %v6105, 4
      %v6108 = vshll.u32 %v5961, 16
      %v6110 = vrot.slane %v6108, 5
      %v6111 = vsel %vm1463, %v6106, %v6110
      %v6113 = vshrl.u32 %v5962, 16
      %v6115 = vrot.slane %v6113, 4
      %v6116 = vshll.u32 %v5962, 16
      %v6118 = vrot.slane %v6116, 5
      %v6119 = vor.u32 %v6115, %v6118
      %v6120 = vrot.slane %v6119, 4
      %v6122 = vshll.u32 %v5963, 16
      %v6124 = vrot.slane %v6122, 5
      %v6125 = vsel %vm1463, %v6120, %v6124
      %v6126 = vshrl.u32 %v5963, 16
      %v6128 = vrot.slane %v6126, 4
      %v6129 = vor.u32 %v6128, %v6124
      %v6130 = vrot.slane %v6129, 4
      %v6132 = vshll.u32 %v5964, 16
      %v6134 = vrot.slane %v6132, 5
      %v6135 = vsel %vm1463, %v6130, %v6134
      %v6137 = vshrl.u32 %v5965, 16
      %v6139 = vrot.slane %v6137, 4
      %v6140 = vshll.u32 %v5965, 16
      %v6142 = vrot.slane %v6140, 5
      %v6143 = vor.u32 %v6139, %v6142
      %v6144 = vrot.slane %v6143, 4
      %v6146 = vshll.u32 %v5966, 16
      %v6148 = vrot.slane %v6146, 5
      %v6149 = vsel %vm1463, %v6144, %v6148
      %v6150 = vshrl.u32 %v5966, 16
      %v6152 = vrot.slane %v6150, 4
      %v6153 = vor.u32 %v6152, %v6148
      %v6154 = vrot.slane %v6153, 4
      %v6156 = vshll.u32 %v5967, 16
      %v6158 = vrot.slane %v6156, 5
      %v6159 = vsel %vm1463, %v6154, %v6158
      %v6160 = vld [vmem:[%s3328] sm:$0x3]
      %v6161 = vunpack.c.l.b16 %v5981
      %v6162 = vunpack.c.l.b16 %v5991
      %v6163 = vunpack.c.l.b16 %v6005
      %v6164 = vunpack.c.l.b16 %v6015
      %v6165 = vunpack.c.l.b16 %v6029
      %v6166 = vunpack.c.l.b16 %v6039
      %v6167 = vunpack.c.l.b16 %v6053
      %v6168 = vunpack.c.l.b16 %v6063
      %v6169 = vunpack.c.l.b16 %v6077
      %v6170 = vunpack.c.l.b16 %v6087
      %v6171 = vunpack.c.l.b16 %v6101
      %v6172 = vunpack.c.l.b16 %v6111
      %v6173 = vunpack.c.l.b16 %v6125
      %v6174 = vunpack.c.l.b16 %v6135
      %v6175 = vunpack.c.l.b16 %v6149
      %v6176 = vunpack.c.l.b16 %v6159
      %v6177 = vpack.c.b16 %v6162, %v6161
      %v6178 = vpack.c.b16 %v6164, %v6163
      %v6179 = vpack.c.b16 %v6166, %v6165
      %v6180 = vpack.c.b16 %v6168, %v6167
      %v6181 = vpack.c.b16 %v6170, %v6169
      %v6182 = vpack.c.b16 %v6172, %v6171
      %v6183 = vpack.c.b16 %v6174, %v6173
      %v6184 = vpack.c.b16 %v6176, %v6175
      %v6186 = vsel %vm978, %v6177, 0
      %v6189 = vsel %vm978, %v6178, 0
      %v6192 = vsel %vm978, %v6179, 0
      %v6195 = vsel %vm978, %v6180, 0
      %v6198 = vsel %vm978, %v6181, 0
      %v6201 = vsel %vm978, %v6182, 0
      %v6204 = vsel %vm978, %v6183, 0
      %v6207 = vsel %vm978, %v6184, 0
      %v6210 = vsel %vm1027, %v6160, 0
      %6212 = vmatprep.subr.bf16.mxu0 0
      %6213 = vmatpush1.bf16.msra.mxu0 %v6210
      %6214 = vmatprep.subr.bf16.mxu0 0
      %6215 = vmatpush1.bf16.msra.mxu0 0
      %6216 = vmatprep.subr.bf16.mxu0 0
      %6217 = vmatpush1.bf16.msra.mxu0 0
      %6218 = vmatprep.subr.bf16.mxu0 0
      %6219 = vmatpush1.bf16.msra.mxu0 0
      %6220 = vmatprep.subr.bf16.mxu0 0
      %6221 = vmatpush1.bf16.msra.mxu0 0
      %6222 = vmatprep.subr.bf16.mxu0 0
      %6223 = vmatpush1.bf16.msra.mxu0 0
      %6224 = vmatprep.subr.bf16.mxu0 0
      %6225 = vmatpush1.bf16.msra.mxu0 0
      %6226 = vmatprep.subr.bf16.mxu0 0
      %6227 = vmatpush1.bf16.msra.mxu0 0
      %6228 = vmatprep.subr.bf16.mxu0 0
      %6229 = vmatpush1.bf16.msra.mxu0 0
      %6230 = vmatprep.subr.bf16.mxu0 0
      %6231 = vmatpush1.bf16.msra.mxu0 0
      %6232 = vmatprep.subr.bf16.mxu0 0
      %6233 = vmatpush1.bf16.msra.mxu0 0
      %6234 = vmatprep.subr.bf16.mxu0 0
      %6235 = vmatpush1.bf16.msra.mxu0 0
      %6236 = vmatprep.subr.bf16.mxu0 0
      %6237 = vmatpush1.bf16.msra.mxu0 0
      %6238 = vmatprep.subr.bf16.mxu0 0
      %6239 = vmatpush1.bf16.msra.mxu0 0
      %6240 = vmatprep.subr.bf16.mxu0 0
      %6241 = vmatpush1.bf16.msra.mxu0 0
      %6242 = vmatprep.subr.bf16.mxu0 0
      %6243 = vmatpush1.bf16.msra.mxu0 0
      %6244 = vmatprep.mubr.bf16.mxu0 0
      %6245 = vmatmul.mubr.bf16.gmra.mrb[0].mxu0 %v6186
      %v6246 = vpop.f32.mrb[0].mxu0
      %v6247 = vadd.f32 0.0, %v6246
      %v6248 = vpop.f32.mrb[0].mxu0
      %v6249 = vpop.f32.mrb[0].mxu0
      %v6250 = vadd.f32 0.0, %v6249
      %v6251 = vpop.f32.mrb[0].mxu0
      %6252 = vmatprep.mubr.bf16.mxu0 0
      %6253 = vmatmul.mubr.bf16.gmra.mrb[0].mxu0 %v6189
      %v6254 = vpop.f32.mrb[0].mxu0
      %v6255 = vadd.f32 0.0, %v6254
      %v6256 = vpop.f32.mrb[0].mxu0
      %v6257 = vpop.f32.mrb[0].mxu0
      %v6258 = vadd.f32 0.0, %v6257
      %v6259 = vpop.f32.mrb[0].mxu0
      %6260 = vmatprep.mubr.bf16.mxu0 0
      %6261 = vmatmul.mubr.bf16.gmra.mrb[0].mxu0 %v6192
      %v6262 = vpop.f32.mrb[0].mxu0
      %v6263 = vadd.f32 0.0, %v6262
      %v6264 = vpop.f32.mrb[0].mxu0
      %v6265 = vpop.f32.mrb[0].mxu0
      %v6266 = vadd.f32 0.0, %v6265
      %v6267 = vpop.f32.mrb[0].mxu0
      %6268 = vmatprep.mubr.bf16.mxu0 0
      %6269 = vmatmul.mubr.bf16.gmra.mrb[0].mxu0 %v6195
      %v6270 = vpop.f32.mrb[0].mxu0
      %v6271 = vadd.f32 0.0, %v6270
      %v6272 = vpop.f32.mrb[0].mxu0
      %v6273 = vpop.f32.mrb[0].mxu0
      %v6274 = vadd.f32 0.0, %v6273
      %v6275 = vpop.f32.mrb[0].mxu0
      %6276 = vmatprep.mubr.bf16.mxu0 0
      %6277 = vmatmul.mubr.bf16.gmra.mrb[0].mxu0 %v6198
      %v6278 = vpop.f32.mrb[0].mxu0
      %v6279 = vadd.f32 0.0, %v6278
      %v6280 = vpop.f32.mrb[0].mxu0
      %v6281 = vpop.f32.mrb[0].mxu0
      %v6282 = vadd.f32 0.0, %v6281
      %v6283 = vpop.f32.mrb[0].mxu0
      %6284 = vmatprep.mubr.bf16.mxu0 0
      %6285 = vmatmul.mubr.bf16.gmra.mrb[0].mxu0 %v6201
      %v6286 = vpop.f32.mrb[0].mxu0
      %v6287 = vadd.f32 0.0, %v6286
      %v6288 = vpop.f32.mrb[0].mxu0
      %v6289 = vpop.f32.mrb[0].mxu0
      %v6290 = vadd.f32 0.0, %v6289
      %v6291 = vpop.f32.mrb[0].mxu0
      %6292 = vmatprep.mubr.bf16.mxu0 0
      %6293 = vmatmul.mubr.bf16.gmra.mrb[0].mxu0 %v6204
      %v6294 = vpop.f32.mrb[0].mxu0
      %v6295 = vadd.f32 0.0, %v6294
      %v6296 = vpop.f32.mrb[0].mxu0
      %v6297 = vpop.f32.mrb[0].mxu0
      %v6298 = vadd.f32 0.0, %v6297
      %v6299 = vpop.f32.mrb[0].mxu0
      %6300 = vmatprep.mubr.bf16.mxu0 0
      %6301 = vmatmul.mubr.bf16.gmra.mrb[0].mxu0 %v6207
      %v6302 = vpop.f32.mrb[0].mxu0
      %v6303 = vadd.f32 0.0, %v6302
      %v6304 = vpop.f32.mrb[0].mxu0
      %v6305 = vpop.f32.mrb[0].mxu0
      %v6306 = vadd.f32 0.0, %v6305
      %v6307 = vpop.f32.mrb[0].mxu0
      %6308 = vdwg.mxu0
      %v6309 = vadd.f32 %v5928, %v6247
      %v6310 = vadd.f32 %v5929, %v6250
      %v6311 = vadd.f32 %v5930, %v6255
      %v6312 = vadd.f32 %v5931, %v6258
      %v6313 = vadd.f32 %v5932, %v6263
      %v6314 = vadd.f32 %v5933, %v6266
      %v6315 = vadd.f32 %v5934, %v6271
      %v6316 = vadd.f32 %v5935, %v6274
      %v6317 = vadd.f32 %v5936, %v6279
      %v6318 = vadd.f32 %v5937, %v6282
      %v6319 = vadd.f32 %v5938, %v6287
      %v6320 = vadd.f32 %v5939, %v6290
      %v6321 = vadd.f32 %v5940, %v6295
      %v6322 = vadd.f32 %v5941, %v6298
      %v6323 = vadd.f32 %v5942, %v6303
      %v6324 = vadd.f32 %v5943, %v6306
      %v6325 = vld [vmem:[%s5746] sm:$0xe]
      %v6326 = vld [vmem:[%s5746 + $0xc] sm:$0xe]
      %v6327 = vld [vmem:[%s5746 + $0x18] sm:$0xe]
      %v6328 = vld [vmem:[%s5746 + $0x24] sm:$0xe]
      %v6329 = vld [vmem:[%s5746 + $0x30] sm:$0xe]
      %v6330 = vld [vmem:[%s5746 + $0x3c] sm:$0xe]
      %v6331 = vld [vmem:[%s5746 + $0x48] sm:$0xe]
      %v6332 = vld [vmem:[%s5746 + $0x54] sm:$0xe]
      %v6357 = vrot.slane %v6325, 5
      %v6358 = vrot.slane %v6357, 4
      %v6359 = vrot.slane %v5945, 5
      %v6360 = vsel %vm1856, %v6358, %v6359
      %v6361 = vrot.slane %v6359, 4
      %v6362 = vrot.slane %v5946, 5
      %v6363 = vsel %vm1856, %v6361, %v6362
      %v6364 = vrot.slane %v6326, 5
      %v6365 = vrot.slane %v6364, 4
      %v6366 = vrot.slane %v5948, 5
      %v6367 = vsel %vm1856, %v6365, %v6366
      %v6368 = vrot.slane %v6366, 4
      %v6369 = vrot.slane %v5949, 5
      %v6370 = vsel %vm1856, %v6368, %v6369
      %v6371 = vrot.slane %v6327, 5
      %v6372 = vrot.slane %v6371, 4
      %v6373 = vrot.slane %v5951, 5
      %v6374 = vsel %vm1856, %v6372, %v6373
      %v6375 = vrot.slane %v6373, 4
      %v6376 = vrot.slane %v5952, 5
      %v6377 = vsel %vm1856, %v6375, %v6376
      %v6378 = vrot.slane %v6328, 5
      %v6379 = vrot.slane %v6378, 4
      %v6380 = vrot.slane %v5954, 5
      %v6381 = vsel %vm1856, %v6379, %v6380
      %v6382 = vrot.slane %v6380, 4
      %v6383 = vrot.slane %v5955, 5
      %v6384 = vsel %vm1856, %v6382, %v6383
      %v6385 = vrot.slane %v6329, 5
      %v6386 = vrot.slane %v6385, 4
      %v6387 = vrot.slane %v5957, 5
      %v6388 = vsel %vm1856, %v6386, %v6387
      %v6389 = vrot.slane %v6387, 4
      %v6390 = vrot.slane %v5958, 5
      %v6391 = vsel %vm1856, %v6389, %v6390
      %v6392 = vrot.slane %v6330, 5
      %v6393 = vrot.slane %v6392, 4
      %v6394 = vrot.slane %v5960, 5
      %v6395 = vsel %vm1856, %v6393, %v6394
      %v6396 = vrot.slane %v6394, 4
      %v6397 = vrot.slane %v5961, 5
      %v6398 = vsel %vm1856, %v6396, %v6397
      %v6399 = vrot.slane %v6331, 5
      %v6400 = vrot.slane %v6399, 4
      %v6401 = vrot.slane %v5963, 5
      %v6402 = vsel %vm1856, %v6400, %v6401
      %v6403 = vrot.slane %v6401, 4
      %v6404 = vrot.slane %v5964, 5
      %v6405 = vsel %vm1856, %v6403, %v6404
      %v6406 = vrot.slane %v6332, 5
      %v6407 = vrot.slane %v6406, 4
      %v6408 = vrot.slane %v5966, 5
      %v6409 = vsel %vm1856, %v6407, %v6408
      %v6410 = vrot.slane %v6408, 4
      %v6411 = vrot.slane %v5967, 5
      %v6412 = vsel %vm1856, %v6410, %v6411
      %v6413 = vld [vmem:[%s3582] sm:$0x3]
      %v6414 = vunpack.c.l.b16 %v6360
      %v6415 = vunpack.c.l.b16 %v6363
      %v6416 = vunpack.c.l.b16 %v6367
      %v6417 = vunpack.c.l.b16 %v6370
      %v6418 = vunpack.c.l.b16 %v6374
      %v6419 = vunpack.c.l.b16 %v6377
      %v6420 = vunpack.c.l.b16 %v6381
      %v6421 = vunpack.c.l.b16 %v6384
      %v6422 = vunpack.c.l.b16 %v6388
      %v6423 = vunpack.c.l.b16 %v6391
      %v6424 = vunpack.c.l.b16 %v6395
      %v6425 = vunpack.c.l.b16 %v6398
      %v6426 = vunpack.c.l.b16 %v6402
      %v6427 = vunpack.c.l.b16 %v6405
      %v6428 = vunpack.c.l.b16 %v6409
      %v6429 = vunpack.c.l.b16 %v6412
      %v6430 = vpack.c.b16 %v6415, %v6414
      %v6431 = vpack.c.b16 %v6417, %v6416
      %v6432 = vpack.c.b16 %v6419, %v6418
      %v6433 = vpack.c.b16 %v6421, %v6420
      %v6434 = vpack.c.b16 %v6423, %v6422
      %v6435 = vpack.c.b16 %v6425, %v6424
      %v6436 = vpack.c.b16 %v6427, %v6426
      %v6437 = vpack.c.b16 %v6429, %v6428
      %v6439 = vsel %vm978, %v6430, 0
      %v6442 = vsel %vm978, %v6431, 0
      %v6445 = vsel %vm978, %v6432, 0
      %v6448 = vsel %vm978, %v6433, 0
      %v6451 = vsel %vm978, %v6434, 0
      %v6454 = vsel %vm978, %v6435, 0
      %v6457 = vsel %vm978, %v6436, 0
      %v6460 = vsel %vm978, %v6437, 0
      %v6463 = vsel %vm1027, %v6413, 0
      %6465 = vmatprep.subr.bf16.mxu0 0
      %6466 = vmatpush1.bf16.msra.mxu0 %v6463
      %6467 = vmatprep.subr.bf16.mxu0 0
      %6468 = vmatpush1.bf16.msra.mxu0 0
      %6469 = vmatprep.subr.bf16.mxu0 0
      %6470 = vmatpush1.bf16.msra.mxu0 0
      %6471 = vmatprep.subr.bf16.mxu0 0
      %6472 = vmatpush1.bf16.msra.mxu0 0
      %6473 = vmatprep.subr.bf16.mxu0 0
      %6474 = vmatpush1.bf16.msra.mxu0 0
      %6475 = vmatprep.subr.bf16.mxu0 0
      %6476 = vmatpush1.bf16.msra.mxu0 0
      %6477 = vmatprep.subr.bf16.mxu0 0
      %6478 = vmatpush1.bf16.msra.mxu0 0
      %6479 = vmatprep.subr.bf16.mxu0 0
      %6480 = vmatpush1.bf16.msra.mxu0 0
      %6481 = vmatprep.subr.bf16.mxu0 0
      %6482 = vmatpush1.bf16.msra.mxu0 0
      %6483 = vmatprep.subr.bf16.mxu0 0
      %6484 = vmatpush1.bf16.msra.mxu0 0
      %6485 = vmatprep.subr.bf16.mxu0 0
      %6486 = vmatpush1.bf16.msra.mxu0 0
      %6487 = vmatprep.subr.bf16.mxu0 0
      %6488 = vmatpush1.bf16.msra.mxu0 0
      %6489 = vmatprep.subr.bf16.mxu0 0
      %6490 = vmatpush1.bf16.msra.mxu0 0
      %6491 = vmatprep.subr.bf16.mxu0 0
      %6492 = vmatpush1.bf16.msra.mxu0 0
      %6493 = vmatprep.subr.bf16.mxu0 0
      %6494 = vmatpush1.bf16.msra.mxu0 0
      %6495 = vmatprep.subr.bf16.mxu0 0
      %6496 = vmatpush1.bf16.msra.mxu0 0
      %6497 = vmatprep.mubr.bf16.mxu0 0
      %6498 = vmatmul.mubr.bf16.gmra.mrb[0].mxu0 %v6439
      %v6499 = vpop.f32.mrb[0].mxu0
      %v6500 = vadd.f32 0.0, %v6499
      %v6501 = vpop.f32.mrb[0].mxu0
      %v6502 = vpop.f32.mrb[0].mxu0
      %v6503 = vadd.f32 0.0, %v6502
      %v6504 = vpop.f32.mrb[0].mxu0
      %6505 = vmatprep.mubr.bf16.mxu0 0
      %6506 = vmatmul.mubr.bf16.gmra.mrb[0].mxu0 %v6442
      %v6507 = vpop.f32.mrb[0].mxu0
      %v6508 = vadd.f32 0.0, %v6507
      %v6509 = vpop.f32.mrb[0].mxu0
      %v6510 = vpop.f32.mrb[0].mxu0
      %v6511 = vadd.f32 0.0, %v6510
      %v6512 = vpop.f32.mrb[0].mxu0
      %6513 = vmatprep.mubr.bf16.mxu0 0
      %6514 = vmatmul.mubr.bf16.gmra.mrb[0].mxu0 %v6445
      %v6515 = vpop.f32.mrb[0].mxu0
      %v6516 = vadd.f32 0.0, %v6515
      %v6517 = vpop.f32.mrb[0].mxu0
      %v6518 = vpop.f32.mrb[0].mxu0
      %v6519 = vadd.f32 0.0, %v6518
      %v6520 = vpop.f32.mrb[0].mxu0
      %6521 = vmatprep.mubr.bf16.mxu0 0
      %6522 = vmatmul.mubr.bf16.gmra.mrb[0].mxu0 %v6448
      %v6523 = vpop.f32.mrb[0].mxu0
      %v6524 = vadd.f32 0.0, %v6523
      %v6525 = vpop.f32.mrb[0].mxu0
      %v6526 = vpop.f32.mrb[0].mxu0
      %v6527 = vadd.f32 0.0, %v6526
      %v6528 = vpop.f32.mrb[0].mxu0
      %6529 = vmatprep.mubr.bf16.mxu0 0
      %6530 = vmatmul.mubr.bf16.gmra.mrb[0].mxu0 %v6451
      %v6531 = vpop.f32.mrb[0].mxu0
      %v6532 = vadd.f32 0.0, %v6531
      %v6533 = vpop.f32.mrb[0].mxu0
      %v6534 = vpop.f32.mrb[0].mxu0
      %v6535 = vadd.f32 0.0, %v6534
      %v6536 = vpop.f32.mrb[0].mxu0
      %6537 = vmatprep.mubr.bf16.mxu0 0
      %6538 = vmatmul.mubr.bf16.gmra.mrb[0].mxu0 %v6454
      %v6539 = vpop.f32.mrb[0].mxu0
      %v6540 = vadd.f32 0.0, %v6539
      %v6541 = vpop.f32.mrb[0].mxu0
      %v6542 = vpop.f32.mrb[0].mxu0
      %v6543 = vadd.f32 0.0, %v6542
      %v6544 = vpop.f32.mrb[0].mxu0
      %6545 = vmatprep.mubr.bf16.mxu0 0
      %6546 = vmatmul.mubr.bf16.gmra.mrb[0].mxu0 %v6457
      %v6547 = vpop.f32.mrb[0].mxu0
      %v6548 = vadd.f32 0.0, %v6547
      %v6549 = vpop.f32.mrb[0].mxu0
      %v6550 = vpop.f32.mrb[0].mxu0
      %v6551 = vadd.f32 0.0, %v6550
      %v6552 = vpop.f32.mrb[0].mxu0
      %6553 = vmatprep.mubr.bf16.mxu0 0
      %6554 = vmatmul.mubr.bf16.gmra.mrb[0].mxu0 %v6460
      %v6555 = vpop.f32.mrb[0].mxu0
      %v6556 = vadd.f32 0.0, %v6555
      %v6557 = vpop.f32.mrb[0].mxu0
      %v6558 = vpop.f32.mrb[0].mxu0
      %v6559 = vadd.f32 0.0, %v6558
      %v6560 = vpop.f32.mrb[0].mxu0
      %6561 = vdwg.mxu0
      %v6562 = vadd.f32 %v6309, %v6500
      %v6563 = vadd.f32 %v6310, %v6503
      %v6564 = vadd.f32 %v6311, %v6508
      %v6565 = vadd.f32 %v6312, %v6511
      %v6566 = vadd.f32 %v6313, %v6516
      %v6567 = vadd.f32 %v6314, %v6519
      %v6568 = vadd.f32 %v6315, %v6524
      %v6569 = vadd.f32 %v6316, %v6527
      %v6570 = vadd.f32 %v6317, %v6532
      %v6571 = vadd.f32 %v6318, %v6535
      %v6572 = vadd.f32 %v6319, %v6540
      %v6573 = vadd.f32 %v6320, %v6543
      %v6574 = vadd.f32 %v6321, %v6548
      %v6575 = vadd.f32 %v6322, %v6551
      %v6576 = vadd.f32 %v6323, %v6556
      %v6577 = vadd.f32 %v6324, %v6559
      %vm6578 = vcmp.gt.f32.partialorder %v6562, 0.0
      %vm6579 = vcmp.gt.f32.partialorder %v6563, 0.0
      %vm6580 = vcmp.gt.f32.partialorder %v6564, 0.0
      %vm6581 = vcmp.gt.f32.partialorder %v6565, 0.0
      %vm6582 = vcmp.gt.f32.partialorder %v6566, 0.0
      %vm6583 = vcmp.gt.f32.partialorder %v6567, 0.0
      %vm6584 = vcmp.gt.f32.partialorder %v6568, 0.0
      %vm6585 = vcmp.gt.f32.partialorder %v6569, 0.0
      %vm6586 = vcmp.gt.f32.partialorder %v6570, 0.0
      %vm6587 = vcmp.gt.f32.partialorder %v6571, 0.0
      %vm6588 = vcmp.gt.f32.partialorder %v6572, 0.0
      %vm6589 = vcmp.gt.f32.partialorder %v6573, 0.0
      %vm6590 = vcmp.gt.f32.partialorder %v6574, 0.0
      %vm6591 = vcmp.gt.f32.partialorder %v6575, 0.0
      %vm6592 = vcmp.gt.f32.partialorder %v6576, 0.0
      %vm6593 = vcmp.gt.f32.partialorder %v6577, 0.0
      %v6594 = vmul.f32 %v6562, 0.2
      %v6595 = vmul.f32 %v6563, 0.2
      %v6596 = vmul.f32 %v6564, 0.2
      %v6597 = vmul.f32 %v6565, 0.2
      %v6598 = vmul.f32 %v6566, 0.2
      %v6599 = vmul.f32 %v6567, 0.2
      %v6600 = vmul.f32 %v6568, 0.2
      %v6601 = vmul.f32 %v6569, 0.2
      %v6602 = vmul.f32 %v6570, 0.2
      %v6603 = vmul.f32 %v6571, 0.2
      %v6604 = vmul.f32 %v6572, 0.2
      %v6605 = vmul.f32 %v6573, 0.2
      %v6606 = vmul.f32 %v6574, 0.2
      %v6607 = vmul.f32 %v6575, 0.2
      %v6608 = vmul.f32 %v6576, 0.2
      %v6609 = vmul.f32 %v6577, 0.2
      %v6610 = vsel %vm6578, %v6562, %v6594
      %v6611 = vsel %vm6579, %v6563, %v6595
      %v6612 = vsel %vm6580, %v6564, %v6596
      %v6613 = vsel %vm6581, %v6565, %v6597
      %v6614 = vsel %vm6582, %v6566, %v6598
      %v6615 = vsel %vm6583, %v6567, %v6599
      %v6616 = vsel %vm6584, %v6568, %v6600
      %v6617 = vsel %vm6585, %v6569, %v6601
      %v6618 = vsel %vm6586, %v6570, %v6602
      %v6619 = vsel %vm6587, %v6571, %v6603
      %v6620 = vsel %vm6588, %v6572, %v6604
      %v6621 = vsel %vm6589, %v6573, %v6605
      %v6622 = vsel %vm6590, %v6574, %v6606
      %v6623 = vsel %vm6591, %v6575, %v6607
      %v6624 = vsel %vm6592, %v6576, %v6608
      %v6625 = vsel %vm6593, %v6577, %v6609
      %v6626 = vpack.c.bf16 %v6611, %v6610
      %v6627 = vpack.c.bf16 %v6613, %v6612
      %v6628 = vpack.c.bf16 %v6615, %v6614
      %v6629 = vpack.c.bf16 %v6617, %v6616
      %v6630 = vpack.c.bf16 %v6619, %v6618
      %v6631 = vpack.c.bf16 %v6621, %v6620
      %v6632 = vpack.c.bf16 %v6623, %v6622
      %v6633 = vpack.c.bf16 %v6625, %v6624
      %v6642 = vunpack.c.l.b16 %v6626
      %v6643 = vunpack.c.h.b16 %v6626
      %v6644 = vunpack.c.l.b16 %v6627
      %v6645 = vunpack.c.h.b16 %v6627
      %v6646 = vunpack.c.l.b16 %v6628
      %v6647 = vunpack.c.h.b16 %v6628
      %v6648 = vunpack.c.l.b16 %v6629
      %v6649 = vunpack.c.h.b16 %v6629
      %v6650 = vunpack.c.l.b16 %v6630
      %v6651 = vunpack.c.h.b16 %v6630
      %v6652 = vunpack.c.l.b16 %v6631
      %v6653 = vunpack.c.h.b16 %v6631
      %v6654 = vunpack.c.l.b16 %v6632
      %v6655 = vunpack.c.h.b16 %v6632
      %v6656 = vunpack.c.l.b16 %v6633
      %v6657 = vunpack.c.h.b16 %v6633
      %v6658 = vpack.c.b16 %v6642, %v6642
      %v6659 = vpack.c.b16 %v6643, %v6643
      %v6660 = vpack.c.b16 %v6644, %v6644
      %v6661 = vpack.c.b16 %v6645, %v6645
      %v6662 = vpack.c.b16 %v6646, %v6646
      %v6663 = vpack.c.b16 %v6647, %v6647
      %v6664 = vpack.c.b16 %v6648, %v6648
      %v6665 = vpack.c.b16 %v6649, %v6649
      %v6666 = vpack.c.b16 %v6650, %v6650
      %v6667 = vpack.c.b16 %v6651, %v6651
      %v6668 = vpack.c.b16 %v6652, %v6652
      %v6669 = vpack.c.b16 %v6653, %v6653
      %v6670 = vpack.c.b16 %v6654, %v6654
      %v6671 = vpack.c.b16 %v6655, %v6655
      %v6672 = vpack.c.b16 %v6656, %v6656
      %v6673 = vpack.c.b16 %v6657, %v6657
      %v6675 = vshrl.u32 %v6658, 16
      %v6677 = vrot.slane %v6675, 7
      %v6678 = vshll.u32 %v6658, 16
      %v6680 = vor.u32 %v6677, %v6678
      %v6681 = vrot.slane %v6677, 4
      %v6683 = vshrl.u32 %v6659, 16
      %v6685 = vrot.slane %v6683, 7
      %v6686 = vshll.u32 %v6659, 16
      %v6688 = vor.u32 %v6685, %v6686
      %v6689 = vsel %vm426, %v6681, %v6688
      %v6690 = vrot.slane %v6685, 4
      %v6692 = vshrl.u32 %v6660, 16
      %v6694 = vrot.slane %v6692, 7
      %v6695 = vshll.u32 %v6660, 16
      %v6697 = vor.u32 %v6694, %v6695
      %v6698 = vrot.slane %v6694, 4
      %v6700 = vshrl.u32 %v6661, 16
      %v6702 = vrot.slane %v6700, 7
      %v6703 = vshll.u32 %v6661, 16
      %v6705 = vor.u32 %v6702, %v6703
      %v6706 = vsel %vm426, %v6698, %v6705
      %v6707 = vrot.slane %v6702, 4
      %v6709 = vshrl.u32 %v6662, 16
      %v6711 = vrot.slane %v6709, 7
      %v6712 = vshll.u32 %v6662, 16
      %v6714 = vor.u32 %v6711, %v6712
      %v6715 = vrot.slane %v6711, 4
      %v6717 = vshrl.u32 %v6663, 16
      %v6719 = vrot.slane %v6717, 7
      %v6720 = vshll.u32 %v6663, 16
      %v6722 = vor.u32 %v6719, %v6720
      %v6723 = vsel %vm426, %v6715, %v6722
      %v6724 = vrot.slane %v6719, 4
      %v6726 = vshrl.u32 %v6664, 16
      %v6728 = vrot.slane %v6726, 7
      %v6729 = vshll.u32 %v6664, 16
      %v6731 = vor.u32 %v6728, %v6729
      %v6732 = vrot.slane %v6728, 4
      %v6734 = vshrl.u32 %v6665, 16
      %v6736 = vrot.slane %v6734, 7
      %v6737 = vshll.u32 %v6665, 16
      %v6739 = vor.u32 %v6736, %v6737
      %v6740 = vsel %vm426, %v6732, %v6739
      %v6741 = vrot.slane %v6736, 4
      %v6743 = vshrl.u32 %v6666, 16
      %v6745 = vrot.slane %v6743, 7
      %v6746 = vshll.u32 %v6666, 16
      %v6748 = vor.u32 %v6745, %v6746
      %v6749 = vrot.slane %v6745, 4
      %v6751 = vshrl.u32 %v6667, 16
      %v6753 = vrot.slane %v6751, 7
      %v6754 = vshll.u32 %v6667, 16
      %v6756 = vor.u32 %v6753, %v6754
      %v6757 = vsel %vm426, %v6749, %v6756
      %v6758 = vrot.slane %v6753, 4
      %v6760 = vshrl.u32 %v6668, 16
      %v6762 = vrot.slane %v6760, 7
      %v6763 = vshll.u32 %v6668, 16
      %v6765 = vor.u32 %v6762, %v6763
      %v6766 = vrot.slane %v6762, 4
      %v6768 = vshrl.u32 %v6669, 16
      %v6770 = vrot.slane %v6768, 7
      %v6771 = vshll.u32 %v6669, 16
      %v6773 = vor.u32 %v6770, %v6771
      %v6774 = vsel %vm426, %v6766, %v6773
      %v6775 = vrot.slane %v6770, 4
      %v6777 = vshrl.u32 %v6670, 16
      %v6779 = vrot.slane %v6777, 7
      %v6780 = vshll.u32 %v6670, 16
      %v6782 = vor.u32 %v6779, %v6780
      %v6783 = vrot.slane %v6779, 4
      %v6785 = vshrl.u32 %v6671, 16
      %v6787 = vrot.slane %v6785, 7
      %v6788 = vshll.u32 %v6671, 16
      %v6790 = vor.u32 %v6787, %v6788
      %v6791 = vsel %vm426, %v6783, %v6790
      %v6792 = vrot.slane %v6787, 4
      %v6794 = vshrl.u32 %v6672, 16
      %v6796 = vrot.slane %v6794, 7
      %v6797 = vshll.u32 %v6672, 16
      %v6799 = vor.u32 %v6796, %v6797
      %v6800 = vrot.slane %v6796, 4
      %v6802 = vshrl.u32 %v6673, 16
      %v6804 = vrot.slane %v6802, 7
      %v6805 = vshll.u32 %v6673, 16
      %v6807 = vor.u32 %v6804, %v6805
      %v6808 = vsel %vm426, %v6800, %v6807
      %v6809 = vrot.slane %v6804, 4
      %s6834 = scalar_lea.vmem [#allocation3], 108
      %v6835 = vld [vmem:[%s6834] sm:$0xf]
      %v6836 = vsel %vm4006, %v6680, %v6835
      %6837 = vst [vmem:[%s6834] sm:$0xf] %v6836
      %6838 = vst.msk [vmem:[%s6834 + $0x4] sm:$0xf] %vm336, %v6689
      %v6839 = vld [vmem:[%s6834 + $0x8] sm:$0x1]
      %v6840 = vsel %vm4012, %v6690, %v6839
      %6841 = vst [vmem:[%s6834 + $0x8] sm:$0x1] %v6840
      %v6842 = vld [vmem:[%s6834 + $0xc] sm:$0xf]
      %v6843 = vsel %vm4006, %v6697, %v6842
      %6844 = vst [vmem:[%s6834 + $0xc] sm:$0xf] %v6843
      %6845 = vst.msk [vmem:[%s6834 + $0x10] sm:$0xf] %vm336, %v6706
      %v6846 = vld [vmem:[%s6834 + $0x14] sm:$0x1]
      %v6847 = vsel %vm4012, %v6707, %v6846
      %6848 = vst [vmem:[%s6834 + $0x14] sm:$0x1] %v6847
      %v6849 = vld [vmem:[%s6834 + $0x18] sm:$0xf]
      %v6850 = vsel %vm4006, %v6714, %v6849
      %6851 = vst [vmem:[%s6834 + $0x18] sm:$0xf] %v6850
      %6852 = vst.msk [vmem:[%s6834 + $0x1c] sm:$0xf] %vm336, %v6723
      %v6853 = vld [vmem:[%s6834 + $0x20] sm:$0x1]
      %v6854 = vsel %vm4012, %v6724, %v6853
      %6855 = vst [vmem:[%s6834 + $0x20] sm:$0x1] %v6854
      %v6856 = vld [vmem:[%s6834 + $0x24] sm:$0xf]
      %v6857 = vsel %vm4006, %v6731, %v6856
      %6858 = vst [vmem:[%s6834 + $0x24] sm:$0xf] %v6857
      %6859 = vst.msk [vmem:[%s6834 + $0x28] sm:$0xf] %vm336, %v6740
      %v6860 = vld [vmem:[%s6834 + $0x2c] sm:$0x1]
      %v6861 = vsel %vm4012, %v6741, %v6860
      %6862 = vst [vmem:[%s6834 + $0x2c] sm:$0x1] %v6861
      %v6863 = vld [vmem:[%s6834 + $0x30] sm:$0xf]
      %v6864 = vsel %vm4006, %v6748, %v6863
      %6865 = vst [vmem:[%s6834 + $0x30] sm:$0xf] %v6864
      %6866 = vst.msk [vmem:[%s6834 + $0x34] sm:$0xf] %vm336, %v6757
      %v6867 = vld [vmem:[%s6834 + $0x38] sm:$0x1]
      %v6868 = vsel %vm4012, %v6758, %v6867
      %6869 = vst [vmem:[%s6834 + $0x38] sm:$0x1] %v6868
      %v6870 = vld [vmem:[%s6834 + $0x3c] sm:$0xf]
      %v6871 = vsel %vm4006, %v6765, %v6870
      %6872 = vst [vmem:[%s6834 + $0x3c] sm:$0xf] %v6871
      %6873 = vst.msk [vmem:[%s6834 + $0x40] sm:$0xf] %vm336, %v6774
      %v6874 = vld [vmem:[%s6834 + $0x44] sm:$0x1]
      %v6875 = vsel %vm4012, %v6775, %v6874
      %6876 = vst [vmem:[%s6834 + $0x44] sm:$0x1] %v6875
      %v6877 = vld [vmem:[%s6834 + $0x48] sm:$0xf]
      %v6878 = vsel %vm4006, %v6782, %v6877
      %6879 = vst [vmem:[%s6834 + $0x48] sm:$0xf] %v6878
      %6880 = vst.msk [vmem:[%s6834 + $0x4c] sm:$0xf] %vm336, %v6791
      %v6881 = vld [vmem:[%s6834 + $0x50] sm:$0x1]
      %v6882 = vsel %vm4012, %v6792, %v6881
      %6883 = vst [vmem:[%s6834 + $0x50] sm:$0x1] %v6882
      %v6884 = vld [vmem:[%s6834 + $0x54] sm:$0xf]
      %v6885 = vsel %vm4006, %v6799, %v6884
      %6886 = vst [vmem:[%s6834 + $0x54] sm:$0xf] %v6885
      %6887 = vst.msk [vmem:[%s6834 + $0x58] sm:$0xf] %vm336, %v6808
      %v6888 = vld [vmem:[%s6834 + $0x5c] sm:$0x1]
      %v6889 = vsel %vm4012, %v6809, %v6888
      %6890 = vst [vmem:[%s6834 + $0x5c] sm:$0x1] %v6889
      %v6891 = vld [vmem:[%s4] sm:$0xff]
      %v6892 = vld [vmem:[%s4 + $0x8] sm:$0xff]
      %v6893 = vld [vmem:[%s4 + $0x10] sm:$0xff]
      %v6894 = vld [vmem:[%s4 + $0x18] sm:$0xff]
      %v6895 = vld [vmem:[%s4 + $0x20] sm:$0xff]
      %v6896 = vld [vmem:[%s4 + $0x28] sm:$0xff]
      %v6897 = vld [vmem:[%s4 + $0x30] sm:$0xff]
      %v6898 = vld [vmem:[%s4 + $0x38] sm:$0xff]
      %v6899 = vld [vmem:[%s4 + $0x40] sm:$0xff]
      %v6900 = vld [vmem:[%s4 + $0x48] sm:$0xff]
      %v6901 = vld [vmem:[%s4 + $0x50] sm:$0xff]
      %v6902 = vld [vmem:[%s4 + $0x58] sm:$0xff]
      %v6903 = vld [vmem:[%s4 + $0x60] sm:$0xff]
      %v6904 = vld [vmem:[%s4 + $0x68] sm:$0xff]
      %v6905 = vld [vmem:[%s4 + $0x70] sm:$0xff]
      %v6906 = vld [vmem:[%s4 + $0x78] sm:$0xff]
      %v6907 = vld [vmem:[#allocation3] sm:$0xf]
      %v6908 = vld [vmem:[#allocation3 + $0x4] sm:$0xf]
      %v6909 = vld [vmem:[#allocation3 + $0xc] sm:$0xf]
      %v6910 = vld [vmem:[#allocation3 + $0x10] sm:$0xf]
      %v6911 = vld [vmem:[#allocation3 + $0x18] sm:$0xf]
      %v6912 = vld [vmem:[#allocation3 + $0x1c] sm:$0xf]
      %v6913 = vld [vmem:[#allocation3 + $0x24] sm:$0xf]
      %v6914 = vld [vmem:[#allocation3 + $0x28] sm:$0xf]
      %v6915 = vld [vmem:[#allocation3 + $0x30] sm:$0xf]
      %v6916 = vld [vmem:[#allocation3 + $0x34] sm:$0xf]
      %v6917 = vld [vmem:[#allocation3 + $0x3c] sm:$0xf]
      %v6918 = vld [vmem:[#allocation3 + $0x40] sm:$0xf]
      %v6919 = vld [vmem:[#allocation3 + $0x48] sm:$0xf]
      %v6920 = vld [vmem:[#allocation3 + $0x4c] sm:$0xf]
      %v6921 = vld [vmem:[#allocation3 + $0x54] sm:$0xf]
      %v6922 = vld [vmem:[#allocation3 + $0x58] sm:$0xf]
      %v6923 = vld [vmem:[%s3] sm:$0xf]
      %v6940 = vunpack.c.l.b16 %v6907
      %v6941 = vunpack.c.l.b16 %v6908
      %v6942 = vunpack.c.l.b16 %v6909
      %v6943 = vunpack.c.l.b16 %v6910
      %v6944 = vunpack.c.l.b16 %v6911
      %v6945 = vunpack.c.l.b16 %v6912
      %v6946 = vunpack.c.l.b16 %v6913
      %v6947 = vunpack.c.l.b16 %v6914
      %v6948 = vunpack.c.l.b16 %v6915
      %v6949 = vunpack.c.l.b16 %v6916
      %v6950 = vunpack.c.l.b16 %v6917
      %v6951 = vunpack.c.l.b16 %v6918
      %v6952 = vunpack.c.l.b16 %v6919
      %v6953 = vunpack.c.l.b16 %v6920
      %v6954 = vunpack.c.l.b16 %v6921
      %v6955 = vunpack.c.l.b16 %v6922
      %v6956 = vpack.c.b16 %v6941, %v6940
      %v6957 = vpack.c.b16 %v6943, %v6942
      %v6958 = vpack.c.b16 %v6945, %v6944
      %v6959 = vpack.c.b16 %v6947, %v6946
      %v6960 = vpack.c.b16 %v6949, %v6948
      %v6961 = vpack.c.b16 %v6951, %v6950
      %v6962 = vpack.c.b16 %v6953, %v6952
      %v6963 = vpack.c.b16 %v6955, %v6954
      %vm6964 = vcmask 64512
      %v6966 = vsel %vm6964, %v6956, 0
      %v6969 = vsel %vm6964, %v6957, 0
      %v6972 = vsel %vm6964, %v6958, 0
      %v6975 = vsel %vm6964, %v6959, 0
      %v6978 = vsel %vm6964, %v6960, 0
      %v6981 = vsel %vm6964, %v6961, 0
      %v6984 = vsel %vm6964, %v6962, 0
      %v6987 = vsel %vm6964, %v6963, 0
      %vm6989 = vcmask 1043456
      %v6991 = vsel %vm6989, %v6923, 0
      %6993 = vmatprep.subr.bf16.mxu0 0
      %6994 = vmatpush1.bf16.msra.mxu0 %v6991
      %6995 = vmatprep.subr.bf16.mxu0 0
      %6996 = vmatpush1.bf16.msra.mxu0 0
      %6997 = vmatprep.subr.bf16.mxu0 0
      %6998 = vmatpush1.bf16.msra.mxu0 0
      %6999 = vmatprep.subr.bf16.mxu0 0
      %7000 = vmatpush1.bf16.msra.mxu0 0
      %7001 = vmatprep.subr.bf16.mxu0 0
      %7002 = vmatpush1.bf16.msra.mxu0 0
      %7003 = vmatprep.subr.bf16.mxu0 0
      %7004 = vmatpush1.bf16.msra.mxu0 0
      %7005 = vmatprep.subr.bf16.mxu0 0
      %7006 = vmatpush1.bf16.msra.mxu0 0
      %7007 = vmatprep.subr.bf16.mxu0 0
      %7008 = vmatpush1.bf16.msra.mxu0 0
      %7009 = vmatprep.subr.bf16.mxu0 0
      %7010 = vmatpush1.bf16.msra.mxu0 0
      %7011 = vmatprep.subr.bf16.mxu0 0
      %7012 = vmatpush1.bf16.msra.mxu0 0
      %7013 = vmatprep.subr.bf16.mxu0 0
      %7014 = vmatpush1.bf16.msra.mxu0 0
      %7015 = vmatprep.subr.bf16.mxu0 0
      %7016 = vmatpush1.bf16.msra.mxu0 0
      %7017 = vmatprep.subr.bf16.mxu0 0
      %7018 = vmatpush1.bf16.msra.mxu0 0
      %7019 = vmatprep.subr.bf16.mxu0 0
      %7020 = vmatpush1.bf16.msra.mxu0 0
      %7021 = vmatprep.subr.bf16.mxu0 0
      %7022 = vmatpush1.bf16.msra.mxu0 0
      %7023 = vmatprep.subr.bf16.mxu0 0
      %7024 = vmatpush1.bf16.msra.mxu0 0
      %7025 = vmatprep.mubr.bf16.mxu0 0
      %7026 = vmatmul.mubr.bf16.gmra.mrb[0].mxu0 %v6966
      %v7027 = vpop.f32.mrb[0].mxu0
      %v7028 = vadd.f32 0.0, %v7027
      %v7029 = vpop.f32.mrb[0].mxu0
      %v7030 = vpop.f32.mrb[0].mxu0
      %v7031 = vadd.f32 0.0, %v7030
      %v7032 = vpop.f32.mrb[0].mxu0
      %7033 = vmatprep.mubr.bf16.mxu0 0
      %7034 = vmatmul.mubr.bf16.gmra.mrb[0].mxu0 %v6969
      %v7035 = vpop.f32.mrb[0].mxu0
      %v7036 = vadd.f32 0.0, %v7035
      %v7037 = vpop.f32.mrb[0].mxu0
      %v7038 = vpop.f32.mrb[0].mxu0
      %v7039 = vadd.f32 0.0, %v7038
      %v7040 = vpop.f32.mrb[0].mxu0
      %7041 = vmatprep.mubr.bf16.mxu0 0
      %7042 = vmatmul.mubr.bf16.gmra.mrb[0].mxu0 %v6972
      %v7043 = vpop.f32.mrb[0].mxu0
      %v7044 = vadd.f32 0.0, %v7043
      %v7045 = vpop.f32.mrb[0].mxu0
      %v7046 = vpop.f32.mrb[0].mxu0
      %v7047 = vadd.f32 0.0, %v7046
      %v7048 = vpop.f32.mrb[0].mxu0
      %7049 = vmatprep.mubr.bf16.mxu0 0
      %7050 = vmatmul.mubr.bf16.gmra.mrb[0].mxu0 %v6975
      %v7051 = vpop.f32.mrb[0].mxu0
      %v7052 = vadd.f32 0.0, %v7051
      %v7053 = vpop.f32.mrb[0].mxu0
      %v7054 = vpop.f32.mrb[0].mxu0
      %v7055 = vadd.f32 0.0, %v7054
      %v7056 = vpop.f32.mrb[0].mxu0
      %7057 = vmatprep.mubr.bf16.mxu0 0
      %7058 = vmatmul.mubr.bf16.gmra.mrb[0].mxu0 %v6978
      %v7059 = vpop.f32.mrb[0].mxu0
      %v7060 = vadd.f32 0.0, %v7059
      %v7061 = vpop.f32.mrb[0].mxu0
      %v7062 = vpop.f32.mrb[0].mxu0
      %v7063 = vadd.f32 0.0, %v7062
      %v7064 = vpop.f32.mrb[0].mxu0
      %7065 = vmatprep.mubr.bf16.mxu0 0
      %7066 = vmatmul.mubr.bf16.gmra.mrb[0].mxu0 %v6981
      %v7067 = vpop.f32.mrb[0].mxu0
      %v7068 = vadd.f32 0.0, %v7067
      %v7069 = vpop.f32.mrb[0].mxu0
      %v7070 = vpop.f32.mrb[0].mxu0
      %v7071 = vadd.f32 0.0, %v7070
      %v7072 = vpop.f32.mrb[0].mxu0
      %7073 = vmatprep.mubr.bf16.mxu0 0
      %7074 = vmatmul.mubr.bf16.gmra.mrb[0].mxu0 %v6984
      %v7075 = vpop.f32.mrb[0].mxu0
      %v7076 = vadd.f32 0.0, %v7075
      %v7077 = vpop.f32.mrb[0].mxu0
      %v7078 = vpop.f32.mrb[0].mxu0
      %v7079 = vadd.f32 0.0, %v7078
      %v7080 = vpop.f32.mrb[0].mxu0
      %7081 = vmatprep.mubr.bf16.mxu0 0
      %7082 = vmatmul.mubr.bf16.gmra.mrb[0].mxu0 %v6987
      %v7083 = vpop.f32.mrb[0].mxu0
      %v7084 = vadd.f32 0.0, %v7083
      %v7085 = vpop.f32.mrb[0].mxu0
      %v7086 = vpop.f32.mrb[0].mxu0
      %v7087 = vadd.f32 0.0, %v7086
      %v7088 = vpop.f32.mrb[0].mxu0
      %7089 = vdwg.mxu0
      %v7090 = vadd.f32 %v6891, %v7028
      %v7091 = vadd.f32 %v6892, %v7031
      %v7092 = vadd.f32 %v6893, %v7036
      %v7093 = vadd.f32 %v6894, %v7039
      %v7094 = vadd.f32 %v6895, %v7044
      %v7095 = vadd.f32 %v6896, %v7047
      %v7096 = vadd.f32 %v6897, %v7052
      %v7097 = vadd.f32 %v6898, %v7055
      %v7098 = vadd.f32 %v6899, %v7060
      %v7099 = vadd.f32 %v6900, %v7063
      %v7100 = vadd.f32 %v6901, %v7068
      %v7101 = vadd.f32 %v6902, %v7071
      %v7102 = vadd.f32 %v6903, %v7076
      %v7103 = vadd.f32 %v6904, %v7079
      %v7104 = vadd.f32 %v6905, %v7084
      %v7105 = vadd.f32 %v6906, %v7087
      %v7106 = vld [vmem:[#allocation3] sm:$0xf]
      %v7107 = vld [vmem:[#allocation3 + $0x4] sm:$0xf]
      %v7108 = vld [vmem:[#allocation3 + $0x8] sm:$0x1]
      %v7109 = vld [vmem:[#allocation3 + $0xc] sm:$0xf]
      %v7110 = vld [vmem:[#allocation3 + $0x10] sm:$0xf]
      %v7111 = vld [vmem:[#allocation3 + $0x14] sm:$0x1]
      %v7112 = vld [vmem:[#allocation3 + $0x18] sm:$0xf]
      %v7113 = vld [vmem:[#allocation3 + $0x1c] sm:$0xf]
      %v7114 = vld [vmem:[#allocation3 + $0x20] sm:$0x1]
      %v7115 = vld [vmem:[#allocation3 + $0x24] sm:$0xf]
      %v7116 = vld [vmem:[#allocation3 + $0x28] sm:$0xf]
      %v7117 = vld [vmem:[#allocation3 + $0x2c] sm:$0x1]
      %v7118 = vld [vmem:[#allocation3 + $0x30] sm:$0xf]
      %v7119 = vld [vmem:[#allocation3 + $0x34] sm:$0xf]
      %v7120 = vld [vmem:[#allocation3 + $0x38] sm:$0x1]
      %v7121 = vld [vmem:[#allocation3 + $0x3c] sm:$0xf]
      %v7122 = vld [vmem:[#allocation3 + $0x40] sm:$0xf]
      %v7123 = vld [vmem:[#allocation3 + $0x44] sm:$0x1]
      %v7124 = vld [vmem:[#allocation3 + $0x48] sm:$0xf]
      %v7125 = vld [vmem:[#allocation3 + $0x4c] sm:$0xf]
      %v7126 = vld [vmem:[#allocation3 + $0x50] sm:$0x1]
      %v7127 = vld [vmem:[#allocation3 + $0x54] sm:$0xf]
      %v7128 = vld [vmem:[#allocation3 + $0x58] sm:$0xf]
      %v7129 = vld [vmem:[#allocation3 + $0x5c] sm:$0x1]
      %v7131 = vshrl.u32 %v7106, 16
      %v7133 = vrot.slane %v7131, 4
      %v7134 = vshll.u32 %v7106, 16
      %v7136 = vrot.slane %v7134, 5
      %v7137 = vor.u32 %v7133, %v7136
      %v7138 = vrot.slane %v7137, 4
      %v7140 = vshll.u32 %v7107, 16
      %v7142 = vrot.slane %v7140, 5
      %v7143 = vsel %vm1463, %v7138, %v7142
      %v7144 = vshrl.u32 %v7107, 16
      %v7146 = vrot.slane %v7144, 4
      %v7147 = vor.u32 %v7146, %v7142
      %v7148 = vrot.slane %v7147, 4
      %v7150 = vshll.u32 %v7108, 16
      %v7152 = vrot.slane %v7150, 5
      %v7153 = vsel %vm1463, %v7148, %v7152
      %v7155 = vshrl.u32 %v7109, 16
      %v7157 = vrot.slane %v7155, 4
      %v7158 = vshll.u32 %v7109, 16
      %v7160 = vrot.slane %v7158, 5
      %v7161 = vor.u32 %v7157, %v7160
      %v7162 = vrot.slane %v7161, 4
      %v7164 = vshll.u32 %v7110, 16
      %v7166 = vrot.slane %v7164, 5
      %v7167 = vsel %vm1463, %v7162, %v7166
      %v7168 = vshrl.u32 %v7110, 16
      %v7170 = vrot.slane %v7168, 4
      %v7171 = vor.u32 %v7170, %v7166
      %v7172 = vrot.slane %v7171, 4
      %v7174 = vshll.u32 %v7111, 16
      %v7176 = vrot.slane %v7174, 5
      %v7177 = vsel %vm1463, %v7172, %v7176
      %v7179 = vshrl.u32 %v7112, 16
      %v7181 = vrot.slane %v7179, 4
      %v7182 = vshll.u32 %v7112, 16
      %v7184 = vrot.slane %v7182, 5
      %v7185 = vor.u32 %v7181, %v7184
      %v7186 = vrot.slane %v7185, 4
      %v7188 = vshll.u32 %v7113, 16
      %v7190 = vrot.slane %v7188, 5
      %v7191 = vsel %vm1463, %v7186, %v7190
      %v7192 = vshrl.u32 %v7113, 16
      %v7194 = vrot.slane %v7192, 4
      %v7195 = vor.u32 %v7194, %v7190
      %v7196 = vrot.slane %v7195, 4
      %v7198 = vshll.u32 %v7114, 16
      %v7200 = vrot.slane %v7198, 5
      %v7201 = vsel %vm1463, %v7196, %v7200
      %v7203 = vshrl.u32 %v7115, 16
      %v7205 = vrot.slane %v7203, 4
      %v7206 = vshll.u32 %v7115, 16
      %v7208 = vrot.slane %v7206, 5
      %v7209 = vor.u32 %v7205, %v7208
      %v7210 = vrot.slane %v7209, 4
      %v7212 = vshll.u32 %v7116, 16
      %v7214 = vrot.slane %v7212, 5
      %v7215 = vsel %vm1463, %v7210, %v7214
      %v7216 = vshrl.u32 %v7116, 16
      %v7218 = vrot.slane %v7216, 4
      %v7219 = vor.u32 %v7218, %v7214
      %v7220 = vrot.slane %v7219, 4
      %v7222 = vshll.u32 %v7117, 16
      %v7224 = vrot.slane %v7222, 5
      %v7225 = vsel %vm1463, %v7220, %v7224
      %v7227 = vshrl.u32 %v7118, 16
      %v7229 = vrot.slane %v7227, 4
      %v7230 = vshll.u32 %v7118, 16
      %v7232 = vrot.slane %v7230, 5
      %v7233 = vor.u32 %v7229, %v7232
      %v7234 = vrot.slane %v7233, 4
      %v7236 = vshll.u32 %v7119, 16
      %v7238 = vrot.slane %v7236, 5
      %v7239 = vsel %vm1463, %v7234, %v7238
      %v7240 = vshrl.u32 %v7119, 16
      %v7242 = vrot.slane %v7240, 4
      %v7243 = vor.u32 %v7242, %v7238
      %v7244 = vrot.slane %v7243, 4
      %v7246 = vshll.u32 %v7120, 16
      %v7248 = vrot.slane %v7246, 5
      %v7249 = vsel %vm1463, %v7244, %v7248
      %v7251 = vshrl.u32 %v7121, 16
      %v7253 = vrot.slane %v7251, 4
      %v7254 = vshll.u32 %v7121, 16
      %v7256 = vrot.slane %v7254, 5
      %v7257 = vor.u32 %v7253, %v7256
      %v7258 = vrot.slane %v7257, 4
      %v7260 = vshll.u32 %v7122, 16
      %v7262 = vrot.slane %v7260, 5
      %v7263 = vsel %vm1463, %v7258, %v7262
      %v7264 = vshrl.u32 %v7122, 16
      %v7266 = vrot.slane %v7264, 4
      %v7267 = vor.u32 %v7266, %v7262
      %v7268 = vrot.slane %v7267, 4
      %v7270 = vshll.u32 %v7123, 16
      %v7272 = vrot.slane %v7270, 5
      %v7273 = vsel %vm1463, %v7268, %v7272
      %v7275 = vshrl.u32 %v7124, 16
      %v7277 = vrot.slane %v7275, 4
      %v7278 = vshll.u32 %v7124, 16
      %v7280 = vrot.slane %v7278, 5
      %v7281 = vor.u32 %v7277, %v7280
      %v7282 = vrot.slane %v7281, 4
      %v7284 = vshll.u32 %v7125, 16
      %v7286 = vrot.slane %v7284, 5
      %v7287 = vsel %vm1463, %v7282, %v7286
      %v7288 = vshrl.u32 %v7125, 16
      %v7290 = vrot.slane %v7288, 4
      %v7291 = vor.u32 %v7290, %v7286
      %v7292 = vrot.slane %v7291, 4
      %v7294 = vshll.u32 %v7126, 16
      %v7296 = vrot.slane %v7294, 5
      %v7297 = vsel %vm1463, %v7292, %v7296
      %v7299 = vshrl.u32 %v7127, 16
      %v7301 = vrot.slane %v7299, 4
      %v7302 = vshll.u32 %v7127, 16
      %v7304 = vrot.slane %v7302, 5
      %v7305 = vor.u32 %v7301, %v7304
      %v7306 = vrot.slane %v7305, 4
      %v7308 = vshll.u32 %v7128, 16
      %v7310 = vrot.slane %v7308, 5
      %v7311 = vsel %vm1463, %v7306, %v7310
      %v7312 = vshrl.u32 %v7128, 16
      %v7314 = vrot.slane %v7312, 4
      %v7315 = vor.u32 %v7314, %v7310
      %v7316 = vrot.slane %v7315, 4
      %v7318 = vshll.u32 %v7129, 16
      %v7320 = vrot.slane %v7318, 5
      %v7321 = vsel %vm1463, %v7316, %v7320
      %s7322 = scalar_lea.vmem %s3, 4
      %v7323 = vld [vmem:[%s7322] sm:$0xf]
      %v7324 = vunpack.c.l.b16 %v7143
      %v7325 = vunpack.c.l.b16 %v7153
      %v7326 = vunpack.c.l.b16 %v7167
      %v7327 = vunpack.c.l.b16 %v7177
      %v7328 = vunpack.c.l.b16 %v7191
      %v7329 = vunpack.c.l.b16 %v7201
      %v7330 = vunpack.c.l.b16 %v7215
      %v7331 = vunpack.c.l.b16 %v7225
      %v7332 = vunpack.c.l.b16 %v7239
      %v7333 = vunpack.c.l.b16 %v7249
      %v7334 = vunpack.c.l.b16 %v7263
      %v7335 = vunpack.c.l.b16 %v7273
      %v7336 = vunpack.c.l.b16 %v7287
      %v7337 = vunpack.c.l.b16 %v7297
      %v7338 = vunpack.c.l.b16 %v7311
      %v7339 = vunpack.c.l.b16 %v7321
      %v7340 = vpack.c.b16 %v7325, %v7324
      %v7341 = vpack.c.b16 %v7327, %v7326
      %v7342 = vpack.c.b16 %v7329, %v7328
      %v7343 = vpack.c.b16 %v7331, %v7330
      %v7344 = vpack.c.b16 %v7333, %v7332
      %v7345 = vpack.c.b16 %v7335, %v7334
      %v7346 = vpack.c.b16 %v7337, %v7336
      %v7347 = vpack.c.b16 %v7339, %v7338
      %v7349 = vsel %vm6964, %v7340, 0
      %v7352 = vsel %vm6964, %v7341, 0
      %v7355 = vsel %vm6964, %v7342, 0
      %v7358 = vsel %vm6964, %v7343, 0
      %v7361 = vsel %vm6964, %v7344, 0
      %v7364 = vsel %vm6964, %v7345, 0
      %v7367 = vsel %vm6964, %v7346, 0
      %v7370 = vsel %vm6964, %v7347, 0
      %v7373 = vsel %vm6989, %v7323, 0
      %7375 = vmatprep.subr.bf16.mxu0 0
      %7376 = vmatpush1.bf16.msra.mxu0 %v7373
      %7377 = vmatprep.subr.bf16.mxu0 0
      %7378 = vmatpush1.bf16.msra.mxu0 0
      %7379 = vmatprep.subr.bf16.mxu0 0
      %7380 = vmatpush1.bf16.msra.mxu0 0
      %7381 = vmatprep.subr.bf16.mxu0 0
      %7382 = vmatpush1.bf16.msra.mxu0 0
      %7383 = vmatprep.subr.bf16.mxu0 0
      %7384 = vmatpush1.bf16.msra.mxu0 0
      %7385 = vmatprep.subr.bf16.mxu0 0
      %7386 = vmatpush1.bf16.msra.mxu0 0
      %7387 = vmatprep.subr.bf16.mxu0 0
      %7388 = vmatpush1.bf16.msra.mxu0 0
      %7389 = vmatprep.subr.bf16.mxu0 0
      %7390 = vmatpush1.bf16.msra.mxu0 0
      %7391 = vmatprep.subr.bf16.mxu0 0
      %7392 = vmatpush1.bf16.msra.mxu0 0
      %7393 = vmatprep.subr.bf16.mxu0 0
      %7394 = vmatpush1.bf16.msra.mxu0 0
      %7395 = vmatprep.subr.bf16.mxu0 0
      %7396 = vmatpush1.bf16.msra.mxu0 0
      %7397 = vmatprep.subr.bf16.mxu0 0
      %7398 = vmatpush1.bf16.msra.mxu0 0
      %7399 = vmatprep.subr.bf16.mxu0 0
      %7400 = vmatpush1.bf16.msra.mxu0 0
      %7401 = vmatprep.subr.bf16.mxu0 0
      %7402 = vmatpush1.bf16.msra.mxu0 0
      %7403 = vmatprep.subr.bf16.mxu0 0
      %7404 = vmatpush1.bf16.msra.mxu0 0
      %7405 = vmatprep.subr.bf16.mxu0 0
      %7406 = vmatpush1.bf16.msra.mxu0 0
      %7407 = vmatprep.mubr.bf16.mxu0 0
      %7408 = vmatmul.mubr.bf16.gmra.mrb[0].mxu0 %v7349
      %v7409 = vpop.f32.mrb[0].mxu0
      %v7410 = vadd.f32 0.0, %v7409
      %v7411 = vpop.f32.mrb[0].mxu0
      %v7412 = vpop.f32.mrb[0].mxu0
      %v7413 = vadd.f32 0.0, %v7412
      %v7414 = vpop.f32.mrb[0].mxu0
      %7415 = vmatprep.mubr.bf16.mxu0 0
      %7416 = vmatmul.mubr.bf16.gmra.mrb[0].mxu0 %v7352
      %v7417 = vpop.f32.mrb[0].mxu0
      %v7418 = vadd.f32 0.0, %v7417
      %v7419 = vpop.f32.mrb[0].mxu0
      %v7420 = vpop.f32.mrb[0].mxu0
      %v7421 = vadd.f32 0.0, %v7420
      %v7422 = vpop.f32.mrb[0].mxu0
      %7423 = vmatprep.mubr.bf16.mxu0 0
      %7424 = vmatmul.mubr.bf16.gmra.mrb[0].mxu0 %v7355
      %v7425 = vpop.f32.mrb[0].mxu0
      %v7426 = vadd.f32 0.0, %v7425
      %v7427 = vpop.f32.mrb[0].mxu0
      %v7428 = vpop.f32.mrb[0].mxu0
      %v7429 = vadd.f32 0.0, %v7428
      %v7430 = vpop.f32.mrb[0].mxu0
      %7431 = vmatprep.mubr.bf16.mxu0 0
      %7432 = vmatmul.mubr.bf16.gmra.mrb[0].mxu0 %v7358
      %v7433 = vpop.f32.mrb[0].mxu0
      %v7434 = vadd.f32 0.0, %v7433
      %v7435 = vpop.f32.mrb[0].mxu0
      %v7436 = vpop.f32.mrb[0].mxu0
      %v7437 = vadd.f32 0.0, %v7436
      %v7438 = vpop.f32.mrb[0].mxu0
      %7439 = vmatprep.mubr.bf16.mxu0 0
      %7440 = vmatmul.mubr.bf16.gmra.mrb[0].mxu0 %v7361
      %v7441 = vpop.f32.mrb[0].mxu0
      %v7442 = vadd.f32 0.0, %v7441
      %v7443 = vpop.f32.mrb[0].mxu0
      %v7444 = vpop.f32.mrb[0].mxu0
      %v7445 = vadd.f32 0.0, %v7444
      %v7446 = vpop.f32.mrb[0].mxu0
      %7447 = vmatprep.mubr.bf16.mxu0 0
      %7448 = vmatmul.mubr.bf16.gmra.mrb[0].mxu0 %v7364
      %v7449 = vpop.f32.mrb[0].mxu0
      %v7450 = vadd.f32 0.0, %v7449
      %v7451 = vpop.f32.mrb[0].mxu0
      %v7452 = vpop.f32.mrb[0].mxu0
      %v7453 = vadd.f32 0.0, %v7452
      %v7454 = vpop.f32.mrb[0].mxu0
      %7455 = vmatprep.mubr.bf16.mxu0 0
      %7456 = vmatmul.mubr.bf16.gmra.mrb[0].mxu0 %v7367
      %v7457 = vpop.f32.mrb[0].mxu0
      %v7458 = vadd.f32 0.0, %v7457
      %v7459 = vpop.f32.mrb[0].mxu0
      %v7460 = vpop.f32.mrb[0].mxu0
      %v7461 = vadd.f32 0.0, %v7460
      %v7462 = vpop.f32.mrb[0].mxu0
      %7463 = vmatprep.mubr.bf16.mxu0 0
      %7464 = vmatmul.mubr.bf16.gmra.mrb[0].mxu0 %v7370
      %v7465 = vpop.f32.mrb[0].mxu0
      %v7466 = vadd.f32 0.0, %v7465
      %v7467 = vpop.f32.mrb[0].mxu0
      %v7468 = vpop.f32.mrb[0].mxu0
      %v7469 = vadd.f32 0.0, %v7468
      %v7470 = vpop.f32.mrb[0].mxu0
      %7471 = vdwg.mxu0
      %v7472 = vadd.f32 %v7090, %v7410
      %v7473 = vadd.f32 %v7091, %v7413
      %v7474 = vadd.f32 %v7092, %v7418
      %v7475 = vadd.f32 %v7093, %v7421
      %v7476 = vadd.f32 %v7094, %v7426
      %v7477 = vadd.f32 %v7095, %v7429
      %v7478 = vadd.f32 %v7096, %v7434
      %v7479 = vadd.f32 %v7097, %v7437
      %v7480 = vadd.f32 %v7098, %v7442
      %v7481 = vadd.f32 %v7099, %v7445
      %v7482 = vadd.f32 %v7100, %v7450
      %v7483 = vadd.f32 %v7101, %v7453
      %v7484 = vadd.f32 %v7102, %v7458
      %v7485 = vadd.f32 %v7103, %v7461
      %v7486 = vadd.f32 %v7104, %v7466
      %v7487 = vadd.f32 %v7105, %v7469
      %v7488 = vld [vmem:[#allocation3] sm:$0xe]
      %v7489 = vld [vmem:[#allocation3 + $0xc] sm:$0xe]
      %v7490 = vld [vmem:[#allocation3 + $0x18] sm:$0xe]
      %v7491 = vld [vmem:[#allocation3 + $0x24] sm:$0xe]
      %v7492 = vld [vmem:[#allocation3 + $0x30] sm:$0xe]
      %v7493 = vld [vmem:[#allocation3 + $0x3c] sm:$0xe]
      %v7494 = vld [vmem:[#allocation3 + $0x48] sm:$0xe]
      %v7495 = vld [vmem:[#allocation3 + $0x54] sm:$0xe]
      %v7520 = vrot.slane %v7488, 5
      %v7521 = vrot.slane %v7520, 4
      %v7522 = vrot.slane %v7107, 5
      %v7523 = vsel %vm1856, %v7521, %v7522
      %v7524 = vrot.slane %v7522, 4
      %v7525 = vrot.slane %v7108, 5
      %v7526 = vsel %vm1856, %v7524, %v7525
      %v7527 = vrot.slane %v7489, 5
      %v7528 = vrot.slane %v7527, 4
      %v7529 = vrot.slane %v7110, 5
      %v7530 = vsel %vm1856, %v7528, %v7529
      %v7531 = vrot.slane %v7529, 4
      %v7532 = vrot.slane %v7111, 5
      %v7533 = vsel %vm1856, %v7531, %v7532
      %v7534 = vrot.slane %v7490, 5
      %v7535 = vrot.slane %v7534, 4
      %v7536 = vrot.slane %v7113, 5
      %v7537 = vsel %vm1856, %v7535, %v7536
      %v7538 = vrot.slane %v7536, 4
      %v7539 = vrot.slane %v7114, 5
      %v7540 = vsel %vm1856, %v7538, %v7539
      %v7541 = vrot.slane %v7491, 5
      %v7542 = vrot.slane %v7541, 4
      %v7543 = vrot.slane %v7116, 5
      %v7544 = vsel %vm1856, %v7542, %v7543
      %v7545 = vrot.slane %v7543, 4
      %v7546 = vrot.slane %v7117, 5
      %v7547 = vsel %vm1856, %v7545, %v7546
      %v7548 = vrot.slane %v7492, 5
      %v7549 = vrot.slane %v7548, 4
      %v7550 = vrot.slane %v7119, 5
      %v7551 = vsel %vm1856, %v7549, %v7550
      %v7552 = vrot.slane %v7550, 4
      %v7553 = vrot.slane %v7120, 5
      %v7554 = vsel %vm1856, %v7552, %v7553
      %v7555 = vrot.slane %v7493, 5
      %v7556 = vrot.slane %v7555, 4
      %v7557 = vrot.slane %v7122, 5
      %v7558 = vsel %vm1856, %v7556, %v7557
      %v7559 = vrot.slane %v7557, 4
      %v7560 = vrot.slane %v7123, 5
      %v7561 = vsel %vm1856, %v7559, %v7560
      %v7562 = vrot.slane %v7494, 5
      %v7563 = vrot.slane %v7562, 4
      %v7564 = vrot.slane %v7125, 5
      %v7565 = vsel %vm1856, %v7563, %v7564
      %v7566 = vrot.slane %v7564, 4
      %v7567 = vrot.slane %v7126, 5
      %v7568 = vsel %vm1856, %v7566, %v7567
      %v7569 = vrot.slane %v7495, 5
      %v7570 = vrot.slane %v7569, 4
      %v7571 = vrot.slane %v7128, 5
      %v7572 = vsel %vm1856, %v7570, %v7571
      %v7573 = vrot.slane %v7571, 4
      %v7574 = vrot.slane %v7129, 5
      %v7575 = vsel %vm1856, %v7573, %v7574
      %s7576 = scalar_lea.vmem %s3, 8
      %v7577 = vld [vmem:[%s7576] sm:$0xf]
      %v7578 = vunpack.c.l.b16 %v7523
      %v7579 = vunpack.c.l.b16 %v7526
      %v7580 = vunpack.c.l.b16 %v7530
      %v7581 = vunpack.c.l.b16 %v7533
      %v7582 = vunpack.c.l.b16 %v7537
      %v7583 = vunpack.c.l.b16 %v7540
      %v7584 = vunpack.c.l.b16 %v7544
      %v7585 = vunpack.c.l.b16 %v7547
      %v7586 = vunpack.c.l.b16 %v7551
      %v7587 = vunpack.c.l.b16 %v7554
      %v7588 = vunpack.c.l.b16 %v7558
      %v7589 = vunpack.c.l.b16 %v7561
      %v7590 = vunpack.c.l.b16 %v7565
      %v7591 = vunpack.c.l.b16 %v7568
      %v7592 = vunpack.c.l.b16 %v7572
      %v7593 = vunpack.c.l.b16 %v7575
      %v7594 = vpack.c.b16 %v7579, %v7578
      %v7595 = vpack.c.b16 %v7581, %v7580
      %v7596 = vpack.c.b16 %v7583, %v7582
      %v7597 = vpack.c.b16 %v7585, %v7584
      %v7598 = vpack.c.b16 %v7587, %v7586
      %v7599 = vpack.c.b16 %v7589, %v7588
      %v7600 = vpack.c.b16 %v7591, %v7590
      %v7601 = vpack.c.b16 %v7593, %v7592
      %v7603 = vsel %vm6964, %v7594, 0
      %v7606 = vsel %vm6964, %v7595, 0
      %v7609 = vsel %vm6964, %v7596, 0
      %v7612 = vsel %vm6964, %v7597, 0
      %v7615 = vsel %vm6964, %v7598, 0
      %v7618 = vsel %vm6964, %v7599, 0
      %v7621 = vsel %vm6964, %v7600, 0
      %v7624 = vsel %vm6964, %v7601, 0
      %v7627 = vsel %vm6989, %v7577, 0
      %7629 = vmatprep.subr.bf16.mxu0 0
      %7630 = vmatpush1.bf16.msra.mxu0 %v7627
      %7631 = vmatprep.subr.bf16.mxu0 0
      %7632 = vmatpush1.bf16.msra.mxu0 0
      %7633 = vmatprep.subr.bf16.mxu0 0
      %7634 = vmatpush1.bf16.msra.mxu0 0
      %7635 = vmatprep.subr.bf16.mxu0 0
      %7636 = vmatpush1.bf16.msra.mxu0 0
      %7637 = vmatprep.subr.bf16.mxu0 0
      %7638 = vmatpush1.bf16.msra.mxu0 0
      %7639 = vmatprep.subr.bf16.mxu0 0
      %7640 = vmatpush1.bf16.msra.mxu0 0
      %7641 = vmatprep.subr.bf16.mxu0 0
      %7642 = vmatpush1.bf16.msra.mxu0 0
      %7643 = vmatprep.subr.bf16.mxu0 0
      %7644 = vmatpush1.bf16.msra.mxu0 0
      %7645 = vmatprep.subr.bf16.mxu0 0
      %7646 = vmatpush1.bf16.msra.mxu0 0
      %7647 = vmatprep.subr.bf16.mxu0 0
      %7648 = vmatpush1.bf16.msra.mxu0 0
      %7649 = vmatprep.subr.bf16.mxu0 0
      %7650 = vmatpush1.bf16.msra.mxu0 0
      %7651 = vmatprep.subr.bf16.mxu0 0
      %7652 = vmatpush1.bf16.msra.mxu0 0
      %7653 = vmatprep.subr.bf16.mxu0 0
      %7654 = vmatpush1.bf16.msra.mxu0 0
      %7655 = vmatprep.subr.bf16.mxu0 0
      %7656 = vmatpush1.bf16.msra.mxu0 0
      %7657 = vmatprep.subr.bf16.mxu0 0
      %7658 = vmatpush1.bf16.msra.mxu0 0
      %7659 = vmatprep.subr.bf16.mxu0 0
      %7660 = vmatpush1.bf16.msra.mxu0 0
      %7661 = vmatprep.mubr.bf16.mxu0 0
      %7662 = vmatmul.mubr.bf16.gmra.mrb[0].mxu0 %v7603
      %v7663 = vpop.f32.mrb[0].mxu0
      %v7664 = vadd.f32 0.0, %v7663
      %v7665 = vpop.f32.mrb[0].mxu0
      %v7666 = vpop.f32.mrb[0].mxu0
      %v7667 = vadd.f32 0.0, %v7666
      %v7668 = vpop.f32.mrb[0].mxu0
      %7669 = vmatprep.mubr.bf16.mxu0 0
      %7670 = vmatmul.mubr.bf16.gmra.mrb[0].mxu0 %v7606
      %v7671 = vpop.f32.mrb[0].mxu0
      %v7672 = vadd.f32 0.0, %v7671
      %v7673 = vpop.f32.mrb[0].mxu0
      %v7674 = vpop.f32.mrb[0].mxu0
      %v7675 = vadd.f32 0.0, %v7674
      %v7676 = vpop.f32.mrb[0].mxu0
      %7677 = vmatprep.mubr.bf16.mxu0 0
      %7678 = vmatmul.mubr.bf16.gmra.mrb[0].mxu0 %v7609
      %v7679 = vpop.f32.mrb[0].mxu0
      %v7680 = vadd.f32 0.0, %v7679
      %v7681 = vpop.f32.mrb[0].mxu0
      %v7682 = vpop.f32.mrb[0].mxu0
      %v7683 = vadd.f32 0.0, %v7682
      %v7684 = vpop.f32.mrb[0].mxu0
      %7685 = vmatprep.mubr.bf16.mxu0 0
      %7686 = vmatmul.mubr.bf16.gmra.mrb[0].mxu0 %v7612
      %v7687 = vpop.f32.mrb[0].mxu0
      %v7688 = vadd.f32 0.0, %v7687
      %v7689 = vpop.f32.mrb[0].mxu0
      %v7690 = vpop.f32.mrb[0].mxu0
      %v7691 = vadd.f32 0.0, %v7690
      %v7692 = vpop.f32.mrb[0].mxu0
      %7693 = vmatprep.mubr.bf16.mxu0 0
      %7694 = vmatmul.mubr.bf16.gmra.mrb[0].mxu0 %v7615
      %v7695 = vpop.f32.mrb[0].mxu0
      %v7696 = vadd.f32 0.0, %v7695
      %v7697 = vpop.f32.mrb[0].mxu0
      %v7698 = vpop.f32.mrb[0].mxu0
      %v7699 = vadd.f32 0.0, %v7698
      %v7700 = vpop.f32.mrb[0].mxu0
      %7701 = vmatprep.mubr.bf16.mxu0 0
      %7702 = vmatmul.mubr.bf16.gmra.mrb[0].mxu0 %v7618
      %v7703 = vpop.f32.mrb[0].mxu0
      %v7704 = vadd.f32 0.0, %v7703
      %v7705 = vpop.f32.mrb[0].mxu0
      %v7706 = vpop.f32.mrb[0].mxu0
      %v7707 = vadd.f32 0.0, %v7706
      %v7708 = vpop.f32.mrb[0].mxu0
      %7709 = vmatprep.mubr.bf16.mxu0 0
      %7710 = vmatmul.mubr.bf16.gmra.mrb[0].mxu0 %v7621
      %v7711 = vpop.f32.mrb[0].mxu0
      %v7712 = vadd.f32 0.0, %v7711
      %v7713 = vpop.f32.mrb[0].mxu0
      %v7714 = vpop.f32.mrb[0].mxu0
      %v7715 = vadd.f32 0.0, %v7714
      %v7716 = vpop.f32.mrb[0].mxu0
      %7717 = vmatprep.mubr.bf16.mxu0 0
      %7718 = vmatmul.mubr.bf16.gmra.mrb[0].mxu0 %v7624
      %v7719 = vpop.f32.mrb[0].mxu0
      %v7720 = vadd.f32 0.0, %v7719
      %v7721 = vpop.f32.mrb[0].mxu0
      %v7722 = vpop.f32.mrb[0].mxu0
      %v7723 = vadd.f32 0.0, %v7722
      %v7724 = vpop.f32.mrb[0].mxu0
      %7725 = vdwg.mxu0
      %v7726 = vadd.f32 %v7472, %v7664
      %v7727 = vadd.f32 %v7473, %v7667
      %v7728 = vadd.f32 %v7474, %v7672
      %v7729 = vadd.f32 %v7475, %v7675
      %v7730 = vadd.f32 %v7476, %v7680
      %v7731 = vadd.f32 %v7477, %v7683
      %v7732 = vadd.f32 %v7478, %v7688
      %v7733 = vadd.f32 %v7479, %v7691
      %v7734 = vadd.f32 %v7480, %v7696
      %v7735 = vadd.f32 %v7481, %v7699
      %v7736 = vadd.f32 %v7482, %v7704
      %v7737 = vadd.f32 %v7483, %v7707
      %v7738 = vadd.f32 %v7484, %v7712
      %v7739 = vadd.f32 %v7485, %v7715
      %v7740 = vadd.f32 %v7486, %v7720
      %v7741 = vadd.f32 %v7487, %v7723
      %v7742 = vld [vmem:[%s4004] sm:$0xf]
      %v7743 = vld [vmem:[%s4004 + $0x4] sm:$0xf]
      %v7744 = vld [vmem:[%s4004 + $0xc] sm:$0xf]
      %v7745 = vld [vmem:[%s4004 + $0x10] sm:$0xf]
      %v7746 = vld [vmem:[%s4004 + $0x18] sm:$0xf]
      %v7747 = vld [vmem:[%s4004 + $0x1c] sm:$0xf]
      %v7748 = vld [vmem:[%s4004 + $0x24] sm:$0xf]
      %v7749 = vld [vmem:[%s4004 + $0x28] sm:$0xf]
      %v7750 = vld [vmem:[%s4004 + $0x30] sm:$0xf]
      %v7751 = vld [vmem:[%s4004 + $0x34] sm:$0xf]
      %v7752 = vld [vmem:[%s4004 + $0x3c] sm:$0xf]
      %v7753 = vld [vmem:[%s4004 + $0x40] sm:$0xf]
      %v7754 = vld [vmem:[%s4004 + $0x48] sm:$0xf]
      %v7755 = vld [vmem:[%s4004 + $0x4c] sm:$0xf]
      %v7756 = vld [vmem:[%s4004 + $0x54] sm:$0xf]
      %v7757 = vld [vmem:[%s4004 + $0x58] sm:$0xf]
      %s7758 = scalar_lea.vmem %s3, 12
      %v7759 = vld [vmem:[%s7758] sm:$0xf]
      %v7776 = vunpack.c.l.b16 %v7742
      %v7777 = vunpack.c.l.b16 %v7743
      %v7778 = vunpack.c.l.b16 %v7744
      %v7779 = vunpack.c.l.b16 %v7745
      %v7780 = vunpack.c.l.b16 %v7746
      %v7781 = vunpack.c.l.b16 %v7747
      %v7782 = vunpack.c.l.b16 %v7748
      %v7783 = vunpack.c.l.b16 %v7749
      %v7784 = vunpack.c.l.b16 %v7750
      %v7785 = vunpack.c.l.b16 %v7751
      %v7786 = vunpack.c.l.b16 %v7752
      %v7787 = vunpack.c.l.b16 %v7753
      %v7788 = vunpack.c.l.b16 %v7754
      %v7789 = vunpack.c.l.b16 %v7755
      %v7790 = vunpack.c.l.b16 %v7756
      %v7791 = vunpack.c.l.b16 %v7757
      %v7792 = vpack.c.b16 %v7777, %v7776
      %v7793 = vpack.c.b16 %v7779, %v7778
      %v7794 = vpack.c.b16 %v7781, %v7780
      %v7795 = vpack.c.b16 %v7783, %v7782
      %v7796 = vpack.c.b16 %v7785, %v7784
      %v7797 = vpack.c.b16 %v7787, %v7786
      %v7798 = vpack.c.b16 %v7789, %v7788
      %v7799 = vpack.c.b16 %v7791, %v7790
      %v7801 = vsel %vm6964, %v7792, 0
      %v7804 = vsel %vm6964, %v7793, 0
      %v7807 = vsel %vm6964, %v7794, 0
      %v7810 = vsel %vm6964, %v7795, 0
      %v7813 = vsel %vm6964, %v7796, 0
      %v7816 = vsel %vm6964, %v7797, 0
      %v7819 = vsel %vm6964, %v7798, 0
      %v7822 = vsel %vm6964, %v7799, 0
      %v7825 = vsel %vm6989, %v7759, 0
      %7827 = vmatprep.subr.bf16.mxu0 0
      %7828 = vmatpush1.bf16.msra.mxu0 %v7825
      %7829 = vmatprep.subr.bf16.mxu0 0
      %7830 = vmatpush1.bf16.msra.mxu0 0
      %7831 = vmatprep.subr.bf16.mxu0 0
      %7832 = vmatpush1.bf16.msra.mxu0 0
      %7833 = vmatprep.subr.bf16.mxu0 0
      %7834 = vmatpush1.bf16.msra.mxu0 0
      %7835 = vmatprep.subr.bf16.mxu0 0
      %7836 = vmatpush1.bf16.msra.mxu0 0
      %7837 = vmatprep.subr.bf16.mxu0 0
      %7838 = vmatpush1.bf16.msra.mxu0 0
      %7839 = vmatprep.subr.bf16.mxu0 0
      %7840 = vmatpush1.bf16.msra.mxu0 0
      %7841 = vmatprep.subr.bf16.mxu0 0
      %7842 = vmatpush1.bf16.msra.mxu0 0
      %7843 = vmatprep.subr.bf16.mxu0 0
      %7844 = vmatpush1.bf16.msra.mxu0 0
      %7845 = vmatprep.subr.bf16.mxu0 0
      %7846 = vmatpush1.bf16.msra.mxu0 0
      %7847 = vmatprep.subr.bf16.mxu0 0
      %7848 = vmatpush1.bf16.msra.mxu0 0
      %7849 = vmatprep.subr.bf16.mxu0 0
      %7850 = vmatpush1.bf16.msra.mxu0 0
      %7851 = vmatprep.subr.bf16.mxu0 0
      %7852 = vmatpush1.bf16.msra.mxu0 0
      %7853 = vmatprep.subr.bf16.mxu0 0
      %7854 = vmatpush1.bf16.msra.mxu0 0
      %7855 = vmatprep.subr.bf16.mxu0 0
      %7856 = vmatpush1.bf16.msra.mxu0 0
      %7857 = vmatprep.subr.bf16.mxu0 0
      %7858 = vmatpush1.bf16.msra.mxu0 0
      %7859 = vmatprep.mubr.bf16.mxu0 0
      %7860 = vmatmul.mubr.bf16.gmra.mrb[0].mxu0 %v7801
      %v7861 = vpop.f32.mrb[0].mxu0
      %v7862 = vadd.f32 0.0, %v7861
      %v7863 = vpop.f32.mrb[0].mxu0
      %v7864 = vpop.f32.mrb[0].mxu0
      %v7865 = vadd.f32 0.0, %v7864
      %v7866 = vpop.f32.mrb[0].mxu0
      %7867 = vmatprep.mubr.bf16.mxu0 0
      %7868 = vmatmul.mubr.bf16.gmra.mrb[0].mxu0 %v7804
      %v7869 = vpop.f32.mrb[0].mxu0
      %v7870 = vadd.f32 0.0, %v7869
      %v7871 = vpop.f32.mrb[0].mxu0
      %v7872 = vpop.f32.mrb[0].mxu0
      %v7873 = vadd.f32 0.0, %v7872
      %v7874 = vpop.f32.mrb[0].mxu0
      %7875 = vmatprep.mubr.bf16.mxu0 0
      %7876 = vmatmul.mubr.bf16.gmra.mrb[0].mxu0 %v7807
      %v7877 = vpop.f32.mrb[0].mxu0
      %v7878 = vadd.f32 0.0, %v7877
      %v7879 = vpop.f32.mrb[0].mxu0
      %v7880 = vpop.f32.mrb[0].mxu0
      %v7881 = vadd.f32 0.0, %v7880
      %v7882 = vpop.f32.mrb[0].mxu0
      %7883 = vmatprep.mubr.bf16.mxu0 0
      %7884 = vmatmul.mubr.bf16.gmra.mrb[0].mxu0 %v7810
      %v7885 = vpop.f32.mrb[0].mxu0
      %v7886 = vadd.f32 0.0, %v7885
      %v7887 = vpop.f32.mrb[0].mxu0
      %v7888 = vpop.f32.mrb[0].mxu0
      %v7889 = vadd.f32 0.0, %v7888
      %v7890 = vpop.f32.mrb[0].mxu0
      %7891 = vmatprep.mubr.bf16.mxu0 0
      %7892 = vmatmul.mubr.bf16.gmra.mrb[0].mxu0 %v7813
      %v7893 = vpop.f32.mrb[0].mxu0
      %v7894 = vadd.f32 0.0, %v7893
      %v7895 = vpop.f32.mrb[0].mxu0
      %v7896 = vpop.f32.mrb[0].mxu0
      %v7897 = vadd.f32 0.0, %v7896
      %v7898 = vpop.f32.mrb[0].mxu0
      %7899 = vmatprep.mubr.bf16.mxu0 0
      %7900 = vmatmul.mubr.bf16.gmra.mrb[0].mxu0 %v7816
      %v7901 = vpop.f32.mrb[0].mxu0
      %v7902 = vadd.f32 0.0, %v7901
      %v7903 = vpop.f32.mrb[0].mxu0
      %v7904 = vpop.f32.mrb[0].mxu0
      %v7905 = vadd.f32 0.0, %v7904
      %v7906 = vpop.f32.mrb[0].mxu0
      %7907 = vmatprep.mubr.bf16.mxu0 0
      %7908 = vmatmul.mubr.bf16.gmra.mrb[0].mxu0 %v7819
      %v7909 = vpop.f32.mrb[0].mxu0
      %v7910 = vadd.f32 0.0, %v7909
      %v7911 = vpop.f32.mrb[0].mxu0
      %v7912 = vpop.f32.mrb[0].mxu0
      %v7913 = vadd.f32 0.0, %v7912
      %v7914 = vpop.f32.mrb[0].mxu0
      %7915 = vmatprep.mubr.bf16.mxu0 0
      %7916 = vmatmul.mubr.bf16.gmra.mrb[0].mxu0 %v7822
      %v7917 = vpop.f32.mrb[0].mxu0
      %v7918 = vadd.f32 0.0, %v7917
      %v7919 = vpop.f32.mrb[0].mxu0
      %v7920 = vpop.f32.mrb[0].mxu0
      %v7921 = vadd.f32 0.0, %v7920
      %v7922 = vpop.f32.mrb[0].mxu0
      %7923 = vdwg.mxu0
      %v7924 = vadd.f32 %v7726, %v7862
      %v7925 = vadd.f32 %v7727, %v7865
      %v7926 = vadd.f32 %v7728, %v7870
      %v7927 = vadd.f32 %v7729, %v7873
      %v7928 = vadd.f32 %v7730, %v7878
      %v7929 = vadd.f32 %v7731, %v7881
      %v7930 = vadd.f32 %v7732, %v7886
      %v7931 = vadd.f32 %v7733, %v7889
      %v7932 = vadd.f32 %v7734, %v7894
      %v7933 = vadd.f32 %v7735, %v7897
      %v7934 = vadd.f32 %v7736, %v7902
      %v7935 = vadd.f32 %v7737, %v7905
      %v7936 = vadd.f32 %v7738, %v7910
      %v7937 = vadd.f32 %v7739, %v7913
      %v7938 = vadd.f32 %v7740, %v7918
      %v7939 = vadd.f32 %v7741, %v7921
      %v7940 = vld [vmem:[%s4004] sm:$0xf]
      %v7941 = vld [vmem:[%s4004 + $0x4] sm:$0xf]
      %v7942 = vld [vmem:[%s4004 + $0x8] sm:$0x1]
      %v7943 = vld [vmem:[%s4004 + $0xc] sm:$0xf]
      %v7944 = vld [vmem:[%s4004 + $0x10] sm:$0xf]
      %v7945 = vld [vmem:[%s4004 + $0x14] sm:$0x1]
      %v7946 = vld [vmem:[%s4004 + $0x18] sm:$0xf]
      %v7947 = vld [vmem:[%s4004 + $0x1c] sm:$0xf]
      %v7948 = vld [vmem:[%s4004 + $0x20] sm:$0x1]
      %v7949 = vld [vmem:[%s4004 + $0x24] sm:$0xf]
      %v7950 = vld [vmem:[%s4004 + $0x28] sm:$0xf]
      %v7951 = vld [vmem:[%s4004 + $0x2c] sm:$0x1]
      %v7952 = vld [vmem:[%s4004 + $0x30] sm:$0xf]
      %v7953 = vld [vmem:[%s4004 + $0x34] sm:$0xf]
      %v7954 = vld [vmem:[%s4004 + $0x38] sm:$0x1]
      %v7955 = vld [vmem:[%s4004 + $0x3c] sm:$0xf]
      %v7956 = vld [vmem:[%s4004 + $0x40] sm:$0xf]
      %v7957 = vld [vmem:[%s4004 + $0x44] sm:$0x1]
      %v7958 = vld [vmem:[%s4004 + $0x48] sm:$0xf]
      %v7959 = vld [vmem:[%s4004 + $0x4c] sm:$0xf]
      %v7960 = vld [vmem:[%s4004 + $0x50] sm:$0x1]
      %v7961 = vld [vmem:[%s4004 + $0x54] sm:$0xf]
      %v7962 = vld [vmem:[%s4004 + $0x58] sm:$0xf]
      %v7963 = vld [vmem:[%s4004 + $0x5c] sm:$0x1]
      %v7965 = vshrl.u32 %v7940, 16
      %v7967 = vrot.slane %v7965, 4
      %v7968 = vshll.u32 %v7940, 16
      %v7970 = vrot.slane %v7968, 5
      %v7971 = vor.u32 %v7967, %v7970
      %v7972 = vrot.slane %v7971, 4
      %v7974 = vshll.u32 %v7941, 16
      %v7976 = vrot.slane %v7974, 5
      %v7977 = vsel %vm1463, %v7972, %v7976
      %v7978 = vshrl.u32 %v7941, 16
      %v7980 = vrot.slane %v7978, 4
      %v7981 = vor.u32 %v7980, %v7976
      %v7982 = vrot.slane %v7981, 4
      %v7984 = vshll.u32 %v7942, 16
      %v7986 = vrot.slane %v7984, 5
      %v7987 = vsel %vm1463, %v7982, %v7986
      %v7989 = vshrl.u32 %v7943, 16
      %v7991 = vrot.slane %v7989, 4
      %v7992 = vshll.u32 %v7943, 16
      %v7994 = vrot.slane %v7992, 5
      %v7995 = vor.u32 %v7991, %v7994
      %v7996 = vrot.slane %v7995, 4
      %v7998 = vshll.u32 %v7944, 16
      %v8000 = vrot.slane %v7998, 5
      %v8001 = vsel %vm1463, %v7996, %v8000
      %v8002 = vshrl.u32 %v7944, 16
      %v8004 = vrot.slane %v8002, 4
      %v8005 = vor.u32 %v8004, %v8000
      %v8006 = vrot.slane %v8005, 4
      %v8008 = vshll.u32 %v7945, 16
      %v8010 = vrot.slane %v8008, 5
      %v8011 = vsel %vm1463, %v8006, %v8010
      %v8013 = vshrl.u32 %v7946, 16
      %v8015 = vrot.slane %v8013, 4
      %v8016 = vshll.u32 %v7946, 16
      %v8018 = vrot.slane %v8016, 5
      %v8019 = vor.u32 %v8015, %v8018
      %v8020 = vrot.slane %v8019, 4
      %v8022 = vshll.u32 %v7947, 16
      %v8024 = vrot.slane %v8022, 5
      %v8025 = vsel %vm1463, %v8020, %v8024
      %v8026 = vshrl.u32 %v7947, 16
      %v8028 = vrot.slane %v8026, 4
      %v8029 = vor.u32 %v8028, %v8024
      %v8030 = vrot.slane %v8029, 4
      %v8032 = vshll.u32 %v7948, 16
      %v8034 = vrot.slane %v8032, 5
      %v8035 = vsel %vm1463, %v8030, %v8034
      %v8037 = vshrl.u32 %v7949, 16
      %v8039 = vrot.slane %v8037, 4
      %v8040 = vshll.u32 %v7949, 16
      %v8042 = vrot.slane %v8040, 5
      %v8043 = vor.u32 %v8039, %v8042
      %v8044 = vrot.slane %v8043, 4
      %v8046 = vshll.u32 %v7950, 16
      %v8048 = vrot.slane %v8046, 5
      %v8049 = vsel %vm1463, %v8044, %v8048
      %v8050 = vshrl.u32 %v7950, 16
      %v8052 = vrot.slane %v8050, 4
      %v8053 = vor.u32 %v8052, %v8048
      %v8054 = vrot.slane %v8053, 4
      %v8056 = vshll.u32 %v7951, 16
      %v8058 = vrot.slane %v8056, 5
      %v8059 = vsel %vm1463, %v8054, %v8058
      %v8061 = vshrl.u32 %v7952, 16
      %v8063 = vrot.slane %v8061, 4
      %v8064 = vshll.u32 %v7952, 16
      %v8066 = vrot.slane %v8064, 5
      %v8067 = vor.u32 %v8063, %v8066
      %v8068 = vrot.slane %v8067, 4
      %v8070 = vshll.u32 %v7953, 16
      %v8072 = vrot.slane %v8070, 5
      %v8073 = vsel %vm1463, %v8068, %v8072
      %v8074 = vshrl.u32 %v7953, 16
      %v8076 = vrot.slane %v8074, 4
      %v8077 = vor.u32 %v8076, %v8072
      %v8078 = vrot.slane %v8077, 4
      %v8080 = vshll.u32 %v7954, 16
      %v8082 = vrot.slane %v8080, 5
      %v8083 = vsel %vm1463, %v8078, %v8082
      %v8085 = vshrl.u32 %v7955, 16
      %v8087 = vrot.slane %v8085, 4
      %v8088 = vshll.u32 %v7955, 16
      %v8090 = vrot.slane %v8088, 5
      %v8091 = vor.u32 %v8087, %v8090
      %v8092 = vrot.slane %v8091, 4
      %v8094 = vshll.u32 %v7956, 16
      %v8096 = vrot.slane %v8094, 5
      %v8097 = vsel %vm1463, %v8092, %v8096
      %v8098 = vshrl.u32 %v7956, 16
      %v8100 = vrot.slane %v8098, 4
      %v8101 = vor.u32 %v8100, %v8096
      %v8102 = vrot.slane %v8101, 4
      %v8104 = vshll.u32 %v7957, 16
      %v8106 = vrot.slane %v8104, 5
      %v8107 = vsel %vm1463, %v8102, %v8106
      %v8109 = vshrl.u32 %v7958, 16
      %v8111 = vrot.slane %v8109, 4
      %v8112 = vshll.u32 %v7958, 16
      %v8114 = vrot.slane %v8112, 5
      %v8115 = vor.u32 %v8111, %v8114
      %v8116 = vrot.slane %v8115, 4
      %v8118 = vshll.u32 %v7959, 16
      %v8120 = vrot.slane %v8118, 5
      %v8121 = vsel %vm1463, %v8116, %v8120
      %v8122 = vshrl.u32 %v7959, 16
      %v8124 = vrot.slane %v8122, 4
      %v8125 = vor.u32 %v8124, %v8120
      %v8126 = vrot.slane %v8125, 4
      %v8128 = vshll.u32 %v7960, 16
      %v8130 = vrot.slane %v8128, 5
      %v8131 = vsel %vm1463, %v8126, %v8130
      %v8133 = vshrl.u32 %v7961, 16
      %v8135 = vrot.slane %v8133, 4
      %v8136 = vshll.u32 %v7961, 16
      %v8138 = vrot.slane %v8136, 5
      %v8139 = vor.u32 %v8135, %v8138
      %v8140 = vrot.slane %v8139, 4
      %v8142 = vshll.u32 %v7962, 16
      %v8144 = vrot.slane %v8142, 5
      %v8145 = vsel %vm1463, %v8140, %v8144
      %v8146 = vshrl.u32 %v7962, 16
      %v8148 = vrot.slane %v8146, 4
      %v8149 = vor.u32 %v8148, %v8144
      %v8150 = vrot.slane %v8149, 4
      %v8152 = vshll.u32 %v7963, 16
      %v8154 = vrot.slane %v8152, 5
      %v8155 = vsel %vm1463, %v8150, %v8154
      %s8156 = scalar_lea.vmem %s3, 16
      %v8157 = vld [vmem:[%s8156] sm:$0xf]
      %v8158 = vunpack.c.l.b16 %v7977
      %v8159 = vunpack.c.l.b16 %v7987
      %v8160 = vunpack.c.l.b16 %v8001
      %v8161 = vunpack.c.l.b16 %v8011
      %v8162 = vunpack.c.l.b16 %v8025
      %v8163 = vunpack.c.l.b16 %v8035
      %v8164 = vunpack.c.l.b16 %v8049
      %v8165 = vunpack.c.l.b16 %v8059
      %v8166 = vunpack.c.l.b16 %v8073
      %v8167 = vunpack.c.l.b16 %v8083
      %v8168 = vunpack.c.l.b16 %v8097
      %v8169 = vunpack.c.l.b16 %v8107
      %v8170 = vunpack.c.l.b16 %v8121
      %v8171 = vunpack.c.l.b16 %v8131
      %v8172 = vunpack.c.l.b16 %v8145
      %v8173 = vunpack.c.l.b16 %v8155
      %v8174 = vpack.c.b16 %v8159, %v8158
      %v8175 = vpack.c.b16 %v8161, %v8160
      %v8176 = vpack.c.b16 %v8163, %v8162
      %v8177 = vpack.c.b16 %v8165, %v8164
      %v8178 = vpack.c.b16 %v8167, %v8166
      %v8179 = vpack.c.b16 %v8169, %v8168
      %v8180 = vpack.c.b16 %v8171, %v8170
      %v8181 = vpack.c.b16 %v8173, %v8172
      %v8183 = vsel %vm6964, %v8174, 0
      %v8186 = vsel %vm6964, %v8175, 0
      %v8189 = vsel %vm6964, %v8176, 0
      %v8192 = vsel %vm6964, %v8177, 0
      %v8195 = vsel %vm6964, %v8178, 0
      %v8198 = vsel %vm6964, %v8179, 0
      %v8201 = vsel %vm6964, %v8180, 0
      %v8204 = vsel %vm6964, %v8181, 0
      %v8207 = vsel %vm6989, %v8157, 0
      %8209 = vmatprep.subr.bf16.mxu0 0
      %8210 = vmatpush1.bf16.msra.mxu0 %v8207
      %8211 = vmatprep.subr.bf16.mxu0 0
      %8212 = vmatpush1.bf16.msra.mxu0 0
      %8213 = vmatprep.subr.bf16.mxu0 0
      %8214 = vmatpush1.bf16.msra.mxu0 0
      %8215 = vmatprep.subr.bf16.mxu0 0
      %8216 = vmatpush1.bf16.msra.mxu0 0
      %8217 = vmatprep.subr.bf16.mxu0 0
      %8218 = vmatpush1.bf16.msra.mxu0 0
      %8219 = vmatprep.subr.bf16.mxu0 0
      %8220 = vmatpush1.bf16.msra.mxu0 0
      %8221 = vmatprep.subr.bf16.mxu0 0
      %8222 = vmatpush1.bf16.msra.mxu0 0
      %8223 = vmatprep.subr.bf16.mxu0 0
      %8224 = vmatpush1.bf16.msra.mxu0 0
      %8225 = vmatprep.subr.bf16.mxu0 0
      %8226 = vmatpush1.bf16.msra.mxu0 0
      %8227 = vmatprep.subr.bf16.mxu0 0
      %8228 = vmatpush1.bf16.msra.mxu0 0
      %8229 = vmatprep.subr.bf16.mxu0 0
      %8230 = vmatpush1.bf16.msra.mxu0 0
      %8231 = vmatprep.subr.bf16.mxu0 0
      %8232 = vmatpush1.bf16.msra.mxu0 0
      %8233 = vmatprep.subr.bf16.mxu0 0
      %8234 = vmatpush1.bf16.msra.mxu0 0
      %8235 = vmatprep.subr.bf16.mxu0 0
      %8236 = vmatpush1.bf16.msra.mxu0 0
      %8237 = vmatprep.subr.bf16.mxu0 0
      %8238 = vmatpush1.bf16.msra.mxu0 0
      %8239 = vmatprep.subr.bf16.mxu0 0
      %8240 = vmatpush1.bf16.msra.mxu0 0
      %8241 = vmatprep.mubr.bf16.mxu0 0
      %8242 = vmatmul.mubr.bf16.gmra.mrb[0].mxu0 %v8183
      %v8243 = vpop.f32.mrb[0].mxu0
      %v8244 = vadd.f32 0.0, %v8243
      %v8245 = vpop.f32.mrb[0].mxu0
      %v8246 = vpop.f32.mrb[0].mxu0
      %v8247 = vadd.f32 0.0, %v8246
      %v8248 = vpop.f32.mrb[0].mxu0
      %8249 = vmatprep.mubr.bf16.mxu0 0
      %8250 = vmatmul.mubr.bf16.gmra.mrb[0].mxu0 %v8186
      %v8251 = vpop.f32.mrb[0].mxu0
      %v8252 = vadd.f32 0.0, %v8251
      %v8253 = vpop.f32.mrb[0].mxu0
      %v8254 = vpop.f32.mrb[0].mxu0
      %v8255 = vadd.f32 0.0, %v8254
      %v8256 = vpop.f32.mrb[0].mxu0
      %8257 = vmatprep.mubr.bf16.mxu0 0
      %8258 = vmatmul.mubr.bf16.gmra.mrb[0].mxu0 %v8189
      %v8259 = vpop.f32.mrb[0].mxu0
      %v8260 = vadd.f32 0.0, %v8259
      %v8261 = vpop.f32.mrb[0].mxu0
      %v8262 = vpop.f32.mrb[0].mxu0
      %v8263 = vadd.f32 0.0, %v8262
      %v8264 = vpop.f32.mrb[0].mxu0
      %8265 = vmatprep.mubr.bf16.mxu0 0
      %8266 = vmatmul.mubr.bf16.gmra.mrb[0].mxu0 %v8192
      %v8267 = vpop.f32.mrb[0].mxu0
      %v8268 = vadd.f32 0.0, %v8267
      %v8269 = vpop.f32.mrb[0].mxu0
      %v8270 = vpop.f32.mrb[0].mxu0
      %v8271 = vadd.f32 0.0, %v8270
      %v8272 = vpop.f32.mrb[0].mxu0
      %8273 = vmatprep.mubr.bf16.mxu0 0
      %8274 = vmatmul.mubr.bf16.gmra.mrb[0].mxu0 %v8195
      %v8275 = vpop.f32.mrb[0].mxu0
      %v8276 = vadd.f32 0.0, %v8275
      %v8277 = vpop.f32.mrb[0].mxu0
      %v8278 = vpop.f32.mrb[0].mxu0
      %v8279 = vadd.f32 0.0, %v8278
      %v8280 = vpop.f32.mrb[0].mxu0
      %8281 = vmatprep.mubr.bf16.mxu0 0
      %8282 = vmatmul.mubr.bf16.gmra.mrb[0].mxu0 %v8198
      %v8283 = vpop.f32.mrb[0].mxu0
      %v8284 = vadd.f32 0.0, %v8283
      %v8285 = vpop.f32.mrb[0].mxu0
      %v8286 = vpop.f32.mrb[0].mxu0
      %v8287 = vadd.f32 0.0, %v8286
      %v8288 = vpop.f32.mrb[0].mxu0
      %8289 = vmatprep.mubr.bf16.mxu0 0
      %8290 = vmatmul.mubr.bf16.gmra.mrb[0].mxu0 %v8201
      %v8291 = vpop.f32.mrb[0].mxu0
      %v8292 = vadd.f32 0.0, %v8291
      %v8293 = vpop.f32.mrb[0].mxu0
      %v8294 = vpop.f32.mrb[0].mxu0
      %v8295 = vadd.f32 0.0, %v8294
      %v8296 = vpop.f32.mrb[0].mxu0
      %8297 = vmatprep.mubr.bf16.mxu0 0
      %8298 = vmatmul.mubr.bf16.gmra.mrb[0].mxu0 %v8204
      %v8299 = vpop.f32.mrb[0].mxu0
      %v8300 = vadd.f32 0.0, %v8299
      %v8301 = vpop.f32.mrb[0].mxu0
      %v8302 = vpop.f32.mrb[0].mxu0
      %v8303 = vadd.f32 0.0, %v8302
      %v8304 = vpop.f32.mrb[0].mxu0
      %8305 = vdwg.mxu0
      %v8306 = vadd.f32 %v7924, %v8244
      %v8307 = vadd.f32 %v7925, %v8247
      %v8308 = vadd.f32 %v7926, %v8252
      %v8309 = vadd.f32 %v7927, %v8255
      %v8310 = vadd.f32 %v7928, %v8260
      %v8311 = vadd.f32 %v7929, %v8263
      %v8312 = vadd.f32 %v7930, %v8268
      %v8313 = vadd.f32 %v7931, %v8271
      %v8314 = vadd.f32 %v7932, %v8276
      %v8315 = vadd.f32 %v7933, %v8279
      %v8316 = vadd.f32 %v7934, %v8284
      %v8317 = vadd.f32 %v7935, %v8287
      %v8318 = vadd.f32 %v7936, %v8292
      %v8319 = vadd.f32 %v7937, %v8295
      %v8320 = vadd.f32 %v7938, %v8300
      %v8321 = vadd.f32 %v7939, %v8303
      %v8322 = vld [vmem:[%s4004] sm:$0xe]
      %v8323 = vld [vmem:[%s4004 + $0xc] sm:$0xe]
      %v8324 = vld [vmem:[%s4004 + $0x18] sm:$0xe]
      %v8325 = vld [vmem:[%s4004 + $0x24] sm:$0xe]
      %v8326 = vld [vmem:[%s4004 + $0x30] sm:$0xe]
      %v8327 = vld [vmem:[%s4004 + $0x3c] sm:$0xe]
      %v8328 = vld [vmem:[%s4004 + $0x48] sm:$0xe]
      %v8329 = vld [vmem:[%s4004 + $0x54] sm:$0xe]
      %v8354 = vrot.slane %v8322, 5
      %v8355 = vrot.slane %v8354, 4
      %v8356 = vrot.slane %v7941, 5
      %v8357 = vsel %vm1856, %v8355, %v8356
      %v8358 = vrot.slane %v8356, 4
      %v8359 = vrot.slane %v7942, 5
      %v8360 = vsel %vm1856, %v8358, %v8359
      %v8361 = vrot.slane %v8323, 5
      %v8362 = vrot.slane %v8361, 4
      %v8363 = vrot.slane %v7944, 5
      %v8364 = vsel %vm1856, %v8362, %v8363
      %v8365 = vrot.slane %v8363, 4
      %v8366 = vrot.slane %v7945, 5
      %v8367 = vsel %vm1856, %v8365, %v8366
      %v8368 = vrot.slane %v8324, 5
      %v8369 = vrot.slane %v8368, 4
      %v8370 = vrot.slane %v7947, 5
      %v8371 = vsel %vm1856, %v8369, %v8370
      %v8372 = vrot.slane %v8370, 4
      %v8373 = vrot.slane %v7948, 5
      %v8374 = vsel %vm1856, %v8372, %v8373
      %v8375 = vrot.slane %v8325, 5
      %v8376 = vrot.slane %v8375, 4
      %v8377 = vrot.slane %v7950, 5
      %v8378 = vsel %vm1856, %v8376, %v8377
      %v8379 = vrot.slane %v8377, 4
      %v8380 = vrot.slane %v7951, 5
      %v8381 = vsel %vm1856, %v8379, %v8380
      %v8382 = vrot.slane %v8326, 5
      %v8383 = vrot.slane %v8382, 4
      %v8384 = vrot.slane %v7953, 5
      %v8385 = vsel %vm1856, %v8383, %v8384
      %v8386 = vrot.slane %v8384, 4
      %v8387 = vrot.slane %v7954, 5
      %v8388 = vsel %vm1856, %v8386, %v8387
      %v8389 = vrot.slane %v8327, 5
      %v8390 = vrot.slane %v8389, 4
      %v8391 = vrot.slane %v7956, 5
      %v8392 = vsel %vm1856, %v8390, %v8391
      %v8393 = vrot.slane %v8391, 4
      %v8394 = vrot.slane %v7957, 5
      %v8395 = vsel %vm1856, %v8393, %v8394
      %v8396 = vrot.slane %v8328, 5
      %v8397 = vrot.slane %v8396, 4
      %v8398 = vrot.slane %v7959, 5
      %v8399 = vsel %vm1856, %v8397, %v8398
      %v8400 = vrot.slane %v8398, 4
      %v8401 = vrot.slane %v7960, 5
      %v8402 = vsel %vm1856, %v8400, %v8401
      %v8403 = vrot.slane %v8329, 5
      %v8404 = vrot.slane %v8403, 4
      %v8405 = vrot.slane %v7962, 5
      %v8406 = vsel %vm1856, %v8404, %v8405
      %v8407 = vrot.slane %v8405, 4
      %v8408 = vrot.slane %v7963, 5
      %v8409 = vsel %vm1856, %v8407, %v8408
      %s8410 = scalar_lea.vmem %s3, 20
      %v8411 = vld [vmem:[%s8410] sm:$0xf]
      %v8412 = vunpack.c.l.b16 %v8357
      %v8413 = vunpack.c.l.b16 %v8360
      %v8414 = vunpack.c.l.b16 %v8364
      %v8415 = vunpack.c.l.b16 %v8367
      %v8416 = vunpack.c.l.b16 %v8371
      %v8417 = vunpack.c.l.b16 %v8374
      %v8418 = vunpack.c.l.b16 %v8378
      %v8419 = vunpack.c.l.b16 %v8381
      %v8420 = vunpack.c.l.b16 %v8385
      %v8421 = vunpack.c.l.b16 %v8388
      %v8422 = vunpack.c.l.b16 %v8392
      %v8423 = vunpack.c.l.b16 %v8395
      %v8424 = vunpack.c.l.b16 %v8399
      %v8425 = vunpack.c.l.b16 %v8402
      %v8426 = vunpack.c.l.b16 %v8406
      %v8427 = vunpack.c.l.b16 %v8409
      %v8428 = vpack.c.b16 %v8413, %v8412
      %v8429 = vpack.c.b16 %v8415, %v8414
      %v8430 = vpack.c.b16 %v8417, %v8416
      %v8431 = vpack.c.b16 %v8419, %v8418
      %v8432 = vpack.c.b16 %v8421, %v8420
      %v8433 = vpack.c.b16 %v8423, %v8422
      %v8434 = vpack.c.b16 %v8425, %v8424
      %v8435 = vpack.c.b16 %v8427, %v8426
      %v8437 = vsel %vm6964, %v8428, 0
      %v8440 = vsel %vm6964, %v8429, 0
      %v8443 = vsel %vm6964, %v8430, 0
      %v8446 = vsel %vm6964, %v8431, 0
      %v8449 = vsel %vm6964, %v8432, 0
      %v8452 = vsel %vm6964, %v8433, 0
      %v8455 = vsel %vm6964, %v8434, 0
      %v8458 = vsel %vm6964, %v8435, 0
      %v8461 = vsel %vm6989, %v8411, 0
      %8463 = vmatprep.subr.bf16.mxu0 0
      %8464 = vmatpush1.bf16.msra.mxu0 %v8461
      %8465 = vmatprep.subr.bf16.mxu0 0
      %8466 = vmatpush1.bf16.msra.mxu0 0
      %8467 = vmatprep.subr.bf16.mxu0 0
      %8468 = vmatpush1.bf16.msra.mxu0 0
      %8469 = vmatprep.subr.bf16.mxu0 0
      %8470 = vmatpush1.bf16.msra.mxu0 0
      %8471 = vmatprep.subr.bf16.mxu0 0
      %8472 = vmatpush1.bf16.msra.mxu0 0
      %8473 = vmatprep.subr.bf16.mxu0 0
      %8474 = vmatpush1.bf16.msra.mxu0 0
      %8475 = vmatprep.subr.bf16.mxu0 0
      %8476 = vmatpush1.bf16.msra.mxu0 0
      %8477 = vmatprep.subr.bf16.mxu0 0
      %8478 = vmatpush1.bf16.msra.mxu0 0
      %8479 = vmatprep.subr.bf16.mxu0 0
      %8480 = vmatpush1.bf16.msra.mxu0 0
      %8481 = vmatprep.subr.bf16.mxu0 0
      %8482 = vmatpush1.bf16.msra.mxu0 0
      %8483 = vmatprep.subr.bf16.mxu0 0
      %8484 = vmatpush1.bf16.msra.mxu0 0
      %8485 = vmatprep.subr.bf16.mxu0 0
      %8486 = vmatpush1.bf16.msra.mxu0 0
      %8487 = vmatprep.subr.bf16.mxu0 0
      %8488 = vmatpush1.bf16.msra.mxu0 0
      %8489 = vmatprep.subr.bf16.mxu0 0
      %8490 = vmatpush1.bf16.msra.mxu0 0
      %8491 = vmatprep.subr.bf16.mxu0 0
      %8492 = vmatpush1.bf16.msra.mxu0 0
      %8493 = vmatprep.subr.bf16.mxu0 0
      %8494 = vmatpush1.bf16.msra.mxu0 0
      %8495 = vmatprep.mubr.bf16.mxu0 0
      %8496 = vmatmul.mubr.bf16.gmra.mrb[0].mxu0 %v8437
      %v8497 = vpop.f32.mrb[0].mxu0
      %v8498 = vadd.f32 0.0, %v8497
      %v8499 = vpop.f32.mrb[0].mxu0
      %v8500 = vpop.f32.mrb[0].mxu0
      %v8501 = vadd.f32 0.0, %v8500
      %v8502 = vpop.f32.mrb[0].mxu0
      %8503 = vmatprep.mubr.bf16.mxu0 0
      %8504 = vmatmul.mubr.bf16.gmra.mrb[0].mxu0 %v8440
      %v8505 = vpop.f32.mrb[0].mxu0
      %v8506 = vadd.f32 0.0, %v8505
      %v8507 = vpop.f32.mrb[0].mxu0
      %v8508 = vpop.f32.mrb[0].mxu0
      %v8509 = vadd.f32 0.0, %v8508
      %v8510 = vpop.f32.mrb[0].mxu0
      %8511 = vmatprep.mubr.bf16.mxu0 0
      %8512 = vmatmul.mubr.bf16.gmra.mrb[0].mxu0 %v8443
      %v8513 = vpop.f32.mrb[0].mxu0
      %v8514 = vadd.f32 0.0, %v8513
      %v8515 = vpop.f32.mrb[0].mxu0
      %v8516 = vpop.f32.mrb[0].mxu0
      %v8517 = vadd.f32 0.0, %v8516
      %v8518 = vpop.f32.mrb[0].mxu0
      %8519 = vmatprep.mubr.bf16.mxu0 0
      %8520 = vmatmul.mubr.bf16.gmra.mrb[0].mxu0 %v8446
      %v8521 = vpop.f32.mrb[0].mxu0
      %v8522 = vadd.f32 0.0, %v8521
      %v8523 = vpop.f32.mrb[0].mxu0
      %v8524 = vpop.f32.mrb[0].mxu0
      %v8525 = vadd.f32 0.0, %v8524
      %v8526 = vpop.f32.mrb[0].mxu0
      %8527 = vmatprep.mubr.bf16.mxu0 0
      %8528 = vmatmul.mubr.bf16.gmra.mrb[0].mxu0 %v8449
      %v8529 = vpop.f32.mrb[0].mxu0
      %v8530 = vadd.f32 0.0, %v8529
      %v8531 = vpop.f32.mrb[0].mxu0
      %v8532 = vpop.f32.mrb[0].mxu0
      %v8533 = vadd.f32 0.0, %v8532
      %v8534 = vpop.f32.mrb[0].mxu0
      %8535 = vmatprep.mubr.bf16.mxu0 0
      %8536 = vmatmul.mubr.bf16.gmra.mrb[0].mxu0 %v8452
      %v8537 = vpop.f32.mrb[0].mxu0
      %v8538 = vadd.f32 0.0, %v8537
      %v8539 = vpop.f32.mrb[0].mxu0
      %v8540 = vpop.f32.mrb[0].mxu0
      %v8541 = vadd.f32 0.0, %v8540
      %v8542 = vpop.f32.mrb[0].mxu0
      %8543 = vmatprep.mubr.bf16.mxu0 0
      %8544 = vmatmul.mubr.bf16.gmra.mrb[0].mxu0 %v8455
      %v8545 = vpop.f32.mrb[0].mxu0
      %v8546 = vadd.f32 0.0, %v8545
      %v8547 = vpop.f32.mrb[0].mxu0
      %v8548 = vpop.f32.mrb[0].mxu0
      %v8549 = vadd.f32 0.0, %v8548
      %v8550 = vpop.f32.mrb[0].mxu0
      %8551 = vmatprep.mubr.bf16.mxu0 0
      %8552 = vmatmul.mubr.bf16.gmra.mrb[0].mxu0 %v8458
      %v8553 = vpop.f32.mrb[0].mxu0
      %v8554 = vadd.f32 0.0, %v8553
      %v8555 = vpop.f32.mrb[0].mxu0
      %v8556 = vpop.f32.mrb[0].mxu0
      %v8557 = vadd.f32 0.0, %v8556
      %v8558 = vpop.f32.mrb[0].mxu0
      %8559 = vdwg.mxu0
      %v8560 = vadd.f32 %v8306, %v8498
      %v8561 = vadd.f32 %v8307, %v8501
      %v8562 = vadd.f32 %v8308, %v8506
      %v8563 = vadd.f32 %v8309, %v8509
      %v8564 = vadd.f32 %v8310, %v8514
      %v8565 = vadd.f32 %v8311, %v8517
      %v8566 = vadd.f32 %v8312, %v8522
      %v8567 = vadd.f32 %v8313, %v8525
      %v8568 = vadd.f32 %v8314, %v8530
      %v8569 = vadd.f32 %v8315, %v8533
      %v8570 = vadd.f32 %v8316, %v8538
      %v8571 = vadd.f32 %v8317, %v8541
      %v8572 = vadd.f32 %v8318, %v8546
      %v8573 = vadd.f32 %v8319, %v8549
      %v8574 = vadd.f32 %v8320, %v8554
      %v8575 = vadd.f32 %v8321, %v8557
      %s8576 = scalar_lea.vmem [#allocation3], 24
      %v8577 = vld [vmem:[%s8576] sm:$0xf]
      %v8578 = vld [vmem:[%s8576 + $0x4] sm:$0xf]
      %v8579 = vld [vmem:[%s8576 + $0xc] sm:$0xf]
      %v8580 = vld [vmem:[%s8576 + $0x10] sm:$0xf]
      %v8581 = vld [vmem:[%s8576 + $0x18] sm:$0xf]
      %v8582 = vld [vmem:[%s8576 + $0x1c] sm:$0xf]
      %v8583 = vld [vmem:[%s8576 + $0x24] sm:$0xf]
      %v8584 = vld [vmem:[%s8576 + $0x28] sm:$0xf]
      %v8585 = vld [vmem:[%s8576 + $0x30] sm:$0xf]
      %v8586 = vld [vmem:[%s8576 + $0x34] sm:$0xf]
      %v8587 = vld [vmem:[%s8576 + $0x3c] sm:$0xf]
      %v8588 = vld [vmem:[%s8576 + $0x40] sm:$0xf]
      %v8589 = vld [vmem:[%s8576 + $0x48] sm:$0xf]
      %v8590 = vld [vmem:[%s8576 + $0x4c] sm:$0xf]
      %v8591 = vld [vmem:[%s8576 + $0x54] sm:$0xf]
      %v8592 = vld [vmem:[%s8576 + $0x58] sm:$0xf]
      %s8593 = scalar_lea.vmem %s3, 24
      %v8594 = vld [vmem:[%s8593] sm:$0xf]
      %v8611 = vunpack.c.l.b16 %v8577
      %v8612 = vunpack.c.l.b16 %v8578
      %v8613 = vunpack.c.l.b16 %v8579
      %v8614 = vunpack.c.l.b16 %v8580
      %v8615 = vunpack.c.l.b16 %v8581
      %v8616 = vunpack.c.l.b16 %v8582
      %v8617 = vunpack.c.l.b16 %v8583
      %v8618 = vunpack.c.l.b16 %v8584
      %v8619 = vunpack.c.l.b16 %v8585
      %v8620 = vunpack.c.l.b16 %v8586
      %v8621 = vunpack.c.l.b16 %v8587
      %v8622 = vunpack.c.l.b16 %v8588
      %v8623 = vunpack.c.l.b16 %v8589
      %v8624 = vunpack.c.l.b16 %v8590
      %v8625 = vunpack.c.l.b16 %v8591
      %v8626 = vunpack.c.l.b16 %v8592
      %v8627 = vpack.c.b16 %v8612, %v8611
      %v8628 = vpack.c.b16 %v8614, %v8613
      %v8629 = vpack.c.b16 %v8616, %v8615
      %v8630 = vpack.c.b16 %v8618, %v8617
      %v8631 = vpack.c.b16 %v8620, %v8619
      %v8632 = vpack.c.b16 %v8622, %v8621
      %v8633 = vpack.c.b16 %v8624, %v8623
      %v8634 = vpack.c.b16 %v8626, %v8625
      %v8636 = vsel %vm6964, %v8627, 0
      %v8639 = vsel %vm6964, %v8628, 0
      %v8642 = vsel %vm6964, %v8629, 0
      %v8645 = vsel %vm6964, %v8630, 0
      %v8648 = vsel %vm6964, %v8631, 0
      %v8651 = vsel %vm6964, %v8632, 0
      %v8654 = vsel %vm6964, %v8633, 0
      %v8657 = vsel %vm6964, %v8634, 0
      %v8660 = vsel %vm6989, %v8594, 0
      %8662 = vmatprep.subr.bf16.mxu0 0
      %8663 = vmatpush1.bf16.msra.mxu0 %v8660
      %8664 = vmatprep.subr.bf16.mxu0 0
      %8665 = vmatpush1.bf16.msra.mxu0 0
      %8666 = vmatprep.subr.bf16.mxu0 0
      %8667 = vmatpush1.bf16.msra.mxu0 0
      %8668 = vmatprep.subr.bf16.mxu0 0
      %8669 = vmatpush1.bf16.msra.mxu0 0
      %8670 = vmatprep.subr.bf16.mxu0 0
      %8671 = vmatpush1.bf16.msra.mxu0 0
      %8672 = vmatprep.subr.bf16.mxu0 0
      %8673 = vmatpush1.bf16.msra.mxu0 0
      %8674 = vmatprep.subr.bf16.mxu0 0
      %8675 = vmatpush1.bf16.msra.mxu0 0
      %8676 = vmatprep.subr.bf16.mxu0 0
      %8677 = vmatpush1.bf16.msra.mxu0 0
      %8678 = vmatprep.subr.bf16.mxu0 0
      %8679 = vmatpush1.bf16.msra.mxu0 0
      %8680 = vmatprep.subr.bf16.mxu0 0
      %8681 = vmatpush1.bf16.msra.mxu0 0
      %8682 = vmatprep.subr.bf16.mxu0 0
      %8683 = vmatpush1.bf16.msra.mxu0 0
      %8684 = vmatprep.subr.bf16.mxu0 0
      %8685 = vmatpush1.bf16.msra.mxu0 0
      %8686 = vmatprep.subr.bf16.mxu0 0
      %8687 = vmatpush1.bf16.msra.mxu0 0
      %8688 = vmatprep.subr.bf16.mxu0 0
      %8689 = vmatpush1.bf16.msra.mxu0 0
      %8690 = vmatprep.subr.bf16.mxu0 0
      %8691 = vmatpush1.bf16.msra.mxu0 0
      %8692 = vmatprep.subr.bf16.mxu0 0
      %8693 = vmatpush1.bf16.msra.mxu0 0
      %8694 = vmatprep.mubr.bf16.mxu0 0
      %8695 = vmatmul.mubr.bf16.gmra.mrb[0].mxu0 %v8636
      %v8696 = vpop.f32.mrb[0].mxu0
      %v8697 = vadd.f32 0.0, %v8696
      %v8698 = vpop.f32.mrb[0].mxu0
      %v8699 = vpop.f32.mrb[0].mxu0
      %v8700 = vadd.f32 0.0, %v8699
      %v8701 = vpop.f32.mrb[0].mxu0
      %8702 = vmatprep.mubr.bf16.mxu0 0
      %8703 = vmatmul.mubr.bf16.gmra.mrb[0].mxu0 %v8639
      %v8704 = vpop.f32.mrb[0].mxu0
      %v8705 = vadd.f32 0.0, %v8704
      %v8706 = vpop.f32.mrb[0].mxu0
      %v8707 = vpop.f32.mrb[0].mxu0
      %v8708 = vadd.f32 0.0, %v8707
      %v8709 = vpop.f32.mrb[0].mxu0
      %8710 = vmatprep.mubr.bf16.mxu0 0
      %8711 = vmatmul.mubr.bf16.gmra.mrb[0].mxu0 %v8642
      %v8712 = vpop.f32.mrb[0].mxu0
      %v8713 = vadd.f32 0.0, %v8712
      %v8714 = vpop.f32.mrb[0].mxu0
      %v8715 = vpop.f32.mrb[0].mxu0
      %v8716 = vadd.f32 0.0, %v8715
      %v8717 = vpop.f32.mrb[0].mxu0
      %8718 = vmatprep.mubr.bf16.mxu0 0
      %8719 = vmatmul.mubr.bf16.gmra.mrb[0].mxu0 %v8645
      %v8720 = vpop.f32.mrb[0].mxu0
      %v8721 = vadd.f32 0.0, %v8720
      %v8722 = vpop.f32.mrb[0].mxu0
      %v8723 = vpop.f32.mrb[0].mxu0
      %v8724 = vadd.f32 0.0, %v8723
      %v8725 = vpop.f32.mrb[0].mxu0
      %8726 = vmatprep.mubr.bf16.mxu0 0
      %8727 = vmatmul.mubr.bf16.gmra.mrb[0].mxu0 %v8648
      %v8728 = vpop.f32.mrb[0].mxu0
      %v8729 = vadd.f32 0.0, %v8728
      %v8730 = vpop.f32.mrb[0].mxu0
      %v8731 = vpop.f32.mrb[0].mxu0
      %v8732 = vadd.f32 0.0, %v8731
      %v8733 = vpop.f32.mrb[0].mxu0
      %8734 = vmatprep.mubr.bf16.mxu0 0
      %8735 = vmatmul.mubr.bf16.gmra.mrb[0].mxu0 %v8651
      %v8736 = vpop.f32.mrb[0].mxu0
      %v8737 = vadd.f32 0.0, %v8736
      %v8738 = vpop.f32.mrb[0].mxu0
      %v8739 = vpop.f32.mrb[0].mxu0
      %v8740 = vadd.f32 0.0, %v8739
      %v8741 = vpop.f32.mrb[0].mxu0
      %8742 = vmatprep.mubr.bf16.mxu0 0
      %8743 = vmatmul.mubr.bf16.gmra.mrb[0].mxu0 %v8654
      %v8744 = vpop.f32.mrb[0].mxu0
      %v8745 = vadd.f32 0.0, %v8744
      %v8746 = vpop.f32.mrb[0].mxu0
      %v8747 = vpop.f32.mrb[0].mxu0
      %v8748 = vadd.f32 0.0, %v8747
      %v8749 = vpop.f32.mrb[0].mxu0
      %8750 = vmatprep.mubr.bf16.mxu0 0
      %8751 = vmatmul.mubr.bf16.gmra.mrb[0].mxu0 %v8657
      %v8752 = vpop.f32.mrb[0].mxu0
      %v8753 = vadd.f32 0.0, %v8752
      %v8754 = vpop.f32.mrb[0].mxu0
      %v8755 = vpop.f32.mrb[0].mxu0
      %v8756 = vadd.f32 0.0, %v8755
      %v8757 = vpop.f32.mrb[0].mxu0
      %8758 = vdwg.mxu0
      %v8759 = vadd.f32 %v8560, %v8697
      %v8760 = vadd.f32 %v8561, %v8700
      %v8761 = vadd.f32 %v8562, %v8705
      %v8762 = vadd.f32 %v8563, %v8708
      %v8763 = vadd.f32 %v8564, %v8713
      %v8764 = vadd.f32 %v8565, %v8716
      %v8765 = vadd.f32 %v8566, %v8721
      %v8766 = vadd.f32 %v8567, %v8724
      %v8767 = vadd.f32 %v8568, %v8729
      %v8768 = vadd.f32 %v8569, %v8732
      %v8769 = vadd.f32 %v8570, %v8737
      %v8770 = vadd.f32 %v8571, %v8740
      %v8771 = vadd.f32 %v8572, %v8745
      %v8772 = vadd.f32 %v8573, %v8748
      %v8773 = vadd.f32 %v8574, %v8753
      %v8774 = vadd.f32 %v8575, %v8756
      %v8775 = vld [vmem:[%s8576] sm:$0xf]
      %v8776 = vld [vmem:[%s8576 + $0x4] sm:$0xf]
      %v8777 = vld [vmem:[%s8576 + $0x8] sm:$0x1]
      %v8778 = vld [vmem:[%s8576 + $0xc] sm:$0xf]
      %v8779 = vld [vmem:[%s8576 + $0x10] sm:$0xf]
      %v8780 = vld [vmem:[%s8576 + $0x14] sm:$0x1]
      %v8781 = vld [vmem:[%s8576 + $0x18] sm:$0xf]
      %v8782 = vld [vmem:[%s8576 + $0x1c] sm:$0xf]
      %v8783 = vld [vmem:[%s8576 + $0x20] sm:$0x1]
      %v8784 = vld [vmem:[%s8576 + $0x24] sm:$0xf]
      %v8785 = vld [vmem:[%s8576 + $0x28] sm:$0xf]
      %v8786 = vld [vmem:[%s8576 + $0x2c] sm:$0x1]
      %v8787 = vld [vmem:[%s8576 + $0x30] sm:$0xf]
      %v8788 = vld [vmem:[%s8576 + $0x34] sm:$0xf]
      %v8789 = vld [vmem:[%s8576 + $0x38] sm:$0x1]
      %v8790 = vld [vmem:[%s8576 + $0x3c] sm:$0xf]
      %v8791 = vld [vmem:[%s8576 + $0x40] sm:$0xf]
      %v8792 = vld [vmem:[%s8576 + $0x44] sm:$0x1]
      %v8793 = vld [vmem:[%s8576 + $0x48] sm:$0xf]
      %v8794 = vld [vmem:[%s8576 + $0x4c] sm:$0xf]
      %v8795 = vld [vmem:[%s8576 + $0x50] sm:$0x1]
      %v8796 = vld [vmem:[%s8576 + $0x54] sm:$0xf]
      %v8797 = vld [vmem:[%s8576 + $0x58] sm:$0xf]
      %v8798 = vld [vmem:[%s8576 + $0x5c] sm:$0x1]
      %v8800 = vshrl.u32 %v8775, 16
      %v8802 = vrot.slane %v8800, 4
      %v8803 = vshll.u32 %v8775, 16
      %v8805 = vrot.slane %v8803, 5
      %v8806 = vor.u32 %v8802, %v8805
      %v8807 = vrot.slane %v8806, 4
      %v8809 = vshll.u32 %v8776, 16
      %v8811 = vrot.slane %v8809, 5
      %v8812 = vsel %vm1463, %v8807, %v8811
      %v8813 = vshrl.u32 %v8776, 16
      %v8815 = vrot.slane %v8813, 4
      %v8816 = vor.u32 %v8815, %v8811
      %v8817 = vrot.slane %v8816, 4
      %v8819 = vshll.u32 %v8777, 16
      %v8821 = vrot.slane %v8819, 5
      %v8822 = vsel %vm1463, %v8817, %v8821
      %v8824 = vshrl.u32 %v8778, 16
      %v8826 = vrot.slane %v8824, 4
      %v8827 = vshll.u32 %v8778, 16
      %v8829 = vrot.slane %v8827, 5
      %v8830 = vor.u32 %v8826, %v8829
      %v8831 = vrot.slane %v8830, 4
      %v8833 = vshll.u32 %v8779, 16
      %v8835 = vrot.slane %v8833, 5
      %v8836 = vsel %vm1463, %v8831, %v8835
      %v8837 = vshrl.u32 %v8779, 16
      %v8839 = vrot.slane %v8837, 4
      %v8840 = vor.u32 %v8839, %v8835
      %v8841 = vrot.slane %v8840, 4
      %v8843 = vshll.u32 %v8780, 16
      %v8845 = vrot.slane %v8843, 5
      %v8846 = vsel %vm1463, %v8841, %v8845
      %v8848 = vshrl.u32 %v8781, 16
      %v8850 = vrot.slane %v8848, 4
      %v8851 = vshll.u32 %v8781, 16
      %v8853 = vrot.slane %v8851, 5
      %v8854 = vor.u32 %v8850, %v8853
      %v8855 = vrot.slane %v8854, 4
      %v8857 = vshll.u32 %v8782, 16
      %v8859 = vrot.slane %v8857, 5
      %v8860 = vsel %vm1463, %v8855, %v8859
      %v8861 = vshrl.u32 %v8782, 16
      %v8863 = vrot.slane %v8861, 4
      %v8864 = vor.u32 %v8863, %v8859
      %v8865 = vrot.slane %v8864, 4
      %v8867 = vshll.u32 %v8783, 16
      %v8869 = vrot.slane %v8867, 5
      %v8870 = vsel %vm1463, %v8865, %v8869
      %v8872 = vshrl.u32 %v8784, 16
      %v8874 = vrot.slane %v8872, 4
      %v8875 = vshll.u32 %v8784, 16
      %v8877 = vrot.slane %v8875, 5
      %v8878 = vor.u32 %v8874, %v8877
      %v8879 = vrot.slane %v8878, 4
      %v8881 = vshll.u32 %v8785, 16
      %v8883 = vrot.slane %v8881, 5
      %v8884 = vsel %vm1463, %v8879, %v8883
      %v8885 = vshrl.u32 %v8785, 16
      %v8887 = vrot.slane %v8885, 4
      %v8888 = vor.u32 %v8887, %v8883
      %v8889 = vrot.slane %v8888, 4
      %v8891 = vshll.u32 %v8786, 16
      %v8893 = vrot.slane %v8891, 5
      %v8894 = vsel %vm1463, %v8889, %v8893
      %v8896 = vshrl.u32 %v8787, 16
      %v8898 = vrot.slane %v8896, 4
      %v8899 = vshll.u32 %v8787, 16
      %v8901 = vrot.slane %v8899, 5
      %v8902 = vor.u32 %v8898, %v8901
      %v8903 = vrot.slane %v8902, 4
      %v8905 = vshll.u32 %v8788, 16
      %v8907 = vrot.slane %v8905, 5
      %v8908 = vsel %vm1463, %v8903, %v8907
      %v8909 = vshrl.u32 %v8788, 16
      %v8911 = vrot.slane %v8909, 4
      %v8912 = vor.u32 %v8911, %v8907
      %v8913 = vrot.slane %v8912, 4
      %v8915 = vshll.u32 %v8789, 16
      %v8917 = vrot.slane %v8915, 5
      %v8918 = vsel %vm1463, %v8913, %v8917
      %v8920 = vshrl.u32 %v8790, 16
      %v8922 = vrot.slane %v8920, 4
      %v8923 = vshll.u32 %v8790, 16
      %v8925 = vrot.slane %v8923, 5
      %v8926 = vor.u32 %v8922, %v8925
      %v8927 = vrot.slane %v8926, 4
      %v8929 = vshll.u32 %v8791, 16
      %v8931 = vrot.slane %v8929, 5
      %v8932 = vsel %vm1463, %v8927, %v8931
      %v8933 = vshrl.u32 %v8791, 16
      %v8935 = vrot.slane %v8933, 4
      %v8936 = vor.u32 %v8935, %v8931
      %v8937 = vrot.slane %v8936, 4
      %v8939 = vshll.u32 %v8792, 16
      %v8941 = vrot.slane %v8939, 5
      %v8942 = vsel %vm1463, %v8937, %v8941
      %v8944 = vshrl.u32 %v8793, 16
      %v8946 = vrot.slane %v8944, 4
      %v8947 = vshll.u32 %v8793, 16
      %v8949 = vrot.slane %v8947, 5
      %v8950 = vor.u32 %v8946, %v8949
      %v8951 = vrot.slane %v8950, 4
      %v8953 = vshll.u32 %v8794, 16
      %v8955 = vrot.slane %v8953, 5
      %v8956 = vsel %vm1463, %v8951, %v8955
      %v8957 = vshrl.u32 %v8794, 16
      %v8959 = vrot.slane %v8957, 4
      %v8960 = vor.u32 %v8959, %v8955
      %v8961 = vrot.slane %v8960, 4
      %v8963 = vshll.u32 %v8795, 16
      %v8965 = vrot.slane %v8963, 5
      %v8966 = vsel %vm1463, %v8961, %v8965
      %v8968 = vshrl.u32 %v8796, 16
      %v8970 = vrot.slane %v8968, 4
      %v8971 = vshll.u32 %v8796, 16
      %v8973 = vrot.slane %v8971, 5
      %v8974 = vor.u32 %v8970, %v8973
      %v8975 = vrot.slane %v8974, 4
      %v8977 = vshll.u32 %v8797, 16
      %v8979 = vrot.slane %v8977, 5
      %v8980 = vsel %vm1463, %v8975, %v8979
      %v8981 = vshrl.u32 %v8797, 16
      %v8983 = vrot.slane %v8981, 4
      %v8984 = vor.u32 %v8983, %v8979
      %v8985 = vrot.slane %v8984, 4
      %v8987 = vshll.u32 %v8798, 16
      %v8989 = vrot.slane %v8987, 5
      %v8990 = vsel %vm1463, %v8985, %v8989
      %s8991 = scalar_lea.vmem %s3, 28
      %v8992 = vld [vmem:[%s8991] sm:$0xf]
      %v8993 = vunpack.c.l.b16 %v8812
      %v8994 = vunpack.c.l.b16 %v8822
      %v8995 = vunpack.c.l.b16 %v8836
      %v8996 = vunpack.c.l.b16 %v8846
      %v8997 = vunpack.c.l.b16 %v8860
      %v8998 = vunpack.c.l.b16 %v8870
      %v8999 = vunpack.c.l.b16 %v8884
      %v9000 = vunpack.c.l.b16 %v8894
      %v9001 = vunpack.c.l.b16 %v8908
      %v9002 = vunpack.c.l.b16 %v8918
      %v9003 = vunpack.c.l.b16 %v8932
      %v9004 = vunpack.c.l.b16 %v8942
      %v9005 = vunpack.c.l.b16 %v8956
      %v9006 = vunpack.c.l.b16 %v8966
      %v9007 = vunpack.c.l.b16 %v8980
      %v9008 = vunpack.c.l.b16 %v8990
      %v9009 = vpack.c.b16 %v8994, %v8993
      %v9010 = vpack.c.b16 %v8996, %v8995
      %v9011 = vpack.c.b16 %v8998, %v8997
      %v9012 = vpack.c.b16 %v9000, %v8999
      %v9013 = vpack.c.b16 %v9002, %v9001
      %v9014 = vpack.c.b16 %v9004, %v9003
      %v9015 = vpack.c.b16 %v9006, %v9005
      %v9016 = vpack.c.b16 %v9008, %v9007
      %v9018 = vsel %vm6964, %v9009, 0
      %v9021 = vsel %vm6964, %v9010, 0
      %v9024 = vsel %vm6964, %v9011, 0
      %v9027 = vsel %vm6964, %v9012, 0
      %v9030 = vsel %vm6964, %v9013, 0
      %v9033 = vsel %vm6964, %v9014, 0
      %v9036 = vsel %vm6964, %v9015, 0
      %v9039 = vsel %vm6964, %v9016, 0
      %v9042 = vsel %vm6989, %v8992, 0
      %9044 = vmatprep.subr.bf16.mxu0 0
      %9045 = vmatpush1.bf16.msra.mxu0 %v9042
      %9046 = vmatprep.subr.bf16.mxu0 0
      %9047 = vmatpush1.bf16.msra.mxu0 0
      %9048 = vmatprep.subr.bf16.mxu0 0
      %9049 = vmatpush1.bf16.msra.mxu0 0
      %9050 = vmatprep.subr.bf16.mxu0 0
      %9051 = vmatpush1.bf16.msra.mxu0 0
      %9052 = vmatprep.subr.bf16.mxu0 0
      %9053 = vmatpush1.bf16.msra.mxu0 0
      %9054 = vmatprep.subr.bf16.mxu0 0
      %9055 = vmatpush1.bf16.msra.mxu0 0
      %9056 = vmatprep.subr.bf16.mxu0 0
      %9057 = vmatpush1.bf16.msra.mxu0 0
      %9058 = vmatprep.subr.bf16.mxu0 0
      %9059 = vmatpush1.bf16.msra.mxu0 0
      %9060 = vmatprep.subr.bf16.mxu0 0
      %9061 = vmatpush1.bf16.msra.mxu0 0
      %9062 = vmatprep.subr.bf16.mxu0 0
      %9063 = vmatpush1.bf16.msra.mxu0 0
      %9064 = vmatprep.subr.bf16.mxu0 0
      %9065 = vmatpush1.bf16.msra.mxu0 0
      %9066 = vmatprep.subr.bf16.mxu0 0
      %9067 = vmatpush1.bf16.msra.mxu0 0
      %9068 = vmatprep.subr.bf16.mxu0 0
      %9069 = vmatpush1.bf16.msra.mxu0 0
      %9070 = vmatprep.subr.bf16.mxu0 0
      %9071 = vmatpush1.bf16.msra.mxu0 0
      %9072 = vmatprep.subr.bf16.mxu0 0
      %9073 = vmatpush1.bf16.msra.mxu0 0
      %9074 = vmatprep.subr.bf16.mxu0 0
      %9075 = vmatpush1.bf16.msra.mxu0 0
      %9076 = vmatprep.mubr.bf16.mxu0 0
      %9077 = vmatmul.mubr.bf16.gmra.mrb[0].mxu0 %v9018
      %v9078 = vpop.f32.mrb[0].mxu0
      %v9079 = vadd.f32 0.0, %v9078
      %v9080 = vpop.f32.mrb[0].mxu0
      %v9081 = vpop.f32.mrb[0].mxu0
      %v9082 = vadd.f32 0.0, %v9081
      %v9083 = vpop.f32.mrb[0].mxu0
      %9084 = vmatprep.mubr.bf16.mxu0 0
      %9085 = vmatmul.mubr.bf16.gmra.mrb[0].mxu0 %v9021
      %v9086 = vpop.f32.mrb[0].mxu0
      %v9087 = vadd.f32 0.0, %v9086
      %v9088 = vpop.f32.mrb[0].mxu0
      %v9089 = vpop.f32.mrb[0].mxu0
      %v9090 = vadd.f32 0.0, %v9089
      %v9091 = vpop.f32.mrb[0].mxu0
      %9092 = vmatprep.mubr.bf16.mxu0 0
      %9093 = vmatmul.mubr.bf16.gmra.mrb[0].mxu0 %v9024
      %v9094 = vpop.f32.mrb[0].mxu0
      %v9095 = vadd.f32 0.0, %v9094
      %v9096 = vpop.f32.mrb[0].mxu0
      %v9097 = vpop.f32.mrb[0].mxu0
      %v9098 = vadd.f32 0.0, %v9097
      %v9099 = vpop.f32.mrb[0].mxu0
      %9100 = vmatprep.mubr.bf16.mxu0 0
      %9101 = vmatmul.mubr.bf16.gmra.mrb[0].mxu0 %v9027
      %v9102 = vpop.f32.mrb[0].mxu0
      %v9103 = vadd.f32 0.0, %v9102
      %v9104 = vpop.f32.mrb[0].mxu0
      %v9105 = vpop.f32.mrb[0].mxu0
      %v9106 = vadd.f32 0.0, %v9105
      %v9107 = vpop.f32.mrb[0].mxu0
      %9108 = vmatprep.mubr.bf16.mxu0 0
      %9109 = vmatmul.mubr.bf16.gmra.mrb[0].mxu0 %v9030
      %v9110 = vpop.f32.mrb[0].mxu0
      %v9111 = vadd.f32 0.0, %v9110
      %v9112 = vpop.f32.mrb[0].mxu0
      %v9113 = vpop.f32.mrb[0].mxu0
      %v9114 = vadd.f32 0.0, %v9113
      %v9115 = vpop.f32.mrb[0].mxu0
      %9116 = vmatprep.mubr.bf16.mxu0 0
      %9117 = vmatmul.mubr.bf16.gmra.mrb[0].mxu0 %v9033
      %v9118 = vpop.f32.mrb[0].mxu0
      %v9119 = vadd.f32 0.0, %v9118
      %v9120 = vpop.f32.mrb[0].mxu0
      %v9121 = vpop.f32.mrb[0].mxu0
      %v9122 = vadd.f32 0.0, %v9121
      %v9123 = vpop.f32.mrb[0].mxu0
      %9124 = vmatprep.mubr.bf16.mxu0 0
      %9125 = vmatmul.mubr.bf16.gmra.mrb[0].mxu0 %v9036
      %v9126 = vpop.f32.mrb[0].mxu0
      %v9127 = vadd.f32 0.0, %v9126
      %v9128 = vpop.f32.mrb[0].mxu0
      %v9129 = vpop.f32.mrb[0].mxu0
      %v9130 = vadd.f32 0.0, %v9129
      %v9131 = vpop.f32.mrb[0].mxu0
      %9132 = vmatprep.mubr.bf16.mxu0 0
      %9133 = vmatmul.mubr.bf16.gmra.mrb[0].mxu0 %v9039
      %v9134 = vpop.f32.mrb[0].mxu0
      %v9135 = vadd.f32 0.0, %v9134
      %v9136 = vpop.f32.mrb[0].mxu0
      %v9137 = vpop.f32.mrb[0].mxu0
      %v9138 = vadd.f32 0.0, %v9137
      %v9139 = vpop.f32.mrb[0].mxu0
      %9140 = vdwg.mxu0
      %v9141 = vadd.f32 %v8759, %v9079
      %v9142 = vadd.f32 %v8760, %v9082
      %v9143 = vadd.f32 %v8761, %v9087
      %v9144 = vadd.f32 %v8762, %v9090
      %v9145 = vadd.f32 %v8763, %v9095
      %v9146 = vadd.f32 %v8764, %v9098
      %v9147 = vadd.f32 %v8765, %v9103
      %v9148 = vadd.f32 %v8766, %v9106
      %v9149 = vadd.f32 %v8767, %v9111
      %v9150 = vadd.f32 %v8768, %v9114
      %v9151 = vadd.f32 %v8769, %v9119
      %v9152 = vadd.f32 %v8770, %v9122
      %v9153 = vadd.f32 %v8771, %v9127
      %v9154 = vadd.f32 %v8772, %v9130
      %v9155 = vadd.f32 %v8773, %v9135
      %v9156 = vadd.f32 %v8774, %v9138
      %v9157 = vld [vmem:[%s8576] sm:$0xe]
      %v9158 = vld [vmem:[%s8576 + $0xc] sm:$0xe]
      %v9159 = vld [vmem:[%s8576 + $0x18] sm:$0xe]
      %v9160 = vld [vmem:[%s8576 + $0x24] sm:$0xe]
      %v9161 = vld [vmem:[%s8576 + $0x30] sm:$0xe]
      %v9162 = vld [vmem:[%s8576 + $0x3c] sm:$0xe]
      %v9163 = vld [vmem:[%s8576 + $0x48] sm:$0xe]
      %v9164 = vld [vmem:[%s8576 + $0x54] sm:$0xe]
      %v9189 = vrot.slane %v9157, 5
      %v9190 = vrot.slane %v9189, 4
      %v9191 = vrot.slane %v8776, 5
      %v9192 = vsel %vm1856, %v9190, %v9191
      %v9193 = vrot.slane %v9191, 4
      %v9194 = vrot.slane %v8777, 5
      %v9195 = vsel %vm1856, %v9193, %v9194
      %v9196 = vrot.slane %v9158, 5
      %v9197 = vrot.slane %v9196, 4
      %v9198 = vrot.slane %v8779, 5
      %v9199 = vsel %vm1856, %v9197, %v9198
      %v9200 = vrot.slane %v9198, 4
      %v9201 = vrot.slane %v8780, 5
      %v9202 = vsel %vm1856, %v9200, %v9201
      %v9203 = vrot.slane %v9159, 5
      %v9204 = vrot.slane %v9203, 4
      %v9205 = vrot.slane %v8782, 5
      %v9206 = vsel %vm1856, %v9204, %v9205
      %v9207 = vrot.slane %v9205, 4
      %v9208 = vrot.slane %v8783, 5
      %v9209 = vsel %vm1856, %v9207, %v9208
      %v9210 = vrot.slane %v9160, 5
      %v9211 = vrot.slane %v9210, 4
      %v9212 = vrot.slane %v8785, 5
      %v9213 = vsel %vm1856, %v9211, %v9212
      %v9214 = vrot.slane %v9212, 4
      %v9215 = vrot.slane %v8786, 5
      %v9216 = vsel %vm1856, %v9214, %v9215
      %v9217 = vrot.slane %v9161, 5
      %v9218 = vrot.slane %v9217, 4
      %v9219 = vrot.slane %v8788, 5
      %v9220 = vsel %vm1856, %v9218, %v9219
      %v9221 = vrot.slane %v9219, 4
      %v9222 = vrot.slane %v8789, 5
      %v9223 = vsel %vm1856, %v9221, %v9222
      %v9224 = vrot.slane %v9162, 5
      %v9225 = vrot.slane %v9224, 4
      %v9226 = vrot.slane %v8791, 5
      %v9227 = vsel %vm1856, %v9225, %v9226
      %v9228 = vrot.slane %v9226, 4
      %v9229 = vrot.slane %v8792, 5
      %v9230 = vsel %vm1856, %v9228, %v9229
      %v9231 = vrot.slane %v9163, 5
      %v9232 = vrot.slane %v9231, 4
      %v9233 = vrot.slane %v8794, 5
      %v9234 = vsel %vm1856, %v9232, %v9233
      %v9235 = vrot.slane %v9233, 4
      %v9236 = vrot.slane %v8795, 5
      %v9237 = vsel %vm1856, %v9235, %v9236
      %v9238 = vrot.slane %v9164, 5
      %v9239 = vrot.slane %v9238, 4
      %v9240 = vrot.slane %v8797, 5
      %v9241 = vsel %vm1856, %v9239, %v9240
      %v9242 = vrot.slane %v9240, 4
      %v9243 = vrot.slane %v8798, 5
      %v9244 = vsel %vm1856, %v9242, %v9243
      %s9245 = scalar_lea.vmem %s3, 32
      %v9246 = vld [vmem:[%s9245] sm:$0xf]
      %v9247 = vunpack.c.l.b16 %v9192
      %v9248 = vunpack.c.l.b16 %v9195
      %v9249 = vunpack.c.l.b16 %v9199
      %v9250 = vunpack.c.l.b16 %v9202
      %v9251 = vunpack.c.l.b16 %v9206
      %v9252 = vunpack.c.l.b16 %v9209
      %v9253 = vunpack.c.l.b16 %v9213
      %v9254 = vunpack.c.l.b16 %v9216
      %v9255 = vunpack.c.l.b16 %v9220
      %v9256 = vunpack.c.l.b16 %v9223
      %v9257 = vunpack.c.l.b16 %v9227
      %v9258 = vunpack.c.l.b16 %v9230
      %v9259 = vunpack.c.l.b16 %v9234
      %v9260 = vunpack.c.l.b16 %v9237
      %v9261 = vunpack.c.l.b16 %v9241
      %v9262 = vunpack.c.l.b16 %v9244
      %v9263 = vpack.c.b16 %v9248, %v9247
      %v9264 = vpack.c.b16 %v9250, %v9249
      %v9265 = vpack.c.b16 %v9252, %v9251
      %v9266 = vpack.c.b16 %v9254, %v9253
      %v9267 = vpack.c.b16 %v9256, %v9255
      %v9268 = vpack.c.b16 %v9258, %v9257
      %v9269 = vpack.c.b16 %v9260, %v9259
      %v9270 = vpack.c.b16 %v9262, %v9261
      %v9272 = vsel %vm6964, %v9263, 0
      %v9275 = vsel %vm6964, %v9264, 0
      %v9278 = vsel %vm6964, %v9265, 0
      %v9281 = vsel %vm6964, %v9266, 0
      %v9284 = vsel %vm6964, %v9267, 0
      %v9287 = vsel %vm6964, %v9268, 0
      %v9290 = vsel %vm6964, %v9269, 0
      %v9293 = vsel %vm6964, %v9270, 0
      %v9296 = vsel %vm6989, %v9246, 0
      %9298 = vmatprep.subr.bf16.mxu0 0
      %9299 = vmatpush1.bf16.msra.mxu0 %v9296
      %9300 = vmatprep.subr.bf16.mxu0 0
      %9301 = vmatpush1.bf16.msra.mxu0 0
      %9302 = vmatprep.subr.bf16.mxu0 0
      %9303 = vmatpush1.bf16.msra.mxu0 0
      %9304 = vmatprep.subr.bf16.mxu0 0
      %9305 = vmatpush1.bf16.msra.mxu0 0
      %9306 = vmatprep.subr.bf16.mxu0 0
      %9307 = vmatpush1.bf16.msra.mxu0 0
      %9308 = vmatprep.subr.bf16.mxu0 0
      %9309 = vmatpush1.bf16.msra.mxu0 0
      %9310 = vmatprep.subr.bf16.mxu0 0
      %9311 = vmatpush1.bf16.msra.mxu0 0
      %9312 = vmatprep.subr.bf16.mxu0 0
      %9313 = vmatpush1.bf16.msra.mxu0 0
      %9314 = vmatprep.subr.bf16.mxu0 0
      %9315 = vmatpush1.bf16.msra.mxu0 0
      %9316 = vmatprep.subr.bf16.mxu0 0
      %9317 = vmatpush1.bf16.msra.mxu0 0
      %9318 = vmatprep.subr.bf16.mxu0 0
      %9319 = vmatpush1.bf16.msra.mxu0 0
      %9320 = vmatprep.subr.bf16.mxu0 0
      %9321 = vmatpush1.bf16.msra.mxu0 0
      %9322 = vmatprep.subr.bf16.mxu0 0
      %9323 = vmatpush1.bf16.msra.mxu0 0
      %9324 = vmatprep.subr.bf16.mxu0 0
      %9325 = vmatpush1.bf16.msra.mxu0 0
      %9326 = vmatprep.subr.bf16.mxu0 0
      %9327 = vmatpush1.bf16.msra.mxu0 0
      %9328 = vmatprep.subr.bf16.mxu0 0
      %9329 = vmatpush1.bf16.msra.mxu0 0
      %9330 = vmatprep.mubr.bf16.mxu0 0
      %9331 = vmatmul.mubr.bf16.gmra.mrb[0].mxu0 %v9272
      %v9332 = vpop.f32.mrb[0].mxu0
      %v9333 = vadd.f32 0.0, %v9332
      %v9334 = vpop.f32.mrb[0].mxu0
      %v9335 = vpop.f32.mrb[0].mxu0
      %v9336 = vadd.f32 0.0, %v9335
      %v9337 = vpop.f32.mrb[0].mxu0
      %9338 = vmatprep.mubr.bf16.mxu0 0
      %9339 = vmatmul.mubr.bf16.gmra.mrb[0].mxu0 %v9275
      %v9340 = vpop.f32.mrb[0].mxu0
      %v9341 = vadd.f32 0.0, %v9340
      %v9342 = vpop.f32.mrb[0].mxu0
      %v9343 = vpop.f32.mrb[0].mxu0
      %v9344 = vadd.f32 0.0, %v9343
      %v9345 = vpop.f32.mrb[0].mxu0
      %9346 = vmatprep.mubr.bf16.mxu0 0
      %9347 = vmatmul.mubr.bf16.gmra.mrb[0].mxu0 %v9278
      %v9348 = vpop.f32.mrb[0].mxu0
      %v9349 = vadd.f32 0.0, %v9348
      %v9350 = vpop.f32.mrb[0].mxu0
      %v9351 = vpop.f32.mrb[0].mxu0
      %v9352 = vadd.f32 0.0, %v9351
      %v9353 = vpop.f32.mrb[0].mxu0
      %9354 = vmatprep.mubr.bf16.mxu0 0
      %9355 = vmatmul.mubr.bf16.gmra.mrb[0].mxu0 %v9281
      %v9356 = vpop.f32.mrb[0].mxu0
      %v9357 = vadd.f32 0.0, %v9356
      %v9358 = vpop.f32.mrb[0].mxu0
      %v9359 = vpop.f32.mrb[0].mxu0
      %v9360 = vadd.f32 0.0, %v9359
      %v9361 = vpop.f32.mrb[0].mxu0
      %9362 = vmatprep.mubr.bf16.mxu0 0
      %9363 = vmatmul.mubr.bf16.gmra.mrb[0].mxu0 %v9284
      %v9364 = vpop.f32.mrb[0].mxu0
      %v9365 = vadd.f32 0.0, %v9364
      %v9366 = vpop.f32.mrb[0].mxu0
      %v9367 = vpop.f32.mrb[0].mxu0
      %v9368 = vadd.f32 0.0, %v9367
      %v9369 = vpop.f32.mrb[0].mxu0
      %9370 = vmatprep.mubr.bf16.mxu0 0
      %9371 = vmatmul.mubr.bf16.gmra.mrb[0].mxu0 %v9287
      %v9372 = vpop.f32.mrb[0].mxu0
      %v9373 = vadd.f32 0.0, %v9372
      %v9374 = vpop.f32.mrb[0].mxu0
      %v9375 = vpop.f32.mrb[0].mxu0
      %v9376 = vadd.f32 0.0, %v9375
      %v9377 = vpop.f32.mrb[0].mxu0
      %9378 = vmatprep.mubr.bf16.mxu0 0
      %9379 = vmatmul.mubr.bf16.gmra.mrb[0].mxu0 %v9290
      %v9380 = vpop.f32.mrb[0].mxu0
      %v9381 = vadd.f32 0.0, %v9380
      %v9382 = vpop.f32.mrb[0].mxu0
      %v9383 = vpop.f32.mrb[0].mxu0
      %v9384 = vadd.f32 0.0, %v9383
      %v9385 = vpop.f32.mrb[0].mxu0
      %9386 = vmatprep.mubr.bf16.mxu0 0
      %9387 = vmatmul.mubr.bf16.gmra.mrb[0].mxu0 %v9293
      %v9388 = vpop.f32.mrb[0].mxu0
      %v9389 = vadd.f32 0.0, %v9388
      %v9390 = vpop.f32.mrb[0].mxu0
      %v9391 = vpop.f32.mrb[0].mxu0
      %v9392 = vadd.f32 0.0, %v9391
      %v9393 = vpop.f32.mrb[0].mxu0
      %9394 = vdwg.mxu0
      %v9395 = vadd.f32 %v9141, %v9333
      %v9396 = vadd.f32 %v9142, %v9336
      %v9397 = vadd.f32 %v9143, %v9341
      %v9398 = vadd.f32 %v9144, %v9344
      %v9399 = vadd.f32 %v9145, %v9349
      %v9400 = vadd.f32 %v9146, %v9352
      %v9401 = vadd.f32 %v9147, %v9357
      %v9402 = vadd.f32 %v9148, %v9360
      %v9403 = vadd.f32 %v9149, %v9365
      %v9404 = vadd.f32 %v9150, %v9368
      %v9405 = vadd.f32 %v9151, %v9373
      %v9406 = vadd.f32 %v9152, %v9376
      %v9407 = vadd.f32 %v9153, %v9381
      %v9408 = vadd.f32 %v9154, %v9384
      %v9409 = vadd.f32 %v9155, %v9389
      %v9410 = vadd.f32 %v9156, %v9392
      %vm9411 = vcmp.gt.f32.partialorder %v9395, 0.0
      %vm9412 = vcmp.gt.f32.partialorder %v9396, 0.0
      %vm9413 = vcmp.gt.f32.partialorder %v9397, 0.0
      %vm9414 = vcmp.gt.f32.partialorder %v9398, 0.0
      %vm9415 = vcmp.gt.f32.partialorder %v9399, 0.0
      %vm9416 = vcmp.gt.f32.partialorder %v9400, 0.0
      %vm9417 = vcmp.gt.f32.partialorder %v9401, 0.0
      %vm9418 = vcmp.gt.f32.partialorder %v9402, 0.0
      %vm9419 = vcmp.gt.f32.partialorder %v9403, 0.0
      %vm9420 = vcmp.gt.f32.partialorder %v9404, 0.0
      %vm9421 = vcmp.gt.f32.partialorder %v9405, 0.0
      %vm9422 = vcmp.gt.f32.partialorder %v9406, 0.0
      %vm9423 = vcmp.gt.f32.partialorder %v9407, 0.0
      %vm9424 = vcmp.gt.f32.partialorder %v9408, 0.0
      %vm9425 = vcmp.gt.f32.partialorder %v9409, 0.0
      %vm9426 = vcmp.gt.f32.partialorder %v9410, 0.0
      %v9427 = vmul.f32 %v9395, 0.2
      %v9428 = vmul.f32 %v9396, 0.2
      %v9429 = vmul.f32 %v9397, 0.2
      %v9430 = vmul.f32 %v9398, 0.2
      %v9431 = vmul.f32 %v9399, 0.2
      %v9432 = vmul.f32 %v9400, 0.2
      %v9433 = vmul.f32 %v9401, 0.2
      %v9434 = vmul.f32 %v9402, 0.2
      %v9435 = vmul.f32 %v9403, 0.2
      %v9436 = vmul.f32 %v9404, 0.2
      %v9437 = vmul.f32 %v9405, 0.2
      %v9438 = vmul.f32 %v9406, 0.2
      %v9439 = vmul.f32 %v9407, 0.2
      %v9440 = vmul.f32 %v9408, 0.2
      %v9441 = vmul.f32 %v9409, 0.2
      %v9442 = vmul.f32 %v9410, 0.2
      %v9443 = vsel %vm9411, %v9395, %v9427
      %v9444 = vsel %vm9412, %v9396, %v9428
      %v9445 = vsel %vm9413, %v9397, %v9429
      %v9446 = vsel %vm9414, %v9398, %v9430
      %v9447 = vsel %vm9415, %v9399, %v9431
      %v9448 = vsel %vm9416, %v9400, %v9432
      %v9449 = vsel %vm9417, %v9401, %v9433
      %v9450 = vsel %vm9418, %v9402, %v9434
      %v9451 = vsel %vm9419, %v9403, %v9435
      %v9452 = vsel %vm9420, %v9404, %v9436
      %v9453 = vsel %vm9421, %v9405, %v9437
      %v9454 = vsel %vm9422, %v9406, %v9438
      %v9455 = vsel %vm9423, %v9407, %v9439
      %v9456 = vsel %vm9424, %v9408, %v9440
      %v9457 = vsel %vm9425, %v9409, %v9441
      %v9458 = vsel %vm9426, %v9410, %v9442
      %9459 = vst [vmem:[#allocation4] sm:$0xff] %v9443
      %9460 = vst [vmem:[#allocation4 + $0x8] sm:$0xff] %v9444
      %9461 = vst [vmem:[#allocation4 + $0x10] sm:$0xff] %v9445
      %9462 = vst [vmem:[#allocation4 + $0x18] sm:$0xff] %v9446
      %9463 = vst [vmem:[#allocation4 + $0x20] sm:$0xff] %v9447
      %9464 = vst [vmem:[#allocation4 + $0x28] sm:$0xff] %v9448
      %9465 = vst [vmem:[#allocation4 + $0x30] sm:$0xff] %v9449
      %9466 = vst [vmem:[#allocation4 + $0x38] sm:$0xff] %v9450
      %9467 = vst [vmem:[#allocation4 + $0x40] sm:$0xff] %v9451
      %9468 = vst [vmem:[#allocation4 + $0x48] sm:$0xff] %v9452
      %9469 = vst [vmem:[#allocation4 + $0x50] sm:$0xff] %v9453
      %9470 = vst [vmem:[#allocation4 + $0x58] sm:$0xff] %v9454
      %9471 = vst [vmem:[#allocation4 + $0x60] sm:$0xff] %v9455
      %9472 = vst [vmem:[#allocation4 + $0x68] sm:$0xff] %v9456
      %9473 = vst [vmem:[#allocation4 + $0x70] sm:$0xff] %v9457
      %9474 = vst [vmem:[#allocation4 + $0x78] sm:$0xff] %v9458
      %s9475 = scalar_lea.vmem %s4, 128
      %v9476 = vld [vmem:[%s9475] sm:$0xff]
      %v9477 = vld [vmem:[%s9475 + $0x8] sm:$0xff]
      %v9478 = vld [vmem:[%s9475 + $0x10] sm:$0xff]
      %v9479 = vld [vmem:[%s9475 + $0x18] sm:$0xff]
      %v9480 = vld [vmem:[%s9475 + $0x20] sm:$0xff]
      %v9481 = vld [vmem:[%s9475 + $0x28] sm:$0xff]
      %v9482 = vld [vmem:[%s9475 + $0x30] sm:$0xff]
      %v9483 = vld [vmem:[%s9475 + $0x38] sm:$0xff]
      %v9484 = vld [vmem:[%s9475 + $0x40] sm:$0xff]
      %v9485 = vld [vmem:[%s9475 + $0x48] sm:$0xff]
      %v9486 = vld [vmem:[%s9475 + $0x50] sm:$0xff]
      %v9487 = vld [vmem:[%s9475 + $0x58] sm:$0xff]
      %v9488 = vld [vmem:[%s9475 + $0x60] sm:$0xff]
      %v9489 = vld [vmem:[%s9475 + $0x68] sm:$0xff]
      %v9490 = vld [vmem:[%s9475 + $0x70] sm:$0xff]
      %v9491 = vld [vmem:[%s9475 + $0x78] sm:$0xff]
      %s9492 = scalar_lea.vmem [#allocation3], 96
      %v9493 = vld [vmem:[%s9492] sm:$0xf]
      %v9494 = vld [vmem:[%s9492 + $0x4] sm:$0xf]
      %v9495 = vld [vmem:[%s9492 + $0xc] sm:$0xf]
      %v9496 = vld [vmem:[%s9492 + $0x10] sm:$0xf]
      %v9497 = vld [vmem:[%s9492 + $0x18] sm:$0xf]
      %v9498 = vld [vmem:[%s9492 + $0x1c] sm:$0xf]
      %v9499 = vld [vmem:[%s9492 + $0x24] sm:$0xf]
      %v9500 = vld [vmem:[%s9492 + $0x28] sm:$0xf]
      %v9501 = vld [vmem:[%s9492 + $0x30] sm:$0xf]
      %v9502 = vld [vmem:[%s9492 + $0x34] sm:$0xf]
      %v9503 = vld [vmem:[%s9492 + $0x3c] sm:$0xf]
      %v9504 = vld [vmem:[%s9492 + $0x40] sm:$0xf]
      %v9505 = vld [vmem:[%s9492 + $0x48] sm:$0xf]
      %v9506 = vld [vmem:[%s9492 + $0x4c] sm:$0xf]
      %v9507 = vld [vmem:[%s9492 + $0x54] sm:$0xf]
      %v9508 = vld [vmem:[%s9492 + $0x58] sm:$0xf]
      %v9509 = vld [vmem:[%s3] sm:$0xf]
      %v9526 = vunpack.c.l.b16 %v9493
      %v9527 = vunpack.c.l.b16 %v9494
      %v9528 = vunpack.c.l.b16 %v9495
      %v9529 = vunpack.c.l.b16 %v9496
      %v9530 = vunpack.c.l.b16 %v9497
      %v9531 = vunpack.c.l.b16 %v9498
      %v9532 = vunpack.c.l.b16 %v9499
      %v9533 = vunpack.c.l.b16 %v9500
      %v9534 = vunpack.c.l.b16 %v9501
      %v9535 = vunpack.c.l.b16 %v9502
      %v9536 = vunpack.c.l.b16 %v9503
      %v9537 = vunpack.c.l.b16 %v9504
      %v9538 = vunpack.c.l.b16 %v9505
      %v9539 = vunpack.c.l.b16 %v9506
      %v9540 = vunpack.c.l.b16 %v9507
      %v9541 = vunpack.c.l.b16 %v9508
      %v9542 = vpack.c.b16 %v9527, %v9526
      %v9543 = vpack.c.b16 %v9529, %v9528
      %v9544 = vpack.c.b16 %v9531, %v9530
      %v9545 = vpack.c.b16 %v9533, %v9532
      %v9546 = vpack.c.b16 %v9535, %v9534
      %v9547 = vpack.c.b16 %v9537, %v9536
      %v9548 = vpack.c.b16 %v9539, %v9538
      %v9549 = vpack.c.b16 %v9541, %v9540
      %v9551 = vsel %vm6964, %v9542, 0
      %v9554 = vsel %vm6964, %v9543, 0
      %v9557 = vsel %vm6964, %v9544, 0
      %v9560 = vsel %vm6964, %v9545, 0
      %v9563 = vsel %vm6964, %v9546, 0
      %v9566 = vsel %vm6964, %v9547, 0
      %v9569 = vsel %vm6964, %v9548, 0
      %v9572 = vsel %vm6964, %v9549, 0
      %v9575 = vsel %vm6989, %v9509, 0
      %9577 = vmatprep.subr.bf16.mxu0 0
      %9578 = vmatpush1.bf16.msra.mxu0 %v9575
      %9579 = vmatprep.subr.bf16.mxu0 0
      %9580 = vmatpush1.bf16.msra.mxu0 0
      %9581 = vmatprep.subr.bf16.mxu0 0
      %9582 = vmatpush1.bf16.msra.mxu0 0
      %9583 = vmatprep.subr.bf16.mxu0 0
      %9584 = vmatpush1.bf16.msra.mxu0 0
      %9585 = vmatprep.subr.bf16.mxu0 0
      %9586 = vmatpush1.bf16.msra.mxu0 0
      %9587 = vmatprep.subr.bf16.mxu0 0
      %9588 = vmatpush1.bf16.msra.mxu0 0
      %9589 = vmatprep.subr.bf16.mxu0 0
      %9590 = vmatpush1.bf16.msra.mxu0 0
      %9591 = vmatprep.subr.bf16.mxu0 0
      %9592 = vmatpush1.bf16.msra.mxu0 0
      %9593 = vmatprep.subr.bf16.mxu0 0
      %9594 = vmatpush1.bf16.msra.mxu0 0
      %9595 = vmatprep.subr.bf16.mxu0 0
      %9596 = vmatpush1.bf16.msra.mxu0 0
      %9597 = vmatprep.subr.bf16.mxu0 0
      %9598 = vmatpush1.bf16.msra.mxu0 0
      %9599 = vmatprep.subr.bf16.mxu0 0
      %9600 = vmatpush1.bf16.msra.mxu0 0
      %9601 = vmatprep.subr.bf16.mxu0 0
      %9602 = vmatpush1.bf16.msra.mxu0 0
      %9603 = vmatprep.subr.bf16.mxu0 0
      %9604 = vmatpush1.bf16.msra.mxu0 0
      %9605 = vmatprep.subr.bf16.mxu0 0
      %9606 = vmatpush1.bf16.msra.mxu0 0
      %9607 = vmatprep.subr.bf16.mxu0 0
      %9608 = vmatpush1.bf16.msra.mxu0 0
      %9609 = vmatprep.mubr.bf16.mxu0 0
      %9610 = vmatmul.mubr.bf16.gmra.mrb[0].mxu0 %v9551
      %v9611 = vpop.f32.mrb[0].mxu0
      %v9612 = vadd.f32 0.0, %v9611
      %v9613 = vpop.f32.mrb[0].mxu0
      %v9614 = vpop.f32.mrb[0].mxu0
      %v9615 = vadd.f32 0.0, %v9614
      %v9616 = vpop.f32.mrb[0].mxu0
      %9617 = vmatprep.mubr.bf16.mxu0 0
      %9618 = vmatmul.mubr.bf16.gmra.mrb[0].mxu0 %v9554
      %v9619 = vpop.f32.mrb[0].mxu0
      %v9620 = vadd.f32 0.0, %v9619
      %v9621 = vpop.f32.mrb[0].mxu0
      %v9622 = vpop.f32.mrb[0].mxu0
      %v9623 = vadd.f32 0.0, %v9622
      %v9624 = vpop.f32.mrb[0].mxu0
      %9625 = vmatprep.mubr.bf16.mxu0 0
      %9626 = vmatmul.mubr.bf16.gmra.mrb[0].mxu0 %v9557
      %v9627 = vpop.f32.mrb[0].mxu0
      %v9628 = vadd.f32 0.0, %v9627
      %v9629 = vpop.f32.mrb[0].mxu0
      %v9630 = vpop.f32.mrb[0].mxu0
      %v9631 = vadd.f32 0.0, %v9630
      %v9632 = vpop.f32.mrb[0].mxu0
      %9633 = vmatprep.mubr.bf16.mxu0 0
      %9634 = vmatmul.mubr.bf16.gmra.mrb[0].mxu0 %v9560
      %v9635 = vpop.f32.mrb[0].mxu0
      %v9636 = vadd.f32 0.0, %v9635
      %v9637 = vpop.f32.mrb[0].mxu0
      %v9638 = vpop.f32.mrb[0].mxu0
      %v9639 = vadd.f32 0.0, %v9638
      %v9640 = vpop.f32.mrb[0].mxu0
      %9641 = vmatprep.mubr.bf16.mxu0 0
      %9642 = vmatmul.mubr.bf16.gmra.mrb[0].mxu0 %v9563
      %v9643 = vpop.f32.mrb[0].mxu0
      %v9644 = vadd.f32 0.0, %v9643
      %v9645 = vpop.f32.mrb[0].mxu0
      %v9646 = vpop.f32.mrb[0].mxu0
      %v9647 = vadd.f32 0.0, %v9646
      %v9648 = vpop.f32.mrb[0].mxu0
      %9649 = vmatprep.mubr.bf16.mxu0 0
      %9650 = vmatmul.mubr.bf16.gmra.mrb[0].mxu0 %v9566
      %v9651 = vpop.f32.mrb[0].mxu0
      %v9652 = vadd.f32 0.0, %v9651
      %v9653 = vpop.f32.mrb[0].mxu0
      %v9654 = vpop.f32.mrb[0].mxu0
      %v9655 = vadd.f32 0.0, %v9654
      %v9656 = vpop.f32.mrb[0].mxu0
      %9657 = vmatprep.mubr.bf16.mxu0 0
      %9658 = vmatmul.mubr.bf16.gmra.mrb[0].mxu0 %v9569
      %v9659 = vpop.f32.mrb[0].mxu0
      %v9660 = vadd.f32 0.0, %v9659
      %v9661 = vpop.f32.mrb[0].mxu0
      %v9662 = vpop.f32.mrb[0].mxu0
      %v9663 = vadd.f32 0.0, %v9662
      %v9664 = vpop.f32.mrb[0].mxu0
      %9665 = vmatprep.mubr.bf16.mxu0 0
      %9666 = vmatmul.mubr.bf16.gmra.mrb[0].mxu0 %v9572
      %v9667 = vpop.f32.mrb[0].mxu0
      %v9668 = vadd.f32 0.0, %v9667
      %v9669 = vpop.f32.mrb[0].mxu0
      %v9670 = vpop.f32.mrb[0].mxu0
      %v9671 = vadd.f32 0.0, %v9670
      %v9672 = vpop.f32.mrb[0].mxu0
      %9673 = vdwg.mxu0
      %v9674 = vadd.f32 %v9476, %v9612
      %v9675 = vadd.f32 %v9477, %v9615
      %v9676 = vadd.f32 %v9478, %v9620
      %v9677 = vadd.f32 %v9479, %v9623
      %v9678 = vadd.f32 %v9480, %v9628
      %v9679 = vadd.f32 %v9481, %v9631
      %v9680 = vadd.f32 %v9482, %v9636
      %v9681 = vadd.f32 %v9483, %v9639
      %v9682 = vadd.f32 %v9484, %v9644
      %v9683 = vadd.f32 %v9485, %v9647
      %v9684 = vadd.f32 %v9486, %v9652
      %v9685 = vadd.f32 %v9487, %v9655
      %v9686 = vadd.f32 %v9488, %v9660
      %v9687 = vadd.f32 %v9489, %v9663
      %v9688 = vadd.f32 %v9490, %v9668
      %v9689 = vadd.f32 %v9491, %v9671
      %v9690 = vld [vmem:[%s9492] sm:$0xf]
      %v9691 = vld [vmem:[%s9492 + $0x4] sm:$0xf]
      %v9692 = vld [vmem:[%s9492 + $0x8] sm:$0x1]
      %v9693 = vld [vmem:[%s9492 + $0xc] sm:$0xf]
      %v9694 = vld [vmem:[%s9492 + $0x10] sm:$0xf]
      %v9695 = vld [vmem:[%s9492 + $0x14] sm:$0x1]
      %v9696 = vld [vmem:[%s9492 + $0x18] sm:$0xf]
      %v9697 = vld [vmem:[%s9492 + $0x1c] sm:$0xf]
      %v9698 = vld [vmem:[%s9492 + $0x20] sm:$0x1]
      %v9699 = vld [vmem:[%s9492 + $0x24] sm:$0xf]
      %v9700 = vld [vmem:[%s9492 + $0x28] sm:$0xf]
      %v9701 = vld [vmem:[%s9492 + $0x2c] sm:$0x1]
      %v9702 = vld [vmem:[%s9492 + $0x30] sm:$0xf]
      %v9703 = vld [vmem:[%s9492 + $0x34] sm:$0xf]
      %v9704 = vld [vmem:[%s9492 + $0x38] sm:$0x1]
      %v9705 = vld [vmem:[%s9492 + $0x3c] sm:$0xf]
      %v9706 = vld [vmem:[%s9492 + $0x40] sm:$0xf]
      %v9707 = vld [vmem:[%s9492 + $0x44] sm:$0x1]
      %v9708 = vld [vmem:[%s9492 + $0x48] sm:$0xf]
      %v9709 = vld [vmem:[%s9492 + $0x4c] sm:$0xf]
      %v9710 = vld [vmem:[%s9492 + $0x50] sm:$0x1]
      %v9711 = vld [vmem:[%s9492 + $0x54] sm:$0xf]
      %v9712 = vld [vmem:[%s9492 + $0x58] sm:$0xf]
      %v9713 = vld [vmem:[%s9492 + $0x5c] sm:$0x1]
      %v9715 = vshrl.u32 %v9690, 16
      %v9717 = vrot.slane %v9715, 4
      %v9718 = vshll.u32 %v9690, 16
      %v9720 = vrot.slane %v9718, 5
      %v9721 = vor.u32 %v9717, %v9720
      %v9722 = vrot.slane %v9721, 4
      %v9724 = vshll.u32 %v9691, 16
      %v9726 = vrot.slane %v9724, 5
      %v9727 = vsel %vm1463, %v9722, %v9726
      %v9728 = vshrl.u32 %v9691, 16
      %v9730 = vrot.slane %v9728, 4
      %v9731 = vor.u32 %v9730, %v9726
      %v9732 = vrot.slane %v9731, 4
      %v9734 = vshll.u32 %v9692, 16
      %v9736 = vrot.slane %v9734, 5
      %v9737 = vsel %vm1463, %v9732, %v9736
      %v9739 = vshrl.u32 %v9693, 16
      %v9741 = vrot.slane %v9739, 4
      %v9742 = vshll.u32 %v9693, 16
      %v9744 = vrot.slane %v9742, 5
      %v9745 = vor.u32 %v9741, %v9744
      %v9746 = vrot.slane %v9745, 4
      %v9748 = vshll.u32 %v9694, 16
      %v9750 = vrot.slane %v9748, 5
      %v9751 = vsel %vm1463, %v9746, %v9750
      %v9752 = vshrl.u32 %v9694, 16
      %v9754 = vrot.slane %v9752, 4
      %v9755 = vor.u32 %v9754, %v9750
      %v9756 = vrot.slane %v9755, 4
      %v9758 = vshll.u32 %v9695, 16
      %v9760 = vrot.slane %v9758, 5
      %v9761 = vsel %vm1463, %v9756, %v9760
      %v9763 = vshrl.u32 %v9696, 16
      %v9765 = vrot.slane %v9763, 4
      %v9766 = vshll.u32 %v9696, 16
      %v9768 = vrot.slane %v9766, 5
      %v9769 = vor.u32 %v9765, %v9768
      %v9770 = vrot.slane %v9769, 4
      %v9772 = vshll.u32 %v9697, 16
      %v9774 = vrot.slane %v9772, 5
      %v9775 = vsel %vm1463, %v9770, %v9774
      %v9776 = vshrl.u32 %v9697, 16
      %v9778 = vrot.slane %v9776, 4
      %v9779 = vor.u32 %v9778, %v9774
      %v9780 = vrot.slane %v9779, 4
      %v9782 = vshll.u32 %v9698, 16
      %v9784 = vrot.slane %v9782, 5
      %v9785 = vsel %vm1463, %v9780, %v9784
      %v9787 = vshrl.u32 %v9699, 16
      %v9789 = vrot.slane %v9787, 4
      %v9790 = vshll.u32 %v9699, 16
      %v9792 = vrot.slane %v9790, 5
      %v9793 = vor.u32 %v9789, %v9792
      %v9794 = vrot.slane %v9793, 4
      %v9796 = vshll.u32 %v9700, 16
      %v9798 = vrot.slane %v9796, 5
      %v9799 = vsel %vm1463, %v9794, %v9798
      %v9800 = vshrl.u32 %v9700, 16
      %v9802 = vrot.slane %v9800, 4
      %v9803 = vor.u32 %v9802, %v9798
      %v9804 = vrot.slane %v9803, 4
      %v9806 = vshll.u32 %v9701, 16
      %v9808 = vrot.slane %v9806, 5
      %v9809 = vsel %vm1463, %v9804, %v9808
      %v9811 = vshrl.u32 %v9702, 16
      %v9813 = vrot.slane %v9811, 4
      %v9814 = vshll.u32 %v9702, 16
      %v9816 = vrot.slane %v9814, 5
      %v9817 = vor.u32 %v9813, %v9816
      %v9818 = vrot.slane %v9817, 4
      %v9820 = vshll.u32 %v9703, 16
      %v9822 = vrot.slane %v9820, 5
      %v9823 = vsel %vm1463, %v9818, %v9822
      %v9824 = vshrl.u32 %v9703, 16
      %v9826 = vrot.slane %v9824, 4
      %v9827 = vor.u32 %v9826, %v9822
      %v9828 = vrot.slane %v9827, 4
      %v9830 = vshll.u32 %v9704, 16
      %v9832 = vrot.slane %v9830, 5
      %v9833 = vsel %vm1463, %v9828, %v9832
      %v9835 = vshrl.u32 %v9705, 16
      %v9837 = vrot.slane %v9835, 4
      %v9838 = vshll.u32 %v9705, 16
      %v9840 = vrot.slane %v9838, 5
      %v9841 = vor.u32 %v9837, %v9840
      %v9842 = vrot.slane %v9841, 4
      %v9844 = vshll.u32 %v9706, 16
      %v9846 = vrot.slane %v9844, 5
      %v9847 = vsel %vm1463, %v9842, %v9846
      %v9848 = vshrl.u32 %v9706, 16
      %v9850 = vrot.slane %v9848, 4
      %v9851 = vor.u32 %v9850, %v9846
      %v9852 = vrot.slane %v9851, 4
      %v9854 = vshll.u32 %v9707, 16
      %v9856 = vrot.slane %v9854, 5
      %v9857 = vsel %vm1463, %v9852, %v9856
      %v9859 = vshrl.u32 %v9708, 16
      %v9861 = vrot.slane %v9859, 4
      %v9862 = vshll.u32 %v9708, 16
      %v9864 = vrot.slane %v9862, 5
      %v9865 = vor.u32 %v9861, %v9864
      %v9866 = vrot.slane %v9865, 4
      %v9868 = vshll.u32 %v9709, 16
      %v9870 = vrot.slane %v9868, 5
      %v9871 = vsel %vm1463, %v9866, %v9870
      %v9872 = vshrl.u32 %v9709, 16
      %v9874 = vrot.slane %v9872, 4
      %v9875 = vor.u32 %v9874, %v9870
      %v9876 = vrot.slane %v9875, 4
      %v9878 = vshll.u32 %v9710, 16
      %v9880 = vrot.slane %v9878, 5
      %v9881 = vsel %vm1463, %v9876, %v9880
      %v9883 = vshrl.u32 %v9711, 16
      %v9885 = vrot.slane %v9883, 4
      %v9886 = vshll.u32 %v9711, 16
      %v9888 = vrot.slane %v9886, 5
      %v9889 = vor.u32 %v9885, %v9888
      %v9890 = vrot.slane %v9889, 4
      %v9892 = vshll.u32 %v9712, 16
      %v9894 = vrot.slane %v9892, 5
      %v9895 = vsel %vm1463, %v9890, %v9894
      %v9896 = vshrl.u32 %v9712, 16
      %v9898 = vrot.slane %v9896, 4
      %v9899 = vor.u32 %v9898, %v9894
      %v9900 = vrot.slane %v9899, 4
      %v9902 = vshll.u32 %v9713, 16
      %v9904 = vrot.slane %v9902, 5
      %v9905 = vsel %vm1463, %v9900, %v9904
      %v9906 = vld [vmem:[%s7322] sm:$0xf]
      %v9907 = vunpack.c.l.b16 %v9727
      %v9908 = vunpack.c.l.b16 %v9737
      %v9909 = vunpack.c.l.b16 %v9751
      %v9910 = vunpack.c.l.b16 %v9761
      %v9911 = vunpack.c.l.b16 %v9775
      %v9912 = vunpack.c.l.b16 %v9785
      %v9913 = vunpack.c.l.b16 %v9799
      %v9914 = vunpack.c.l.b16 %v9809
      %v9915 = vunpack.c.l.b16 %v9823
      %v9916 = vunpack.c.l.b16 %v9833
      %v9917 = vunpack.c.l.b16 %v9847
      %v9918 = vunpack.c.l.b16 %v9857
      %v9919 = vunpack.c.l.b16 %v9871
      %v9920 = vunpack.c.l.b16 %v9881
      %v9921 = vunpack.c.l.b16 %v9895
      %v9922 = vunpack.c.l.b16 %v9905
      %v9923 = vpack.c.b16 %v9908, %v9907
      %v9924 = vpack.c.b16 %v9910, %v9909
      %v9925 = vpack.c.b16 %v9912, %v9911
      %v9926 = vpack.c.b16 %v9914, %v9913
      %v9927 = vpack.c.b16 %v9916, %v9915
      %v9928 = vpack.c.b16 %v9918, %v9917
      %v9929 = vpack.c.b16 %v9920, %v9919
      %v9930 = vpack.c.b16 %v9922, %v9921
      %v9932 = vsel %vm6964, %v9923, 0
      %v9935 = vsel %vm6964, %v9924, 0
      %v9938 = vsel %vm6964, %v9925, 0
      %v9941 = vsel %vm6964, %v9926, 0
      %v9944 = vsel %vm6964, %v9927, 0
      %v9947 = vsel %vm6964, %v9928, 0
      %v9950 = vsel %vm6964, %v9929, 0
      %v9953 = vsel %vm6964, %v9930, 0
      %v9956 = vsel %vm6989, %v9906, 0
      %9958 = vmatprep.subr.bf16.mxu0 0
      %9959 = vmatpush1.bf16.msra.mxu0 %v9956
      %9960 = vmatprep.subr.bf16.mxu0 0
      %9961 = vmatpush1.bf16.msra.mxu0 0
      %9962 = vmatprep.subr.bf16.mxu0 0
      %9963 = vmatpush1.bf16.msra.mxu0 0
      %9964 = vmatprep.subr.bf16.mxu0 0
      %9965 = vmatpush1.bf16.msra.mxu0 0
      %9966 = vmatprep.subr.bf16.mxu0 0
      %9967 = vmatpush1.bf16.msra.mxu0 0
      %9968 = vmatprep.subr.bf16.mxu0 0
      %9969 = vmatpush1.bf16.msra.mxu0 0
      %9970 = vmatprep.subr.bf16.mxu0 0
      %9971 = vmatpush1.bf16.msra.mxu0 0
      %9972 = vmatprep.subr.bf16.mxu0 0
      %9973 = vmatpush1.bf16.msra.mxu0 0
      %9974 = vmatprep.subr.bf16.mxu0 0
      %9975 = vmatpush1.bf16.msra.mxu0 0
      %9976 = vmatprep.subr.bf16.mxu0 0
      %9977 = vmatpush1.bf16.msra.mxu0 0
      %9978 = vmatprep.subr.bf16.mxu0 0
      %9979 = vmatpush1.bf16.msra.mxu0 0
      %9980 = vmatprep.subr.bf16.mxu0 0
      %9981 = vmatpush1.bf16.msra.mxu0 0
      %9982 = vmatprep.subr.bf16.mxu0 0
      %9983 = vmatpush1.bf16.msra.mxu0 0
      %9984 = vmatprep.subr.bf16.mxu0 0
      %9985 = vmatpush1.bf16.msra.mxu0 0
      %9986 = vmatprep.subr.bf16.mxu0 0
      %9987 = vmatpush1.bf16.msra.mxu0 0
      %9988 = vmatprep.subr.bf16.mxu0 0
      %9989 = vmatpush1.bf16.msra.mxu0 0
      %9990 = vmatprep.mubr.bf16.mxu0 0
      %9991 = vmatmul.mubr.bf16.gmra.mrb[0].mxu0 %v9932
      %v9992 = vpop.f32.mrb[0].mxu0
      %v9993 = vadd.f32 0.0, %v9992
      %v9994 = vpop.f32.mrb[0].mxu0
      %v9995 = vpop.f32.mrb[0].mxu0
      %v9996 = vadd.f32 0.0, %v9995
      %v9997 = vpop.f32.mrb[0].mxu0
      %9998 = vmatprep.mubr.bf16.mxu0 0
      %9999 = vmatmul.mubr.bf16.gmra.mrb[0].mxu0 %v9935
      %v10000 = vpop.f32.mrb[0].mxu0
      %v10001 = vadd.f32 0.0, %v10000
      %v10002 = vpop.f32.mrb[0].mxu0
      %v10003 = vpop.f32.mrb[0].mxu0
      %v10004 = vadd.f32 0.0, %v10003
      %v10005 = vpop.f32.mrb[0].mxu0
      %10006 = vmatprep.mubr.bf16.mxu0 0
      %10007 = vmatmul.mubr.bf16.gmra.mrb[0].mxu0 %v9938
      %v10008 = vpop.f32.mrb[0].mxu0
      %v10009 = vadd.f32 0.0, %v10008
      %v10010 = vpop.f32.mrb[0].mxu0
      %v10011 = vpop.f32.mrb[0].mxu0
      %v10012 = vadd.f32 0.0, %v10011
      %v10013 = vpop.f32.mrb[0].mxu0
      %10014 = vmatprep.mubr.bf16.mxu0 0
      %10015 = vmatmul.mubr.bf16.gmra.mrb[0].mxu0 %v9941
      %v10016 = vpop.f32.mrb[0].mxu0
      %v10017 = vadd.f32 0.0, %v10016
      %v10018 = vpop.f32.mrb[0].mxu0
      %v10019 = vpop.f32.mrb[0].mxu0
      %v10020 = vadd.f32 0.0, %v10019
      %v10021 = vpop.f32.mrb[0].mxu0
      %10022 = vmatprep.mubr.bf16.mxu0 0
      %10023 = vmatmul.mubr.bf16.gmra.mrb[0].mxu0 %v9944
      %v10024 = vpop.f32.mrb[0].mxu0
      %v10025 = vadd.f32 0.0, %v10024
      %v10026 = vpop.f32.mrb[0].mxu0
      %v10027 = vpop.f32.mrb[0].mxu0
      %v10028 = vadd.f32 0.0, %v10027
      %v10029 = vpop.f32.mrb[0].mxu0
      %10030 = vmatprep.mubr.bf16.mxu0 0
      %10031 = vmatmul.mubr.bf16.gmra.mrb[0].mxu0 %v9947
      %v10032 = vpop.f32.mrb[0].mxu0
      %v10033 = vadd.f32 0.0, %v10032
      %v10034 = vpop.f32.mrb[0].mxu0
      %v10035 = vpop.f32.mrb[0].mxu0
      %v10036 = vadd.f32 0.0, %v10035
      %v10037 = vpop.f32.mrb[0].mxu0
      %10038 = vmatprep.mubr.bf16.mxu0 0
      %10039 = vmatmul.mubr.bf16.gmra.mrb[0].mxu0 %v9950
      %v10040 = vpop.f32.mrb[0].mxu0
      %v10041 = vadd.f32 0.0, %v10040
      %v10042 = vpop.f32.mrb[0].mxu0
      %v10043 = vpop.f32.mrb[0].mxu0
      %v10044 = vadd.f32 0.0, %v10043
      %v10045 = vpop.f32.mrb[0].mxu0
      %10046 = vmatprep.mubr.bf16.mxu0 0
      %10047 = vmatmul.mubr.bf16.gmra.mrb[0].mxu0 %v9953
      %v10048 = vpop.f32.mrb[0].mxu0
      %v10049 = vadd.f32 0.0, %v10048
      %v10050 = vpop.f32.mrb[0].mxu0
      %v10051 = vpop.f32.mrb[0].mxu0
      %v10052 = vadd.f32 0.0, %v10051
      %v10053 = vpop.f32.mrb[0].mxu0
      %10054 = vdwg.mxu0
      %v10055 = vadd.f32 %v9674, %v9993
      %v10056 = vadd.f32 %v9675, %v9996
      %v10057 = vadd.f32 %v9676, %v10001
      %v10058 = vadd.f32 %v9677, %v10004
      %v10059 = vadd.f32 %v9678, %v10009
      %v10060 = vadd.f32 %v9679, %v10012
      %v10061 = vadd.f32 %v9680, %v10017
      %v10062 = vadd.f32 %v9681, %v10020
      %v10063 = vadd.f32 %v9682, %v10025
      %v10064 = vadd.f32 %v9683, %v10028
      %v10065 = vadd.f32 %v9684, %v10033
      %v10066 = vadd.f32 %v9685, %v10036
      %v10067 = vadd.f32 %v9686, %v10041
      %v10068 = vadd.f32 %v9687, %v10044
      %v10069 = vadd.f32 %v9688, %v10049
      %v10070 = vadd.f32 %v9689, %v10052
      %v10071 = vld [vmem:[%s9492] sm:$0xe]
      %v10072 = vld [vmem:[%s9492 + $0xc] sm:$0xe]
      %v10073 = vld [vmem:[%s9492 + $0x18] sm:$0xe]
      %v10074 = vld [vmem:[%s9492 + $0x24] sm:$0xe]
      %v10075 = vld [vmem:[%s9492 + $0x30] sm:$0xe]
      %v10076 = vld [vmem:[%s9492 + $0x3c] sm:$0xe]
      %v10077 = vld [vmem:[%s9492 + $0x48] sm:$0xe]
      %v10078 = vld [vmem:[%s9492 + $0x54] sm:$0xe]
      %v10103 = vrot.slane %v10071, 5
      %v10104 = vrot.slane %v10103, 4
      %v10105 = vrot.slane %v9691, 5
      %v10106 = vsel %vm1856, %v10104, %v10105
      %v10107 = vrot.slane %v10105, 4
      %v10108 = vrot.slane %v9692, 5
      %v10109 = vsel %vm1856, %v10107, %v10108
      %v10110 = vrot.slane %v10072, 5
      %v10111 = vrot.slane %v10110, 4
      %v10112 = vrot.slane %v9694, 5
      %v10113 = vsel %vm1856, %v10111, %v10112
      %v10114 = vrot.slane %v10112, 4
      %v10115 = vrot.slane %v9695, 5
      %v10116 = vsel %vm1856, %v10114, %v10115
      %v10117 = vrot.slane %v10073, 5
      %v10118 = vrot.slane %v10117, 4
      %v10119 = vrot.slane %v9697, 5
      %v10120 = vsel %vm1856, %v10118, %v10119
      %v10121 = vrot.slane %v10119, 4
      %v10122 = vrot.slane %v9698, 5
      %v10123 = vsel %vm1856, %v10121, %v10122
      %v10124 = vrot.slane %v10074, 5
      %v10125 = vrot.slane %v10124, 4
      %v10126 = vrot.slane %v9700, 5
      %v10127 = vsel %vm1856, %v10125, %v10126
      %v10128 = vrot.slane %v10126, 4
      %v10129 = vrot.slane %v9701, 5
      %v10130 = vsel %vm1856, %v10128, %v10129
      %v10131 = vrot.slane %v10075, 5
      %v10132 = vrot.slane %v10131, 4
      %v10133 = vrot.slane %v9703, 5
      %v10134 = vsel %vm1856, %v10132, %v10133
      %v10135 = vrot.slane %v10133, 4
      %v10136 = vrot.slane %v9704, 5
      %v10137 = vsel %vm1856, %v10135, %v10136
      %v10138 = vrot.slane %v10076, 5
      %v10139 = vrot.slane %v10138, 4
      %v10140 = vrot.slane %v9706, 5
      %v10141 = vsel %vm1856, %v10139, %v10140
      %v10142 = vrot.slane %v10140, 4
      %v10143 = vrot.slane %v9707, 5
      %v10144 = vsel %vm1856, %v10142, %v10143
      %v10145 = vrot.slane %v10077, 5
      %v10146 = vrot.slane %v10145, 4
      %v10147 = vrot.slane %v9709, 5
      %v10148 = vsel %vm1856, %v10146, %v10147
      %v10149 = vrot.slane %v10147, 4
      %v10150 = vrot.slane %v9710, 5
      %v10151 = vsel %vm1856, %v10149, %v10150
      %v10152 = vrot.slane %v10078, 5
      %v10153 = vrot.slane %v10152, 4
      %v10154 = vrot.slane %v9712, 5
      %v10155 = vsel %vm1856, %v10153, %v10154
      %v10156 = vrot.slane %v10154, 4
      %v10157 = vrot.slane %v9713, 5
      %v10158 = vsel %vm1856, %v10156, %v10157
      %v10159 = vld [vmem:[%s7576] sm:$0xf]
      %v10160 = vunpack.c.l.b16 %v10106
      %v10161 = vunpack.c.l.b16 %v10109
      %v10162 = vunpack.c.l.b16 %v10113
      %v10163 = vunpack.c.l.b16 %v10116
      %v10164 = vunpack.c.l.b16 %v10120
      %v10165 = vunpack.c.l.b16 %v10123
      %v10166 = vunpack.c.l.b16 %v10127
      %v10167 = vunpack.c.l.b16 %v10130
      %v10168 = vunpack.c.l.b16 %v10134
      %v10169 = vunpack.c.l.b16 %v10137
      %v10170 = vunpack.c.l.b16 %v10141
      %v10171 = vunpack.c.l.b16 %v10144
      %v10172 = vunpack.c.l.b16 %v10148
      %v10173 = vunpack.c.l.b16 %v10151
      %v10174 = vunpack.c.l.b16 %v10155
      %v10175 = vunpack.c.l.b16 %v10158
      %v10176 = vpack.c.b16 %v10161, %v10160
      %v10177 = vpack.c.b16 %v10163, %v10162
      %v10178 = vpack.c.b16 %v10165, %v10164
      %v10179 = vpack.c.b16 %v10167, %v10166
      %v10180 = vpack.c.b16 %v10169, %v10168
      %v10181 = vpack.c.b16 %v10171, %v10170
      %v10182 = vpack.c.b16 %v10173, %v10172
      %v10183 = vpack.c.b16 %v10175, %v10174
      %v10185 = vsel %vm6964, %v10176, 0
      %v10188 = vsel %vm6964, %v10177, 0
      %v10191 = vsel %vm6964, %v10178, 0
      %v10194 = vsel %vm6964, %v10179, 0
      %v10197 = vsel %vm6964, %v10180, 0
      %v10200 = vsel %vm6964, %v10181, 0
      %v10203 = vsel %vm6964, %v10182, 0
      %v10206 = vsel %vm6964, %v10183, 0
      %v10209 = vsel %vm6989, %v10159, 0
      %10211 = vmatprep.subr.bf16.mxu0 0
      %10212 = vmatpush1.bf16.msra.mxu0 %v10209
      %10213 = vmatprep.subr.bf16.mxu0 0
      %10214 = vmatpush1.bf16.msra.mxu0 0
      %10215 = vmatprep.subr.bf16.mxu0 0
      %10216 = vmatpush1.bf16.msra.mxu0 0
      %10217 = vmatprep.subr.bf16.mxu0 0
      %10218 = vmatpush1.bf16.msra.mxu0 0
      %10219 = vmatprep.subr.bf16.mxu0 0
      %10220 = vmatpush1.bf16.msra.mxu0 0
      %10221 = vmatprep.subr.bf16.mxu0 0
      %10222 = vmatpush1.bf16.msra.mxu0 0
      %10223 = vmatprep.subr.bf16.mxu0 0
      %10224 = vmatpush1.bf16.msra.mxu0 0
      %10225 = vmatprep.subr.bf16.mxu0 0
      %10226 = vmatpush1.bf16.msra.mxu0 0
      %10227 = vmatprep.subr.bf16.mxu0 0
      %10228 = vmatpush1.bf16.msra.mxu0 0
      %10229 = vmatprep.subr.bf16.mxu0 0
      %10230 = vmatpush1.bf16.msra.mxu0 0
      %10231 = vmatprep.subr.bf16.mxu0 0
      %10232 = vmatpush1.bf16.msra.mxu0 0
      %10233 = vmatprep.subr.bf16.mxu0 0
      %10234 = vmatpush1.bf16.msra.mxu0 0
      %10235 = vmatprep.subr.bf16.mxu0 0
      %10236 = vmatpush1.bf16.msra.mxu0 0
      %10237 = vmatprep.subr.bf16.mxu0 0
      %10238 = vmatpush1.bf16.msra.mxu0 0
      %10239 = vmatprep.subr.bf16.mxu0 0
      %10240 = vmatpush1.bf16.msra.mxu0 0
      %10241 = vmatprep.subr.bf16.mxu0 0
      %10242 = vmatpush1.bf16.msra.mxu0 0
      %10243 = vmatprep.mubr.bf16.mxu0 0
      %10244 = vmatmul.mubr.bf16.gmra.mrb[0].mxu0 %v10185
      %v10245 = vpop.f32.mrb[0].mxu0
      %v10246 = vadd.f32 0.0, %v10245
      %v10247 = vpop.f32.mrb[0].mxu0
      %v10248 = vpop.f32.mrb[0].mxu0
      %v10249 = vadd.f32 0.0, %v10248
      %v10250 = vpop.f32.mrb[0].mxu0
      %10251 = vmatprep.mubr.bf16.mxu0 0
      %10252 = vmatmul.mubr.bf16.gmra.mrb[0].mxu0 %v10188
      %v10253 = vpop.f32.mrb[0].mxu0
      %v10254 = vadd.f32 0.0, %v10253
      %v10255 = vpop.f32.mrb[0].mxu0
      %v10256 = vpop.f32.mrb[0].mxu0
      %v10257 = vadd.f32 0.0, %v10256
      %v10258 = vpop.f32.mrb[0].mxu0
      %10259 = vmatprep.mubr.bf16.mxu0 0
      %10260 = vmatmul.mubr.bf16.gmra.mrb[0].mxu0 %v10191
      %v10261 = vpop.f32.mrb[0].mxu0
      %v10262 = vadd.f32 0.0, %v10261
      %v10263 = vpop.f32.mrb[0].mxu0
      %v10264 = vpop.f32.mrb[0].mxu0
      %v10265 = vadd.f32 0.0, %v10264
      %v10266 = vpop.f32.mrb[0].mxu0
      %10267 = vmatprep.mubr.bf16.mxu0 0
      %10268 = vmatmul.mubr.bf16.gmra.mrb[0].mxu0 %v10194
      %v10269 = vpop.f32.mrb[0].mxu0
      %v10270 = vadd.f32 0.0, %v10269
      %v10271 = vpop.f32.mrb[0].mxu0
      %v10272 = vpop.f32.mrb[0].mxu0
      %v10273 = vadd.f32 0.0, %v10272
      %v10274 = vpop.f32.mrb[0].mxu0
      %10275 = vmatprep.mubr.bf16.mxu0 0
      %10276 = vmatmul.mubr.bf16.gmra.mrb[0].mxu0 %v10197
      %v10277 = vpop.f32.mrb[0].mxu0
      %v10278 = vadd.f32 0.0, %v10277
      %v10279 = vpop.f32.mrb[0].mxu0
      %v10280 = vpop.f32.mrb[0].mxu0
      %v10281 = vadd.f32 0.0, %v10280
      %v10282 = vpop.f32.mrb[0].mxu0
      %10283 = vmatprep.mubr.bf16.mxu0 0
      %10284 = vmatmul.mubr.bf16.gmra.mrb[0].mxu0 %v10200
      %v10285 = vpop.f32.mrb[0].mxu0
      %v10286 = vadd.f32 0.0, %v10285
      %v10287 = vpop.f32.mrb[0].mxu0
      %v10288 = vpop.f32.mrb[0].mxu0
      %v10289 = vadd.f32 0.0, %v10288
      %v10290 = vpop.f32.mrb[0].mxu0
      %10291 = vmatprep.mubr.bf16.mxu0 0
      %10292 = vmatmul.mubr.bf16.gmra.mrb[0].mxu0 %v10203
      %v10293 = vpop.f32.mrb[0].mxu0
      %v10294 = vadd.f32 0.0, %v10293
      %v10295 = vpop.f32.mrb[0].mxu0
      %v10296 = vpop.f32.mrb[0].mxu0
      %v10297 = vadd.f32 0.0, %v10296
      %v10298 = vpop.f32.mrb[0].mxu0
      %10299 = vmatprep.mubr.bf16.mxu0 0
      %10300 = vmatmul.mubr.bf16.gmra.mrb[0].mxu0 %v10206
      %v10301 = vpop.f32.mrb[0].mxu0
      %v10302 = vadd.f32 0.0, %v10301
      %v10303 = vpop.f32.mrb[0].mxu0
      %v10304 = vpop.f32.mrb[0].mxu0
      %v10305 = vadd.f32 0.0, %v10304
      %v10306 = vpop.f32.mrb[0].mxu0
      %10307 = vdwg.mxu0
      %v10308 = vadd.f32 %v10055, %v10246
      %v10309 = vadd.f32 %v10056, %v10249
      %v10310 = vadd.f32 %v10057, %v10254
      %v10311 = vadd.f32 %v10058, %v10257
      %v10312 = vadd.f32 %v10059, %v10262
      %v10313 = vadd.f32 %v10060, %v10265
      %v10314 = vadd.f32 %v10061, %v10270
      %v10315 = vadd.f32 %v10062, %v10273
      %v10316 = vadd.f32 %v10063, %v10278
      %v10317 = vadd.f32 %v10064, %v10281
      %v10318 = vadd.f32 %v10065, %v10286
      %v10319 = vadd.f32 %v10066, %v10289
      %v10320 = vadd.f32 %v10067, %v10294
      %v10321 = vadd.f32 %v10068, %v10297
      %v10322 = vadd.f32 %v10069, %v10302
      %v10323 = vadd.f32 %v10070, %v10305
      %v10324 = vld [vmem:[%s6834] sm:$0xf]
      %v10325 = vld [vmem:[%s6834 + $0x4] sm:$0xf]
      %v10326 = vld [vmem:[%s6834 + $0xc] sm:$0xf]
      %v10327 = vld [vmem:[%s6834 + $0x10] sm:$0xf]
      %v10328 = vld [vmem:[%s6834 + $0x18] sm:$0xf]
      %v10329 = vld [vmem:[%s6834 + $0x1c] sm:$0xf]
      %v10330 = vld [vmem:[%s6834 + $0x24] sm:$0xf]
      %v10331 = vld [vmem:[%s6834 + $0x28] sm:$0xf]
      %v10332 = vld [vmem:[%s6834 + $0x30] sm:$0xf]
      %v10333 = vld [vmem:[%s6834 + $0x34] sm:$0xf]
      %v10334 = vld [vmem:[%s6834 + $0x3c] sm:$0xf]
      %v10335 = vld [vmem:[%s6834 + $0x40] sm:$0xf]
      %v10336 = vld [vmem:[%s6834 + $0x48] sm:$0xf]
      %v10337 = vld [vmem:[%s6834 + $0x4c] sm:$0xf]
      %v10338 = vld [vmem:[%s6834 + $0x54] sm:$0xf]
      %v10339 = vld [vmem:[%s6834 + $0x58] sm:$0xf]
      %v10340 = vld [vmem:[%s7758] sm:$0xf]
      %v10357 = vunpack.c.l.b16 %v10324
      %v10358 = vunpack.c.l.b16 %v10325
      %v10359 = vunpack.c.l.b16 %v10326
      %v10360 = vunpack.c.l.b16 %v10327
      %v10361 = vunpack.c.l.b16 %v10328
      %v10362 = vunpack.c.l.b16 %v10329
      %v10363 = vunpack.c.l.b16 %v10330
      %v10364 = vunpack.c.l.b16 %v10331
      %v10365 = vunpack.c.l.b16 %v10332
      %v10366 = vunpack.c.l.b16 %v10333
      %v10367 = vunpack.c.l.b16 %v10334
      %v10368 = vunpack.c.l.b16 %v10335
      %v10369 = vunpack.c.l.b16 %v10336
      %v10370 = vunpack.c.l.b16 %v10337
      %v10371 = vunpack.c.l.b16 %v10338
      %v10372 = vunpack.c.l.b16 %v10339
      %v10373 = vpack.c.b16 %v10358, %v10357
      %v10374 = vpack.c.b16 %v10360, %v10359
      %v10375 = vpack.c.b16 %v10362, %v10361
      %v10376 = vpack.c.b16 %v10364, %v10363
      %v10377 = vpack.c.b16 %v10366, %v10365
      %v10378 = vpack.c.b16 %v10368, %v10367
      %v10379 = vpack.c.b16 %v10370, %v10369
      %v10380 = vpack.c.b16 %v10372, %v10371
      %v10382 = vsel %vm6964, %v10373, 0
      %v10385 = vsel %vm6964, %v10374, 0
      %v10388 = vsel %vm6964, %v10375, 0
      %v10391 = vsel %vm6964, %v10376, 0
      %v10394 = vsel %vm6964, %v10377, 0
      %v10397 = vsel %vm6964, %v10378, 0
      %v10400 = vsel %vm6964, %v10379, 0
      %v10403 = vsel %vm6964, %v10380, 0
      %v10406 = vsel %vm6989, %v10340, 0
      %10408 = vmatprep.subr.bf16.mxu0 0
      %10409 = vmatpush1.bf16.msra.mxu0 %v10406
      %10410 = vmatprep.subr.bf16.mxu0 0
      %10411 = vmatpush1.bf16.msra.mxu0 0
      %10412 = vmatprep.subr.bf16.mxu0 0
      %10413 = vmatpush1.bf16.msra.mxu0 0
      %10414 = vmatprep.subr.bf16.mxu0 0
      %10415 = vmatpush1.bf16.msra.mxu0 0
      %10416 = vmatprep.subr.bf16.mxu0 0
      %10417 = vmatpush1.bf16.msra.mxu0 0
      %10418 = vmatprep.subr.bf16.mxu0 0
      %10419 = vmatpush1.bf16.msra.mxu0 0
      %10420 = vmatprep.subr.bf16.mxu0 0
      %10421 = vmatpush1.bf16.msra.mxu0 0
      %10422 = vmatprep.subr.bf16.mxu0 0
      %10423 = vmatpush1.bf16.msra.mxu0 0
      %10424 = vmatprep.subr.bf16.mxu0 0
      %10425 = vmatpush1.bf16.msra.mxu0 0
      %10426 = vmatprep.subr.bf16.mxu0 0
      %10427 = vmatpush1.bf16.msra.mxu0 0
      %10428 = vmatprep.subr.bf16.mxu0 0
      %10429 = vmatpush1.bf16.msra.mxu0 0
      %10430 = vmatprep.subr.bf16.mxu0 0
      %10431 = vmatpush1.bf16.msra.mxu0 0
      %10432 = vmatprep.subr.bf16.mxu0 0
      %10433 = vmatpush1.bf16.msra.mxu0 0
      %10434 = vmatprep.subr.bf16.mxu0 0
      %10435 = vmatpush1.bf16.msra.mxu0 0
      %10436 = vmatprep.subr.bf16.mxu0 0
      %10437 = vmatpush1.bf16.msra.mxu0 0
      %10438 = vmatprep.subr.bf16.mxu0 0
      %10439 = vmatpush1.bf16.msra.mxu0 0
      %10440 = vmatprep.mubr.bf16.mxu0 0
      %10441 = vmatmul.mubr.bf16.gmra.mrb[0].mxu0 %v10382
      %v10442 = vpop.f32.mrb[0].mxu0
      %v10443 = vadd.f32 0.0, %v10442
      %v10444 = vpop.f32.mrb[0].mxu0
      %v10445 = vpop.f32.mrb[0].mxu0
      %v10446 = vadd.f32 0.0, %v10445
      %v10447 = vpop.f32.mrb[0].mxu0
      %10448 = vmatprep.mubr.bf16.mxu0 0
      %10449 = vmatmul.mubr.bf16.gmra.mrb[0].mxu0 %v10385
      %v10450 = vpop.f32.mrb[0].mxu0
      %v10451 = vadd.f32 0.0, %v10450
      %v10452 = vpop.f32.mrb[0].mxu0
      %v10453 = vpop.f32.mrb[0].mxu0
      %v10454 = vadd.f32 0.0, %v10453
      %v10455 = vpop.f32.mrb[0].mxu0
      %10456 = vmatprep.mubr.bf16.mxu0 0
      %10457 = vmatmul.mubr.bf16.gmra.mrb[0].mxu0 %v10388
      %v10458 = vpop.f32.mrb[0].mxu0
      %v10459 = vadd.f32 0.0, %v10458
      %v10460 = vpop.f32.mrb[0].mxu0
      %v10461 = vpop.f32.mrb[0].mxu0
      %v10462 = vadd.f32 0.0, %v10461
      %v10463 = vpop.f32.mrb[0].mxu0
      %10464 = vmatprep.mubr.bf16.mxu0 0
      %10465 = vmatmul.mubr.bf16.gmra.mrb[0].mxu0 %v10391
      %v10466 = vpop.f32.mrb[0].mxu0
      %v10467 = vadd.f32 0.0, %v10466
      %v10468 = vpop.f32.mrb[0].mxu0
      %v10469 = vpop.f32.mrb[0].mxu0
      %v10470 = vadd.f32 0.0, %v10469
      %v10471 = vpop.f32.mrb[0].mxu0
      %10472 = vmatprep.mubr.bf16.mxu0 0
      %10473 = vmatmul.mubr.bf16.gmra.mrb[0].mxu0 %v10394
      %v10474 = vpop.f32.mrb[0].mxu0
      %v10475 = vadd.f32 0.0, %v10474
      %v10476 = vpop.f32.mrb[0].mxu0
      %v10477 = vpop.f32.mrb[0].mxu0
      %v10478 = vadd.f32 0.0, %v10477
      %v10479 = vpop.f32.mrb[0].mxu0
      %10480 = vmatprep.mubr.bf16.mxu0 0
      %10481 = vmatmul.mubr.bf16.gmra.mrb[0].mxu0 %v10397
      %v10482 = vpop.f32.mrb[0].mxu0
      %v10483 = vadd.f32 0.0, %v10482
      %v10484 = vpop.f32.mrb[0].mxu0
      %v10485 = vpop.f32.mrb[0].mxu0
      %v10486 = vadd.f32 0.0, %v10485
      %v10487 = vpop.f32.mrb[0].mxu0
      %10488 = vmatprep.mubr.bf16.mxu0 0
      %10489 = vmatmul.mubr.bf16.gmra.mrb[0].mxu0 %v10400
      %v10490 = vpop.f32.mrb[0].mxu0
      %v10491 = vadd.f32 0.0, %v10490
      %v10492 = vpop.f32.mrb[0].mxu0
      %v10493 = vpop.f32.mrb[0].mxu0
      %v10494 = vadd.f32 0.0, %v10493
      %v10495 = vpop.f32.mrb[0].mxu0
      %10496 = vmatprep.mubr.bf16.mxu0 0
      %10497 = vmatmul.mubr.bf16.gmra.mrb[0].mxu0 %v10403
      %v10498 = vpop.f32.mrb[0].mxu0
      %v10499 = vadd.f32 0.0, %v10498
      %v10500 = vpop.f32.mrb[0].mxu0
      %v10501 = vpop.f32.mrb[0].mxu0
      %v10502 = vadd.f32 0.0, %v10501
      %v10503 = vpop.f32.mrb[0].mxu0
      %10504 = vdwg.mxu0
      %v10505 = vadd.f32 %v10308, %v10443
      %v10506 = vadd.f32 %v10309, %v10446
      %v10507 = vadd.f32 %v10310, %v10451
      %v10508 = vadd.f32 %v10311, %v10454
      %v10509 = vadd.f32 %v10312, %v10459
      %v10510 = vadd.f32 %v10313, %v10462
      %v10511 = vadd.f32 %v10314, %v10467
      %v10512 = vadd.f32 %v10315, %v10470
      %v10513 = vadd.f32 %v10316, %v10475
      %v10514 = vadd.f32 %v10317, %v10478
      %v10515 = vadd.f32 %v10318, %v10483
      %v10516 = vadd.f32 %v10319, %v10486
      %v10517 = vadd.f32 %v10320, %v10491
      %v10518 = vadd.f32 %v10321, %v10494
      %v10519 = vadd.f32 %v10322, %v10499
      %v10520 = vadd.f32 %v10323, %v10502
      %v10521 = vld [vmem:[%s6834] sm:$0xf]
      %v10522 = vld [vmem:[%s6834 + $0x4] sm:$0xf]
      %v10523 = vld [vmem:[%s6834 + $0x8] sm:$0x1]
      %v10524 = vld [vmem:[%s6834 + $0xc] sm:$0xf]
      %v10525 = vld [vmem:[%s6834 + $0x10] sm:$0xf]
      %v10526 = vld [vmem:[%s6834 + $0x14] sm:$0x1]
      %v10527 = vld [vmem:[%s6834 + $0x18] sm:$0xf]
      %v10528 = vld [vmem:[%s6834 + $0x1c] sm:$0xf]
      %v10529 = vld [vmem:[%s6834 + $0x20] sm:$0x1]
      %v10530 = vld [vmem:[%s6834 + $0x24] sm:$0xf]
      %v10531 = vld [vmem:[%s6834 + $0x28] sm:$0xf]
      %v10532 = vld [vmem:[%s6834 + $0x2c] sm:$0x1]
      %v10533 = vld [vmem:[%s6834 + $0x30] sm:$0xf]
      %v10534 = vld [vmem:[%s6834 + $0x34] sm:$0xf]
      %v10535 = vld [vmem:[%s6834 + $0x38] sm:$0x1]
      %v10536 = vld [vmem:[%s6834 + $0x3c] sm:$0xf]
      %v10537 = vld [vmem:[%s6834 + $0x40] sm:$0xf]
      %v10538 = vld [vmem:[%s6834 + $0x44] sm:$0x1]
      %v10539 = vld [vmem:[%s6834 + $0x48] sm:$0xf]
      %v10540 = vld [vmem:[%s6834 + $0x4c] sm:$0xf]
      %v10541 = vld [vmem:[%s6834 + $0x50] sm:$0x1]
      %v10542 = vld [vmem:[%s6834 + $0x54] sm:$0xf]
      %v10543 = vld [vmem:[%s6834 + $0x58] sm:$0xf]
      %v10544 = vld [vmem:[%s6834 + $0x5c] sm:$0x1]
      %v10546 = vshrl.u32 %v10521, 16
      %v10548 = vrot.slane %v10546, 4
      %v10549 = vshll.u32 %v10521, 16
      %v10551 = vrot.slane %v10549, 5
      %v10552 = vor.u32 %v10548, %v10551
      %v10553 = vrot.slane %v10552, 4
      %v10555 = vshll.u32 %v10522, 16
      %v10557 = vrot.slane %v10555, 5
      %v10558 = vsel %vm1463, %v10553, %v10557
      %v10559 = vshrl.u32 %v10522, 16
      %v10561 = vrot.slane %v10559, 4
      %v10562 = vor.u32 %v10561, %v10557
      %v10563 = vrot.slane %v10562, 4
      %v10565 = vshll.u32 %v10523, 16
      %v10567 = vrot.slane %v10565, 5
      %v10568 = vsel %vm1463, %v10563, %v10567
      %v10570 = vshrl.u32 %v10524, 16
      %v10572 = vrot.slane %v10570, 4
      %v10573 = vshll.u32 %v10524, 16
      %v10575 = vrot.slane %v10573, 5
      %v10576 = vor.u32 %v10572, %v10575
      %v10577 = vrot.slane %v10576, 4
      %v10579 = vshll.u32 %v10525, 16
      %v10581 = vrot.slane %v10579, 5
      %v10582 = vsel %vm1463, %v10577, %v10581
      %v10583 = vshrl.u32 %v10525, 16
      %v10585 = vrot.slane %v10583, 4
      %v10586 = vor.u32 %v10585, %v10581
      %v10587 = vrot.slane %v10586, 4
      %v10589 = vshll.u32 %v10526, 16
      %v10591 = vrot.slane %v10589, 5
      %v10592 = vsel %vm1463, %v10587, %v10591
      %v10594 = vshrl.u32 %v10527, 16
      %v10596 = vrot.slane %v10594, 4
      %v10597 = vshll.u32 %v10527, 16
      %v10599 = vrot.slane %v10597, 5
      %v10600 = vor.u32 %v10596, %v10599
      %v10601 = vrot.slane %v10600, 4
      %v10603 = vshll.u32 %v10528, 16
      %v10605 = vrot.slane %v10603, 5
      %v10606 = vsel %vm1463, %v10601, %v10605
      %v10607 = vshrl.u32 %v10528, 16
      %v10609 = vrot.slane %v10607, 4
      %v10610 = vor.u32 %v10609, %v10605
      %v10611 = vrot.slane %v10610, 4
      %v10613 = vshll.u32 %v10529, 16
      %v10615 = vrot.slane %v10613, 5
      %v10616 = vsel %vm1463, %v10611, %v10615
      %v10618 = vshrl.u32 %v10530, 16
      %v10620 = vrot.slane %v10618, 4
      %v10621 = vshll.u32 %v10530, 16
      %v10623 = vrot.slane %v10621, 5
      %v10624 = vor.u32 %v10620, %v10623
      %v10625 = vrot.slane %v10624, 4
      %v10627 = vshll.u32 %v10531, 16
      %v10629 = vrot.slane %v10627, 5
      %v10630 = vsel %vm1463, %v10625, %v10629
      %v10631 = vshrl.u32 %v10531, 16
      %v10633 = vrot.slane %v10631, 4
      %v10634 = vor.u32 %v10633, %v10629
      %v10635 = vrot.slane %v10634, 4
      %v10637 = vshll.u32 %v10532, 16
      %v10639 = vrot.slane %v10637, 5
      %v10640 = vsel %vm1463, %v10635, %v10639
      %v10642 = vshrl.u32 %v10533, 16
      %v10644 = vrot.slane %v10642, 4
      %v10645 = vshll.u32 %v10533, 16
      %v10647 = vrot.slane %v10645, 5
      %v10648 = vor.u32 %v10644, %v10647
      %v10649 = vrot.slane %v10648, 4
      %v10651 = vshll.u32 %v10534, 16
      %v10653 = vrot.slane %v10651, 5
      %v10654 = vsel %vm1463, %v10649, %v10653
      %v10655 = vshrl.u32 %v10534, 16
      %v10657 = vrot.slane %v10655, 4
      %v10658 = vor.u32 %v10657, %v10653
      %v10659 = vrot.slane %v10658, 4
      %v10661 = vshll.u32 %v10535, 16
      %v10663 = vrot.slane %v10661, 5
      %v10664 = vsel %vm1463, %v10659, %v10663
      %v10666 = vshrl.u32 %v10536, 16
      %v10668 = vrot.slane %v10666, 4
      %v10669 = vshll.u32 %v10536, 16
      %v10671 = vrot.slane %v10669, 5
      %v10672 = vor.u32 %v10668, %v10671
      %v10673 = vrot.slane %v10672, 4
      %v10675 = vshll.u32 %v10537, 16
      %v10677 = vrot.slane %v10675, 5
      %v10678 = vsel %vm1463, %v10673, %v10677
      %v10679 = vshrl.u32 %v10537, 16
      %v10681 = vrot.slane %v10679, 4
      %v10682 = vor.u32 %v10681, %v10677
      %v10683 = vrot.slane %v10682, 4
      %v10685 = vshll.u32 %v10538, 16
      %v10687 = vrot.slane %v10685, 5
      %v10688 = vsel %vm1463, %v10683, %v10687
      %v10690 = vshrl.u32 %v10539, 16
      %v10692 = vrot.slane %v10690, 4
      %v10693 = vshll.u32 %v10539, 16
      %v10695 = vrot.slane %v10693, 5
      %v10696 = vor.u32 %v10692, %v10695
      %v10697 = vrot.slane %v10696, 4
      %v10699 = vshll.u32 %v10540, 16
      %v10701 = vrot.slane %v10699, 5
      %v10702 = vsel %vm1463, %v10697, %v10701
      %v10703 = vshrl.u32 %v10540, 16
      %v10705 = vrot.slane %v10703, 4
      %v10706 = vor.u32 %v10705, %v10701
      %v10707 = vrot.slane %v10706, 4
      %v10709 = vshll.u32 %v10541, 16
      %v10711 = vrot.slane %v10709, 5
      %v10712 = vsel %vm1463, %v10707, %v10711
      %v10714 = vshrl.u32 %v10542, 16
      %v10716 = vrot.slane %v10714, 4
      %v10717 = vshll.u32 %v10542, 16
      %v10719 = vrot.slane %v10717, 5
      %v10720 = vor.u32 %v10716, %v10719
      %v10721 = vrot.slane %v10720, 4
      %v10723 = vshll.u32 %v10543, 16
      %v10725 = vrot.slane %v10723, 5
      %v10726 = vsel %vm1463, %v10721, %v10725
      %v10727 = vshrl.u32 %v10543, 16
      %v10729 = vrot.slane %v10727, 4
      %v10730 = vor.u32 %v10729, %v10725
      %v10731 = vrot.slane %v10730, 4
      %v10733 = vshll.u32 %v10544, 16
      %v10735 = vrot.slane %v10733, 5
      %v10736 = vsel %vm1463, %v10731, %v10735
      %v10737 = vld [vmem:[%s8156] sm:$0xf]
      %v10738 = vunpack.c.l.b16 %v10558
      %v10739 = vunpack.c.l.b16 %v10568
      %v10740 = vunpack.c.l.b16 %v10582
      %v10741 = vunpack.c.l.b16 %v10592
      %v10742 = vunpack.c.l.b16 %v10606
      %v10743 = vunpack.c.l.b16 %v10616
      %v10744 = vunpack.c.l.b16 %v10630
      %v10745 = vunpack.c.l.b16 %v10640
      %v10746 = vunpack.c.l.b16 %v10654
      %v10747 = vunpack.c.l.b16 %v10664
      %v10748 = vunpack.c.l.b16 %v10678
      %v10749 = vunpack.c.l.b16 %v10688
      %v10750 = vunpack.c.l.b16 %v10702
      %v10751 = vunpack.c.l.b16 %v10712
      %v10752 = vunpack.c.l.b16 %v10726
      %v10753 = vunpack.c.l.b16 %v10736
      %v10754 = vpack.c.b16 %v10739, %v10738
      %v10755 = vpack.c.b16 %v10741, %v10740
      %v10756 = vpack.c.b16 %v10743, %v10742
      %v10757 = vpack.c.b16 %v10745, %v10744
      %v10758 = vpack.c.b16 %v10747, %v10746
      %v10759 = vpack.c.b16 %v10749, %v10748
      %v10760 = vpack.c.b16 %v10751, %v10750
      %v10761 = vpack.c.b16 %v10753, %v10752
      %v10763 = vsel %vm6964, %v10754, 0
      %v10766 = vsel %vm6964, %v10755, 0
      %v10769 = vsel %vm6964, %v10756, 0
      %v10772 = vsel %vm6964, %v10757, 0
      %v10775 = vsel %vm6964, %v10758, 0
      %v10778 = vsel %vm6964, %v10759, 0
      %v10781 = vsel %vm6964, %v10760, 0
      %v10784 = vsel %vm6964, %v10761, 0
      %v10787 = vsel %vm6989, %v10737, 0
      %10789 = vmatprep.subr.bf16.mxu0 0
      %10790 = vmatpush1.bf16.msra.mxu0 %v10787
      %10791 = vmatprep.subr.bf16.mxu0 0
      %10792 = vmatpush1.bf16.msra.mxu0 0
      %10793 = vmatprep.subr.bf16.mxu0 0
      %10794 = vmatpush1.bf16.msra.mxu0 0
      %10795 = vmatprep.subr.bf16.mxu0 0
      %10796 = vmatpush1.bf16.msra.mxu0 0
      %10797 = vmatprep.subr.bf16.mxu0 0
      %10798 = vmatpush1.bf16.msra.mxu0 0
      %10799 = vmatprep.subr.bf16.mxu0 0
      %10800 = vmatpush1.bf16.msra.mxu0 0
      %10801 = vmatprep.subr.bf16.mxu0 0
      %10802 = vmatpush1.bf16.msra.mxu0 0
      %10803 = vmatprep.subr.bf16.mxu0 0
      %10804 = vmatpush1.bf16.msra.mxu0 0
      %10805 = vmatprep.subr.bf16.mxu0 0
      %10806 = vmatpush1.bf16.msra.mxu0 0
      %10807 = vmatprep.subr.bf16.mxu0 0
      %10808 = vmatpush1.bf16.msra.mxu0 0
      %10809 = vmatprep.subr.bf16.mxu0 0
      %10810 = vmatpush1.bf16.msra.mxu0 0
      %10811 = vmatprep.subr.bf16.mxu0 0
      %10812 = vmatpush1.bf16.msra.mxu0 0
      %10813 = vmatprep.subr.bf16.mxu0 0
      %10814 = vmatpush1.bf16.msra.mxu0 0
      %10815 = vmatprep.subr.bf16.mxu0 0
      %10816 = vmatpush1.bf16.msra.mxu0 0
      %10817 = vmatprep.subr.bf16.mxu0 0
      %10818 = vmatpush1.bf16.msra.mxu0 0
      %10819 = vmatprep.subr.bf16.mxu0 0
      %10820 = vmatpush1.bf16.msra.mxu0 0
      %10821 = vmatprep.mubr.bf16.mxu0 0
      %10822 = vmatmul.mubr.bf16.gmra.mrb[0].mxu0 %v10763
      %v10823 = vpop.f32.mrb[0].mxu0
      %v10824 = vadd.f32 0.0, %v10823
      %v10825 = vpop.f32.mrb[0].mxu0
      %v10826 = vpop.f32.mrb[0].mxu0
      %v10827 = vadd.f32 0.0, %v10826
      %v10828 = vpop.f32.mrb[0].mxu0
      %10829 = vmatprep.mubr.bf16.mxu0 0
      %10830 = vmatmul.mubr.bf16.gmra.mrb[0].mxu0 %v10766
      %v10831 = vpop.f32.mrb[0].mxu0
      %v10832 = vadd.f32 0.0, %v10831
      %v10833 = vpop.f32.mrb[0].mxu0
      %v10834 = vpop.f32.mrb[0].mxu0
      %v10835 = vadd.f32 0.0, %v10834
      %v10836 = vpop.f32.mrb[0].mxu0
      %10837 = vmatprep.mubr.bf16.mxu0 0
      %10838 = vmatmul.mubr.bf16.gmra.mrb[0].mxu0 %v10769
      %v10839 = vpop.f32.mrb[0].mxu0
      %v10840 = vadd.f32 0.0, %v10839
      %v10841 = vpop.f32.mrb[0].mxu0
      %v10842 = vpop.f32.mrb[0].mxu0
      %v10843 = vadd.f32 0.0, %v10842
      %v10844 = vpop.f32.mrb[0].mxu0
      %10845 = vmatprep.mubr.bf16.mxu0 0
      %10846 = vmatmul.mubr.bf16.gmra.mrb[0].mxu0 %v10772
      %v10847 = vpop.f32.mrb[0].mxu0
      %v10848 = vadd.f32 0.0, %v10847
      %v10849 = vpop.f32.mrb[0].mxu0
      %v10850 = vpop.f32.mrb[0].mxu0
      %v10851 = vadd.f32 0.0, %v10850
      %v10852 = vpop.f32.mrb[0].mxu0
      %10853 = vmatprep.mubr.bf16.mxu0 0
      %10854 = vmatmul.mubr.bf16.gmra.mrb[0].mxu0 %v10775
      %v10855 = vpop.f32.mrb[0].mxu0
      %v10856 = vadd.f32 0.0, %v10855
      %v10857 = vpop.f32.mrb[0].mxu0
      %v10858 = vpop.f32.mrb[0].mxu0
      %v10859 = vadd.f32 0.0, %v10858
      %v10860 = vpop.f32.mrb[0].mxu0
      %10861 = vmatprep.mubr.bf16.mxu0 0
      %10862 = vmatmul.mubr.bf16.gmra.mrb[0].mxu0 %v10778
      %v10863 = vpop.f32.mrb[0].mxu0
      %v10864 = vadd.f32 0.0, %v10863
      %v10865 = vpop.f32.mrb[0].mxu0
      %v10866 = vpop.f32.mrb[0].mxu0
      %v10867 = vadd.f32 0.0, %v10866
      %v10868 = vpop.f32.mrb[0].mxu0
      %10869 = vmatprep.mubr.bf16.mxu0 0
      %10870 = vmatmul.mubr.bf16.gmra.mrb[0].mxu0 %v10781
      %v10871 = vpop.f32.mrb[0].mxu0
      %v10872 = vadd.f32 0.0, %v10871
      %v10873 = vpop.f32.mrb[0].mxu0
      %v10874 = vpop.f32.mrb[0].mxu0
      %v10875 = vadd.f32 0.0, %v10874
      %v10876 = vpop.f32.mrb[0].mxu0
      %10877 = vmatprep.mubr.bf16.mxu0 0
      %10878 = vmatmul.mubr.bf16.gmra.mrb[0].mxu0 %v10784
      %v10879 = vpop.f32.mrb[0].mxu0
      %v10880 = vadd.f32 0.0, %v10879
      %v10881 = vpop.f32.mrb[0].mxu0
      %v10882 = vpop.f32.mrb[0].mxu0
      %v10883 = vadd.f32 0.0, %v10882
      %v10884 = vpop.f32.mrb[0].mxu0
      %10885 = vdwg.mxu0
      %v10886 = vadd.f32 %v10505, %v10824
      %v10887 = vadd.f32 %v10506, %v10827
      %v10888 = vadd.f32 %v10507, %v10832
      %v10889 = vadd.f32 %v10508, %v10835
      %v10890 = vadd.f32 %v10509, %v10840
      %v10891 = vadd.f32 %v10510, %v10843
      %v10892 = vadd.f32 %v10511, %v10848
      %v10893 = vadd.f32 %v10512, %v10851
      %v10894 = vadd.f32 %v10513, %v10856
      %v10895 = vadd.f32 %v10514, %v10859
      %v10896 = vadd.f32 %v10515, %v10864
      %v10897 = vadd.f32 %v10516, %v10867
      %v10898 = vadd.f32 %v10517, %v10872
      %v10899 = vadd.f32 %v10518, %v10875
      %v10900 = vadd.f32 %v10519, %v10880
      %v10901 = vadd.f32 %v10520, %v10883
      %v10902 = vld [vmem:[%s6834] sm:$0xe]
      %v10903 = vld [vmem:[%s6834 + $0xc] sm:$0xe]
      %v10904 = vld [vmem:[%s6834 + $0x18] sm:$0xe]
      %v10905 = vld [vmem:[%s6834 + $0x24] sm:$0xe]
      %v10906 = vld [vmem:[%s6834 + $0x30] sm:$0xe]
      %v10907 = vld [vmem:[%s6834 + $0x3c] sm:$0xe]
      %v10908 = vld [vmem:[%s6834 + $0x48] sm:$0xe]
      %v10909 = vld [vmem:[%s6834 + $0x54] sm:$0xe]
      %v10934 = vrot.slane %v10902, 5
      %v10935 = vrot.slane %v10934, 4
      %v10936 = vrot.slane %v10522, 5
      %v10937 = vsel %vm1856, %v10935, %v10936
      %v10938 = vrot.slane %v10936, 4
      %v10939 = vrot.slane %v10523, 5
      %v10940 = vsel %vm1856, %v10938, %v10939
      %v10941 = vrot.slane %v10903, 5
      %v10942 = vrot.slane %v10941, 4
      %v10943 = vrot.slane %v10525, 5
      %v10944 = vsel %vm1856, %v10942, %v10943
      %v10945 = vrot.slane %v10943, 4
      %v10946 = vrot.slane %v10526, 5
      %v10947 = vsel %vm1856, %v10945, %v10946
      %v10948 = vrot.slane %v10904, 5
      %v10949 = vrot.slane %v10948, 4
      %v10950 = vrot.slane %v10528, 5
      %v10951 = vsel %vm1856, %v10949, %v10950
      %v10952 = vrot.slane %v10950, 4
      %v10953 = vrot.slane %v10529, 5
      %v10954 = vsel %vm1856, %v10952, %v10953
      %v10955 = vrot.slane %v10905, 5
      %v10956 = vrot.slane %v10955, 4
      %v10957 = vrot.slane %v10531, 5
      %v10958 = vsel %vm1856, %v10956, %v10957
      %v10959 = vrot.slane %v10957, 4
      %v10960 = vrot.slane %v10532, 5
      %v10961 = vsel %vm1856, %v10959, %v10960
      %v10962 = vrot.slane %v10906, 5
      %v10963 = vrot.slane %v10962, 4
      %v10964 = vrot.slane %v10534, 5
      %v10965 = vsel %vm1856, %v10963, %v10964
      %v10966 = vrot.slane %v10964, 4
      %v10967 = vrot.slane %v10535, 5
      %v10968 = vsel %vm1856, %v10966, %v10967
      %v10969 = vrot.slane %v10907, 5
      %v10970 = vrot.slane %v10969, 4
      %v10971 = vrot.slane %v10537, 5
      %v10972 = vsel %vm1856, %v10970, %v10971
      %v10973 = vrot.slane %v10971, 4
      %v10974 = vrot.slane %v10538, 5
      %v10975 = vsel %vm1856, %v10973, %v10974
      %v10976 = vrot.slane %v10908, 5
      %v10977 = vrot.slane %v10976, 4
      %v10978 = vrot.slane %v10540, 5
      %v10979 = vsel %vm1856, %v10977, %v10978
      %v10980 = vrot.slane %v10978, 4
      %v10981 = vrot.slane %v10541, 5
      %v10982 = vsel %vm1856, %v10980, %v10981
      %v10983 = vrot.slane %v10909, 5
      %v10984 = vrot.slane %v10983, 4
      %v10985 = vrot.slane %v10543, 5
      %v10986 = vsel %vm1856, %v10984, %v10985
      %v10987 = vrot.slane %v10985, 4
      %v10988 = vrot.slane %v10544, 5
      %v10989 = vsel %vm1856, %v10987, %v10988
      %v10990 = vld [vmem:[%s8410] sm:$0xf]
      %v10991 = vunpack.c.l.b16 %v10937
      %v10992 = vunpack.c.l.b16 %v10940
      %v10993 = vunpack.c.l.b16 %v10944
      %v10994 = vunpack.c.l.b16 %v10947
      %v10995 = vunpack.c.l.b16 %v10951
      %v10996 = vunpack.c.l.b16 %v10954
      %v10997 = vunpack.c.l.b16 %v10958
      %v10998 = vunpack.c.l.b16 %v10961
      %v10999 = vunpack.c.l.b16 %v10965
      %v11000 = vunpack.c.l.b16 %v10968
      %v11001 = vunpack.c.l.b16 %v10972
      %v11002 = vunpack.c.l.b16 %v10975
      %v11003 = vunpack.c.l.b16 %v10979
      %v11004 = vunpack.c.l.b16 %v10982
      %v11005 = vunpack.c.l.b16 %v10986
      %v11006 = vunpack.c.l.b16 %v10989
      %v11007 = vpack.c.b16 %v10992, %v10991
      %v11008 = vpack.c.b16 %v10994, %v10993
      %v11009 = vpack.c.b16 %v10996, %v10995
      %v11010 = vpack.c.b16 %v10998, %v10997
      %v11011 = vpack.c.b16 %v11000, %v10999
      %v11012 = vpack.c.b16 %v11002, %v11001
      %v11013 = vpack.c.b16 %v11004, %v11003
      %v11014 = vpack.c.b16 %v11006, %v11005
      %v11016 = vsel %vm6964, %v11007, 0
      %v11019 = vsel %vm6964, %v11008, 0
      %v11022 = vsel %vm6964, %v11009, 0
      %v11025 = vsel %vm6964, %v11010, 0
      %v11028 = vsel %vm6964, %v11011, 0
      %v11031 = vsel %vm6964, %v11012, 0
      %v11034 = vsel %vm6964, %v11013, 0
      %v11037 = vsel %vm6964, %v11014, 0
      %v11040 = vsel %vm6989, %v10990, 0
      %11042 = vmatprep.subr.bf16.mxu0 0
      %11043 = vmatpush1.bf16.msra.mxu0 %v11040
      %11044 = vmatprep.subr.bf16.mxu0 0
      %11045 = vmatpush1.bf16.msra.mxu0 0
      %11046 = vmatprep.subr.bf16.mxu0 0
      %11047 = vmatpush1.bf16.msra.mxu0 0
      %11048 = vmatprep.subr.bf16.mxu0 0
      %11049 = vmatpush1.bf16.msra.mxu0 0
      %11050 = vmatprep.subr.bf16.mxu0 0
      %11051 = vmatpush1.bf16.msra.mxu0 0
      %11052 = vmatprep.subr.bf16.mxu0 0
      %11053 = vmatpush1.bf16.msra.mxu0 0
      %11054 = vmatprep.subr.bf16.mxu0 0
      %11055 = vmatpush1.bf16.msra.mxu0 0
      %11056 = vmatprep.subr.bf16.mxu0 0
      %11057 = vmatpush1.bf16.msra.mxu0 0
      %11058 = vmatprep.subr.bf16.mxu0 0
      %11059 = vmatpush1.bf16.msra.mxu0 0
      %11060 = vmatprep.subr.bf16.mxu0 0
      %11061 = vmatpush1.bf16.msra.mxu0 0
      %11062 = vmatprep.subr.bf16.mxu0 0
      %11063 = vmatpush1.bf16.msra.mxu0 0
      %11064 = vmatprep.subr.bf16.mxu0 0
      %11065 = vmatpush1.bf16.msra.mxu0 0
      %11066 = vmatprep.subr.bf16.mxu0 0
      %11067 = vmatpush1.bf16.msra.mxu0 0
      %11068 = vmatprep.subr.bf16.mxu0 0
      %11069 = vmatpush1.bf16.msra.mxu0 0
      %11070 = vmatprep.subr.bf16.mxu0 0
      %11071 = vmatpush1.bf16.msra.mxu0 0
      %11072 = vmatprep.subr.bf16.mxu0 0
      %11073 = vmatpush1.bf16.msra.mxu0 0
      %11074 = vmatprep.mubr.bf16.mxu0 0
      %11075 = vmatmul.mubr.bf16.gmra.mrb[0].mxu0 %v11016
      %v11076 = vpop.f32.mrb[0].mxu0
      %v11077 = vadd.f32 0.0, %v11076
      %v11078 = vpop.f32.mrb[0].mxu0
      %v11079 = vpop.f32.mrb[0].mxu0
      %v11080 = vadd.f32 0.0, %v11079
      %v11081 = vpop.f32.mrb[0].mxu0
      %11082 = vmatprep.mubr.bf16.mxu0 0
      %11083 = vmatmul.mubr.bf16.gmra.mrb[0].mxu0 %v11019
      %v11084 = vpop.f32.mrb[0].mxu0
      %v11085 = vadd.f32 0.0, %v11084
      %v11086 = vpop.f32.mrb[0].mxu0
      %v11087 = vpop.f32.mrb[0].mxu0
      %v11088 = vadd.f32 0.0, %v11087
      %v11089 = vpop.f32.mrb[0].mxu0
      %11090 = vmatprep.mubr.bf16.mxu0 0
      %11091 = vmatmul.mubr.bf16.gmra.mrb[0].mxu0 %v11022
      %v11092 = vpop.f32.mrb[0].mxu0
      %v11093 = vadd.f32 0.0, %v11092
      %v11094 = vpop.f32.mrb[0].mxu0
      %v11095 = vpop.f32.mrb[0].mxu0
      %v11096 = vadd.f32 0.0, %v11095
      %v11097 = vpop.f32.mrb[0].mxu0
      %11098 = vmatprep.mubr.bf16.mxu0 0
      %11099 = vmatmul.mubr.bf16.gmra.mrb[0].mxu0 %v11025
      %v11100 = vpop.f32.mrb[0].mxu0
      %v11101 = vadd.f32 0.0, %v11100
      %v11102 = vpop.f32.mrb[0].mxu0
      %v11103 = vpop.f32.mrb[0].mxu0
      %v11104 = vadd.f32 0.0, %v11103
      %v11105 = vpop.f32.mrb[0].mxu0
      %11106 = vmatprep.mubr.bf16.mxu0 0
      %11107 = vmatmul.mubr.bf16.gmra.mrb[0].mxu0 %v11028
      %v11108 = vpop.f32.mrb[0].mxu0
      %v11109 = vadd.f32 0.0, %v11108
      %v11110 = vpop.f32.mrb[0].mxu0
      %v11111 = vpop.f32.mrb[0].mxu0
      %v11112 = vadd.f32 0.0, %v11111
      %v11113 = vpop.f32.mrb[0].mxu0
      %11114 = vmatprep.mubr.bf16.mxu0 0
      %11115 = vmatmul.mubr.bf16.gmra.mrb[0].mxu0 %v11031
      %v11116 = vpop.f32.mrb[0].mxu0
      %v11117 = vadd.f32 0.0, %v11116
      %v11118 = vpop.f32.mrb[0].mxu0
      %v11119 = vpop.f32.mrb[0].mxu0
      %v11120 = vadd.f32 0.0, %v11119
      %v11121 = vpop.f32.mrb[0].mxu0
      %11122 = vmatprep.mubr.bf16.mxu0 0
      %11123 = vmatmul.mubr.bf16.gmra.mrb[0].mxu0 %v11034
      %v11124 = vpop.f32.mrb[0].mxu0
      %v11125 = vadd.f32 0.0, %v11124
      %v11126 = vpop.f32.mrb[0].mxu0
      %v11127 = vpop.f32.mrb[0].mxu0
      %v11128 = vadd.f32 0.0, %v11127
      %v11129 = vpop.f32.mrb[0].mxu0
      %11130 = vmatprep.mubr.bf16.mxu0 0
      %11131 = vmatmul.mubr.bf16.gmra.mrb[0].mxu0 %v11037
      %v11132 = vpop.f32.mrb[0].mxu0
      %v11133 = vadd.f32 0.0, %v11132
      %v11134 = vpop.f32.mrb[0].mxu0
      %v11135 = vpop.f32.mrb[0].mxu0
      %v11136 = vadd.f32 0.0, %v11135
      %v11137 = vpop.f32.mrb[0].mxu0
      %11138 = vdwg.mxu0
      %v11139 = vadd.f32 %v10886, %v11077
      %v11140 = vadd.f32 %v10887, %v11080
      %v11141 = vadd.f32 %v10888, %v11085
      %v11142 = vadd.f32 %v10889, %v11088
      %v11143 = vadd.f32 %v10890, %v11093
      %v11144 = vadd.f32 %v10891, %v11096
      %v11145 = vadd.f32 %v10892, %v11101
      %v11146 = vadd.f32 %v10893, %v11104
      %v11147 = vadd.f32 %v10894, %v11109
      %v11148 = vadd.f32 %v10895, %v11112
      %v11149 = vadd.f32 %v10896, %v11117
      %v11150 = vadd.f32 %v10897, %v11120
      %v11151 = vadd.f32 %v10898, %v11125
      %v11152 = vadd.f32 %v10899, %v11128
      %v11153 = vadd.f32 %v10900, %v11133
      %v11154 = vadd.f32 %v10901, %v11136
      %s11155 = scalar_lea.vmem [#allocation3], 120
      %v11156 = vld [vmem:[%s11155] sm:$0xf]
      %v11157 = vld [vmem:[%s11155 + $0x4] sm:$0xf]
      %v11158 = vld [vmem:[%s11155 + $0xc] sm:$0xf]
      %v11159 = vld [vmem:[%s11155 + $0x10] sm:$0xf]
      %v11160 = vld [vmem:[%s11155 + $0x18] sm:$0xf]
      %v11161 = vld [vmem:[%s11155 + $0x1c] sm:$0xf]
      %v11162 = vld [vmem:[%s11155 + $0x24] sm:$0xf]
      %v11163 = vld [vmem:[%s11155 + $0x28] sm:$0xf]
      %v11164 = vld [vmem:[%s11155 + $0x30] sm:$0xf]
      %v11165 = vld [vmem:[%s11155 + $0x34] sm:$0xf]
      %v11166 = vld [vmem:[%s11155 + $0x3c] sm:$0xf]
      %v11167 = vld [vmem:[%s11155 + $0x40] sm:$0xf]
      %v11168 = vld [vmem:[%s11155 + $0x48] sm:$0xf]
      %v11169 = vld [vmem:[%s11155 + $0x4c] sm:$0xf]
      %v11170 = vld [vmem:[%s11155 + $0x54] sm:$0xf]
      %v11171 = vld [vmem:[%s11155 + $0x58] sm:$0xf]
      %v11172 = vld [vmem:[%s8593] sm:$0xf]
      %v11189 = vunpack.c.l.b16 %v11156
      %v11190 = vunpack.c.l.b16 %v11157
      %v11191 = vunpack.c.l.b16 %v11158
      %v11192 = vunpack.c.l.b16 %v11159
      %v11193 = vunpack.c.l.b16 %v11160
      %v11194 = vunpack.c.l.b16 %v11161
      %v11195 = vunpack.c.l.b16 %v11162
      %v11196 = vunpack.c.l.b16 %v11163
      %v11197 = vunpack.c.l.b16 %v11164
      %v11198 = vunpack.c.l.b16 %v11165
      %v11199 = vunpack.c.l.b16 %v11166
      %v11200 = vunpack.c.l.b16 %v11167
      %v11201 = vunpack.c.l.b16 %v11168
      %v11202 = vunpack.c.l.b16 %v11169
      %v11203 = vunpack.c.l.b16 %v11170
      %v11204 = vunpack.c.l.b16 %v11171
      %v11205 = vpack.c.b16 %v11190, %v11189
      %v11206 = vpack.c.b16 %v11192, %v11191
      %v11207 = vpack.c.b16 %v11194, %v11193
      %v11208 = vpack.c.b16 %v11196, %v11195
      %v11209 = vpack.c.b16 %v11198, %v11197
      %v11210 = vpack.c.b16 %v11200, %v11199
      %v11211 = vpack.c.b16 %v11202, %v11201
      %v11212 = vpack.c.b16 %v11204, %v11203
      %v11214 = vsel %vm6964, %v11205, 0
      %v11217 = vsel %vm6964, %v11206, 0
      %v11220 = vsel %vm6964, %v11207, 0
      %v11223 = vsel %vm6964, %v11208, 0
      %v11226 = vsel %vm6964, %v11209, 0
      %v11229 = vsel %vm6964, %v11210, 0
      %v11232 = vsel %vm6964, %v11211, 0
      %v11235 = vsel %vm6964, %v11212, 0
      %v11238 = vsel %vm6989, %v11172, 0
      %11240 = vmatprep.subr.bf16.mxu0 0
      %11241 = vmatpush1.bf16.msra.mxu0 %v11238
      %11242 = vmatprep.subr.bf16.mxu0 0
      %11243 = vmatpush1.bf16.msra.mxu0 0
      %11244 = vmatprep.subr.bf16.mxu0 0
      %11245 = vmatpush1.bf16.msra.mxu0 0
      %11246 = vmatprep.subr.bf16.mxu0 0
      %11247 = vmatpush1.bf16.msra.mxu0 0
      %11248 = vmatprep.subr.bf16.mxu0 0
      %11249 = vmatpush1.bf16.msra.mxu0 0
      %11250 = vmatprep.subr.bf16.mxu0 0
      %11251 = vmatpush1.bf16.msra.mxu0 0
      %11252 = vmatprep.subr.bf16.mxu0 0
      %11253 = vmatpush1.bf16.msra.mxu0 0
      %11254 = vmatprep.subr.bf16.mxu0 0
      %11255 = vmatpush1.bf16.msra.mxu0 0
      %11256 = vmatprep.subr.bf16.mxu0 0
      %11257 = vmatpush1.bf16.msra.mxu0 0
      %11258 = vmatprep.subr.bf16.mxu0 0
      %11259 = vmatpush1.bf16.msra.mxu0 0
      %11260 = vmatprep.subr.bf16.mxu0 0
      %11261 = vmatpush1.bf16.msra.mxu0 0
      %11262 = vmatprep.subr.bf16.mxu0 0
      %11263 = vmatpush1.bf16.msra.mxu0 0
      %11264 = vmatprep.subr.bf16.mxu0 0
      %11265 = vmatpush1.bf16.msra.mxu0 0
      %11266 = vmatprep.subr.bf16.mxu0 0
      %11267 = vmatpush1.bf16.msra.mxu0 0
      %11268 = vmatprep.subr.bf16.mxu0 0
      %11269 = vmatpush1.bf16.msra.mxu0 0
      %11270 = vmatprep.subr.bf16.mxu0 0
      %11271 = vmatpush1.bf16.msra.mxu0 0
      %11272 = vmatprep.mubr.bf16.mxu0 0
      %11273 = vmatmul.mubr.bf16.gmra.mrb[0].mxu0 %v11214
      %v11274 = vpop.f32.mrb[0].mxu0
      %v11275 = vadd.f32 0.0, %v11274
      %v11276 = vpop.f32.mrb[0].mxu0
      %v11277 = vpop.f32.mrb[0].mxu0
      %v11278 = vadd.f32 0.0, %v11277
      %v11279 = vpop.f32.mrb[0].mxu0
      %11280 = vmatprep.mubr.bf16.mxu0 0
      %11281 = vmatmul.mubr.bf16.gmra.mrb[0].mxu0 %v11217
      %v11282 = vpop.f32.mrb[0].mxu0
      %v11283 = vadd.f32 0.0, %v11282
      %v11284 = vpop.f32.mrb[0].mxu0
      %v11285 = vpop.f32.mrb[0].mxu0
      %v11286 = vadd.f32 0.0, %v11285
      %v11287 = vpop.f32.mrb[0].mxu0
      %11288 = vmatprep.mubr.bf16.mxu0 0
      %11289 = vmatmul.mubr.bf16.gmra.mrb[0].mxu0 %v11220
      %v11290 = vpop.f32.mrb[0].mxu0
      %v11291 = vadd.f32 0.0, %v11290
      %v11292 = vpop.f32.mrb[0].mxu0
      %v11293 = vpop.f32.mrb[0].mxu0
      %v11294 = vadd.f32 0.0, %v11293
      %v11295 = vpop.f32.mrb[0].mxu0
      %11296 = vmatprep.mubr.bf16.mxu0 0
      %11297 = vmatmul.mubr.bf16.gmra.mrb[0].mxu0 %v11223
      %v11298 = vpop.f32.mrb[0].mxu0
      %v11299 = vadd.f32 0.0, %v11298
      %v11300 = vpop.f32.mrb[0].mxu0
      %v11301 = vpop.f32.mrb[0].mxu0
      %v11302 = vadd.f32 0.0, %v11301
      %v11303 = vpop.f32.mrb[0].mxu0
      %11304 = vmatprep.mubr.bf16.mxu0 0
      %11305 = vmatmul.mubr.bf16.gmra.mrb[0].mxu0 %v11226
      %v11306 = vpop.f32.mrb[0].mxu0
      %v11307 = vadd.f32 0.0, %v11306
      %v11308 = vpop.f32.mrb[0].mxu0
      %v11309 = vpop.f32.mrb[0].mxu0
      %v11310 = vadd.f32 0.0, %v11309
      %v11311 = vpop.f32.mrb[0].mxu0
      %11312 = vmatprep.mubr.bf16.mxu0 0
      %11313 = vmatmul.mubr.bf16.gmra.mrb[0].mxu0 %v11229
      %v11314 = vpop.f32.mrb[0].mxu0
      %v11315 = vadd.f32 0.0, %v11314
      %v11316 = vpop.f32.mrb[0].mxu0
      %v11317 = vpop.f32.mrb[0].mxu0
      %v11318 = vadd.f32 0.0, %v11317
      %v11319 = vpop.f32.mrb[0].mxu0
      %11320 = vmatprep.mubr.bf16.mxu0 0
      %11321 = vmatmul.mubr.bf16.gmra.mrb[0].mxu0 %v11232
      %v11322 = vpop.f32.mrb[0].mxu0
      %v11323 = vadd.f32 0.0, %v11322
      %v11324 = vpop.f32.mrb[0].mxu0
      %v11325 = vpop.f32.mrb[0].mxu0
      %v11326 = vadd.f32 0.0, %v11325
      %v11327 = vpop.f32.mrb[0].mxu0
      %11328 = vmatprep.mubr.bf16.mxu0 0
      %11329 = vmatmul.mubr.bf16.gmra.mrb[0].mxu0 %v11235
      %v11330 = vpop.f32.mrb[0].mxu0
      %v11331 = vadd.f32 0.0, %v11330
      %v11332 = vpop.f32.mrb[0].mxu0
      %v11333 = vpop.f32.mrb[0].mxu0
      %v11334 = vadd.f32 0.0, %v11333
      %v11335 = vpop.f32.mrb[0].mxu0
      %11336 = vdwg.mxu0
      %v11337 = vadd.f32 %v11139, %v11275
      %v11338 = vadd.f32 %v11140, %v11278
      %v11339 = vadd.f32 %v11141, %v11283
      %v11340 = vadd.f32 %v11142, %v11286
      %v11341 = vadd.f32 %v11143, %v11291
      %v11342 = vadd.f32 %v11144, %v11294
      %v11343 = vadd.f32 %v11145, %v11299
      %v11344 = vadd.f32 %v11146, %v11302
      %v11345 = vadd.f32 %v11147, %v11307
      %v11346 = vadd.f32 %v11148, %v11310
      %v11347 = vadd.f32 %v11149, %v11315
      %v11348 = vadd.f32 %v11150, %v11318
      %v11349 = vadd.f32 %v11151, %v11323
      %v11350 = vadd.f32 %v11152, %v11326
      %v11351 = vadd.f32 %v11153, %v11331
      %v11352 = vadd.f32 %v11154, %v11334
      %v11353 = vld [vmem:[%s11155] sm:$0xf]
      %v11354 = vld [vmem:[%s11155 + $0x4] sm:$0xf]
      %v11355 = vld [vmem:[%s11155 + $0x8] sm:$0x1]
      %v11356 = vld [vmem:[%s11155 + $0xc] sm:$0xf]
      %v11357 = vld [vmem:[%s11155 + $0x10] sm:$0xf]
      %v11358 = vld [vmem:[%s11155 + $0x14] sm:$0x1]
      %v11359 = vld [vmem:[%s11155 + $0x18] sm:$0xf]
      %v11360 = vld [vmem:[%s11155 + $0x1c] sm:$0xf]
      %v11361 = vld [vmem:[%s11155 + $0x20] sm:$0x1]
      %v11362 = vld [vmem:[%s11155 + $0x24] sm:$0xf]
      %v11363 = vld [vmem:[%s11155 + $0x28] sm:$0xf]
      %v11364 = vld [vmem:[%s11155 + $0x2c] sm:$0x1]
      %v11365 = vld [vmem:[%s11155 + $0x30] sm:$0xf]
      %v11366 = vld [vmem:[%s11155 + $0x34] sm:$0xf]
      %v11367 = vld [vmem:[%s11155 + $0x38] sm:$0x1]
      %v11368 = vld [vmem:[%s11155 + $0x3c] sm:$0xf]
      %v11369 = vld [vmem:[%s11155 + $0x40] sm:$0xf]
      %v11370 = vld [vmem:[%s11155 + $0x44] sm:$0x1]
      %v11371 = vld [vmem:[%s11155 + $0x48] sm:$0xf]
      %v11372 = vld [vmem:[%s11155 + $0x4c] sm:$0xf]
      %v11373 = vld [vmem:[%s11155 + $0x50] sm:$0x1]
      %v11374 = vld [vmem:[%s11155 + $0x54] sm:$0xf]
      %v11375 = vld [vmem:[%s11155 + $0x58] sm:$0xf]
      %v11376 = vld [vmem:[%s11155 + $0x5c] sm:$0x1]
      %v11378 = vshrl.u32 %v11353, 16
      %v11380 = vrot.slane %v11378, 4
      %v11381 = vshll.u32 %v11353, 16
      %v11383 = vrot.slane %v11381, 5
      %v11384 = vor.u32 %v11380, %v11383
      %v11385 = vrot.slane %v11384, 4
      %v11387 = vshll.u32 %v11354, 16
      %v11389 = vrot.slane %v11387, 5
      %v11390 = vsel %vm1463, %v11385, %v11389
      %v11391 = vshrl.u32 %v11354, 16
      %v11393 = vrot.slane %v11391, 4
      %v11394 = vor.u32 %v11393, %v11389
      %v11395 = vrot.slane %v11394, 4
      %v11397 = vshll.u32 %v11355, 16
      %v11399 = vrot.slane %v11397, 5
      %v11400 = vsel %vm1463, %v11395, %v11399
      %v11402 = vshrl.u32 %v11356, 16
      %v11404 = vrot.slane %v11402, 4
      %v11405 = vshll.u32 %v11356, 16
      %v11407 = vrot.slane %v11405, 5
      %v11408 = vor.u32 %v11404, %v11407
      %v11409 = vrot.slane %v11408, 4
      %v11411 = vshll.u32 %v11357, 16
      %v11413 = vrot.slane %v11411, 5
      %v11414 = vsel %vm1463, %v11409, %v11413
      %v11415 = vshrl.u32 %v11357, 16
      %v11417 = vrot.slane %v11415, 4
      %v11418 = vor.u32 %v11417, %v11413
      %v11419 = vrot.slane %v11418, 4
      %v11421 = vshll.u32 %v11358, 16
      %v11423 = vrot.slane %v11421, 5
      %v11424 = vsel %vm1463, %v11419, %v11423
      %v11426 = vshrl.u32 %v11359, 16
      %v11428 = vrot.slane %v11426, 4
      %v11429 = vshll.u32 %v11359, 16
      %v11431 = vrot.slane %v11429, 5
      %v11432 = vor.u32 %v11428, %v11431
      %v11433 = vrot.slane %v11432, 4
      %v11435 = vshll.u32 %v11360, 16
      %v11437 = vrot.slane %v11435, 5
      %v11438 = vsel %vm1463, %v11433, %v11437
      %v11439 = vshrl.u32 %v11360, 16
      %v11441 = vrot.slane %v11439, 4
      %v11442 = vor.u32 %v11441, %v11437
      %v11443 = vrot.slane %v11442, 4
      %v11445 = vshll.u32 %v11361, 16
      %v11447 = vrot.slane %v11445, 5
      %v11448 = vsel %vm1463, %v11443, %v11447
      %v11450 = vshrl.u32 %v11362, 16
      %v11452 = vrot.slane %v11450, 4
      %v11453 = vshll.u32 %v11362, 16
      %v11455 = vrot.slane %v11453, 5
      %v11456 = vor.u32 %v11452, %v11455
      %v11457 = vrot.slane %v11456, 4
      %v11459 = vshll.u32 %v11363, 16
      %v11461 = vrot.slane %v11459, 5
      %v11462 = vsel %vm1463, %v11457, %v11461
      %v11463 = vshrl.u32 %v11363, 16
      %v11465 = vrot.slane %v11463, 4
      %v11466 = vor.u32 %v11465, %v11461
      %v11467 = vrot.slane %v11466, 4
      %v11469 = vshll.u32 %v11364, 16
      %v11471 = vrot.slane %v11469, 5
      %v11472 = vsel %vm1463, %v11467, %v11471
      %v11474 = vshrl.u32 %v11365, 16
      %v11476 = vrot.slane %v11474, 4
      %v11477 = vshll.u32 %v11365, 16
      %v11479 = vrot.slane %v11477, 5
      %v11480 = vor.u32 %v11476, %v11479
      %v11481 = vrot.slane %v11480, 4
      %v11483 = vshll.u32 %v11366, 16
      %v11485 = vrot.slane %v11483, 5
      %v11486 = vsel %vm1463, %v11481, %v11485
      %v11487 = vshrl.u32 %v11366, 16
      %v11489 = vrot.slane %v11487, 4
      %v11490 = vor.u32 %v11489, %v11485
      %v11491 = vrot.slane %v11490, 4
      %v11493 = vshll.u32 %v11367, 16
      %v11495 = vrot.slane %v11493, 5
      %v11496 = vsel %vm1463, %v11491, %v11495
      %v11498 = vshrl.u32 %v11368, 16
      %v11500 = vrot.slane %v11498, 4
      %v11501 = vshll.u32 %v11368, 16
      %v11503 = vrot.slane %v11501, 5
      %v11504 = vor.u32 %v11500, %v11503
      %v11505 = vrot.slane %v11504, 4
      %v11507 = vshll.u32 %v11369, 16
      %v11509 = vrot.slane %v11507, 5
      %v11510 = vsel %vm1463, %v11505, %v11509
      %v11511 = vshrl.u32 %v11369, 16
      %v11513 = vrot.slane %v11511, 4
      %v11514 = vor.u32 %v11513, %v11509
      %v11515 = vrot.slane %v11514, 4
      %v11517 = vshll.u32 %v11370, 16
      %v11519 = vrot.slane %v11517, 5
      %v11520 = vsel %vm1463, %v11515, %v11519
      %v11522 = vshrl.u32 %v11371, 16
      %v11524 = vrot.slane %v11522, 4
      %v11525 = vshll.u32 %v11371, 16
      %v11527 = vrot.slane %v11525, 5
      %v11528 = vor.u32 %v11524, %v11527
      %v11529 = vrot.slane %v11528, 4
      %v11531 = vshll.u32 %v11372, 16
      %v11533 = vrot.slane %v11531, 5
      %v11534 = vsel %vm1463, %v11529, %v11533
      %v11535 = vshrl.u32 %v11372, 16
      %v11537 = vrot.slane %v11535, 4
      %v11538 = vor.u32 %v11537, %v11533
      %v11539 = vrot.slane %v11538, 4
      %v11541 = vshll.u32 %v11373, 16
      %v11543 = vrot.slane %v11541, 5
      %v11544 = vsel %vm1463, %v11539, %v11543
      %v11546 = vshrl.u32 %v11374, 16
      %v11548 = vrot.slane %v11546, 4
      %v11549 = vshll.u32 %v11374, 16
      %v11551 = vrot.slane %v11549, 5
      %v11552 = vor.u32 %v11548, %v11551
      %v11553 = vrot.slane %v11552, 4
      %v11555 = vshll.u32 %v11375, 16
      %v11557 = vrot.slane %v11555, 5
      %v11558 = vsel %vm1463, %v11553, %v11557
      %v11559 = vshrl.u32 %v11375, 16
      %v11561 = vrot.slane %v11559, 4
      %v11562 = vor.u32 %v11561, %v11557
      %v11563 = vrot.slane %v11562, 4
      %v11565 = vshll.u32 %v11376, 16
      %v11567 = vrot.slane %v11565, 5
      %v11568 = vsel %vm1463, %v11563, %v11567
      %v11569 = vld [vmem:[%s8991] sm:$0xf]
      %v11570 = vunpack.c.l.b16 %v11390
      %v11571 = vunpack.c.l.b16 %v11400
      %v11572 = vunpack.c.l.b16 %v11414
      %v11573 = vunpack.c.l.b16 %v11424
      %v11574 = vunpack.c.l.b16 %v11438
      %v11575 = vunpack.c.l.b16 %v11448
      %v11576 = vunpack.c.l.b16 %v11462
      %v11577 = vunpack.c.l.b16 %v11472
      %v11578 = vunpack.c.l.b16 %v11486
      %v11579 = vunpack.c.l.b16 %v11496
      %v11580 = vunpack.c.l.b16 %v11510
      %v11581 = vunpack.c.l.b16 %v11520
      %v11582 = vunpack.c.l.b16 %v11534
      %v11583 = vunpack.c.l.b16 %v11544
      %v11584 = vunpack.c.l.b16 %v11558
      %v11585 = vunpack.c.l.b16 %v11568
      %v11586 = vpack.c.b16 %v11571, %v11570
      %v11587 = vpack.c.b16 %v11573, %v11572
      %v11588 = vpack.c.b16 %v11575, %v11574
      %v11589 = vpack.c.b16 %v11577, %v11576
      %v11590 = vpack.c.b16 %v11579, %v11578
      %v11591 = vpack.c.b16 %v11581, %v11580
      %v11592 = vpack.c.b16 %v11583, %v11582
      %v11593 = vpack.c.b16 %v11585, %v11584
      %v11595 = vsel %vm6964, %v11586, 0
      %v11598 = vsel %vm6964, %v11587, 0
      %v11601 = vsel %vm6964, %v11588, 0
      %v11604 = vsel %vm6964, %v11589, 0
      %v11607 = vsel %vm6964, %v11590, 0
      %v11610 = vsel %vm6964, %v11591, 0
      %v11613 = vsel %vm6964, %v11592, 0
      %v11616 = vsel %vm6964, %v11593, 0
      %v11619 = vsel %vm6989, %v11569, 0
      %11621 = vmatprep.subr.bf16.mxu0 0
      %11622 = vmatpush1.bf16.msra.mxu0 %v11619
      %11623 = vmatprep.subr.bf16.mxu0 0
      %11624 = vmatpush1.bf16.msra.mxu0 0
      %11625 = vmatprep.subr.bf16.mxu0 0
      %11626 = vmatpush1.bf16.msra.mxu0 0
      %11627 = vmatprep.subr.bf16.mxu0 0
      %11628 = vmatpush1.bf16.msra.mxu0 0
      %11629 = vmatprep.subr.bf16.mxu0 0
      %11630 = vmatpush1.bf16.msra.mxu0 0
      %11631 = vmatprep.subr.bf16.mxu0 0
      %11632 = vmatpush1.bf16.msra.mxu0 0
      %11633 = vmatprep.subr.bf16.mxu0 0
      %11634 = vmatpush1.bf16.msra.mxu0 0
      %11635 = vmatprep.subr.bf16.mxu0 0
      %11636 = vmatpush1.bf16.msra.mxu0 0
      %11637 = vmatprep.subr.bf16.mxu0 0
      %11638 = vmatpush1.bf16.msra.mxu0 0
      %11639 = vmatprep.subr.bf16.mxu0 0
      %11640 = vmatpush1.bf16.msra.mxu0 0
      %11641 = vmatprep.subr.bf16.mxu0 0
      %11642 = vmatpush1.bf16.msra.mxu0 0
      %11643 = vmatprep.subr.bf16.mxu0 0
      %11644 = vmatpush1.bf16.msra.mxu0 0
      %11645 = vmatprep.subr.bf16.mxu0 0
      %11646 = vmatpush1.bf16.msra.mxu0 0
      %11647 = vmatprep.subr.bf16.mxu0 0
      %11648 = vmatpush1.bf16.msra.mxu0 0
      %11649 = vmatprep.subr.bf16.mxu0 0
      %11650 = vmatpush1.bf16.msra.mxu0 0
      %11651 = vmatprep.subr.bf16.mxu0 0
      %11652 = vmatpush1.bf16.msra.mxu0 0
      %11653 = vmatprep.mubr.bf16.mxu0 0
      %11654 = vmatmul.mubr.bf16.gmra.mrb[0].mxu0 %v11595
      %v11655 = vpop.f32.mrb[0].mxu0
      %v11656 = vadd.f32 0.0, %v11655
      %v11657 = vpop.f32.mrb[0].mxu0
      %v11658 = vpop.f32.mrb[0].mxu0
      %v11659 = vadd.f32 0.0, %v11658
      %v11660 = vpop.f32.mrb[0].mxu0
      %11661 = vmatprep.mubr.bf16.mxu0 0
      %11662 = vmatmul.mubr.bf16.gmra.mrb[0].mxu0 %v11598
      %v11663 = vpop.f32.mrb[0].mxu0
      %v11664 = vadd.f32 0.0, %v11663
      %v11665 = vpop.f32.mrb[0].mxu0
      %v11666 = vpop.f32.mrb[0].mxu0
      %v11667 = vadd.f32 0.0, %v11666
      %v11668 = vpop.f32.mrb[0].mxu0
      %11669 = vmatprep.mubr.bf16.mxu0 0
      %11670 = vmatmul.mubr.bf16.gmra.mrb[0].mxu0 %v11601
      %v11671 = vpop.f32.mrb[0].mxu0
      %v11672 = vadd.f32 0.0, %v11671
      %v11673 = vpop.f32.mrb[0].mxu0
      %v11674 = vpop.f32.mrb[0].mxu0
      %v11675 = vadd.f32 0.0, %v11674
      %v11676 = vpop.f32.mrb[0].mxu0
      %11677 = vmatprep.mubr.bf16.mxu0 0
      %11678 = vmatmul.mubr.bf16.gmra.mrb[0].mxu0 %v11604
      %v11679 = vpop.f32.mrb[0].mxu0
      %v11680 = vadd.f32 0.0, %v11679
      %v11681 = vpop.f32.mrb[0].mxu0
      %v11682 = vpop.f32.mrb[0].mxu0
      %v11683 = vadd.f32 0.0, %v11682
      %v11684 = vpop.f32.mrb[0].mxu0
      %11685 = vmatprep.mubr.bf16.mxu0 0
      %11686 = vmatmul.mubr.bf16.gmra.mrb[0].mxu0 %v11607
      %v11687 = vpop.f32.mrb[0].mxu0
      %v11688 = vadd.f32 0.0, %v11687
      %v11689 = vpop.f32.mrb[0].mxu0
      %v11690 = vpop.f32.mrb[0].mxu0
      %v11691 = vadd.f32 0.0, %v11690
      %v11692 = vpop.f32.mrb[0].mxu0
      %11693 = vmatprep.mubr.bf16.mxu0 0
      %11694 = vmatmul.mubr.bf16.gmra.mrb[0].mxu0 %v11610
      %v11695 = vpop.f32.mrb[0].mxu0
      %v11696 = vadd.f32 0.0, %v11695
      %v11697 = vpop.f32.mrb[0].mxu0
      %v11698 = vpop.f32.mrb[0].mxu0
      %v11699 = vadd.f32 0.0, %v11698
      %v11700 = vpop.f32.mrb[0].mxu0
      %11701 = vmatprep.mubr.bf16.mxu0 0
      %11702 = vmatmul.mubr.bf16.gmra.mrb[0].mxu0 %v11613
      %v11703 = vpop.f32.mrb[0].mxu0
      %v11704 = vadd.f32 0.0, %v11703
      %v11705 = vpop.f32.mrb[0].mxu0
      %v11706 = vpop.f32.mrb[0].mxu0
      %v11707 = vadd.f32 0.0, %v11706
      %v11708 = vpop.f32.mrb[0].mxu0
      %11709 = vmatprep.mubr.bf16.mxu0 0
      %11710 = vmatmul.mubr.bf16.gmra.mrb[0].mxu0 %v11616
      %v11711 = vpop.f32.mrb[0].mxu0
      %v11712 = vadd.f32 0.0, %v11711
      %v11713 = vpop.f32.mrb[0].mxu0
      %v11714 = vpop.f32.mrb[0].mxu0
      %v11715 = vadd.f32 0.0, %v11714
      %v11716 = vpop.f32.mrb[0].mxu0
      %11717 = vdwg.mxu0
      %v11718 = vadd.f32 %v11337, %v11656
      %v11719 = vadd.f32 %v11338, %v11659
      %v11720 = vadd.f32 %v11339, %v11664
      %v11721 = vadd.f32 %v11340, %v11667
      %v11722 = vadd.f32 %v11341, %v11672
      %v11723 = vadd.f32 %v11342, %v11675
      %v11724 = vadd.f32 %v11343, %v11680
      %v11725 = vadd.f32 %v11344, %v11683
      %v11726 = vadd.f32 %v11345, %v11688
      %v11727 = vadd.f32 %v11346, %v11691
      %v11728 = vadd.f32 %v11347, %v11696
      %v11729 = vadd.f32 %v11348, %v11699
      %v11730 = vadd.f32 %v11349, %v11704
      %v11731 = vadd.f32 %v11350, %v11707
      %v11732 = vadd.f32 %v11351, %v11712
      %v11733 = vadd.f32 %v11352, %v11715
      %v11734 = vld [vmem:[%s11155] sm:$0xe]
      %v11735 = vld [vmem:[%s11155 + $0xc] sm:$0xe]
      %v11736 = vld [vmem:[%s11155 + $0x18] sm:$0xe]
      %v11737 = vld [vmem:[%s11155 + $0x24] sm:$0xe]
      %v11738 = vld [vmem:[%s11155 + $0x30] sm:$0xe]
      %v11739 = vld [vmem:[%s11155 + $0x3c] sm:$0xe]
      %v11740 = vld [vmem:[%s11155 + $0x48] sm:$0xe]
      %v11741 = vld [vmem:[%s11155 + $0x54] sm:$0xe]
      %v11766 = vrot.slane %v11734, 5
      %v11767 = vrot.slane %v11766, 4
      %v11768 = vrot.slane %v11354, 5
      %v11769 = vsel %vm1856, %v11767, %v11768
      %v11770 = vrot.slane %v11768, 4
      %v11771 = vrot.slane %v11355, 5
      %v11772 = vsel %vm1856, %v11770, %v11771
      %v11773 = vrot.slane %v11735, 5
      %v11774 = vrot.slane %v11773, 4
      %v11775 = vrot.slane %v11357, 5
      %v11776 = vsel %vm1856, %v11774, %v11775
      %v11777 = vrot.slane %v11775, 4
      %v11778 = vrot.slane %v11358, 5
      %v11779 = vsel %vm1856, %v11777, %v11778
      %v11780 = vrot.slane %v11736, 5
      %v11781 = vrot.slane %v11780, 4
      %v11782 = vrot.slane %v11360, 5
      %v11783 = vsel %vm1856, %v11781, %v11782
      %v11784 = vrot.slane %v11782, 4
      %v11785 = vrot.slane %v11361, 5
      %v11786 = vsel %vm1856, %v11784, %v11785
      %v11787 = vrot.slane %v11737, 5
      %v11788 = vrot.slane %v11787, 4
      %v11789 = vrot.slane %v11363, 5
      %v11790 = vsel %vm1856, %v11788, %v11789
      %v11791 = vrot.slane %v11789, 4
      %v11792 = vrot.slane %v11364, 5
      %v11793 = vsel %vm1856, %v11791, %v11792
      %v11794 = vrot.slane %v11738, 5
      %v11795 = vrot.slane %v11794, 4
      %v11796 = vrot.slane %v11366, 5
      %v11797 = vsel %vm1856, %v11795, %v11796
      %v11798 = vrot.slane %v11796, 4
      %v11799 = vrot.slane %v11367, 5
      %v11800 = vsel %vm1856, %v11798, %v11799
      %v11801 = vrot.slane %v11739, 5
      %v11802 = vrot.slane %v11801, 4
      %v11803 = vrot.slane %v11369, 5
      %v11804 = vsel %vm1856, %v11802, %v11803
      %v11805 = vrot.slane %v11803, 4
      %v11806 = vrot.slane %v11370, 5
      %v11807 = vsel %vm1856, %v11805, %v11806
      %v11808 = vrot.slane %v11740, 5
      %v11809 = vrot.slane %v11808, 4
      %v11810 = vrot.slane %v11372, 5
      %v11811 = vsel %vm1856, %v11809, %v11810
      %v11812 = vrot.slane %v11810, 4
      %v11813 = vrot.slane %v11373, 5
      %v11814 = vsel %vm1856, %v11812, %v11813
      %v11815 = vrot.slane %v11741, 5
      %v11816 = vrot.slane %v11815, 4
      %v11817 = vrot.slane %v11375, 5
      %v11818 = vsel %vm1856, %v11816, %v11817
      %v11819 = vrot.slane %v11817, 4
      %v11820 = vrot.slane %v11376, 5
      %v11821 = vsel %vm1856, %v11819, %v11820
      %v11822 = vld [vmem:[%s9245] sm:$0xf]
      %v11823 = vunpack.c.l.b16 %v11769
      %v11824 = vunpack.c.l.b16 %v11772
      %v11825 = vunpack.c.l.b16 %v11776
      %v11826 = vunpack.c.l.b16 %v11779
      %v11827 = vunpack.c.l.b16 %v11783
      %v11828 = vunpack.c.l.b16 %v11786
      %v11829 = vunpack.c.l.b16 %v11790
      %v11830 = vunpack.c.l.b16 %v11793
      %v11831 = vunpack.c.l.b16 %v11797
      %v11832 = vunpack.c.l.b16 %v11800
      %v11833 = vunpack.c.l.b16 %v11804
      %v11834 = vunpack.c.l.b16 %v11807
      %v11835 = vunpack.c.l.b16 %v11811
      %v11836 = vunpack.c.l.b16 %v11814
      %v11837 = vunpack.c.l.b16 %v11818
      %v11838 = vunpack.c.l.b16 %v11821
      %v11839 = vpack.c.b16 %v11824, %v11823
      %v11840 = vpack.c.b16 %v11826, %v11825
      %v11841 = vpack.c.b16 %v11828, %v11827
      %v11842 = vpack.c.b16 %v11830, %v11829
      %v11843 = vpack.c.b16 %v11832, %v11831
      %v11844 = vpack.c.b16 %v11834, %v11833
      %v11845 = vpack.c.b16 %v11836, %v11835
      %v11846 = vpack.c.b16 %v11838, %v11837
      %v11848 = vsel %vm6964, %v11839, 0
      %v11851 = vsel %vm6964, %v11840, 0
      %v11854 = vsel %vm6964, %v11841, 0
      %v11857 = vsel %vm6964, %v11842, 0
      %v11860 = vsel %vm6964, %v11843, 0
      %v11863 = vsel %vm6964, %v11844, 0
      %v11866 = vsel %vm6964, %v11845, 0
      %v11869 = vsel %vm6964, %v11846, 0
      %v11872 = vsel %vm6989, %v11822, 0
      %11874 = vmatprep.subr.bf16.mxu0 0
      %11875 = vmatpush1.bf16.msra.mxu0 %v11872
      %11876 = vmatprep.subr.bf16.mxu0 0
      %11877 = vmatpush1.bf16.msra.mxu0 0
      %11878 = vmatprep.subr.bf16.mxu0 0
      %11879 = vmatpush1.bf16.msra.mxu0 0
      %11880 = vmatprep.subr.bf16.mxu0 0
      %11881 = vmatpush1.bf16.msra.mxu0 0
      %11882 = vmatprep.subr.bf16.mxu0 0
      %11883 = vmatpush1.bf16.msra.mxu0 0
      %11884 = vmatprep.subr.bf16.mxu0 0
      %11885 = vmatpush1.bf16.msra.mxu0 0
      %11886 = vmatprep.subr.bf16.mxu0 0
      %11887 = vmatpush1.bf16.msra.mxu0 0
      %11888 = vmatprep.subr.bf16.mxu0 0
      %11889 = vmatpush1.bf16.msra.mxu0 0
      %11890 = vmatprep.subr.bf16.mxu0 0
      %11891 = vmatpush1.bf16.msra.mxu0 0
      %11892 = vmatprep.subr.bf16.mxu0 0
      %11893 = vmatpush1.bf16.msra.mxu0 0
      %11894 = vmatprep.subr.bf16.mxu0 0
      %11895 = vmatpush1.bf16.msra.mxu0 0
      %11896 = vmatprep.subr.bf16.mxu0 0
      %11897 = vmatpush1.bf16.msra.mxu0 0
      %11898 = vmatprep.subr.bf16.mxu0 0
      %11899 = vmatpush1.bf16.msra.mxu0 0
      %11900 = vmatprep.subr.bf16.mxu0 0
      %11901 = vmatpush1.bf16.msra.mxu0 0
      %11902 = vmatprep.subr.bf16.mxu0 0
      %11903 = vmatpush1.bf16.msra.mxu0 0
      %11904 = vmatprep.subr.bf16.mxu0 0
      %11905 = vmatpush1.bf16.msra.mxu0 0
      %11906 = vmatprep.mubr.bf16.mxu0 0
      %11907 = vmatmul.mubr.bf16.gmra.mrb[0].mxu0 %v11848
      %v11908 = vpop.f32.mrb[0].mxu0
      %v11909 = vadd.f32 0.0, %v11908
      %v11910 = vpop.f32.mrb[0].mxu0
      %v11911 = vpop.f32.mrb[0].mxu0
      %v11912 = vadd.f32 0.0, %v11911
      %v11913 = vpop.f32.mrb[0].mxu0
      %11914 = vmatprep.mubr.bf16.mxu0 0
      %11915 = vmatmul.mubr.bf16.gmra.mrb[0].mxu0 %v11851
      %v11916 = vpop.f32.mrb[0].mxu0
      %v11917 = vadd.f32 0.0, %v11916
      %v11918 = vpop.f32.mrb[0].mxu0
      %v11919 = vpop.f32.mrb[0].mxu0
      %v11920 = vadd.f32 0.0, %v11919
      %v11921 = vpop.f32.mrb[0].mxu0
      %11922 = vmatprep.mubr.bf16.mxu0 0
      %11923 = vmatmul.mubr.bf16.gmra.mrb[0].mxu0 %v11854
      %v11924 = vpop.f32.mrb[0].mxu0
      %v11925 = vadd.f32 0.0, %v11924
      %v11926 = vpop.f32.mrb[0].mxu0
      %v11927 = vpop.f32.mrb[0].mxu0
      %v11928 = vadd.f32 0.0, %v11927
      %v11929 = vpop.f32.mrb[0].mxu0
      %11930 = vmatprep.mubr.bf16.mxu0 0
      %11931 = vmatmul.mubr.bf16.gmra.mrb[0].mxu0 %v11857
      %v11932 = vpop.f32.mrb[0].mxu0
      %v11933 = vadd.f32 0.0, %v11932
      %v11934 = vpop.f32.mrb[0].mxu0
      %v11935 = vpop.f32.mrb[0].mxu0
      %v11936 = vadd.f32 0.0, %v11935
      %v11937 = vpop.f32.mrb[0].mxu0
      %11938 = vmatprep.mubr.bf16.mxu0 0
      %11939 = vmatmul.mubr.bf16.gmra.mrb[0].mxu0 %v11860
      %v11940 = vpop.f32.mrb[0].mxu0
      %v11941 = vadd.f32 0.0, %v11940
      %v11942 = vpop.f32.mrb[0].mxu0
      %v11943 = vpop.f32.mrb[0].mxu0
      %v11944 = vadd.f32 0.0, %v11943
      %v11945 = vpop.f32.mrb[0].mxu0
      %11946 = vmatprep.mubr.bf16.mxu0 0
      %11947 = vmatmul.mubr.bf16.gmra.mrb[0].mxu0 %v11863
      %v11948 = vpop.f32.mrb[0].mxu0
      %v11949 = vadd.f32 0.0, %v11948
      %v11950 = vpop.f32.mrb[0].mxu0
      %v11951 = vpop.f32.mrb[0].mxu0
      %v11952 = vadd.f32 0.0, %v11951
      %v11953 = vpop.f32.mrb[0].mxu0
      %11954 = vmatprep.mubr.bf16.mxu0 0
      %11955 = vmatmul.mubr.bf16.gmra.mrb[0].mxu0 %v11866
      %v11956 = vpop.f32.mrb[0].mxu0
      %v11957 = vadd.f32 0.0, %v11956
      %v11958 = vpop.f32.mrb[0].mxu0
      %v11959 = vpop.f32.mrb[0].mxu0
      %v11960 = vadd.f32 0.0, %v11959
      %v11961 = vpop.f32.mrb[0].mxu0
      %11962 = vmatprep.mubr.bf16.mxu0 0
      %11963 = vmatmul.mubr.bf16.gmra.mrb[0].mxu0 %v11869
      %v11964 = vpop.f32.mrb[0].mxu0
      %v11965 = vadd.f32 0.0, %v11964
      %v11966 = vpop.f32.mrb[0].mxu0
      %v11967 = vpop.f32.mrb[0].mxu0
      %v11968 = vadd.f32 0.0, %v11967
      %v11969 = vpop.f32.mrb[0].mxu0
      %11970 = vdwg.mxu0
      %v11971 = vadd.f32 %v11718, %v11909
      %v11972 = vadd.f32 %v11719, %v11912
      %v11973 = vadd.f32 %v11720, %v11917
      %v11974 = vadd.f32 %v11721, %v11920
      %v11975 = vadd.f32 %v11722, %v11925
      %v11976 = vadd.f32 %v11723, %v11928
      %v11977 = vadd.f32 %v11724, %v11933
      %v11978 = vadd.f32 %v11725, %v11936
      %v11979 = vadd.f32 %v11726, %v11941
      %v11980 = vadd.f32 %v11727, %v11944
      %v11981 = vadd.f32 %v11728, %v11949
      %v11982 = vadd.f32 %v11729, %v11952
      %v11983 = vadd.f32 %v11730, %v11957
      %v11984 = vadd.f32 %v11731, %v11960
      %v11985 = vadd.f32 %v11732, %v11965
      %v11986 = vadd.f32 %v11733, %v11968
      %vm11987 = vcmp.gt.f32.partialorder %v11971, 0.0
      %vm11988 = vcmp.gt.f32.partialorder %v11972, 0.0
      %vm11989 = vcmp.gt.f32.partialorder %v11973, 0.0
      %vm11990 = vcmp.gt.f32.partialorder %v11974, 0.0
      %vm11991 = vcmp.gt.f32.partialorder %v11975, 0.0
      %vm11992 = vcmp.gt.f32.partialorder %v11976, 0.0
      %vm11993 = vcmp.gt.f32.partialorder %v11977, 0.0
      %vm11994 = vcmp.gt.f32.partialorder %v11978, 0.0
      %vm11995 = vcmp.gt.f32.partialorder %v11979, 0.0
      %vm11996 = vcmp.gt.f32.partialorder %v11980, 0.0
      %vm11997 = vcmp.gt.f32.partialorder %v11981, 0.0
      %vm11998 = vcmp.gt.f32.partialorder %v11982, 0.0
      %vm11999 = vcmp.gt.f32.partialorder %v11983, 0.0
      %vm12000 = vcmp.gt.f32.partialorder %v11984, 0.0
      %vm12001 = vcmp.gt.f32.partialorder %v11985, 0.0
      %vm12002 = vcmp.gt.f32.partialorder %v11986, 0.0
      %v12003 = vmul.f32 %v11971, 0.2
      %v12004 = vmul.f32 %v11972, 0.2
      %v12005 = vmul.f32 %v11973, 0.2
      %v12006 = vmul.f32 %v11974, 0.2
      %v12007 = vmul.f32 %v11975, 0.2
      %v12008 = vmul.f32 %v11976, 0.2
      %v12009 = vmul.f32 %v11977, 0.2
      %v12010 = vmul.f32 %v11978, 0.2
      %v12011 = vmul.f32 %v11979, 0.2
      %v12012 = vmul.f32 %v11980, 0.2
      %v12013 = vmul.f32 %v11981, 0.2
      %v12014 = vmul.f32 %v11982, 0.2
      %v12015 = vmul.f32 %v11983, 0.2
      %v12016 = vmul.f32 %v11984, 0.2
      %v12017 = vmul.f32 %v11985, 0.2
      %v12018 = vmul.f32 %v11986, 0.2
      %v12019 = vsel %vm11987, %v11971, %v12003
      %v12020 = vsel %vm11988, %v11972, %v12004
      %v12021 = vsel %vm11989, %v11973, %v12005
      %v12022 = vsel %vm11990, %v11974, %v12006
      %v12023 = vsel %vm11991, %v11975, %v12007
      %v12024 = vsel %vm11992, %v11976, %v12008
      %v12025 = vsel %vm11993, %v11977, %v12009
      %v12026 = vsel %vm11994, %v11978, %v12010
      %v12027 = vsel %vm11995, %v11979, %v12011
      %v12028 = vsel %vm11996, %v11980, %v12012
      %v12029 = vsel %vm11997, %v11981, %v12013
      %v12030 = vsel %vm11998, %v11982, %v12014
      %v12031 = vsel %vm11999, %v11983, %v12015
      %v12032 = vsel %vm12000, %v11984, %v12016
      %v12033 = vsel %vm12001, %v11985, %v12017
      %v12034 = vsel %vm12002, %v11986, %v12018
      %s12035 = scalar_lea.vmem [#allocation4], 128
      %12036 = vst [vmem:[%s12035] sm:$0xff] %v12019
      %12037 = vst [vmem:[%s12035 + $0x8] sm:$0xff] %v12020
      %12038 = vst [vmem:[%s12035 + $0x10] sm:$0xff] %v12021
      %12039 = vst [vmem:[%s12035 + $0x18] sm:$0xff] %v12022
      %12040 = vst [vmem:[%s12035 + $0x20] sm:$0xff] %v12023
      %12041 = vst [vmem:[%s12035 + $0x28] sm:$0xff] %v12024
      %12042 = vst [vmem:[%s12035 + $0x30] sm:$0xff] %v12025
      %12043 = vst [vmem:[%s12035 + $0x38] sm:$0xff] %v12026
      %12044 = vst [vmem:[%s12035 + $0x40] sm:$0xff] %v12027
      %12045 = vst [vmem:[%s12035 + $0x48] sm:$0xff] %v12028
      %12046 = vst [vmem:[%s12035 + $0x50] sm:$0xff] %v12029
      %12047 = vst [vmem:[%s12035 + $0x58] sm:$0xff] %v12030
      %12048 = vst [vmem:[%s12035 + $0x60] sm:$0xff] %v12031
      %12049 = vst [vmem:[%s12035 + $0x68] sm:$0xff] %v12032
      %12050 = vst [vmem:[%s12035 + $0x70] sm:$0xff] %v12033
      %12051 = vst [vmem:[%s12035 + $0x78] sm:$0xff] %v12034
      %v12052 = vld [vmem:[#allocation4] ss:$2 sm:$0xff]
      %s12053 = scalar_lea.vmem [#allocation4], 32
      %v12054 = vld [vmem:[%s12053] ss:$2 sm:$0xff]
      %s12055 = scalar_lea.vmem [#allocation4], 64
      %v12056 = vld [vmem:[%s12055] ss:$2 sm:$0xff]
      %s12057 = scalar_lea.vmem [#allocation4], 96
      %v12058 = vld [vmem:[%s12057] ss:$2 sm:$0xff]
      %s12059 = scalar_lea.vmem [#allocation4], 128
      %v12060 = vld [vmem:[%s12059] ss:$2 sm:$0xff]
      %s12061 = scalar_lea.vmem [#allocation4], 160
      %v12062 = vld [vmem:[%s12061] ss:$2 sm:$0xff]
      %s12063 = scalar_lea.vmem [#allocation4], 192
      %v12064 = vld [vmem:[%s12063] ss:$2 sm:$0xff]
      %s12065 = scalar_lea.vmem [#allocation4], 224
      %v12066 = vld [vmem:[%s12065] ss:$2 sm:$0xff]
      %s12067 = scalar_lea.vmem [#allocation4], 1
      %v12068 = vld [vmem:[%s12067] ss:$2 sm:$0xff]
      %s12069 = scalar_lea.vmem [#allocation4], 33
      %v12070 = vld [vmem:[%s12069] ss:$2 sm:$0xff]
      %s12071 = scalar_lea.vmem [#allocation4], 65
      %v12072 = vld [vmem:[%s12071] ss:$2 sm:$0xff]
      %s12073 = scalar_lea.vmem [#allocation4], 97
      %v12074 = vld [vmem:[%s12073] ss:$2 sm:$0xff]
      %s12075 = scalar_lea.vmem [#allocation4], 129
      %v12076 = vld [vmem:[%s12075] ss:$2 sm:$0xff]
      %s12077 = scalar_lea.vmem [#allocation4], 161
      %v12078 = vld [vmem:[%s12077] ss:$2 sm:$0xff]
      %s12079 = scalar_lea.vmem [#allocation4], 193
      %v12080 = vld [vmem:[%s12079] ss:$2 sm:$0xff]
      %s12081 = scalar_lea.vmem [#allocation4], 225
      %v12082 = vld [vmem:[%s12081] ss:$2 sm:$0xff]
      %v12083 = vadd.f32 %v12052, %v12068
      %v12084 = vadd.f32 %v12054, %v12070
      %v12085 = vadd.f32 %v12056, %v12072
      %v12086 = vadd.f32 %v12058, %v12074
      %v12087 = vadd.f32 %v12060, %v12076
      %v12088 = vadd.f32 %v12062, %v12078
      %v12089 = vadd.f32 %v12064, %v12080
      %v12090 = vadd.f32 %v12066, %v12082
      %s12091 = scalar_lea.vmem [#allocation4], 16
      %v12092 = vld [vmem:[%s12091] ss:$2 sm:$0xff]
      %s12093 = scalar_lea.vmem [#allocation4], 48
      %v12094 = vld [vmem:[%s12093] ss:$2 sm:$0xff]
      %s12095 = scalar_lea.vmem [#allocation4], 80
      %v12096 = vld [vmem:[%s12095] ss:$2 sm:$0xff]
      %s12097 = scalar_lea.vmem [#allocation4], 112
      %v12098 = vld [vmem:[%s12097] ss:$2 sm:$0xff]
      %s12099 = scalar_lea.vmem [#allocation4], 144
      %v12100 = vld [vmem:[%s12099] ss:$2 sm:$0xff]
      %s12101 = scalar_lea.vmem [#allocation4], 176
      %v12102 = vld [vmem:[%s12101] ss:$2 sm:$0xff]
      %s12103 = scalar_lea.vmem [#allocation4], 208
      %v12104 = vld [vmem:[%s12103] ss:$2 sm:$0xff]
      %s12105 = scalar_lea.vmem [#allocation4], 240
      %v12106 = vld [vmem:[%s12105] ss:$2 sm:$0xff]
      %v12107 = vadd.f32 %v12083, %v12092
      %v12108 = vadd.f32 %v12084, %v12094
      %v12109 = vadd.f32 %v12085, %v12096
      %v12110 = vadd.f32 %v12086, %v12098
      %v12111 = vadd.f32 %v12087, %v12100
      %v12112 = vadd.f32 %v12088, %v12102
      %v12113 = vadd.f32 %v12089, %v12104
      %v12114 = vadd.f32 %v12090, %v12106
      %s12115 = scalar_lea.vmem [#allocation4], 17
      %v12116 = vld [vmem:[%s12115] ss:$2 sm:$0xff]
      %s12117 = scalar_lea.vmem [#allocation4], 49
      %v12118 = vld [vmem:[%s12117] ss:$2 sm:$0xff]
      %s12119 = scalar_lea.vmem [#allocation4], 81
      %v12120 = vld [vmem:[%s12119] ss:$2 sm:$0xff]
      %s12121 = scalar_lea.vmem [#allocation4], 113
      %v12122 = vld [vmem:[%s12121] ss:$2 sm:$0xff]
      %s12123 = scalar_lea.vmem [#allocation4], 145
      %v12124 = vld [vmem:[%s12123] ss:$2 sm:$0xff]
      %s12125 = scalar_lea.vmem [#allocation4], 177
      %v12126 = vld [vmem:[%s12125] ss:$2 sm:$0xff]
      %s12127 = scalar_lea.vmem [#allocation4], 209
      %v12128 = vld [vmem:[%s12127] ss:$2 sm:$0xff]
      %s12129 = scalar_lea.vmem [#allocation4], 241
      %v12130 = vld [vmem:[%s12129] ss:$2 sm:$0xff]
      %v12131 = vadd.f32 %v12107, %v12116
      %v12132 = vadd.f32 %v12108, %v12118
      %v12133 = vadd.f32 %v12109, %v12120
      %v12134 = vadd.f32 %v12110, %v12122
      %v12135 = vadd.f32 %v12111, %v12124
      %v12136 = vadd.f32 %v12112, %v12126
      %v12137 = vadd.f32 %v12113, %v12128
      %v12138 = vadd.f32 %v12114, %v12130
      %v12139 = vld [vmem:[#allocation5] ss:$2 sm:$0xff]
      %s12140 = scalar_lea.vmem [#allocation5], 32
      %v12141 = vld [vmem:[%s12140] ss:$2 sm:$0xff]
      %s12142 = scalar_lea.vmem [#allocation5], 64
      %v12143 = vld [vmem:[%s12142] ss:$2 sm:$0xff]
      %s12144 = scalar_lea.vmem [#allocation5], 96
      %v12145 = vld [vmem:[%s12144] ss:$2 sm:$0xff]
      %s12146 = scalar_lea.vmem [#allocation5], 128
      %v12147 = vld [vmem:[%s12146] ss:$2 sm:$0xff]
      %s12148 = scalar_lea.vmem [#allocation5], 160
      %v12149 = vld [vmem:[%s12148] ss:$2 sm:$0xff]
      %s12150 = scalar_lea.vmem [#allocation5], 192
      %v12151 = vld [vmem:[%s12150] ss:$2 sm:$0xff]
      %s12152 = scalar_lea.vmem [#allocation5], 224
      %v12153 = vld [vmem:[%s12152] ss:$2 sm:$0xff]
      %v12154 = vadd.f32 %v12131, %v12139
      %v12155 = vadd.f32 %v12132, %v12141
      %v12156 = vadd.f32 %v12133, %v12143
      %v12157 = vadd.f32 %v12134, %v12145
      %v12158 = vadd.f32 %v12135, %v12147
      %v12159 = vadd.f32 %v12136, %v12149
      %v12160 = vadd.f32 %v12137, %v12151
      %v12161 = vadd.f32 %v12138, %v12153
      %v12162 = vld [vmem:[%s6] sm:$0xff]
      %v12163 = vld [vmem:[%s6 + $0x8] sm:$0xff]
      %v12164 = vld [vmem:[%s6 + $0x10] sm:$0xff]
      %v12165 = vld [vmem:[%s6 + $0x18] sm:$0xff]
      %v12166 = vld [vmem:[%s6 + $0x20] sm:$0xff]
      %v12167 = vld [vmem:[%s6 + $0x28] sm:$0xff]
      %v12168 = vld [vmem:[%s6 + $0x30] sm:$0xff]
      %v12169 = vld [vmem:[%s6 + $0x38] sm:$0xff]
      %v12170 = vadd.f32 %v12154, %v12162
      %v12171 = vadd.f32 %v12155, %v12163
      %v12172 = vadd.f32 %v12156, %v12164
      %v12173 = vadd.f32 %v12157, %v12165
      %v12174 = vadd.f32 %v12158, %v12166
      %v12175 = vadd.f32 %v12159, %v12167
      %v12176 = vadd.f32 %v12160, %v12168
      %v12177 = vadd.f32 %v12161, %v12169
      %12178 = vst [vmem:[%s278] sm:$0xff] %v12170
      %12179 = vst [vmem:[%s278 + $0x8] sm:$0xff] %v12171
      %12180 = vst [vmem:[%s278 + $0x10] sm:$0xff] %v12172
      %12181 = vst [vmem:[%s278 + $0x18] sm:$0xff] %v12173
      %12182 = vst [vmem:[%s278 + $0x20] sm:$0xff] %v12174
      %12183 = vst [vmem:[%s278 + $0x28] sm:$0xff] %v12175
      %12184 = vst [vmem:[%s278 + $0x30] sm:$0xff] %v12176
      %12185 = vst [vmem:[%s278 + $0x38] sm:$0xff] %v12177
      %p12186 = scmp.lt.s32.totalorder %s18, 1
      %s12187 = scalar_select %p12186, %s18, 1
      %s12188 = smul.addr %s12187, 8
      %s12189 = smul.addr %s12188, 8
      %s12190 = scalar_lea.vmem %s7, %s12189
      // Predicated region
      $region49: #{discriminator_block_forward.1} parent=47 // pred_check
        %p12191 = pneg %p188
      $region50: #{discriminator_block_forward.1} parent=47 // pred_check_branch
        %12193 = sbr.rel (%p12191) target = $region52
      $region51: #{discriminator_block_forward.1} parent=47 // pred_region
        _
      $region52: #{discriminator_block_forward.1} parent=47 // pred_fallthru
        _
    $region48: #{discriminator_block_forward.1} parent=5 // pred_fallthru
      _
    %p12194 = scmp.le.s32.totalorder 2, %s13
    // Predicated region
    $region53: #{discriminator_block_forward.1} parent=5 // pred_check
      %p12195 = pneg %p12194
    $region54: #{discriminator_block_forward.1} parent=5 // pred_check_branch
      %12197 = sbr.rel (%p12195) target = $region56
    $region55: #{discriminator_block_forward.1} parent=5 // pred_region
      %s12198 = ssub.s32 %s13, 2
      // Predicated region
      $region57: #{discriminator_block_forward.1} parent=55 // pred_check
        %p12199 = pneg %p194
      $region58: #{discriminator_block_forward.1} parent=55 // pred_check_branch
        %12201 = sbr.rel (%p12199) target = $region60
      $region59: #{discriminator_block_forward.1} parent=55 // pred_region
        %p12202 = scmp.lt.s32.totalorder %s19, 1
        %s12203 = scalar_select %p12202, %s19, 1
        %s12204 = smul.addr %s12203, 8
        %s12205 = smul.addr %s12204, 8
        %s12206 = scalar_lea.vmem %s7, %s12205
      $region60: #{discriminator_block_forward.1} parent=55 // pred_fallthru
        _
    $region56: #{discriminator_block_forward.1} parent=5 // pred_fallthru
      _
  $region6: #{discriminator_block_forward.1} parent=0 // loop_footer
    %s17 = sadd.s32 1, %s13
  $region7: #{discriminator_block_forward.1} parent=0 // loop_footer_branch
    %12 = sbr.rel target = $region3
  $region8: #{discriminator_block_forward.1} parent=0 // loop_exit
    _

</llo_original>
